<compile_context>
chip_gen: v7x
topology: tpu7x:2x2x1
jax: 0.10.0
libtpu: 0.0.40
codegen_flags: <defaults>
</compile_context>

<pallas_src>
import numpy as np

import jax
import jax.numpy as jnp
from jax.experimental import pallas as pl
from jax.experimental.pallas import tpu as pltpu

_GRAY = np.array([0.2989, 0.587, 0.114], np.float32)

# Static geometry implied by the module (96x96 input, fc1 in = 3872 = 32*11*11).
_H, _W, _C = 96, 96, 3
_XW = _W * _C                        # 288  image row flattened as (w, c)
_K1, _ST1, _OH1, _CO1 = 5, 4, 23, 16
_A1W = _OH1 * _CO1                   # 368  conv1 row flattened as (ow, co)
_K2, _ST2, _OH2, _CO2 = 3, 2, 11, 32
_A2W = _OH2 * _CO2                   # 352  conv2 row flattened as (ow, co)
_FC1, _NCLS = 128, 7

_FLOPS_PER_IMAGE = 2 * (
    _K1 * (_OH1 * _H * _XW + _OH1 * _XW * _A1W)
    + _K2 * (_OH2 * _OH1 * _A1W + _OH2 * _A1W * _A2W)
    + _OH2 * _A2W * _FC1
    + _FC1 * _NCLS
)


# ----------------------------------------------------------------------------
# Fused Pallas kernel: one grid step == one image, output = (1, 7) logits.
# ----------------------------------------------------------------------------
def _net_kernel(x_ref, s1_ref, w1_ref, b1_ref, s2_ref, w2_ref, b2_ref,
                wf1_ref, bf1_ref, wf2_ref, bf2_ref, o_ref):
    f32 = jnp.float32
    bf16 = jnp.bfloat16

    # Observation for this image, cast to bf16 in-kernel.
    xb = x_ref[0].astype(bf16)                                        # (96, 288)

    # conv1 (5x5, stride 4) + bias + ReLU; rgb2gray folded into w1.
    acc1 = None
    for kh in range(_K1):
        rows = jnp.dot(s1_ref[kh], xb, preferred_element_type=f32)    # (23, 288)
        part = jnp.dot(rows.astype(bf16), w1_ref[kh],
                       preferred_element_type=f32)                    # (23, 368)
        acc1 = part if acc1 is None else acc1 + part
    a1 = jnp.maximum(acc1 + b1_ref[...], 0.0).astype(bf16)            # (23, 368)
    # dropout = identity (inference)

    # conv2 (3x3, stride 2) + bias + ReLU.
    acc2 = None
    for kh in range(_K2):
        rows = jnp.dot(s2_ref[kh], a1, preferred_element_type=f32)    # (11, 368)
        part = jnp.dot(rows.astype(bf16), w2_ref[kh],
                       preferred_element_type=f32)                    # (11, 352)
        acc2 = part if acc2 is None else acc2 + part
    a2 = jnp.maximum(acc2 + b2_ref[...], 0.0).astype(bf16)            # (11, 352)
    # dropout = identity (inference)

    # fc1 (no activation in the torch forward): consume a2 row-by-row so the
    # NHWC flatten never needs an in-kernel reshape.
    h = bf1_ref[...]                                                   # (1, 128) f32
    for r in range(_OH2):
        h = h + jnp.dot(a2[r:r + 1, :], wf1_ref[r],
                        preferred_element_type=f32)                   # (1, 128)

    # fc2 -> logits; the only HBM write of the whole network.
    out = jnp.dot(h, wf2_ref[...], preferred_element_type=f32) + bf2_ref[...]
    o_ref[0] = out.astype(o_ref.dtype)                                # (1, 7)


# ----------------------------------------------------------------------------
# Parameter init (torch layouts) and one-time matmul-ready prep.
# ----------------------------------------------------------------------------
def init_params(key):
    ks = jax.random.split(key, 8)
    scale = 0.05
    return {
        "conv1_w": scale * jax.random.normal(ks[0], (16, 1, 5, 5), jnp.float32),
        "conv1_b": scale * jax.random.normal(ks[1], (16,), jnp.float32),
        "conv2_w": scale * jax.random.normal(ks[2], (32, 16, 3, 3), jnp.float32),
        "conv2_b": scale * jax.random.normal(ks[3], (32,), jnp.float32),
        "fc1_w": scale * jax.random.normal(ks[4], (128, 3872), jnp.float32),
        "fc1_b": scale * jax.random.normal(ks[5], (128,), jnp.float32),
        "fc2_w": scale * jax.random.normal(ks[6], (7, 128), jnp.float32),
        "fc2_b": scale * jax.random.normal(ks[7], (7,), jnp.float32),
    }


def prepare_params(params):
    """One-time host prep: fold rgb2gray + kw/channel selection into per-kh
    conv matmul weights, build 0/1 row-selection matrices, permute fc1 rows to
    NHWC flatten order, cast big weights to bf16."""
    w1 = np.asarray(params["conv1_w"], np.float32)[:, 0]              # (16, 5, 5)
    b1 = np.asarray(params["conv1_b"], np.float32)                    # (16,)
    w2 = np.asarray(params["conv2_w"], np.float32)                    # (32, 16, 3, 3)
    b2 = np.asarray(params["conv2_b"], np.float32)                    # (32,)
    f1w = np.asarray(params["fc1_w"], np.float32)                     # (128, 3872)
    f1b = np.asarray(params["fc1_b"], np.float32)                     # (128,)
    f2w = np.asarray(params["fc2_w"], np.float32)                     # (7, 128)
    f2b = np.asarray(params["fc2_b"], np.float32)                     # (7,)

    # conv1 per-kh weights: W1[kh, 3*(4*ow+kw)+c, 16*ow+co] = gray[c]*w1[co,kh,kw]
    W1 = np.zeros((_K1, _XW, _A1W), np.float32)
    for kh in range(_K1):
        for kw in range(_K1):
            tap = _GRAY[:, None] * w1[:, kh, kw][None, :]             # (3, 16)
            for ow in range(_OH1):
                j0 = 3 * (_ST1 * ow + kw)
                W1[kh, j0:j0 + 3, _CO1 * ow:_CO1 * ow + _CO1] = tap

    # conv1 row selection: S1[kh, oh, 4*oh+kh] = 1
    S1 = np.zeros((_K1, _OH1, _H), np.float32)
    for kh in range(_K1):
        S1[kh, np.arange(_OH1), _ST1 * np.arange(_OH1) + kh] = 1.0

    # conv2 per-kh weights: W2[kh, 16*(2*ow+kw)+ci, 32*ow+co] = w2[co,ci,kh,kw]
    W2 = np.zeros((_K2, _A1W, _A2W), np.float32)
    for kh in range(_K2):
        for kw in range(_K2):
            tap = w2[:, :, kh, kw].T                                  # (ci=16, co=32)
            for ow in range(_OH2):
                r0 = _CO1 * (_ST2 * ow + kw)
                W2[kh, r0:r0 + _CO1, _CO2 * ow:_CO2 * ow + _CO2] = tap

    # conv2 row selection: S2[kh, oh, 2*oh+kh] = 1
    S2 = np.zeros((_K2, _OH2, _OH1), np.float32)
    for kh in range(_K2):
        S2[kh, np.arange(_OH2), _ST2 * np.arange(_OH2) + kh] = 1.0

    b1big = np.tile(b1, _OH1).reshape(1, _A1W)                        # b1[co] at 16*ow+co
    b2big = np.tile(b2, _OH2).reshape(1, _A2W)                        # b2[co] at 32*ow+co

    # fc1: torch flatten is (c, h, w); our flatten is (h, w, c) -> permute rows
    # once, then split per conv2-output-row: (11, 352, 128).
    Wf1 = (f1w.reshape(128, 32, 11, 11).transpose(2, 3, 1, 0)
           .reshape(_OH2, _A2W, _FC1))
    Wf2 = f2w.T                                                       # (128, 7)

    return {
        "s1": jnp.asarray(S1, jnp.bfloat16),
        "w1": jnp.asarray(W1, jnp.bfloat16),
        "b1": jnp.asarray(b1big, jnp.float32),
        "s2": jnp.asarray(S2, jnp.bfloat16),
        "w2": jnp.asarray(W2, jnp.bfloat16),
        "b2": jnp.asarray(b2big, jnp.float32),
        "wf1": jnp.asarray(Wf1, jnp.bfloat16),
        "bf1": jnp.asarray(f1b.reshape(1, _FC1), jnp.float32),
        "wf2": jnp.asarray(Wf2, jnp.float32),
        "bf2": jnp.asarray(f2b.reshape(1, _NCLS), jnp.float32),
    }


# ----------------------------------------------------------------------------
# ClassificationNetwork.forward
# ----------------------------------------------------------------------------
@jax.jit
def forward(prepped, observation):
    """observation: (B, 96, 96, 3) float32 -> logits (B, 7) float32."""
    B = observation.shape[0]
    # Row-major (free) reshape: each image row becomes a (w, c)-flattened lane dim.
    x = observation.reshape(B, _H, _XW)

    weight_bytes = sum(int(np.prod(v.shape)) * v.dtype.itemsize
                       for v in jax.tree_util.tree_leaves(prepped))
    cost = pl.CostEstimate(
        flops=B * _FLOPS_PER_IMAGE,
        transcendentals=0,
        bytes_accessed=B * _H * _XW * 4 + weight_bytes + B * _NCLS * 4,
    )

    out = pl.pallas_call(
        _net_kernel,
        out_shape=jax.ShapeDtypeStruct((B, 1, _NCLS), jnp.float32),
        grid=(B,),
        in_specs=[
            pl.BlockSpec((1, _H, _XW), lambda i: (i, 0, 0)),           # image i
            pl.BlockSpec((_K1, _OH1, _H), lambda i: (0, 0, 0)),        # s1
            pl.BlockSpec((_K1, _XW, _A1W), lambda i: (0, 0, 0)),       # w1
            pl.BlockSpec((1, _A1W), lambda i: (0, 0)),                 # b1
            pl.BlockSpec((_K2, _OH2, _OH1), lambda i: (0, 0, 0)),      # s2
            pl.BlockSpec((_K2, _A1W, _A2W), lambda i: (0, 0, 0)),      # w2
            pl.BlockSpec((1, _A2W), lambda i: (0, 0)),                 # b2
            pl.BlockSpec((_OH2, _A2W, _FC1), lambda i: (0, 0, 0)),     # wf1
            pl.BlockSpec((1, _FC1), lambda i: (0, 0)),                 # bf1
            pl.BlockSpec((_FC1, _NCLS), lambda i: (0, 0)),             # wf2
            pl.BlockSpec((1, _NCLS), lambda i: (0, 0)),                # bf2
        ],
        out_specs=pl.BlockSpec((1, 1, _NCLS), lambda i: (i, 0, 0)),
        compiler_params=pltpu.CompilerParams(
            dimension_semantics=("parallel",),
            vmem_limit_bytes=32 * 1024 * 1024),
        cost_estimate=cost,
    )(x, prepped["s1"], prepped["w1"], prepped["b1"],
      prepped["s2"], prepped["w2"], prepped["b2"],
      prepped["wf1"], prepped["bf1"], prepped["wf2"], prepped["bf2"])
    return out.reshape(B, _NCLS)


if __name__ == "__main__":
    key = jax.random.PRNGKey(0)
    pkey, xkey = jax.random.split(key)
    params = init_params(pkey)
    prepped = prepare_params(params)

    # batch=2 observations of 96x96x3 (the module hard-codes 96x96 via fc1=3872)
    obs = jax.random.uniform(xkey, (2, 96, 96, 3), jnp.float32)

    out = forward(prepped, obs)
    out = jax.block_until_ready(out)
    assert out.shape == (2, 7), out.shape
    assert bool(jnp.all(jnp.isfinite(out))), "non-finite logits"
    print("KERNEL_OK")
</pallas_src>

<mosaic_0001>
module attributes {stable_mosaic.version = 11 : i64} {
  func.func @_net_kernel(%arg0: i32, %arg1: memref<1x96x288xf32, #tpu.memory_space<vmem>>, %arg2: memref<5x23x96xbf16, #tpu.memory_space<vmem>>, %arg3: memref<5x288x368xbf16, #tpu.memory_space<vmem>>, %arg4: memref<1x368xf32, #tpu.memory_space<vmem>>, %arg5: memref<3x11x23xbf16, #tpu.memory_space<vmem>>, %arg6: memref<3x368x352xbf16, #tpu.memory_space<vmem>>, %arg7: memref<1x352xf32, #tpu.memory_space<vmem>>, %arg8: memref<11x352x128xbf16, #tpu.memory_space<vmem>>, %arg9: memref<1x128xf32, #tpu.memory_space<vmem>>, %arg10: memref<128x7xf32, #tpu.memory_space<vmem>>, %arg11: memref<1x7xf32, #tpu.memory_space<vmem>>, %arg12: memref<1x1x7xf32, #tpu.memory_space<vmem>>) attributes {dimension_semantics = [#tpu.dimension_semantics<parallel>], iteration_bounds = array<i64: 2>, scalar_prefetch = 0 : i64, scratch_operands = 0 : i64, tpu.core_type = #tpu.core_type<tc>, window_params = [{transform_indices = @transform_0, window_bounds = array<i64: 1, 96, 288>}, {pipeline_mode = #tpu.pipeline_mode<synchronous>, transform_indices = @transform_1, window_bounds = array<i64: 5, 23, 96>}, {pipeline_mode = #tpu.pipeline_mode<synchronous>, transform_indices = @transform_2, window_bounds = array<i64: 5, 288, 368>}, {pipeline_mode = #tpu.pipeline_mode<synchronous>, transform_indices = @transform_3, window_bounds = array<i64: 1, 368>}, {pipeline_mode = #tpu.pipeline_mode<synchronous>, transform_indices = @transform_4, window_bounds = array<i64: 3, 11, 23>}, {pipeline_mode = #tpu.pipeline_mode<synchronous>, transform_indices = @transform_5, window_bounds = array<i64: 3, 368, 352>}, {pipeline_mode = #tpu.pipeline_mode<synchronous>, transform_indices = @transform_6, window_bounds = array<i64: 1, 352>}, {pipeline_mode = #tpu.pipeline_mode<synchronous>, transform_indices = @transform_7, window_bounds = array<i64: 11, 352, 128>}, {pipeline_mode = #tpu.pipeline_mode<synchronous>, transform_indices = @transform_8, window_bounds = array<i64: 1, 128>}, {pipeline_mode = #tpu.pipeline_mode<synchronous>, transform_indices = @transform_9, window_bounds = array<i64: 128, 7>}, {pipeline_mode = #tpu.pipeline_mode<synchronous>, transform_indices = @transform_10, window_bounds = array<i64: 1, 7>}, {transform_indices = @transform_11, window_bounds = array<i64: 1, 1, 7>}]} {
    %c0 = arith.constant 0 : index
    %c0_0 = arith.constant 0 : index
    %c0_1 = arith.constant 0 : index
    %0 = vector.load %arg1[%c0, %c0_0, %c0_1] : memref<1x96x288xf32, #tpu.memory_space<vmem>>, vector<1x96x288xf32>
    %1 = vector.shape_cast %0 : vector<1x96x288xf32> to vector<96x288xf32>
    %2 = arith.truncf %1 : vector<96x288xf32> to vector<96x288xbf16>
    %c0_2 = arith.constant 0 : index
    %c0_3 = arith.constant 0 : index
    %c0_4 = arith.constant 0 : index
    %3 = vector.load %arg2[%c0_2, %c0_3, %c0_4] : memref<5x23x96xbf16, #tpu.memory_space<vmem>>, vector<1x23x96xbf16>
    %4 = vector.shape_cast %3 : vector<1x23x96xbf16> to vector<23x96xbf16>
    %cst = arith.constant dense<0.000000e+00> : vector<23x288xf32>
    %5 = tpu.matmul %4, %2, %cst {dimension_numbers = #tpu.dot_dimension_numbers<[1], [0], [0], [1], [0, 0, 1, 1], [], []>} : vector<23x96xbf16>, vector<96x288xbf16>, vector<23x288xf32> -> vector<23x288xf32>
    %6 = arith.truncf %5 : vector<23x288xf32> to vector<23x288xbf16>
    %c0_5 = arith.constant 0 : index
    %c0_6 = arith.constant 0 : index
    %c0_7 = arith.constant 0 : index
    %7 = vector.load %arg3[%c0_5, %c0_6, %c0_7] : memref<5x288x368xbf16, #tpu.memory_space<vmem>>, vector<1x288x368xbf16>
    %8 = vector.shape_cast %7 : vector<1x288x368xbf16> to vector<288x368xbf16>
    %cst_8 = arith.constant dense<0.000000e+00> : vector<23x368xf32>
    %9 = tpu.matmul %6, %8, %cst_8 {dimension_numbers = #tpu.dot_dimension_numbers<[1], [0], [0], [1], [0, 0, 1, 1], [], []>} : vector<23x288xbf16>, vector<288x368xbf16>, vector<23x368xf32> -> vector<23x368xf32>
    %c1 = arith.constant 1 : index
    %c0_9 = arith.constant 0 : index
    %c0_10 = arith.constant 0 : index
    %10 = vector.load %arg2[%c1, %c0_9, %c0_10] : memref<5x23x96xbf16, #tpu.memory_space<vmem>>, vector<1x23x96xbf16>
    %11 = vector.shape_cast %10 : vector<1x23x96xbf16> to vector<23x96xbf16>
    %cst_11 = arith.constant dense<0.000000e+00> : vector<23x288xf32>
    %12 = tpu.matmul %11, %2, %cst_11 {dimension_numbers = #tpu.dot_dimension_numbers<[1], [0], [0], [1], [0, 0, 1, 1], [], []>} : vector<23x96xbf16>, vector<96x288xbf16>, vector<23x288xf32> -> vector<23x288xf32>
    %13 = arith.truncf %12 : vector<23x288xf32> to vector<23x288xbf16>
    %c1_12 = arith.constant 1 : index
    %c0_13 = arith.constant 0 : index
    %c0_14 = arith.constant 0 : index
    %14 = vector.load %arg3[%c1_12, %c0_13, %c0_14] : memref<5x288x368xbf16, #tpu.memory_space<vmem>>, vector<1x288x368xbf16>
    %15 = vector.shape_cast %14 : vector<1x288x368xbf16> to vector<288x368xbf16>
    %cst_15 = arith.constant dense<0.000000e+00> : vector<23x368xf32>
    %16 = tpu.matmul %13, %15, %cst_15 {dimension_numbers = #tpu.dot_dimension_numbers<[1], [0], [0], [1], [0, 0, 1, 1], [], []>} : vector<23x288xbf16>, vector<288x368xbf16>, vector<23x368xf32> -> vector<23x368xf32>
    %17 = arith.addf %9, %16 : vector<23x368xf32>
    %c2 = arith.constant 2 : index
    %c0_16 = arith.constant 0 : index
    %c0_17 = arith.constant 0 : index
    %18 = vector.load %arg2[%c2, %c0_16, %c0_17] : memref<5x23x96xbf16, #tpu.memory_space<vmem>>, vector<1x23x96xbf16>
    %19 = vector.shape_cast %18 : vector<1x23x96xbf16> to vector<23x96xbf16>
    %cst_18 = arith.constant dense<0.000000e+00> : vector<23x288xf32>
    %20 = tpu.matmul %19, %2, %cst_18 {dimension_numbers = #tpu.dot_dimension_numbers<[1], [0], [0], [1], [0, 0, 1, 1], [], []>} : vector<23x96xbf16>, vector<96x288xbf16>, vector<23x288xf32> -> vector<23x288xf32>
    %21 = arith.truncf %20 : vector<23x288xf32> to vector<23x288xbf16>
    %c2_19 = arith.constant 2 : index
    %c0_20 = arith.constant 0 : index
    %c0_21 = arith.constant 0 : index
    %22 = vector.load %arg3[%c2_19, %c0_20, %c0_21] : memref<5x288x368xbf16, #tpu.memory_space<vmem>>, vector<1x288x368xbf16>
    %23 = vector.shape_cast %22 : vector<1x288x368xbf16> to vector<288x368xbf16>
    %cst_22 = arith.constant dense<0.000000e+00> : vector<23x368xf32>
    %24 = tpu.matmul %21, %23, %cst_22 {dimension_numbers = #tpu.dot_dimension_numbers<[1], [0], [0], [1], [0, 0, 1, 1], [], []>} : vector<23x288xbf16>, vector<288x368xbf16>, vector<23x368xf32> -> vector<23x368xf32>
    %25 = arith.addf %17, %24 : vector<23x368xf32>
    %c3 = arith.constant 3 : index
    %c0_23 = arith.constant 0 : index
    %c0_24 = arith.constant 0 : index
    %26 = vector.load %arg2[%c3, %c0_23, %c0_24] : memref<5x23x96xbf16, #tpu.memory_space<vmem>>, vector<1x23x96xbf16>
    %27 = vector.shape_cast %26 : vector<1x23x96xbf16> to vector<23x96xbf16>
    %cst_25 = arith.constant dense<0.000000e+00> : vector<23x288xf32>
    %28 = tpu.matmul %27, %2, %cst_25 {dimension_numbers = #tpu.dot_dimension_numbers<[1], [0], [0], [1], [0, 0, 1, 1], [], []>} : vector<23x96xbf16>, vector<96x288xbf16>, vector<23x288xf32> -> vector<23x288xf32>
    %29 = arith.truncf %28 : vector<23x288xf32> to vector<23x288xbf16>
    %c3_26 = arith.constant 3 : index
    %c0_27 = arith.constant 0 : index
    %c0_28 = arith.constant 0 : index
    %30 = vector.load %arg3[%c3_26, %c0_27, %c0_28] : memref<5x288x368xbf16, #tpu.memory_space<vmem>>, vector<1x288x368xbf16>
    %31 = vector.shape_cast %30 : vector<1x288x368xbf16> to vector<288x368xbf16>
    %cst_29 = arith.constant dense<0.000000e+00> : vector<23x368xf32>
    %32 = tpu.matmul %29, %31, %cst_29 {dimension_numbers = #tpu.dot_dimension_numbers<[1], [0], [0], [1], [0, 0, 1, 1], [], []>} : vector<23x288xbf16>, vector<288x368xbf16>, vector<23x368xf32> -> vector<23x368xf32>
    %33 = arith.addf %25, %32 : vector<23x368xf32>
    %c4 = arith.constant 4 : index
    %c0_30 = arith.constant 0 : index
    %c0_31 = arith.constant 0 : index
    %34 = vector.load %arg2[%c4, %c0_30, %c0_31] : memref<5x23x96xbf16, #tpu.memory_space<vmem>>, vector<1x23x96xbf16>
    %35 = vector.shape_cast %34 : vector<1x23x96xbf16> to vector<23x96xbf16>
    %cst_32 = arith.constant dense<0.000000e+00> : vector<23x288xf32>
    %36 = tpu.matmul %35, %2, %cst_32 {dimension_numbers = #tpu.dot_dimension_numbers<[1], [0], [0], [1], [0, 0, 1, 1], [], []>} : vector<23x96xbf16>, vector<96x288xbf16>, vector<23x288xf32> -> vector<23x288xf32>
    %37 = arith.truncf %36 : vector<23x288xf32> to vector<23x288xbf16>
    %c4_33 = arith.constant 4 : index
    %c0_34 = arith.constant 0 : index
    %c0_35 = arith.constant 0 : index
    %38 = vector.load %arg3[%c4_33, %c0_34, %c0_35] : memref<5x288x368xbf16, #tpu.memory_space<vmem>>, vector<1x288x368xbf16>
    %39 = vector.shape_cast %38 : vector<1x288x368xbf16> to vector<288x368xbf16>
    %cst_36 = arith.constant dense<0.000000e+00> : vector<23x368xf32>
    %40 = tpu.matmul %37, %39, %cst_36 {dimension_numbers = #tpu.dot_dimension_numbers<[1], [0], [0], [1], [0, 0, 1, 1], [], []>} : vector<23x288xbf16>, vector<288x368xbf16>, vector<23x368xf32> -> vector<23x368xf32>
    %41 = arith.addf %33, %40 : vector<23x368xf32>
    %c0_37 = arith.constant 0 : index
    %c0_38 = arith.constant 0 : index
    %42 = vector.load %arg4[%c0_37, %c0_38] : memref<1x368xf32, #tpu.memory_space<vmem>>, vector<1x368xf32>
    %43 = vector.broadcast %42 : vector<1x368xf32> to vector<23x368xf32>
    %44 = arith.addf %41, %43 : vector<23x368xf32>
    %cst_39 = arith.constant 0.000000e+00 : f32
    %45 = vector.broadcast %cst_39 : f32 to vector<23x368xf32>
    %46 = arith.maximumf %44, %45 : vector<23x368xf32>
    %47 = arith.truncf %46 : vector<23x368xf32> to vector<23x368xbf16>
    %c0_40 = arith.constant 0 : index
    %c0_41 = arith.constant 0 : index
    %c0_42 = arith.constant 0 : index
    %48 = vector.load %arg5[%c0_40, %c0_41, %c0_42] : memref<3x11x23xbf16, #tpu.memory_space<vmem>>, vector<1x11x23xbf16>
    %49 = vector.shape_cast %48 : vector<1x11x23xbf16> to vector<11x23xbf16>
    %cst_43 = arith.constant dense<0.000000e+00> : vector<11x368xf32>
    %50 = tpu.matmul %49, %47, %cst_43 {dimension_numbers = #tpu.dot_dimension_numbers<[1], [0], [0], [1], [0, 0, 1, 1], [], []>} : vector<11x23xbf16>, vector<23x368xbf16>, vector<11x368xf32> -> vector<11x368xf32>
    %51 = arith.truncf %50 : vector<11x368xf32> to vector<11x368xbf16>
    %c0_44 = arith.constant 0 : index
    %c0_45 = arith.constant 0 : index
    %c0_46 = arith.constant 0 : index
    %52 = vector.load %arg6[%c0_44, %c0_45, %c0_46] : memref<3x368x352xbf16, #tpu.memory_space<vmem>>, vector<1x368x352xbf16>
    %53 = vector.shape_cast %52 : vector<1x368x352xbf16> to vector<368x352xbf16>
    %cst_47 = arith.constant dense<0.000000e+00> : vector<11x352xf32>
    %54 = tpu.matmul %51, %53, %cst_47 {dimension_numbers = #tpu.dot_dimension_numbers<[1], [0], [0], [1], [0, 0, 1, 1], [], []>} : vector<11x368xbf16>, vector<368x352xbf16>, vector<11x352xf32> -> vector<11x352xf32>
    %c1_48 = arith.constant 1 : index
    %c0_49 = arith.constant 0 : index
    %c0_50 = arith.constant 0 : index
    %55 = vector.load %arg5[%c1_48, %c0_49, %c0_50] : memref<3x11x23xbf16, #tpu.memory_space<vmem>>, vector<1x11x23xbf16>
    %56 = vector.shape_cast %55 : vector<1x11x23xbf16> to vector<11x23xbf16>
    %cst_51 = arith.constant dense<0.000000e+00> : vector<11x368xf32>
    %57 = tpu.matmul %56, %47, %cst_51 {dimension_numbers = #tpu.dot_dimension_numbers<[1], [0], [0], [1], [0, 0, 1, 1], [], []>} : vector<11x23xbf16>, vector<23x368xbf16>, vector<11x368xf32> -> vector<11x368xf32>
    %58 = arith.truncf %57 : vector<11x368xf32> to vector<11x368xbf16>
    %c1_52 = arith.constant 1 : index
    %c0_53 = arith.constant 0 : index
    %c0_54 = arith.constant 0 : index
    %59 = vector.load %arg6[%c1_52, %c0_53, %c0_54] : memref<3x368x352xbf16, #tpu.memory_space<vmem>>, vector<1x368x352xbf16>
    %60 = vector.shape_cast %59 : vector<1x368x352xbf16> to vector<368x352xbf16>
    %cst_55 = arith.constant dense<0.000000e+00> : vector<11x352xf32>
    %61 = tpu.matmul %58, %60, %cst_55 {dimension_numbers = #tpu.dot_dimension_numbers<[1], [0], [0], [1], [0, 0, 1, 1], [], []>} : vector<11x368xbf16>, vector<368x352xbf16>, vector<11x352xf32> -> vector<11x352xf32>
    %62 = arith.addf %54, %61 : vector<11x352xf32>
    %c2_56 = arith.constant 2 : index
    %c0_57 = arith.constant 0 : index
    %c0_58 = arith.constant 0 : index
    %63 = vector.load %arg5[%c2_56, %c0_57, %c0_58] : memref<3x11x23xbf16, #tpu.memory_space<vmem>>, vector<1x11x23xbf16>
    %64 = vector.shape_cast %63 : vector<1x11x23xbf16> to vector<11x23xbf16>
    %cst_59 = arith.constant dense<0.000000e+00> : vector<11x368xf32>
    %65 = tpu.matmul %64, %47, %cst_59 {dimension_numbers = #tpu.dot_dimension_numbers<[1], [0], [0], [1], [0, 0, 1, 1], [], []>} : vector<11x23xbf16>, vector<23x368xbf16>, vector<11x368xf32> -> vector<11x368xf32>
    %66 = arith.truncf %65 : vector<11x368xf32> to vector<11x368xbf16>
    %c2_60 = arith.constant 2 : index
    %c0_61 = arith.constant 0 : index
    %c0_62 = arith.constant 0 : index
    %67 = vector.load %arg6[%c2_60, %c0_61, %c0_62] : memref<3x368x352xbf16, #tpu.memory_space<vmem>>, vector<1x368x352xbf16>
    %68 = vector.shape_cast %67 : vector<1x368x352xbf16> to vector<368x352xbf16>
    %cst_63 = arith.constant dense<0.000000e+00> : vector<11x352xf32>
    %69 = tpu.matmul %66, %68, %cst_63 {dimension_numbers = #tpu.dot_dimension_numbers<[1], [0], [0], [1], [0, 0, 1, 1], [], []>} : vector<11x368xbf16>, vector<368x352xbf16>, vector<11x352xf32> -> vector<11x352xf32>
    %70 = arith.addf %62, %69 : vector<11x352xf32>
    %c0_64 = arith.constant 0 : index
    %c0_65 = arith.constant 0 : index
    %71 = vector.load %arg7[%c0_64, %c0_65] : memref<1x352xf32, #tpu.memory_space<vmem>>, vector<1x352xf32>
    %72 = vector.broadcast %71 : vector<1x352xf32> to vector<11x352xf32>
    %73 = arith.addf %70, %72 : vector<11x352xf32>
    %cst_66 = arith.constant 0.000000e+00 : f32
    %74 = vector.broadcast %cst_66 : f32 to vector<11x352xf32>
    %75 = arith.maximumf %73, %74 : vector<11x352xf32>
    %76 = arith.truncf %75 : vector<11x352xf32> to vector<11x352xbf16>
    %c0_67 = arith.constant 0 : index
    %c0_68 = arith.constant 0 : index
    %77 = vector.load %arg9[%c0_67, %c0_68] : memref<1x128xf32, #tpu.memory_space<vmem>>, vector<1x128xf32>
    %78 = vector.extract_strided_slice %76 {offsets = [0, 0], sizes = [1, 352], strides = [1, 1]} : vector<11x352xbf16> to vector<1x352xbf16>
    %c0_69 = arith.constant 0 : index
    %c0_70 = arith.constant 0 : index
    %c0_71 = arith.constant 0 : index
    %79 = vector.load %arg8[%c0_69, %c0_70, %c0_71] : memref<11x352x128xbf16, #tpu.memory_space<vmem>>, vector<1x352x128xbf16>
    %80 = vector.shape_cast %79 : vector<1x352x128xbf16> to vector<352x128xbf16>
    %cst_72 = arith.constant dense<0.000000e+00> : vector<1x128xf32>
    %81 = tpu.matmul %78, %80, %cst_72 {dimension_numbers = #tpu.dot_dimension_numbers<[1], [0], [0], [1], [0, 0, 1, 1], [], []>} : vector<1x352xbf16>, vector<352x128xbf16>, vector<1x128xf32> -> vector<1x128xf32>
    %82 = arith.addf %77, %81 : vector<1x128xf32>
    %83 = vector.extract_strided_slice %76 {offsets = [1, 0], sizes = [1, 352], strides = [1, 1]} : vector<11x352xbf16> to vector<1x352xbf16>
    %c1_73 = arith.constant 1 : index
    %c0_74 = arith.constant 0 : index
    %c0_75 = arith.constant 0 : index
    %84 = vector.load %arg8[%c1_73, %c0_74, %c0_75] : memref<11x352x128xbf16, #tpu.memory_space<vmem>>, vector<1x352x128xbf16>
    %85 = vector.shape_cast %84 : vector<1x352x128xbf16> to vector<352x128xbf16>
    %cst_76 = arith.constant dense<0.000000e+00> : vector<1x128xf32>
    %86 = tpu.matmul %83, %85, %cst_76 {dimension_numbers = #tpu.dot_dimension_numbers<[1], [0], [0], [1], [0, 0, 1, 1], [], []>} : vector<1x352xbf16>, vector<352x128xbf16>, vector<1x128xf32> -> vector<1x128xf32>
    %87 = arith.addf %82, %86 : vector<1x128xf32>
    %88 = vector.extract_strided_slice %76 {offsets = [2, 0], sizes = [1, 352], strides = [1, 1]} : vector<11x352xbf16> to vector<1x352xbf16>
    %c2_77 = arith.constant 2 : index
    %c0_78 = arith.constant 0 : index
    %c0_79 = arith.constant 0 : index
    %89 = vector.load %arg8[%c2_77, %c0_78, %c0_79] : memref<11x352x128xbf16, #tpu.memory_space<vmem>>, vector<1x352x128xbf16>
    %90 = vector.shape_cast %89 : vector<1x352x128xbf16> to vector<352x128xbf16>
    %cst_80 = arith.constant dense<0.000000e+00> : vector<1x128xf32>
    %91 = tpu.matmul %88, %90, %cst_80 {dimension_numbers = #tpu.dot_dimension_numbers<[1], [0], [0], [1], [0, 0, 1, 1], [], []>} : vector<1x352xbf16>, vector<352x128xbf16>, vector<1x128xf32> -> vector<1x128xf32>
    %92 = arith.addf %87, %91 : vector<1x128xf32>
    %93 = vector.extract_strided_slice %76 {offsets = [3, 0], sizes = [1, 352], strides = [1, 1]} : vector<11x352xbf16> to vector<1x352xbf16>
    %c3_81 = arith.constant 3 : index
    %c0_82 = arith.constant 0 : index
    %c0_83 = arith.constant 0 : index
    %94 = vector.load %arg8[%c3_81, %c0_82, %c0_83] : memref<11x352x128xbf16, #tpu.memory_space<vmem>>, vector<1x352x128xbf16>
    %95 = vector.shape_cast %94 : vector<1x352x128xbf16> to vector<352x128xbf16>
    %cst_84 = arith.constant dense<0.000000e+00> : vector<1x128xf32>
    %96 = tpu.matmul %93, %95, %cst_84 {dimension_numbers = #tpu.dot_dimension_numbers<[1], [0], [0], [1], [0, 0, 1, 1], [], []>} : vector<1x352xbf16>, vector<352x128xbf16>, vector<1x128xf32> -> vector<1x128xf32>
    %97 = arith.addf %92, %96 : vector<1x128xf32>
    %98 = vector.extract_strided_slice %76 {offsets = [4, 0], sizes = [1, 352], strides = [1, 1]} : vector<11x352xbf16> to vector<1x352xbf16>
    %c4_85 = arith.constant 4 : index
    %c0_86 = arith.constant 0 : index
    %c0_87 = arith.constant 0 : index
    %99 = vector.load %arg8[%c4_85, %c0_86, %c0_87] : memref<11x352x128xbf16, #tpu.memory_space<vmem>>, vector<1x352x128xbf16>
    %100 = vector.shape_cast %99 : vector<1x352x128xbf16> to vector<352x128xbf16>
    %cst_88 = arith.constant dense<0.000000e+00> : vector<1x128xf32>
    %101 = tpu.matmul %98, %100, %cst_88 {dimension_numbers = #tpu.dot_dimension_numbers<[1], [0], [0], [1], [0, 0, 1, 1], [], []>} : vector<1x352xbf16>, vector<352x128xbf16>, vector<1x128xf32> -> vector<1x128xf32>
    %102 = arith.addf %97, %101 : vector<1x128xf32>
    %103 = vector.extract_strided_slice %76 {offsets = [5, 0], sizes = [1, 352], strides = [1, 1]} : vector<11x352xbf16> to vector<1x352xbf16>
    %c5 = arith.constant 5 : index
    %c0_89 = arith.constant 0 : index
    %c0_90 = arith.constant 0 : index
    %104 = vector.load %arg8[%c5, %c0_89, %c0_90] : memref<11x352x128xbf16, #tpu.memory_space<vmem>>, vector<1x352x128xbf16>
    %105 = vector.shape_cast %104 : vector<1x352x128xbf16> to vector<352x128xbf16>
    %cst_91 = arith.constant dense<0.000000e+00> : vector<1x128xf32>
    %106 = tpu.matmul %103, %105, %cst_91 {dimension_numbers = #tpu.dot_dimension_numbers<[1], [0], [0], [1], [0, 0, 1, 1], [], []>} : vector<1x352xbf16>, vector<352x128xbf16>, vector<1x128xf32> -> vector<1x128xf32>
    %107 = arith.addf %102, %106 : vector<1x128xf32>
    %108 = vector.extract_strided_slice %76 {offsets = [6, 0], sizes = [1, 352], strides = [1, 1]} : vector<11x352xbf16> to vector<1x352xbf16>
    %c6 = arith.constant 6 : index
    %c0_92 = arith.constant 0 : index
    %c0_93 = arith.constant 0 : index
    %109 = vector.load %arg8[%c6, %c0_92, %c0_93] : memref<11x352x128xbf16, #tpu.memory_space<vmem>>, vector<1x352x128xbf16>
    %110 = vector.shape_cast %109 : vector<1x352x128xbf16> to vector<352x128xbf16>
    %cst_94 = arith.constant dense<0.000000e+00> : vector<1x128xf32>
    %111 = tpu.matmul %108, %110, %cst_94 {dimension_numbers = #tpu.dot_dimension_numbers<[1], [0], [0], [1], [0, 0, 1, 1], [], []>} : vector<1x352xbf16>, vector<352x128xbf16>, vector<1x128xf32> -> vector<1x128xf32>
    %112 = arith.addf %107, %111 : vector<1x128xf32>
    %113 = vector.extract_strided_slice %76 {offsets = [7, 0], sizes = [1, 352], strides = [1, 1]} : vector<11x352xbf16> to vector<1x352xbf16>
    %c7 = arith.constant 7 : index
    %c0_95 = arith.constant 0 : index
    %c0_96 = arith.constant 0 : index
    %114 = vector.load %arg8[%c7, %c0_95, %c0_96] : memref<11x352x128xbf16, #tpu.memory_space<vmem>>, vector<1x352x128xbf16>
    %115 = vector.shape_cast %114 : vector<1x352x128xbf16> to vector<352x128xbf16>
    %cst_97 = arith.constant dense<0.000000e+00> : vector<1x128xf32>
    %116 = tpu.matmul %113, %115, %cst_97 {dimension_numbers = #tpu.dot_dimension_numbers<[1], [0], [0], [1], [0, 0, 1, 1], [], []>} : vector<1x352xbf16>, vector<352x128xbf16>, vector<1x128xf32> -> vector<1x128xf32>
    %117 = arith.addf %112, %116 : vector<1x128xf32>
    %118 = vector.extract_strided_slice %76 {offsets = [8, 0], sizes = [1, 352], strides = [1, 1]} : vector<11x352xbf16> to vector<1x352xbf16>
    %c8 = arith.constant 8 : index
    %c0_98 = arith.constant 0 : index
    %c0_99 = arith.constant 0 : index
    %119 = vector.load %arg8[%c8, %c0_98, %c0_99] : memref<11x352x128xbf16, #tpu.memory_space<vmem>>, vector<1x352x128xbf16>
    %120 = vector.shape_cast %119 : vector<1x352x128xbf16> to vector<352x128xbf16>
    %cst_100 = arith.constant dense<0.000000e+00> : vector<1x128xf32>
    %121 = tpu.matmul %118, %120, %cst_100 {dimension_numbers = #tpu.dot_dimension_numbers<[1], [0], [0], [1], [0, 0, 1, 1], [], []>} : vector<1x352xbf16>, vector<352x128xbf16>, vector<1x128xf32> -> vector<1x128xf32>
    %122 = arith.addf %117, %121 : vector<1x128xf32>
    %123 = vector.extract_strided_slice %76 {offsets = [9, 0], sizes = [1, 352], strides = [1, 1]} : vector<11x352xbf16> to vector<1x352xbf16>
    %c9 = arith.constant 9 : index
    %c0_101 = arith.constant 0 : index
    %c0_102 = arith.constant 0 : index
    %124 = vector.load %arg8[%c9, %c0_101, %c0_102] : memref<11x352x128xbf16, #tpu.memory_space<vmem>>, vector<1x352x128xbf16>
    %125 = vector.shape_cast %124 : vector<1x352x128xbf16> to vector<352x128xbf16>
    %cst_103 = arith.constant dense<0.000000e+00> : vector<1x128xf32>
    %126 = tpu.matmul %123, %125, %cst_103 {dimension_numbers = #tpu.dot_dimension_numbers<[1], [0], [0], [1], [0, 0, 1, 1], [], []>} : vector<1x352xbf16>, vector<352x128xbf16>, vector<1x128xf32> -> vector<1x128xf32>
    %127 = arith.addf %122, %126 : vector<1x128xf32>
    %128 = vector.extract_strided_slice %76 {offsets = [10, 0], sizes = [1, 352], strides = [1, 1]} : vector<11x352xbf16> to vector<1x352xbf16>
    %c10 = arith.constant 10 : index
    %c0_104 = arith.constant 0 : index
    %c0_105 = arith.constant 0 : index
    %129 = vector.load %arg8[%c10, %c0_104, %c0_105] : memref<11x352x128xbf16, #tpu.memory_space<vmem>>, vector<1x352x128xbf16>
    %130 = vector.shape_cast %129 : vector<1x352x128xbf16> to vector<352x128xbf16>
    %cst_106 = arith.constant dense<0.000000e+00> : vector<1x128xf32>
    %131 = tpu.matmul %128, %130, %cst_106 {dimension_numbers = #tpu.dot_dimension_numbers<[1], [0], [0], [1], [0, 0, 1, 1], [], []>} : vector<1x352xbf16>, vector<352x128xbf16>, vector<1x128xf32> -> vector<1x128xf32>
    %132 = arith.addf %127, %131 : vector<1x128xf32>
    %c0_107 = arith.constant 0 : index
    %c0_108 = arith.constant 0 : index
    %133 = vector.load %arg10[%c0_107, %c0_108] : memref<128x7xf32, #tpu.memory_space<vmem>>, vector<128x7xf32>
    %cst_109 = arith.constant dense<0.000000e+00> : vector<1x7xf32>
    %134 = tpu.matmul %132, %133, %cst_109 {dimension_numbers = #tpu.dot_dimension_numbers<[1], [0], [0], [1], [0, 0, 1, 1], [], []>} : vector<1x128xf32>, vector<128x7xf32>, vector<1x7xf32> -> vector<1x7xf32>
    %c0_110 = arith.constant 0 : index
    %c0_111 = arith.constant 0 : index
    %135 = vector.load %arg11[%c0_110, %c0_111] : memref<1x7xf32, #tpu.memory_space<vmem>>, vector<1x7xf32>
    %136 = arith.addf %134, %135 : vector<1x7xf32>
    %c0_112 = arith.constant 0 : index
    %c0_113 = arith.constant 0 : index
    %c0_114 = arith.constant 0 : index
    %137 = vector.load %arg12[%c0_112, %c0_113, %c0_114] : memref<1x1x7xf32, #tpu.memory_space<vmem>>, vector<1x1x7xf32>
    %138 = vector.shape_cast %137 : vector<1x1x7xf32> to vector<1x7xf32>
    %139 = vector.shape_cast %136 : vector<1x7xf32> to vector<1x1x7xf32>
    tpu.vector_store %arg12[%c0_112, %c0_113, %c0_114], %139 {strides = array<i32>} : memref<1x1x7xf32, #tpu.memory_space<vmem>>, vector<1x1x7xf32>,
    return
  }
  func.func @transform_0(%arg0: i32) -> (i32, i32, i32) {
    %c0_i32 = arith.constant 0 : i32
    %c0_i32_0 = arith.constant 0 : i32
    %c0_i32_1 = arith.constant 0 : i32
    return %arg0, %c0_i32, %c0_i32_0 : i32, i32, i32
  }
  func.func @transform_1(%arg0: i32) -> (i32, i32, i32) {
    %c0_i32 = arith.constant 0 : i32
    %c0_i32_0 = arith.constant 0 : i32
    %c0_i32_1 = arith.constant 0 : i32
    %c0_i32_2 = arith.constant 0 : i32
    return %c0_i32, %c0_i32_0, %c0_i32_1 : i32, i32, i32
  }
  func.func @transform_2(%arg0: i32) -> (i32, i32, i32) {
    %c0_i32 = arith.constant 0 : i32
    %c0_i32_0 = arith.constant 0 : i32
    %c0_i32_1 = arith.constant 0 : i32
    %c0_i32_2 = arith.constant 0 : i32
    return %c0_i32, %c0_i32_0, %c0_i32_1 : i32, i32, i32
  }
  func.func @transform_3(%arg0: i32) -> (i32, i32) {
    %c0_i32 = arith.constant 0 : i32
    %c0_i32_0 = arith.constant 0 : i32
    %c0_i32_1 = arith.constant 0 : i32
    return %c0_i32, %c0_i32_0 : i32, i32
  }
  func.func @transform_4(%arg0: i32) -> (i32, i32, i32) {
    %c0_i32 = arith.constant 0 : i32
    %c0_i32_0 = arith.constant 0 : i32
    %c0_i32_1 = arith.constant 0 : i32
    %c0_i32_2 = arith.constant 0 : i32
    return %c0_i32, %c0_i32_0, %c0_i32_1 : i32, i32, i32
  }
  func.func @transform_5(%arg0: i32) -> (i32, i32, i32) {
    %c0_i32 = arith.constant 0 : i32
    %c0_i32_0 = arith.constant 0 : i32
    %c0_i32_1 = arith.constant 0 : i32
    %c0_i32_2 = arith.constant 0 : i32
    return %c0_i32, %c0_i32_0, %c0_i32_1 : i32, i32, i32
  }
  func.func @transform_6(%arg0: i32) -> (i32, i32) {
    %c0_i32 = arith.constant 0 : i32
    %c0_i32_0 = arith.constant 0 : i32
    %c0_i32_1 = arith.constant 0 : i32
    return %c0_i32, %c0_i32_0 : i32, i32
  }
  func.func @transform_7(%arg0: i32) -> (i32, i32, i32) {
    %c0_i32 = arith.constant 0 : i32
    %c0_i32_0 = arith.constant 0 : i32
    %c0_i32_1 = arith.constant 0 : i32
    %c0_i32_2 = arith.constant 0 : i32
    return %c0_i32, %c0_i32_0, %c0_i32_1 : i32, i32, i32
  }
  func.func @transform_8(%arg0: i32) -> (i32, i32) {
    %c0_i32 = arith.constant 0 : i32
    %c0_i32_0 = arith.constant 0 : i32
    %c0_i32_1 = arith.constant 0 : i32
    return %c0_i32, %c0_i32_0 : i32, i32
  }
  func.func @transform_9(%arg0: i32) -> (i32, i32) {
    %c0_i32 = arith.constant 0 : i32
    %c0_i32_0 = arith.constant 0 : i32
    %c0_i32_1 = arith.constant 0 : i32
    return %c0_i32, %c0_i32_0 : i32, i32
  }
  func.func @transform_10(%arg0: i32) -> (i32, i32) {
    %c0_i32 = arith.constant 0 : i32
    %c0_i32_0 = arith.constant 0 : i32
    %c0_i32_1 = arith.constant 0 : i32
    return %c0_i32, %c0_i32_0 : i32, i32
  }
  func.func @transform_11(%arg0: i32) -> (i32, i32, i32) {
    %c0_i32 = arith.constant 0 : i32
    %c0_i32_0 = arith.constant 0 : i32
    %c0_i32_1 = arith.constant 0 : i32
    return %arg0, %c0_i32, %c0_i32_0 : i32, i32, i32
  }
}

</mosaic_0001>

<llo_original>
// kernel: forward.1
$region0: #{forward.1}
  #allocation0 [shape = 'u32[]', space=smem, size = 0x4, offset = 0x4, fixed_abs, tag = 'smem constant byte address 0x4 - core index']
  #allocation1 [shape = 'u32[144,128]{1,0:T(1,128)}', space=vmem, size = 0x12000, scoped, tag = 'internal scratch']
  %s0 = inlined_call_operand.vmem [shape: f32[2,96,288], index: 0, kind: input, shape index: {}]
  %s1 = inlined_call_operand.vmem [shape: bf16[5,23,96], index: 1, kind: input, shape index: {}]
  %s2 = inlined_call_operand.vmem [shape: bf16[5,288,368], index: 2, kind: input, shape index: {}]
  %s3 = inlined_call_operand.vmem [shape: f32[1,368], index: 3, kind: input, shape index: {}]
  %s4 = inlined_call_operand.vmem [shape: bf16[3,11,23], index: 4, kind: input, shape index: {}]
  %s5 = inlined_call_operand.vmem [shape: bf16[3,368,352], index: 5, kind: input, shape index: {}]
  %s6 = inlined_call_operand.vmem [shape: f32[1,352], index: 6, kind: input, shape index: {}]
  %s7 = inlined_call_operand.vmem [shape: bf16[11,352,128], index: 7, kind: input, shape index: {}]
  %s8 = inlined_call_operand.vmem [shape: f32[1,128], index: 8, kind: input, shape index: {}]
  %s9 = inlined_call_operand.vmem [shape: f32[128,7], index: 9, kind: input, shape index: {}]
  %s10 = inlined_call_operand.vmem [shape: f32[1,7], index: 10, kind: input, shape index: {}]
  %s11 = inlined_call_operand.hbm [shape: f32[2,1,7], index: 11, kind: output, shape index: {}]
  %s12 = sld [smem:[#allocation0]]
  $region77: #{forward.1} parent=0
    _
  %s14 = ssub.s32 1, %s12
  %s15 = scalar_select 0, %s14, %s12
  $region1: #{forward.1} parent=0
    #allocation2 [shape = 'u8[1024]{0}', space=vmem, size = 0x400, scoped, tag = 'output window, operand 0']
    #allocation3 [shape = 's32[2]{0}', space=sflag, size = 0x8, scoped, tag = 'scoped memory for forward.1']
    %16 = vsyncpa [#allocation3], 0
    %s17 = scalar_lea.sflag [#allocation3], 1
    %18 = vsyncpa %s17, 0
    loop: start=0, step=1, limit=4
    $region2: #{forward.1} parent=1 // loop_pre_header
      _
    $region3: #{forward.1} parent=1 // loop_header
      %s20 = sphi 0, %s24
      %p21 = scmp.ge.s32.totalorder %s20, 4
      %s30 = sphi 0, %s32
      %s33 = sphi 0, %s30
      %s34 = sphi 0, %s33
      %s50 = sphi 0, %s34
      %s54 = sphi 0, %s54
      %s56 = sphi 0, %s54
      %s57 = sphi 0, %s56
      %s71 = sphi 0, %s57
      %s75 = sphi 0, %s75
      %s77 = sphi 0, %s75
      %s78 = sphi 0, %s77
      %s92 = sphi 0, %s78
      %s96 = sphi 0, %s96
      %s98 = sphi 0, %s96
      %s99 = sphi 0, %s98
      %s113 = sphi 0, %s99
      %s117 = sphi 0, %s117
      %s119 = sphi 0, %s117
      %s120 = sphi 0, %s119
      %s134 = sphi 0, %s120
      %s138 = sphi 0, %s138
      %s140 = sphi 0, %s138
      %s141 = sphi 0, %s140
      %s155 = sphi 0, %s141
      %s159 = sphi 0, %s159
      %s161 = sphi 0, %s159
      %s162 = sphi 0, %s161
      %s176 = sphi 0, %s162
      %s180 = sphi 0, %s180
      %s182 = sphi 0, %s180
      %s183 = sphi 0, %s182
      %s197 = sphi 0, %s183
      %s201 = sphi 0, %s201
      %s203 = sphi 0, %s201
      %s204 = sphi 0, %s203
      %s218 = sphi 0, %s204
      %s222 = sphi 0, %s222
      %s224 = sphi 0, %s222
      %s225 = sphi 0, %s224
      %s239 = sphi 0, %s225
      %s243 = sphi 0, %s243
      %s245 = sphi 0, %s243
      %s246 = sphi 0, %s245
      %s260 = sphi 0, %s246
      %s266 = sphi 0, %s268
      %s269 = sphi 0, %s266
      %s270 = sphi 0, %s269
      %s286 = sphi 0, %s270
    $region4: #{forward.1} parent=1 // loop_header_branch
      %23 = sbr.rel (%p21) target = $region8
    $region5: #{forward.1} parent=1 // loop_body
      %s25 = ssub.s32 %s20, 1
      %s26 = ssub.s32 %s20, 2
      %s27 = sadd.s32 %s20, 1
      %s28 = ssub.s32 %s20, %s27
      %p29 = scmp.eq.s32.totalorder %s28, 0
      %s31 = sadd.s32 %s30, 1
      %s32 = scalar_select %p29, %s30, %s31
      %p35 = pneg %p29
      %p36 = scmp.eq.s32.totalorder %s20, 1
      %p37 = por %p35, %p36
      %p38 = scmp.ne.s32.totalorder %s30, %s33
      %p39 = scmp.eq.s32.totalorder %s20, 0
      %p40 = por %p38, %p39
      %p41 = scmp.ne.s32.totalorder %s30, %s33
      %p42 = scmp.eq.s32.totalorder %s25, 1
      %p43 = por %p41, %p42
      %p44 = scmp.ne.s32.totalorder %s33, %s34
      %p45 = scmp.eq.s32.totalorder %s25, 0
      %p46 = por %p44, %p45
      %p47 = scmp.ne.s32.totalorder %s33, %s34
      %p48 = scmp.eq.s32.totalorder %s26, 1
      %p49 = por %p47, %p48
      %p51 = scmp.ne.s32.totalorder %s34, %s50
      %p52 = scmp.eq.s32.totalorder %s26, 0
      %p53 = por %p51, %p52
      %s55 = sadd.s32 %s54, 1
      %p58 = scmp.eq.s32.totalorder %s20, 1
      %p59 = scmp.ne.s32.totalorder %s54, %s56
      %p60 = scmp.eq.s32.totalorder %s20, 0
      %p61 = por %p59, %p60
      %p62 = scmp.ne.s32.totalorder %s54, %s56
      %p63 = scmp.eq.s32.totalorder %s25, 1
      %p64 = por %p62, %p63
      %p65 = scmp.ne.s32.totalorder %s56, %s57
      %p66 = scmp.eq.s32.totalorder %s25, 0
      %p67 = por %p65, %p66
      %p68 = scmp.ne.s32.totalorder %s56, %s57
      %p69 = scmp.eq.s32.totalorder %s26, 1
      %p70 = por %p68, %p69
      %p72 = scmp.ne.s32.totalorder %s57, %s71
      %p73 = scmp.eq.s32.totalorder %s26, 0
      %p74 = por %p72, %p73
      %s76 = sadd.s32 %s75, 1
      %p79 = scmp.eq.s32.totalorder %s20, 1
      %p80 = scmp.ne.s32.totalorder %s75, %s77
      %p81 = scmp.eq.s32.totalorder %s20, 0
      %p82 = por %p80, %p81
      %p83 = scmp.ne.s32.totalorder %s75, %s77
      %p84 = scmp.eq.s32.totalorder %s25, 1
      %p85 = por %p83, %p84
      %p86 = scmp.ne.s32.totalorder %s77, %s78
      %p87 = scmp.eq.s32.totalorder %s25, 0
      %p88 = por %p86, %p87
      %p89 = scmp.ne.s32.totalorder %s77, %s78
      %p90 = scmp.eq.s32.totalorder %s26, 1
      %p91 = por %p89, %p90
      %p93 = scmp.ne.s32.totalorder %s78, %s92
      %p94 = scmp.eq.s32.totalorder %s26, 0
      %p95 = por %p93, %p94
      %s97 = sadd.s32 %s96, 1
      %p100 = scmp.eq.s32.totalorder %s20, 1
      %p101 = scmp.ne.s32.totalorder %s96, %s98
      %p102 = scmp.eq.s32.totalorder %s20, 0
      %p103 = por %p101, %p102
      %p104 = scmp.ne.s32.totalorder %s96, %s98
      %p105 = scmp.eq.s32.totalorder %s25, 1
      %p106 = por %p104, %p105
      %p107 = scmp.ne.s32.totalorder %s98, %s99
      %p108 = scmp.eq.s32.totalorder %s25, 0
      %p109 = por %p107, %p108
      %p110 = scmp.ne.s32.totalorder %s98, %s99
      %p111 = scmp.eq.s32.totalorder %s26, 1
      %p112 = por %p110, %p111
      %p114 = scmp.ne.s32.totalorder %s99, %s113
      %p115 = scmp.eq.s32.totalorder %s26, 0
      %p116 = por %p114, %p115
      %s118 = sadd.s32 %s117, 1
      %p121 = scmp.eq.s32.totalorder %s20, 1
      %p122 = scmp.ne.s32.totalorder %s117, %s119
      %p123 = scmp.eq.s32.totalorder %s20, 0
      %p124 = por %p122, %p123
      %p125 = scmp.ne.s32.totalorder %s117, %s119
      %p126 = scmp.eq.s32.totalorder %s25, 1
      %p127 = por %p125, %p126
      %p128 = scmp.ne.s32.totalorder %s119, %s120
      %p129 = scmp.eq.s32.totalorder %s25, 0
      %p130 = por %p128, %p129
      %p131 = scmp.ne.s32.totalorder %s119, %s120
      %p132 = scmp.eq.s32.totalorder %s26, 1
      %p133 = por %p131, %p132
      %p135 = scmp.ne.s32.totalorder %s120, %s134
      %p136 = scmp.eq.s32.totalorder %s26, 0
      %p137 = por %p135, %p136
      %s139 = sadd.s32 %s138, 1
      %p142 = scmp.eq.s32.totalorder %s20, 1
      %p143 = scmp.ne.s32.totalorder %s138, %s140
      %p144 = scmp.eq.s32.totalorder %s20, 0
      %p145 = por %p143, %p144
      %p146 = scmp.ne.s32.totalorder %s138, %s140
      %p147 = scmp.eq.s32.totalorder %s25, 1
      %p148 = por %p146, %p147
      %p149 = scmp.ne.s32.totalorder %s140, %s141
      %p150 = scmp.eq.s32.totalorder %s25, 0
      %p151 = por %p149, %p150
      %p152 = scmp.ne.s32.totalorder %s140, %s141
      %p153 = scmp.eq.s32.totalorder %s26, 1
      %p154 = por %p152, %p153
      %p156 = scmp.ne.s32.totalorder %s141, %s155
      %p157 = scmp.eq.s32.totalorder %s26, 0
      %p158 = por %p156, %p157
      %s160 = sadd.s32 %s159, 1
      %p163 = scmp.eq.s32.totalorder %s20, 1
      %p164 = scmp.ne.s32.totalorder %s159, %s161
      %p165 = scmp.eq.s32.totalorder %s20, 0
      %p166 = por %p164, %p165
      %p167 = scmp.ne.s32.totalorder %s159, %s161
      %p168 = scmp.eq.s32.totalorder %s25, 1
      %p169 = por %p167, %p168
      %p170 = scmp.ne.s32.totalorder %s161, %s162
      %p171 = scmp.eq.s32.totalorder %s25, 0
      %p172 = por %p170, %p171
      %p173 = scmp.ne.s32.totalorder %s161, %s162
      %p174 = scmp.eq.s32.totalorder %s26, 1
      %p175 = por %p173, %p174
      %p177 = scmp.ne.s32.totalorder %s162, %s176
      %p178 = scmp.eq.s32.totalorder %s26, 0
      %p179 = por %p177, %p178
      %s181 = sadd.s32 %s180, 1
      %p184 = scmp.eq.s32.totalorder %s20, 1
      %p185 = scmp.ne.s32.totalorder %s180, %s182
      %p186 = scmp.eq.s32.totalorder %s20, 0
      %p187 = por %p185, %p186
      %p188 = scmp.ne.s32.totalorder %s180, %s182
      %p189 = scmp.eq.s32.totalorder %s25, 1
      %p190 = por %p188, %p189
      %p191 = scmp.ne.s32.totalorder %s182, %s183
      %p192 = scmp.eq.s32.totalorder %s25, 0
      %p193 = por %p191, %p192
      %p194 = scmp.ne.s32.totalorder %s182, %s183
      %p195 = scmp.eq.s32.totalorder %s26, 1
      %p196 = por %p194, %p195
      %p198 = scmp.ne.s32.totalorder %s183, %s197
      %p199 = scmp.eq.s32.totalorder %s26, 0
      %p200 = por %p198, %p199
      %s202 = sadd.s32 %s201, 1
      %p205 = scmp.eq.s32.totalorder %s20, 1
      %p206 = scmp.ne.s32.totalorder %s201, %s203
      %p207 = scmp.eq.s32.totalorder %s20, 0
      %p208 = por %p206, %p207
      %p209 = scmp.ne.s32.totalorder %s201, %s203
      %p210 = scmp.eq.s32.totalorder %s25, 1
      %p211 = por %p209, %p210
      %p212 = scmp.ne.s32.totalorder %s203, %s204
      %p213 = scmp.eq.s32.totalorder %s25, 0
      %p214 = por %p212, %p213
      %p215 = scmp.ne.s32.totalorder %s203, %s204
      %p216 = scmp.eq.s32.totalorder %s26, 1
      %p217 = por %p215, %p216
      %p219 = scmp.ne.s32.totalorder %s204, %s218
      %p220 = scmp.eq.s32.totalorder %s26, 0
      %p221 = por %p219, %p220
      %s223 = sadd.s32 %s222, 1
      %p226 = scmp.eq.s32.totalorder %s20, 1
      %p227 = scmp.ne.s32.totalorder %s222, %s224
      %p228 = scmp.eq.s32.totalorder %s20, 0
      %p229 = por %p227, %p228
      %p230 = scmp.ne.s32.totalorder %s222, %s224
      %p231 = scmp.eq.s32.totalorder %s25, 1
      %p232 = por %p230, %p231
      %p233 = scmp.ne.s32.totalorder %s224, %s225
      %p234 = scmp.eq.s32.totalorder %s25, 0
      %p235 = por %p233, %p234
      %p236 = scmp.ne.s32.totalorder %s224, %s225
      %p237 = scmp.eq.s32.totalorder %s26, 1
      %p238 = por %p236, %p237
      %p240 = scmp.ne.s32.totalorder %s225, %s239
      %p241 = scmp.eq.s32.totalorder %s26, 0
      %p242 = por %p240, %p241
      %s244 = sadd.s32 %s243, 1
      %p247 = scmp.eq.s32.totalorder %s20, 1
      %p248 = scmp.ne.s32.totalorder %s243, %s245
      %p249 = scmp.eq.s32.totalorder %s20, 0
      %p250 = por %p248, %p249
      %p251 = scmp.ne.s32.totalorder %s243, %s245
      %p252 = scmp.eq.s32.totalorder %s25, 1
      %p253 = por %p251, %p252
      %p254 = scmp.ne.s32.totalorder %s245, %s246
      %p255 = scmp.eq.s32.totalorder %s25, 0
      %p256 = por %p254, %p255
      %p257 = scmp.ne.s32.totalorder %s245, %s246
      %p258 = scmp.eq.s32.totalorder %s26, 1
      %p259 = por %p257, %p258
      %p261 = scmp.ne.s32.totalorder %s246, %s260
      %p262 = scmp.eq.s32.totalorder %s26, 0
      %p263 = por %p261, %p262
      %s264 = ssub.s32 %s20, %s27
      %p265 = scmp.eq.s32.totalorder %s264, 0
      %s267 = sadd.s32 %s266, 1
      %s268 = scalar_select %p265, %s266, %s267
      %p271 = pneg %p265
      %p272 = scmp.eq.s32.totalorder %s20, 1
      %p273 = por %p271, %p272
      %p274 = scmp.ne.s32.totalorder %s266, %s269
      %p275 = scmp.eq.s32.totalorder %s20, 0
      %p276 = por %p274, %p275
      %p277 = scmp.ne.s32.totalorder %s266, %s269
      %p278 = scmp.eq.s32.totalorder %s25, 1
      %p279 = por %p277, %p278
      %p280 = scmp.ne.s32.totalorder %s269, %s270
      %p281 = scmp.eq.s32.totalorder %s25, 0
      %p282 = por %p280, %p281
      %p283 = scmp.ne.s32.totalorder %s269, %s270
      %p284 = scmp.eq.s32.totalorder %s26, 1
      %p285 = por %p283, %p284
      %p287 = scmp.ne.s32.totalorder %s270, %s286
      %p288 = scmp.eq.s32.totalorder %s26, 0
      %p289 = por %p287, %p288
      %p290 = scmp.le.s32.totalorder 1, %s20
      %p291 = scmp.lt.s32.totalorder %s20, 3
      %p292 = pnand %p290, %p291
      %p293 = pneg %p292
      // Predicated region
      $region9: #{forward.1} parent=5 // pred_check
        _
      $region10: #{forward.1} parent=5 // pred_check_branch
        %295 = sbr.rel (%p292) target = $region12
      $region11: #{forward.1} parent=5 // pred_region
        %s296 = ssub.s32 %s20, 1
        // Predicated region
        $region13: #{forward.1} parent=11 // pred_check
          %p297 = pneg %p67
        $region14: #{forward.1} parent=11 // pred_check_branch
          %299 = sbr.rel (%p297) target = $region16
        $region15: #{forward.1} parent=11 // pred_region
          _
        $region16: #{forward.1} parent=11 // pred_fallthru
          _
        // Predicated region
        $region17: #{forward.1} parent=11 // pred_check
          %p300 = pneg %p88
        $region18: #{forward.1} parent=11 // pred_check_branch
          %302 = sbr.rel (%p300) target = $region20
        $region19: #{forward.1} parent=11 // pred_region
          _
        $region20: #{forward.1} parent=11 // pred_fallthru
          _
        // Predicated region
        $region21: #{forward.1} parent=11 // pred_check
          %p303 = pneg %p109
        $region22: #{forward.1} parent=11 // pred_check_branch
          %305 = sbr.rel (%p303) target = $region24
        $region23: #{forward.1} parent=11 // pred_region
          _
        $region24: #{forward.1} parent=11 // pred_fallthru
          _
        // Predicated region
        $region25: #{forward.1} parent=11 // pred_check
          %p306 = pneg %p130
        $region26: #{forward.1} parent=11 // pred_check_branch
          %308 = sbr.rel (%p306) target = $region28
        $region27: #{forward.1} parent=11 // pred_region
          _
        $region28: #{forward.1} parent=11 // pred_fallthru
          _
        // Predicated region
        $region29: #{forward.1} parent=11 // pred_check
          %p309 = pneg %p151
        $region30: #{forward.1} parent=11 // pred_check_branch
          %311 = sbr.rel (%p309) target = $region32
        $region31: #{forward.1} parent=11 // pred_region
          _
        $region32: #{forward.1} parent=11 // pred_fallthru
          _
        // Predicated region
        $region33: #{forward.1} parent=11 // pred_check
          %p312 = pneg %p172
        $region34: #{forward.1} parent=11 // pred_check_branch
          %314 = sbr.rel (%p312) target = $region36
        $region35: #{forward.1} parent=11 // pred_region
          _
        $region36: #{forward.1} parent=11 // pred_fallthru
          _
        // Predicated region
        $region37: #{forward.1} parent=11 // pred_check
          %p315 = pneg %p193
        $region38: #{forward.1} parent=11 // pred_check_branch
          %317 = sbr.rel (%p315) target = $region40
        $region39: #{forward.1} parent=11 // pred_region
          _
        $region40: #{forward.1} parent=11 // pred_fallthru
          _
        // Predicated region
        $region41: #{forward.1} parent=11 // pred_check
          %p318 = pneg %p214
        $region42: #{forward.1} parent=11 // pred_check_branch
          %320 = sbr.rel (%p318) target = $region44
        $region43: #{forward.1} parent=11 // pred_region
          _
        $region44: #{forward.1} parent=11 // pred_fallthru
          _
        // Predicated region
        $region45: #{forward.1} parent=11 // pred_check
          %p321 = pneg %p235
        $region46: #{forward.1} parent=11 // pred_check_branch
          %323 = sbr.rel (%p321) target = $region48
        $region47: #{forward.1} parent=11 // pred_region
          _
        $region48: #{forward.1} parent=11 // pred_fallthru
          _
        // Predicated region
        $region49: #{forward.1} parent=11 // pred_check
          %p324 = pneg %p256
        $region50: #{forward.1} parent=11 // pred_check_branch
          %326 = sbr.rel (%p324) target = $region52
        $region51: #{forward.1} parent=11 // pred_region
          _
        $region52: #{forward.1} parent=11 // pred_fallthru
          _
      $region12: #{forward.1} parent=5 // pred_fallthru
        _
      %p327 = scmp.lt.s32.totalorder %s20, 2
      // Predicated region
      $region53: #{forward.1} parent=5 // pred_check
        %p328 = pneg %p327
      $region54: #{forward.1} parent=5 // pred_check_branch
        %330 = sbr.rel (%p328) target = $region56
      $region55: #{forward.1} parent=5 // pred_region
        // Predicated region
        $region57: #{forward.1} parent=55 // pred_check
          %p331 = pneg %p40
        $region58: #{forward.1} parent=55 // pred_check_branch
          %333 = sbr.rel (%p331) target = $region60
        $region59: #{forward.1} parent=55 // pred_region
          %p334 = scmp.lt.s32.totalorder %s20, 1
          %s335 = scalar_select %p334, %s20, 1
          %s336 = smul.addr %s335, 36
          %s337 = smul.addr %s336, 8
          %s338 = scalar_lea.vmem %s0, %s337
        $region60: #{forward.1} parent=55 // pred_fallthru
          _
      $region56: #{forward.1} parent=5 // pred_fallthru
        _
      %p339 = scmp.le.s32.totalorder 1, %s20
      %p340 = scmp.lt.s32.totalorder %s20, 3
      %p341 = pnand %p339, %p340
      %p342 = pneg %p341
      // Predicated region
      $region61: #{forward.1} parent=5 // pred_check
        _
      $region62: #{forward.1} parent=5 // pred_check_branch
        %344 = sbr.rel (%p341) target = $region64
      $region63: #{forward.1} parent=5 // pred_region
        %s345 = ssub.s32 %s20, 1
        %p346 = scmp.lt.s32.totalorder %s25, 1
        %s347 = scalar_select %p346, %s25, 1
        %s348 = smul.addr %s347, 36
        %s349 = smul.addr %s348, 8
        %s350 = scalar_lea.vmem %s0, %s349
        %p351 = pneg %p46
        %p352 = pneg %p43
        %p353 = pneg %p67
        %p354 = pneg %p64
        %p355 = pneg %p88
        %p356 = pneg %p85
        %p357 = pneg %p109
        %p358 = pneg %p106
        %p359 = pneg %p130
        %p360 = pneg %p127
        %p361 = pneg %p151
        %p362 = pneg %p148
        %p363 = pneg %p172
        %p364 = pneg %p169
        %p365 = pneg %p193
        %p366 = pneg %p190
        %p367 = pneg %p214
        %p368 = pneg %p211
        %p369 = pneg %p235
        %p370 = pneg %p232
        %p371 = pneg %p256
        %p372 = pneg %p253
        %p373 = pneg %p282
        %p374 = pneg %p279
        %s375 = sand.u32 %s269, 1
        %s376 = scalar_lea.sflag [#allocation3], %s375
        %s377 = sand.u32 %s269, 1
        %s378 = scalar_lea.vmem [#allocation2], %s377
        %p379 = scmp.lt.s32.totalorder %s25, 1
        %s380 = scalar_select %p379, %s25, 1
        %s381 = smul.addr %s380, 36
        %s382 = smul.addr %s381, 8
        %s383 = scalar_lea.vmem %s0, %s382
        %v385 = vld [vmem:[%s383] sm:$0xff]
        %v386 = vld [vmem:[%s383 + $0x8] sm:$0xff]
        %v387 = vld [vmem:[%s383 + $0x10] sm:$0xff]
        %v388 = vld [vmem:[%s383 + $0x18] sm:$0xff]
        %v389 = vld [vmem:[%s383 + $0x20] sm:$0xff]
        %v390 = vld [vmem:[%s383 + $0x28] sm:$0xff]
        %v391 = vld [vmem:[%s383 + $0x30] sm:$0xff]
        %v392 = vld [vmem:[%s383 + $0x38] sm:$0xff]
        %v393 = vld [vmem:[%s383 + $0x40] sm:$0xff]
        %v394 = vld [vmem:[%s383 + $0x48] sm:$0xff]
        %v395 = vld [vmem:[%s383 + $0x50] sm:$0xff]
        %v396 = vld [vmem:[%s383 + $0x58] sm:$0xff]
        %v397 = vld [vmem:[%s383 + $0x60] sm:$0xff]
        %v398 = vld [vmem:[%s383 + $0x68] sm:$0xff]
        %v399 = vld [vmem:[%s383 + $0x70] sm:$0xff]
        %v400 = vld [vmem:[%s383 + $0x78] sm:$0xff]
        %v401 = vld [vmem:[%s383 + $0x80] sm:$0xff]
        %v402 = vld [vmem:[%s383 + $0x88] sm:$0xff]
        %v403 = vld [vmem:[%s383 + $0x90] sm:$0xff]
        %v404 = vld [vmem:[%s383 + $0x98] sm:$0xff]
        %v405 = vld [vmem:[%s383 + $0xa0] sm:$0xff]
        %v406 = vld [vmem:[%s383 + $0xa8] sm:$0xff]
        %v407 = vld [vmem:[%s383 + $0xb0] sm:$0xff]
        %v408 = vld [vmem:[%s383 + $0xb8] sm:$0xff]
        %v409 = vld [vmem:[%s383 + $0xc0] sm:$0xff]
        %v410 = vld [vmem:[%s383 + $0xc8] sm:$0xff]
        %v411 = vld [vmem:[%s383 + $0xd0] sm:$0xff]
        %v412 = vld [vmem:[%s383 + $0xd8] sm:$0xff]
        %v413 = vld [vmem:[%s383 + $0xe0] sm:$0xff]
        %v414 = vld [vmem:[%s383 + $0xe8] sm:$0xff]
        %v415 = vld [vmem:[%s383 + $0xf0] sm:$0xff]
        %v416 = vld [vmem:[%s383 + $0xf8] sm:$0xff]
        %v417 = vld [vmem:[%s383 + $0x100] sm:$0xff]
        %v418 = vld [vmem:[%s383 + $0x108] sm:$0xff]
        %v419 = vld [vmem:[%s383 + $0x110] sm:$0xff]
        %v420 = vld [vmem:[%s383 + $0x118] sm:$0xff]
        %v421 = vpack.c.bf16 %v388, %v385
        %v422 = vpack.c.bf16 %v389, %v386
        %v423 = vpack.c.bf16 %v390, %v387
        %v424 = vpack.c.bf16 %v394, %v391
        %v425 = vpack.c.bf16 %v395, %v392
        %v426 = vpack.c.bf16 %v396, %v393
        %v427 = vpack.c.bf16 %v400, %v397
        %v428 = vpack.c.bf16 %v401, %v398
        %v429 = vpack.c.bf16 %v402, %v399
        %v430 = vpack.c.bf16 %v406, %v403
        %v431 = vpack.c.bf16 %v407, %v404
        %v432 = vpack.c.bf16 %v408, %v405
        %v433 = vpack.c.bf16 %v412, %v409
        %v434 = vpack.c.bf16 %v413, %v410
        %v435 = vpack.c.bf16 %v414, %v411
        %v436 = vpack.c.bf16 %v418, %v415
        %v437 = vpack.c.bf16 %v419, %v416
        %v438 = vpack.c.bf16 %v420, %v417
        %v439 = vld [vmem:[%s1] sm:$0xf]
        %v440 = vld [vmem:[%s1 + $0x4] sm:$0xf]
        %v441 = vld [vmem:[%s1 + $0x8] sm:$0xf]
        %v445 = vunpack.c.l.b16 %v439
        %v446 = vunpack.c.l.b16 %v440
        %v447 = vunpack.c.l.b16 %v441
        %v448 = vpack.c.b16 %v446, %v445
        %v449 = vpack.c.b16 %v447, %v447
        %vm450 = vcmask 785408
        %v452 = vsel %vm450, %v448, 0
        %v455 = vsel %vm450, %v449, 0
        %457 = vmatprep.subr.bf16.mxu0 %v422
        %458 = vmatpush1.bf16.msra.mxu0 %v421
        %459 = vmatprep.subr.bf16.mxu0 %v425
        %460 = vmatpush1.bf16.msra.mxu0 %v424
        %461 = vmatprep.subr.bf16.mxu0 %v428
        %462 = vmatpush1.bf16.msra.mxu0 %v427
        %463 = vmatprep.subr.bf16.mxu0 %v431
        %464 = vmatpush1.bf16.msra.mxu0 %v430
        %465 = vmatprep.subr.bf16.mxu0 %v434
        %466 = vmatpush1.bf16.msra.mxu0 %v433
        %467 = vmatprep.subr.bf16.mxu0 %v437
        %468 = vmatpush1.bf16.msra.mxu0 %v436
        %469 = vmatprep.subr.bf16.mxu0 0
        %470 = vmatpush1.bf16.msra.mxu0 0
        %471 = vmatprep.subr.bf16.mxu0 0
        %472 = vmatpush1.bf16.msra.mxu0 0
        %473 = vmatprep.subr.bf16.mxu0 0
        %474 = vmatpush1.bf16.msra.mxu0 0
        %475 = vmatprep.subr.bf16.mxu0 0
        %476 = vmatpush1.bf16.msra.mxu0 0
        %477 = vmatprep.subr.bf16.mxu0 0
        %478 = vmatpush1.bf16.msra.mxu0 0
        %479 = vmatprep.subr.bf16.mxu0 0
        %480 = vmatpush1.bf16.msra.mxu0 0
        %481 = vmatprep.subr.bf16.mxu0 0
        %482 = vmatpush1.bf16.msra.mxu0 0
        %483 = vmatprep.subr.bf16.mxu0 0
        %484 = vmatpush1.bf16.msra.mxu0 0
        %485 = vmatprep.subr.bf16.mxu0 0
        %486 = vmatpush1.bf16.msra.mxu0 0
        %487 = vmatprep.subr.bf16.mxu0 0
        %488 = vmatpush1.bf16.msra.mxu0 0
        %489 = vmatprep.mubr.bf16.mxu0 0
        %490 = vmatmul.mubr.bf16.gmra.mrb[0].mxu0 %v452
        %v491 = vpop.f32.mrb[0].mxu0
        %v492 = vadd.f32 0.0, %v491
        %v493 = vpop.f32.mrb[0].mxu0
        %v494 = vadd.f32 0.0, %v493
        %v495 = vpop.f32.mrb[0].mxu0
        %v496 = vadd.f32 0.0, %v495
        %v497 = vpop.f32.mrb[0].mxu0
        %v498 = vadd.f32 0.0, %v497
        %499 = vmatprep.mubr.bf16.mxu0 0
        %500 = vmatmul.mubr.bf16.gmra.mrb[0].mxu0 %v455
        %v501 = vpop.f32.mrb[0].mxu0
        %v502 = vadd.f32 0.0, %v501
        %v503 = vpop.f32.mrb[0].mxu0
        %v504 = vadd.f32 0.0, %v503
        %v505 = vpop.f32.mrb[0].mxu0
        %v506 = vpop.f32.mrb[0].mxu0
        %507 = vdwg.mxu0
        %508 = vmatprep.subr.bf16.mxu0 0
        %509 = vmatpush1.bf16.msra.mxu0 %v423
        %510 = vmatprep.subr.bf16.mxu0 0
        %511 = vmatpush1.bf16.msra.mxu0 %v426
        %512 = vmatprep.subr.bf16.mxu0 0
        %513 = vmatpush1.bf16.msra.mxu0 %v429
        %514 = vmatprep.subr.bf16.mxu0 0
        %515 = vmatpush1.bf16.msra.mxu0 %v432
        %516 = vmatprep.subr.bf16.mxu0 0
        %517 = vmatpush1.bf16.msra.mxu0 %v435
        %518 = vmatprep.subr.bf16.mxu0 0
        %519 = vmatpush1.bf16.msra.mxu0 %v438
        %520 = vmatprep.subr.bf16.mxu0 0
        %521 = vmatpush1.bf16.msra.mxu0 0
        %522 = vmatprep.subr.bf16.mxu0 0
        %523 = vmatpush1.bf16.msra.mxu0 0
        %524 = vmatprep.subr.bf16.mxu0 0
        %525 = vmatpush1.bf16.msra.mxu0 0
        %526 = vmatprep.subr.bf16.mxu0 0
        %527 = vmatpush1.bf16.msra.mxu0 0
        %528 = vmatprep.subr.bf16.mxu0 0
        %529 = vmatpush1.bf16.msra.mxu0 0
        %530 = vmatprep.subr.bf16.mxu0 0
        %531 = vmatpush1.bf16.msra.mxu0 0
        %532 = vmatprep.subr.bf16.mxu0 0
        %533 = vmatpush1.bf16.msra.mxu0 0
        %534 = vmatprep.subr.bf16.mxu0 0
        %535 = vmatpush1.bf16.msra.mxu0 0
        %536 = vmatprep.subr.bf16.mxu0 0
        %537 = vmatpush1.bf16.msra.mxu0 0
        %538 = vmatprep.subr.bf16.mxu0 0
        %539 = vmatpush1.bf16.msra.mxu0 0
        %540 = vmatprep.mubr.bf16.mxu0 0
        %541 = vmatmul.mubr.bf16.gmra.mrb[0].mxu0 %v452
        %v542 = vpop.f32.mrb[0].mxu0
        %v543 = vadd.f32 0.0, %v542
        %v544 = vpop.f32.mrb[0].mxu0
        %v545 = vpop.f32.mrb[0].mxu0
        %v546 = vadd.f32 0.0, %v545
        %v547 = vpop.f32.mrb[0].mxu0
        %548 = vmatprep.mubr.bf16.mxu0 0
        %549 = vmatmul.mubr.bf16.gmra.mrb[0].mxu0 %v455
        %v550 = vpop.f32.mrb[0].mxu0
        %v551 = vadd.f32 0.0, %v550
        %v552 = vpop.f32.mrb[0].mxu0
        %v553 = vpop.f32.mrb[0].mxu0
        %v554 = vpop.f32.mrb[0].mxu0
        %555 = vdwg.mxu0
        %v556 = vpack.c.bf16 %v496, %v492
        %v557 = vpack.c.bf16 %v498, %v494
        %v558 = vpack.c.bf16 %v546, %v543
        %v559 = vpack.c.bf16 %v502, %v502
        %v560 = vpack.c.bf16 %v504, %v504
        %v561 = vpack.c.bf16 %v551, %v551
        %v562 = vld [vmem:[%s2] sm:$0xff]
        %v563 = vld [vmem:[%s2 + $0x8] sm:$0xf]
        %v564 = vld [vmem:[%s2 + $0xc] sm:$0xff]
        %v565 = vld [vmem:[%s2 + $0x14] sm:$0xf]
        %v566 = vld [vmem:[%s2 + $0x18] sm:$0xff]
        %v567 = vld [vmem:[%s2 + $0x20] sm:$0xf]
        %v568 = vld [vmem:[%s2 + $0x24] sm:$0xff]
        %v569 = vld [vmem:[%s2 + $0x2c] sm:$0xf]
        %v570 = vld [vmem:[%s2 + $0x30] sm:$0xff]
        %v571 = vld [vmem:[%s2 + $0x38] sm:$0xf]
        %v572 = vld [vmem:[%s2 + $0x3c] sm:$0xff]
        %v573 = vld [vmem:[%s2 + $0x44] sm:$0xf]
        %v574 = vld [vmem:[%s2 + $0x48] sm:$0xff]
        %v575 = vld [vmem:[%s2 + $0x50] sm:$0xf]
        %v576 = vld [vmem:[%s2 + $0x54] sm:$0xff]
        %v577 = vld [vmem:[%s2 + $0x5c] sm:$0xf]
        %v578 = vld [vmem:[%s2 + $0x60] sm:$0xff]
        %v579 = vld [vmem:[%s2 + $0x68] sm:$0xf]
        %v580 = vld [vmem:[%s2 + $0x6c] sm:$0xff]
        %v581 = vld [vmem:[%s2 + $0x74] sm:$0xf]
        %v582 = vld [vmem:[%s2 + $0x78] sm:$0xff]
        %v583 = vld [vmem:[%s2 + $0x80] sm:$0xf]
        %v584 = vld [vmem:[%s2 + $0x84] sm:$0xff]
        %v585 = vld [vmem:[%s2 + $0x8c] sm:$0xf]
        %v586 = vld [vmem:[%s2 + $0x90] sm:$0xff]
        %v587 = vld [vmem:[%s2 + $0x98] sm:$0xf]
        %v588 = vld [vmem:[%s2 + $0x9c] sm:$0xff]
        %v589 = vld [vmem:[%s2 + $0xa4] sm:$0xf]
        %v590 = vld [vmem:[%s2 + $0xa8] sm:$0xff]
        %v591 = vld [vmem:[%s2 + $0xb0] sm:$0xf]
        %v592 = vld [vmem:[%s2 + $0xb4] sm:$0xff]
        %v593 = vld [vmem:[%s2 + $0xbc] sm:$0xf]
        %v594 = vld [vmem:[%s2 + $0xc0] sm:$0xff]
        %v595 = vld [vmem:[%s2 + $0xc8] sm:$0xf]
        %v596 = vld [vmem:[%s2 + $0xcc] sm:$0xff]
        %v597 = vld [vmem:[%s2 + $0xd4] sm:$0xf]
        %v598 = vld [vmem:[%s2 + $0xd8] sm:$0xff]
        %v599 = vld [vmem:[%s2 + $0xe0] sm:$0xf]
        %v600 = vld [vmem:[%s2 + $0xe4] sm:$0xff]
        %v601 = vld [vmem:[%s2 + $0xec] sm:$0xf]
        %v602 = vld [vmem:[%s2 + $0xf0] sm:$0xff]
        %v603 = vld [vmem:[%s2 + $0xf8] sm:$0xf]
        %v604 = vld [vmem:[%s2 + $0xfc] sm:$0xff]
        %v605 = vld [vmem:[%s2 + $0x104] sm:$0xf]
        %v606 = vld [vmem:[%s2 + $0x108] sm:$0xff]
        %v607 = vld [vmem:[%s2 + $0x110] sm:$0xf]
        %v608 = vld [vmem:[%s2 + $0x114] sm:$0xff]
        %v609 = vld [vmem:[%s2 + $0x11c] sm:$0xf]
        %v610 = vld [vmem:[%s2 + $0x120] sm:$0xff]
        %v611 = vld [vmem:[%s2 + $0x128] sm:$0xf]
        %v612 = vld [vmem:[%s2 + $0x12c] sm:$0xff]
        %v613 = vld [vmem:[%s2 + $0x134] sm:$0xf]
        %v614 = vld [vmem:[%s2 + $0x138] sm:$0xff]
        %v615 = vld [vmem:[%s2 + $0x140] sm:$0xf]
        %v616 = vld [vmem:[%s2 + $0x144] sm:$0xff]
        %v617 = vld [vmem:[%s2 + $0x14c] sm:$0xf]
        %v618 = vld [vmem:[%s2 + $0x150] sm:$0xff]
        %v619 = vld [vmem:[%s2 + $0x158] sm:$0xf]
        %v620 = vld [vmem:[%s2 + $0x15c] sm:$0xff]
        %v621 = vld [vmem:[%s2 + $0x164] sm:$0xf]
        %v622 = vld [vmem:[%s2 + $0x168] sm:$0xff]
        %v623 = vld [vmem:[%s2 + $0x170] sm:$0xf]
        %v624 = vld [vmem:[%s2 + $0x174] sm:$0xff]
        %v625 = vld [vmem:[%s2 + $0x17c] sm:$0xf]
        %v626 = vld [vmem:[%s2 + $0x180] sm:$0xff]
        %v627 = vld [vmem:[%s2 + $0x188] sm:$0xf]
        %v628 = vld [vmem:[%s2 + $0x18c] sm:$0xff]
        %v629 = vld [vmem:[%s2 + $0x194] sm:$0xf]
        %v630 = vld [vmem:[%s2 + $0x198] sm:$0xff]
        %v631 = vld [vmem:[%s2 + $0x1a0] sm:$0xf]
        %v632 = vld [vmem:[%s2 + $0x1a4] sm:$0xff]
        %v633 = vld [vmem:[%s2 + $0x1ac] sm:$0xf]
        %s634 = scalar_lea.vmem %s1, 12
        %v635 = vld [vmem:[%s634] sm:$0xf]
        %v636 = vld [vmem:[%s634 + $0x4] sm:$0xf]
        %v637 = vld [vmem:[%s634 + $0x8] sm:$0xf]
        %v641 = vunpack.c.l.b16 %v635
        %v642 = vunpack.c.l.b16 %v636
        %v643 = vunpack.c.l.b16 %v637
        %v644 = vpack.c.b16 %v642, %v641
        %v645 = vpack.c.b16 %v643, %v643
        %v647 = vsel %vm450, %v644, 0
        %v650 = vsel %vm450, %v645, 0
        %652 = vmatprep.subr.bf16.mxu0 %v422
        %653 = vmatpush1.bf16.msra.mxu0 %v421
        %654 = vmatprep.subr.bf16.mxu0 %v425
        %655 = vmatpush1.bf16.msra.mxu0 %v424
        %656 = vmatprep.subr.bf16.mxu0 %v428
        %657 = vmatpush1.bf16.msra.mxu0 %v427
        %658 = vmatprep.subr.bf16.mxu0 %v431
        %659 = vmatpush1.bf16.msra.mxu0 %v430
        %660 = vmatprep.subr.bf16.mxu0 %v434
        %661 = vmatpush1.bf16.msra.mxu0 %v433
        %662 = vmatprep.subr.bf16.mxu0 %v437
        %663 = vmatpush1.bf16.msra.mxu0 %v436
        %664 = vmatprep.subr.bf16.mxu0 0
        %665 = vmatpush1.bf16.msra.mxu0 0
        %666 = vmatprep.subr.bf16.mxu0 0
        %667 = vmatpush1.bf16.msra.mxu0 0
        %668 = vmatprep.subr.bf16.mxu0 0
        %669 = vmatpush1.bf16.msra.mxu0 0
        %670 = vmatprep.subr.bf16.mxu0 0
        %671 = vmatpush1.bf16.msra.mxu0 0
        %672 = vmatprep.subr.bf16.mxu0 0
        %673 = vmatpush1.bf16.msra.mxu0 0
        %674 = vmatprep.subr.bf16.mxu0 0
        %675 = vmatpush1.bf16.msra.mxu0 0
        %676 = vmatprep.subr.bf16.mxu0 0
        %677 = vmatpush1.bf16.msra.mxu0 0
        %678 = vmatprep.subr.bf16.mxu0 0
        %679 = vmatpush1.bf16.msra.mxu0 0
        %680 = vmatprep.subr.bf16.mxu0 0
        %681 = vmatpush1.bf16.msra.mxu0 0
        %682 = vmatprep.subr.bf16.mxu0 0
        %683 = vmatpush1.bf16.msra.mxu0 0
        %684 = vmatprep.mubr.bf16.mxu0 0
        %685 = vmatmul.mubr.bf16.gmra.mrb[0].mxu0 %v647
        %v686 = vpop.f32.mrb[0].mxu0
        %v687 = vadd.f32 0.0, %v686
        %v688 = vpop.f32.mrb[0].mxu0
        %v689 = vadd.f32 0.0, %v688
        %v690 = vpop.f32.mrb[0].mxu0
        %v691 = vadd.f32 0.0, %v690
        %v692 = vpop.f32.mrb[0].mxu0
        %v693 = vadd.f32 0.0, %v692
        %694 = vmatprep.mubr.bf16.mxu0 0
        %695 = vmatmul.mubr.bf16.gmra.mrb[0].mxu0 %v650
        %v696 = vpop.f32.mrb[0].mxu0
        %v697 = vadd.f32 0.0, %v696
        %v698 = vpop.f32.mrb[0].mxu0
        %v699 = vadd.f32 0.0, %v698
        %v700 = vpop.f32.mrb[0].mxu0
        %v701 = vpop.f32.mrb[0].mxu0
        %702 = vdwg.mxu0
        %703 = vmatprep.subr.bf16.mxu0 0
        %704 = vmatpush1.bf16.msra.mxu0 %v423
        %705 = vmatprep.subr.bf16.mxu0 0
        %706 = vmatpush1.bf16.msra.mxu0 %v426
        %707 = vmatprep.subr.bf16.mxu0 0
        %708 = vmatpush1.bf16.msra.mxu0 %v429
        %709 = vmatprep.subr.bf16.mxu0 0
        %710 = vmatpush1.bf16.msra.mxu0 %v432
        %711 = vmatprep.subr.bf16.mxu0 0
        %712 = vmatpush1.bf16.msra.mxu0 %v435
        %713 = vmatprep.subr.bf16.mxu0 0
        %714 = vmatpush1.bf16.msra.mxu0 %v438
        %715 = vmatprep.subr.bf16.mxu0 0
        %716 = vmatpush1.bf16.msra.mxu0 0
        %717 = vmatprep.subr.bf16.mxu0 0
        %718 = vmatpush1.bf16.msra.mxu0 0
        %719 = vmatprep.subr.bf16.mxu0 0
        %720 = vmatpush1.bf16.msra.mxu0 0
        %721 = vmatprep.subr.bf16.mxu0 0
        %722 = vmatpush1.bf16.msra.mxu0 0
        %723 = vmatprep.subr.bf16.mxu0 0
        %724 = vmatpush1.bf16.msra.mxu0 0
        %725 = vmatprep.subr.bf16.mxu0 0
        %726 = vmatpush1.bf16.msra.mxu0 0
        %727 = vmatprep.subr.bf16.mxu0 0
        %728 = vmatpush1.bf16.msra.mxu0 0
        %729 = vmatprep.subr.bf16.mxu0 0
        %730 = vmatpush1.bf16.msra.mxu0 0
        %731 = vmatprep.subr.bf16.mxu0 0
        %732 = vmatpush1.bf16.msra.mxu0 0
        %733 = vmatprep.subr.bf16.mxu0 0
        %734 = vmatpush1.bf16.msra.mxu0 0
        %735 = vmatprep.mubr.bf16.mxu0 0
        %736 = vmatmul.mubr.bf16.gmra.mrb[0].mxu0 %v647
        %v737 = vpop.f32.mrb[0].mxu0
        %v738 = vadd.f32 0.0, %v737
        %v739 = vpop.f32.mrb[0].mxu0
        %v740 = vpop.f32.mrb[0].mxu0
        %v741 = vadd.f32 0.0, %v740
        %v742 = vpop.f32.mrb[0].mxu0
        %743 = vmatprep.mubr.bf16.mxu0 0
        %744 = vmatmul.mubr.bf16.gmra.mrb[0].mxu0 %v650
        %v745 = vpop.f32.mrb[0].mxu0
        %v746 = vadd.f32 0.0, %v745
        %v747 = vpop.f32.mrb[0].mxu0
        %v748 = vpop.f32.mrb[0].mxu0
        %v749 = vpop.f32.mrb[0].mxu0
        %750 = vdwg.mxu0
        %v751 = vpack.c.bf16 %v691, %v687
        %v752 = vpack.c.bf16 %v693, %v689
        %v753 = vpack.c.bf16 %v741, %v738
        %v754 = vpack.c.bf16 %v697, %v697
        %v755 = vpack.c.bf16 %v699, %v699
        %v756 = vpack.c.bf16 %v746, %v746
        %s757 = scalar_lea.vmem %s2, 432
        %v758 = vld [vmem:[%s757] sm:$0xff]
        %v759 = vld [vmem:[%s757 + $0x8] sm:$0xf]
        %v760 = vld [vmem:[%s757 + $0xc] sm:$0xff]
        %v761 = vld [vmem:[%s757 + $0x14] sm:$0xf]
        %v762 = vld [vmem:[%s757 + $0x18] sm:$0xff]
        %v763 = vld [vmem:[%s757 + $0x20] sm:$0xf]
        %v764 = vld [vmem:[%s757 + $0x24] sm:$0xff]
        %v765 = vld [vmem:[%s757 + $0x2c] sm:$0xf]
        %v766 = vld [vmem:[%s757 + $0x30] sm:$0xff]
        %v767 = vld [vmem:[%s757 + $0x38] sm:$0xf]
        %v768 = vld [vmem:[%s757 + $0x3c] sm:$0xff]
        %v769 = vld [vmem:[%s757 + $0x44] sm:$0xf]
        %v770 = vld [vmem:[%s757 + $0x48] sm:$0xff]
        %v771 = vld [vmem:[%s757 + $0x50] sm:$0xf]
        %v772 = vld [vmem:[%s757 + $0x54] sm:$0xff]
        %v773 = vld [vmem:[%s757 + $0x5c] sm:$0xf]
        %v774 = vld [vmem:[%s757 + $0x60] sm:$0xff]
        %v775 = vld [vmem:[%s757 + $0x68] sm:$0xf]
        %v776 = vld [vmem:[%s757 + $0x6c] sm:$0xff]
        %v777 = vld [vmem:[%s757 + $0x74] sm:$0xf]
        %v778 = vld [vmem:[%s757 + $0x78] sm:$0xff]
        %v779 = vld [vmem:[%s757 + $0x80] sm:$0xf]
        %v780 = vld [vmem:[%s757 + $0x84] sm:$0xff]
        %v781 = vld [vmem:[%s757 + $0x8c] sm:$0xf]
        %v782 = vld [vmem:[%s757 + $0x90] sm:$0xff]
        %v783 = vld [vmem:[%s757 + $0x98] sm:$0xf]
        %v784 = vld [vmem:[%s757 + $0x9c] sm:$0xff]
        %v785 = vld [vmem:[%s757 + $0xa4] sm:$0xf]
        %v786 = vld [vmem:[%s757 + $0xa8] sm:$0xff]
        %v787 = vld [vmem:[%s757 + $0xb0] sm:$0xf]
        %v788 = vld [vmem:[%s757 + $0xb4] sm:$0xff]
        %v789 = vld [vmem:[%s757 + $0xbc] sm:$0xf]
        %v790 = vld [vmem:[%s757 + $0xc0] sm:$0xff]
        %v791 = vld [vmem:[%s757 + $0xc8] sm:$0xf]
        %v792 = vld [vmem:[%s757 + $0xcc] sm:$0xff]
        %v793 = vld [vmem:[%s757 + $0xd4] sm:$0xf]
        %v794 = vld [vmem:[%s757 + $0xd8] sm:$0xff]
        %v795 = vld [vmem:[%s757 + $0xe0] sm:$0xf]
        %v796 = vld [vmem:[%s757 + $0xe4] sm:$0xff]
        %v797 = vld [vmem:[%s757 + $0xec] sm:$0xf]
        %v798 = vld [vmem:[%s757 + $0xf0] sm:$0xff]
        %v799 = vld [vmem:[%s757 + $0xf8] sm:$0xf]
        %v800 = vld [vmem:[%s757 + $0xfc] sm:$0xff]
        %v801 = vld [vmem:[%s757 + $0x104] sm:$0xf]
        %v802 = vld [vmem:[%s757 + $0x108] sm:$0xff]
        %v803 = vld [vmem:[%s757 + $0x110] sm:$0xf]
        %v804 = vld [vmem:[%s757 + $0x114] sm:$0xff]
        %v805 = vld [vmem:[%s757 + $0x11c] sm:$0xf]
        %v806 = vld [vmem:[%s757 + $0x120] sm:$0xff]
        %v807 = vld [vmem:[%s757 + $0x128] sm:$0xf]
        %v808 = vld [vmem:[%s757 + $0x12c] sm:$0xff]
        %v809 = vld [vmem:[%s757 + $0x134] sm:$0xf]
        %v810 = vld [vmem:[%s757 + $0x138] sm:$0xff]
        %v811 = vld [vmem:[%s757 + $0x140] sm:$0xf]
        %v812 = vld [vmem:[%s757 + $0x144] sm:$0xff]
        %v813 = vld [vmem:[%s757 + $0x14c] sm:$0xf]
        %v814 = vld [vmem:[%s757 + $0x150] sm:$0xff]
        %v815 = vld [vmem:[%s757 + $0x158] sm:$0xf]
        %v816 = vld [vmem:[%s757 + $0x15c] sm:$0xff]
        %v817 = vld [vmem:[%s757 + $0x164] sm:$0xf]
        %v818 = vld [vmem:[%s757 + $0x168] sm:$0xff]
        %v819 = vld [vmem:[%s757 + $0x170] sm:$0xf]
        %v820 = vld [vmem:[%s757 + $0x174] sm:$0xff]
        %v821 = vld [vmem:[%s757 + $0x17c] sm:$0xf]
        %v822 = vld [vmem:[%s757 + $0x180] sm:$0xff]
        %v823 = vld [vmem:[%s757 + $0x188] sm:$0xf]
        %v824 = vld [vmem:[%s757 + $0x18c] sm:$0xff]
        %v825 = vld [vmem:[%s757 + $0x194] sm:$0xf]
        %v826 = vld [vmem:[%s757 + $0x198] sm:$0xff]
        %v827 = vld [vmem:[%s757 + $0x1a0] sm:$0xf]
        %v828 = vld [vmem:[%s757 + $0x1a4] sm:$0xff]
        %v829 = vld [vmem:[%s757 + $0x1ac] sm:$0xf]
        %v902 = vunpack.c.l.b16 %v758
        %v903 = vunpack.c.h.b16 %v758
        %v904 = vunpack.c.l.b16 %v759
        %v905 = vunpack.c.l.b16 %v760
        %v906 = vunpack.c.h.b16 %v760
        %v907 = vunpack.c.l.b16 %v761
        %v908 = vunpack.c.l.b16 %v762
        %v909 = vunpack.c.h.b16 %v762
        %v910 = vunpack.c.l.b16 %v763
        %v911 = vunpack.c.l.b16 %v764
        %v912 = vunpack.c.h.b16 %v764
        %v913 = vunpack.c.l.b16 %v765
        %v914 = vunpack.c.l.b16 %v766
        %v915 = vunpack.c.h.b16 %v766
        %v916 = vunpack.c.l.b16 %v767
        %v917 = vunpack.c.l.b16 %v768
        %v918 = vunpack.c.h.b16 %v768
        %v919 = vunpack.c.l.b16 %v769
        %v920 = vunpack.c.l.b16 %v770
        %v921 = vunpack.c.h.b16 %v770
        %v922 = vunpack.c.l.b16 %v771
        %v923 = vunpack.c.l.b16 %v772
        %v924 = vunpack.c.h.b16 %v772
        %v925 = vunpack.c.l.b16 %v773
        %v926 = vunpack.c.l.b16 %v774
        %v927 = vunpack.c.h.b16 %v774
        %v928 = vunpack.c.l.b16 %v775
        %v929 = vunpack.c.l.b16 %v776
        %v930 = vunpack.c.h.b16 %v776
        %v931 = vunpack.c.l.b16 %v777
        %v932 = vunpack.c.l.b16 %v778
        %v933 = vunpack.c.h.b16 %v778
        %v934 = vunpack.c.l.b16 %v779
        %v935 = vunpack.c.l.b16 %v780
        %v936 = vunpack.c.h.b16 %v780
        %v937 = vunpack.c.l.b16 %v781
        %v938 = vunpack.c.l.b16 %v782
        %v939 = vunpack.c.h.b16 %v782
        %v940 = vunpack.c.l.b16 %v783
        %v941 = vunpack.c.l.b16 %v784
        %v942 = vunpack.c.h.b16 %v784
        %v943 = vunpack.c.l.b16 %v785
        %v944 = vunpack.c.l.b16 %v786
        %v945 = vunpack.c.h.b16 %v786
        %v946 = vunpack.c.l.b16 %v787
        %v947 = vunpack.c.l.b16 %v788
        %v948 = vunpack.c.h.b16 %v788
        %v949 = vunpack.c.l.b16 %v789
        %v950 = vunpack.c.l.b16 %v790
        %v951 = vunpack.c.h.b16 %v790
        %v952 = vunpack.c.l.b16 %v791
        %v953 = vunpack.c.l.b16 %v792
        %v954 = vunpack.c.h.b16 %v792
        %v955 = vunpack.c.l.b16 %v793
        %v956 = vunpack.c.l.b16 %v794
        %v957 = vunpack.c.h.b16 %v794
        %v958 = vunpack.c.l.b16 %v795
        %v959 = vunpack.c.l.b16 %v796
        %v960 = vunpack.c.h.b16 %v796
        %v961 = vunpack.c.l.b16 %v797
        %v962 = vunpack.c.l.b16 %v798
        %v963 = vunpack.c.h.b16 %v798
        %v964 = vunpack.c.l.b16 %v799
        %v965 = vunpack.c.l.b16 %v800
        %v966 = vunpack.c.h.b16 %v800
        %v967 = vunpack.c.l.b16 %v801
        %v968 = vunpack.c.l.b16 %v802
        %v969 = vunpack.c.h.b16 %v802
        %v970 = vunpack.c.l.b16 %v803
        %v971 = vunpack.c.l.b16 %v804
        %v972 = vunpack.c.h.b16 %v804
        %v973 = vunpack.c.l.b16 %v805
        %v974 = vunpack.c.l.b16 %v806
        %v975 = vunpack.c.h.b16 %v806
        %v976 = vunpack.c.l.b16 %v807
        %v977 = vunpack.c.l.b16 %v808
        %v978 = vunpack.c.h.b16 %v808
        %v979 = vunpack.c.l.b16 %v809
        %v980 = vunpack.c.l.b16 %v810
        %v981 = vunpack.c.h.b16 %v810
        %v982 = vunpack.c.l.b16 %v811
        %v983 = vunpack.c.l.b16 %v812
        %v984 = vunpack.c.h.b16 %v812
        %v985 = vunpack.c.l.b16 %v813
        %v986 = vunpack.c.l.b16 %v814
        %v987 = vunpack.c.h.b16 %v814
        %v988 = vunpack.c.l.b16 %v815
        %v989 = vunpack.c.l.b16 %v816
        %v990 = vunpack.c.h.b16 %v816
        %v991 = vunpack.c.l.b16 %v817
        %v992 = vunpack.c.l.b16 %v818
        %v993 = vunpack.c.h.b16 %v818
        %v994 = vunpack.c.l.b16 %v819
        %v995 = vunpack.c.l.b16 %v820
        %v996 = vunpack.c.h.b16 %v820
        %v997 = vunpack.c.l.b16 %v821
        %v998 = vunpack.c.l.b16 %v822
        %v999 = vunpack.c.h.b16 %v822
        %v1000 = vunpack.c.l.b16 %v823
        %v1001 = vunpack.c.l.b16 %v824
        %v1002 = vunpack.c.h.b16 %v824
        %v1003 = vunpack.c.l.b16 %v825
        %v1004 = vunpack.c.l.b16 %v826
        %v1005 = vunpack.c.h.b16 %v826
        %v1006 = vunpack.c.l.b16 %v827
        %v1007 = vunpack.c.l.b16 %v828
        %v1008 = vunpack.c.h.b16 %v828
        %v1009 = vunpack.c.l.b16 %v829
        %v1010 = vpack.c.b16 %v905, %v902
        %v1011 = vpack.c.b16 %v906, %v903
        %v1012 = vpack.c.b16 %v907, %v904
        %v1013 = vpack.c.b16 %v911, %v908
        %v1014 = vpack.c.b16 %v912, %v909
        %v1015 = vpack.c.b16 %v913, %v910
        %v1016 = vpack.c.b16 %v917, %v914
        %v1017 = vpack.c.b16 %v918, %v915
        %v1018 = vpack.c.b16 %v919, %v916
        %v1019 = vpack.c.b16 %v923, %v920
        %v1020 = vpack.c.b16 %v924, %v921
        %v1021 = vpack.c.b16 %v925, %v922
        %v1022 = vpack.c.b16 %v929, %v926
        %v1023 = vpack.c.b16 %v930, %v927
        %v1024 = vpack.c.b16 %v931, %v928
        %v1025 = vpack.c.b16 %v935, %v932
        %v1026 = vpack.c.b16 %v936, %v933
        %v1027 = vpack.c.b16 %v937, %v934
        %v1028 = vpack.c.b16 %v941, %v938
        %v1029 = vpack.c.b16 %v942, %v939
        %v1030 = vpack.c.b16 %v943, %v940
        %v1031 = vpack.c.b16 %v947, %v944
        %v1032 = vpack.c.b16 %v948, %v945
        %v1033 = vpack.c.b16 %v949, %v946
        %v1034 = vpack.c.b16 %v953, %v950
        %v1035 = vpack.c.b16 %v954, %v951
        %v1036 = vpack.c.b16 %v955, %v952
        %v1037 = vpack.c.b16 %v959, %v956
        %v1038 = vpack.c.b16 %v960, %v957
        %v1039 = vpack.c.b16 %v961, %v958
        %v1040 = vpack.c.b16 %v965, %v962
        %v1041 = vpack.c.b16 %v966, %v963
        %v1042 = vpack.c.b16 %v967, %v964
        %v1043 = vpack.c.b16 %v971, %v968
        %v1044 = vpack.c.b16 %v972, %v969
        %v1045 = vpack.c.b16 %v973, %v970
        %v1046 = vpack.c.b16 %v977, %v974
        %v1047 = vpack.c.b16 %v978, %v975
        %v1048 = vpack.c.b16 %v979, %v976
        %v1049 = vpack.c.b16 %v983, %v980
        %v1050 = vpack.c.b16 %v984, %v981
        %v1051 = vpack.c.b16 %v985, %v982
        %v1052 = vpack.c.b16 %v989, %v986
        %v1053 = vpack.c.b16 %v990, %v987
        %v1054 = vpack.c.b16 %v991, %v988
        %v1055 = vpack.c.b16 %v995, %v992
        %v1056 = vpack.c.b16 %v996, %v993
        %v1057 = vpack.c.b16 %v997, %v994
        %v1058 = vpack.c.b16 %v1001, %v998
        %v1059 = vpack.c.b16 %v1002, %v999
        %v1060 = vpack.c.b16 %v1003, %v1000
        %v1061 = vpack.c.b16 %v1007, %v1004
        %v1062 = vpack.c.b16 %v1008, %v1005
        %v1063 = vpack.c.b16 %v1009, %v1006
        %vm1118 = vcmask 261120
        %v1120 = vsel %vm1118, %v753, 0
        %v1123 = vsel %vm1118, %v756, 0
        %1125 = vmatprep.subr.bf16.mxu0 %v1011
        %1126 = vmatpush1.bf16.msra.mxu0 %v1010
        %1127 = vmatprep.subr.bf16.mxu0 %v1014
        %1128 = vmatpush1.bf16.msra.mxu0 %v1013
        %1129 = vmatprep.subr.bf16.mxu0 %v1017
        %1130 = vmatpush1.bf16.msra.mxu0 %v1016
        %1131 = vmatprep.subr.bf16.mxu0 %v1020
        %1132 = vmatpush1.bf16.msra.mxu0 %v1019
        %1133 = vmatprep.subr.bf16.mxu0 %v1023
        %1134 = vmatpush1.bf16.msra.mxu0 %v1022
        %1135 = vmatprep.subr.bf16.mxu0 %v1026
        %1136 = vmatpush1.bf16.msra.mxu0 %v1025
        %1137 = vmatprep.subr.bf16.mxu0 %v1029
        %1138 = vmatpush1.bf16.msra.mxu0 %v1028
        %1139 = vmatprep.subr.bf16.mxu0 %v1032
        %1140 = vmatpush1.bf16.msra.mxu0 %v1031
        %1141 = vmatprep.subr.bf16.mxu0 %v1035
        %1142 = vmatpush1.bf16.msra.mxu0 %v1034
        %1143 = vmatprep.subr.bf16.mxu0 %v1038
        %1144 = vmatpush1.bf16.msra.mxu0 %v1037
        %1145 = vmatprep.subr.bf16.mxu0 %v1041
        %1146 = vmatpush1.bf16.msra.mxu0 %v1040
        %1147 = vmatprep.subr.bf16.mxu0 %v1044
        %1148 = vmatpush1.bf16.msra.mxu0 %v1043
        %1149 = vmatprep.subr.bf16.mxu0 %v1047
        %1150 = vmatpush1.bf16.msra.mxu0 %v1046
        %1151 = vmatprep.subr.bf16.mxu0 %v1050
        %1152 = vmatpush1.bf16.msra.mxu0 %v1049
        %1153 = vmatprep.subr.bf16.mxu0 %v1053
        %1154 = vmatpush1.bf16.msra.mxu0 %v1052
        %1155 = vmatprep.subr.bf16.mxu0 %v1056
        %1156 = vmatpush1.bf16.msra.mxu0 %v1055
        %1157 = vmatprep.mubr.bf16.mxu0 %v752
        %1158 = vmatmul.mubr.bf16.gmra.mrb[0].mxu0 %v751
        %v1159 = vpop.f32.mrb[0].mxu0
        %v1160 = vadd.f32 0.0, %v1159
        %v1161 = vpop.f32.mrb[0].mxu0
        %v1162 = vadd.f32 0.0, %v1161
        %v1163 = vpop.f32.mrb[0].mxu0
        %v1164 = vadd.f32 0.0, %v1163
        %v1165 = vpop.f32.mrb[0].mxu0
        %v1166 = vadd.f32 0.0, %v1165
        %1167 = vmatprep.mubr.bf16.mxu0 %v755
        %1168 = vmatmul.mubr.bf16.gmra.mrb[0].mxu0 %v754
        %v1169 = vpop.f32.mrb[0].mxu0
        %v1170 = vadd.f32 0.0, %v1169
        %v1171 = vpop.f32.mrb[0].mxu0
        %v1172 = vadd.f32 0.0, %v1171
        %v1173 = vpop.f32.mrb[0].mxu0
        %v1174 = vpop.f32.mrb[0].mxu0
        %1175 = vdwg.mxu0
        %1176 = vmatprep.subr.bf16.mxu0 %v1059
        %1177 = vmatpush1.bf16.msra.mxu0 %v1058
        %1178 = vmatprep.subr.bf16.mxu0 %v1062
        %1179 = vmatpush1.bf16.msra.mxu0 %v1061
        %1180 = vmatprep.subr.bf16.mxu0 0
        %1181 = vmatpush1.bf16.msra.mxu0 0
        %1182 = vmatprep.subr.bf16.mxu0 0
        %1183 = vmatpush1.bf16.msra.mxu0 0
        %1184 = vmatprep.subr.bf16.mxu0 0
        %1185 = vmatpush1.bf16.msra.mxu0 0
        %1186 = vmatprep.subr.bf16.mxu0 0
        %1187 = vmatpush1.bf16.msra.mxu0 0
        %1188 = vmatprep.subr.bf16.mxu0 0
        %1189 = vmatpush1.bf16.msra.mxu0 0
        %1190 = vmatprep.subr.bf16.mxu0 0
        %1191 = vmatpush1.bf16.msra.mxu0 0
        %1192 = vmatprep.subr.bf16.mxu0 0
        %1193 = vmatpush1.bf16.msra.mxu0 0
        %1194 = vmatprep.subr.bf16.mxu0 0
        %1195 = vmatpush1.bf16.msra.mxu0 0
        %1196 = vmatprep.subr.bf16.mxu0 0
        %1197 = vmatpush1.bf16.msra.mxu0 0
        %1198 = vmatprep.subr.bf16.mxu0 0
        %1199 = vmatpush1.bf16.msra.mxu0 0
        %1200 = vmatprep.subr.bf16.mxu0 0
        %1201 = vmatpush1.bf16.msra.mxu0 0
        %1202 = vmatprep.subr.bf16.mxu0 0
        %1203 = vmatpush1.bf16.msra.mxu0 0
        %1204 = vmatprep.subr.bf16.mxu0 0
        %1205 = vmatpush1.bf16.msra.mxu0 0
        %1206 = vmatprep.subr.bf16.mxu0 0
        %1207 = vmatpush1.bf16.msra.mxu0 0
        %1208 = vmatprep.mubr.bf16.mxu0 0
        %1209 = vmatmul.mubr.bf16.gmra.mrb[0].mxu0 %v1120
        %v1210 = vpop.f32.mrb[0].mxu0
        %v1211 = vadd.f32 %v1160, %v1210
        %v1212 = vpop.f32.mrb[0].mxu0
        %v1213 = vadd.f32 %v1162, %v1212
        %v1214 = vpop.f32.mrb[0].mxu0
        %v1215 = vadd.f32 %v1164, %v1214
        %v1216 = vpop.f32.mrb[0].mxu0
        %v1217 = vadd.f32 %v1166, %v1216
        %1218 = vmatprep.mubr.bf16.mxu0 0
        %1219 = vmatmul.mubr.bf16.gmra.mrb[0].mxu0 %v1123
        %v1220 = vpop.f32.mrb[0].mxu0
        %v1221 = vadd.f32 %v1170, %v1220
        %v1222 = vpop.f32.mrb[0].mxu0
        %v1223 = vadd.f32 %v1172, %v1222
        %v1224 = vpop.f32.mrb[0].mxu0
        %v1225 = vpop.f32.mrb[0].mxu0
        %1226 = vdwg.mxu0
        %1227 = vmatprep.subr.bf16.mxu0 0
        %1228 = vmatpush1.bf16.msra.mxu0 %v1012
        %1229 = vmatprep.subr.bf16.mxu0 0
        %1230 = vmatpush1.bf16.msra.mxu0 %v1015
        %1231 = vmatprep.subr.bf16.mxu0 0
        %1232 = vmatpush1.bf16.msra.mxu0 %v1018
        %1233 = vmatprep.subr.bf16.mxu0 0
        %1234 = vmatpush1.bf16.msra.mxu0 %v1021
        %1235 = vmatprep.subr.bf16.mxu0 0
        %1236 = vmatpush1.bf16.msra.mxu0 %v1024
        %1237 = vmatprep.subr.bf16.mxu0 0
        %1238 = vmatpush1.bf16.msra.mxu0 %v1027
        %1239 = vmatprep.subr.bf16.mxu0 0
        %1240 = vmatpush1.bf16.msra.mxu0 %v1030
        %1241 = vmatprep.subr.bf16.mxu0 0
        %1242 = vmatpush1.bf16.msra.mxu0 %v1033
        %1243 = vmatprep.subr.bf16.mxu0 0
        %1244 = vmatpush1.bf16.msra.mxu0 %v1036
        %1245 = vmatprep.subr.bf16.mxu0 0
        %1246 = vmatpush1.bf16.msra.mxu0 %v1039
        %1247 = vmatprep.subr.bf16.mxu0 0
        %1248 = vmatpush1.bf16.msra.mxu0 %v1042
        %1249 = vmatprep.subr.bf16.mxu0 0
        %1250 = vmatpush1.bf16.msra.mxu0 %v1045
        %1251 = vmatprep.subr.bf16.mxu0 0
        %1252 = vmatpush1.bf16.msra.mxu0 %v1048
        %1253 = vmatprep.subr.bf16.mxu0 0
        %1254 = vmatpush1.bf16.msra.mxu0 %v1051
        %1255 = vmatprep.subr.bf16.mxu0 0
        %1256 = vmatpush1.bf16.msra.mxu0 %v1054
        %1257 = vmatprep.subr.bf16.mxu0 0
        %1258 = vmatpush1.bf16.msra.mxu0 %v1057
        %1259 = vmatprep.mubr.bf16.mxu0 %v752
        %1260 = vmatmul.mubr.bf16.gmra.mrb[0].mxu0 %v751
        %v1261 = vpop.f32.mrb[0].mxu0
        %v1262 = vadd.f32 0.0, %v1261
        %v1263 = vpop.f32.mrb[0].mxu0
        %v1264 = vpop.f32.mrb[0].mxu0
        %v1265 = vadd.f32 0.0, %v1264
        %v1266 = vpop.f32.mrb[0].mxu0
        %1267 = vmatprep.mubr.bf16.mxu0 %v755
        %1268 = vmatmul.mubr.bf16.gmra.mrb[0].mxu0 %v754
        %v1269 = vpop.f32.mrb[0].mxu0
        %v1270 = vadd.f32 0.0, %v1269
        %v1271 = vpop.f32.mrb[0].mxu0
        %v1272 = vpop.f32.mrb[0].mxu0
        %v1273 = vpop.f32.mrb[0].mxu0
        %1274 = vdwg.mxu0
        %1275 = vmatprep.subr.bf16.mxu0 0
        %1276 = vmatpush1.bf16.msra.mxu0 %v1060
        %1277 = vmatprep.subr.bf16.mxu0 0
        %1278 = vmatpush1.bf16.msra.mxu0 %v1063
        %1279 = vmatprep.subr.bf16.mxu0 0
        %1280 = vmatpush1.bf16.msra.mxu0 0
        %1281 = vmatprep.subr.bf16.mxu0 0
        %1282 = vmatpush1.bf16.msra.mxu0 0
        %1283 = vmatprep.subr.bf16.mxu0 0
        %1284 = vmatpush1.bf16.msra.mxu0 0
        %1285 = vmatprep.subr.bf16.mxu0 0
        %1286 = vmatpush1.bf16.msra.mxu0 0
        %1287 = vmatprep.subr.bf16.mxu0 0
        %1288 = vmatpush1.bf16.msra.mxu0 0
        %1289 = vmatprep.subr.bf16.mxu0 0
        %1290 = vmatpush1.bf16.msra.mxu0 0
        %1291 = vmatprep.subr.bf16.mxu0 0
        %1292 = vmatpush1.bf16.msra.mxu0 0
        %1293 = vmatprep.subr.bf16.mxu0 0
        %1294 = vmatpush1.bf16.msra.mxu0 0
        %1295 = vmatprep.subr.bf16.mxu0 0
        %1296 = vmatpush1.bf16.msra.mxu0 0
        %1297 = vmatprep.subr.bf16.mxu0 0
        %1298 = vmatpush1.bf16.msra.mxu0 0
        %1299 = vmatprep.subr.bf16.mxu0 0
        %1300 = vmatpush1.bf16.msra.mxu0 0
        %1301 = vmatprep.subr.bf16.mxu0 0
        %1302 = vmatpush1.bf16.msra.mxu0 0
        %1303 = vmatprep.subr.bf16.mxu0 0
        %1304 = vmatpush1.bf16.msra.mxu0 0
        %1305 = vmatprep.subr.bf16.mxu0 0
        %1306 = vmatpush1.bf16.msra.mxu0 0
        %1307 = vmatprep.mubr.bf16.mxu0 0
        %1308 = vmatmul.mubr.bf16.gmra.mrb[0].mxu0 %v1120
        %v1309 = vpop.f32.mrb[0].mxu0
        %v1310 = vadd.f32 %v1262, %v1309
        %v1311 = vpop.f32.mrb[0].mxu0
        %v1312 = vpop.f32.mrb[0].mxu0
        %v1313 = vadd.f32 %v1265, %v1312
        %v1314 = vpop.f32.mrb[0].mxu0
        %1315 = vmatprep.mubr.bf16.mxu0 0
        %1316 = vmatmul.mubr.bf16.gmra.mrb[0].mxu0 %v1123
        %v1317 = vpop.f32.mrb[0].mxu0
        %v1318 = vadd.f32 %v1270, %v1317
        %v1319 = vpop.f32.mrb[0].mxu0
        %v1320 = vpop.f32.mrb[0].mxu0
        %v1321 = vpop.f32.mrb[0].mxu0
        %1322 = vdwg.mxu0
        %v1395 = vunpack.c.l.b16 %v562
        %v1396 = vunpack.c.h.b16 %v562
        %v1397 = vunpack.c.l.b16 %v563
        %v1398 = vunpack.c.l.b16 %v564
        %v1399 = vunpack.c.h.b16 %v564
        %v1400 = vunpack.c.l.b16 %v565
        %v1401 = vunpack.c.l.b16 %v566
        %v1402 = vunpack.c.h.b16 %v566
        %v1403 = vunpack.c.l.b16 %v567
        %v1404 = vunpack.c.l.b16 %v568
        %v1405 = vunpack.c.h.b16 %v568
        %v1406 = vunpack.c.l.b16 %v569
        %v1407 = vunpack.c.l.b16 %v570
        %v1408 = vunpack.c.h.b16 %v570
        %v1409 = vunpack.c.l.b16 %v571
        %v1410 = vunpack.c.l.b16 %v572
        %v1411 = vunpack.c.h.b16 %v572
        %v1412 = vunpack.c.l.b16 %v573
        %v1413 = vunpack.c.l.b16 %v574
        %v1414 = vunpack.c.h.b16 %v574
        %v1415 = vunpack.c.l.b16 %v575
        %v1416 = vunpack.c.l.b16 %v576
        %v1417 = vunpack.c.h.b16 %v576
        %v1418 = vunpack.c.l.b16 %v577
        %v1419 = vunpack.c.l.b16 %v578
        %v1420 = vunpack.c.h.b16 %v578
        %v1421 = vunpack.c.l.b16 %v579
        %v1422 = vunpack.c.l.b16 %v580
        %v1423 = vunpack.c.h.b16 %v580
        %v1424 = vunpack.c.l.b16 %v581
        %v1425 = vunpack.c.l.b16 %v582
        %v1426 = vunpack.c.h.b16 %v582
        %v1427 = vunpack.c.l.b16 %v583
        %v1428 = vunpack.c.l.b16 %v584
        %v1429 = vunpack.c.h.b16 %v584
        %v1430 = vunpack.c.l.b16 %v585
        %v1431 = vunpack.c.l.b16 %v586
        %v1432 = vunpack.c.h.b16 %v586
        %v1433 = vunpack.c.l.b16 %v587
        %v1434 = vunpack.c.l.b16 %v588
        %v1435 = vunpack.c.h.b16 %v588
        %v1436 = vunpack.c.l.b16 %v589
        %v1437 = vunpack.c.l.b16 %v590
        %v1438 = vunpack.c.h.b16 %v590
        %v1439 = vunpack.c.l.b16 %v591
        %v1440 = vunpack.c.l.b16 %v592
        %v1441 = vunpack.c.h.b16 %v592
        %v1442 = vunpack.c.l.b16 %v593
        %v1443 = vunpack.c.l.b16 %v594
        %v1444 = vunpack.c.h.b16 %v594
        %v1445 = vunpack.c.l.b16 %v595
        %v1446 = vunpack.c.l.b16 %v596
        %v1447 = vunpack.c.h.b16 %v596
        %v1448 = vunpack.c.l.b16 %v597
        %v1449 = vunpack.c.l.b16 %v598
        %v1450 = vunpack.c.h.b16 %v598
        %v1451 = vunpack.c.l.b16 %v599
        %v1452 = vunpack.c.l.b16 %v600
        %v1453 = vunpack.c.h.b16 %v600
        %v1454 = vunpack.c.l.b16 %v601
        %v1455 = vunpack.c.l.b16 %v602
        %v1456 = vunpack.c.h.b16 %v602
        %v1457 = vunpack.c.l.b16 %v603
        %v1458 = vunpack.c.l.b16 %v604
        %v1459 = vunpack.c.h.b16 %v604
        %v1460 = vunpack.c.l.b16 %v605
        %v1461 = vunpack.c.l.b16 %v606
        %v1462 = vunpack.c.h.b16 %v606
        %v1463 = vunpack.c.l.b16 %v607
        %v1464 = vunpack.c.l.b16 %v608
        %v1465 = vunpack.c.h.b16 %v608
        %v1466 = vunpack.c.l.b16 %v609
        %v1467 = vunpack.c.l.b16 %v610
        %v1468 = vunpack.c.h.b16 %v610
        %v1469 = vunpack.c.l.b16 %v611
        %v1470 = vunpack.c.l.b16 %v612
        %v1471 = vunpack.c.h.b16 %v612
        %v1472 = vunpack.c.l.b16 %v613
        %v1473 = vunpack.c.l.b16 %v614
        %v1474 = vunpack.c.h.b16 %v614
        %v1475 = vunpack.c.l.b16 %v615
        %v1476 = vunpack.c.l.b16 %v616
        %v1477 = vunpack.c.h.b16 %v616
        %v1478 = vunpack.c.l.b16 %v617
        %v1479 = vunpack.c.l.b16 %v618
        %v1480 = vunpack.c.h.b16 %v618
        %v1481 = vunpack.c.l.b16 %v619
        %v1482 = vunpack.c.l.b16 %v620
        %v1483 = vunpack.c.h.b16 %v620
        %v1484 = vunpack.c.l.b16 %v621
        %v1485 = vunpack.c.l.b16 %v622
        %v1486 = vunpack.c.h.b16 %v622
        %v1487 = vunpack.c.l.b16 %v623
        %v1488 = vunpack.c.l.b16 %v624
        %v1489 = vunpack.c.h.b16 %v624
        %v1490 = vunpack.c.l.b16 %v625
        %v1491 = vunpack.c.l.b16 %v626
        %v1492 = vunpack.c.h.b16 %v626
        %v1493 = vunpack.c.l.b16 %v627
        %v1494 = vunpack.c.l.b16 %v628
        %v1495 = vunpack.c.h.b16 %v628
        %v1496 = vunpack.c.l.b16 %v629
        %v1497 = vunpack.c.l.b16 %v630
        %v1498 = vunpack.c.h.b16 %v630
        %v1499 = vunpack.c.l.b16 %v631
        %v1500 = vunpack.c.l.b16 %v632
        %v1501 = vunpack.c.h.b16 %v632
        %v1502 = vunpack.c.l.b16 %v633
        %v1503 = vpack.c.b16 %v1398, %v1395
        %v1504 = vpack.c.b16 %v1399, %v1396
        %v1505 = vpack.c.b16 %v1400, %v1397
        %v1506 = vpack.c.b16 %v1404, %v1401
        %v1507 = vpack.c.b16 %v1405, %v1402
        %v1508 = vpack.c.b16 %v1406, %v1403
        %v1509 = vpack.c.b16 %v1410, %v1407
        %v1510 = vpack.c.b16 %v1411, %v1408
        %v1511 = vpack.c.b16 %v1412, %v1409
        %v1512 = vpack.c.b16 %v1416, %v1413
        %v1513 = vpack.c.b16 %v1417, %v1414
        %v1514 = vpack.c.b16 %v1418, %v1415
        %v1515 = vpack.c.b16 %v1422, %v1419
        %v1516 = vpack.c.b16 %v1423, %v1420
        %v1517 = vpack.c.b16 %v1424, %v1421
        %v1518 = vpack.c.b16 %v1428, %v1425
        %v1519 = vpack.c.b16 %v1429, %v1426
        %v1520 = vpack.c.b16 %v1430, %v1427
        %v1521 = vpack.c.b16 %v1434, %v1431
        %v1522 = vpack.c.b16 %v1435, %v1432
        %v1523 = vpack.c.b16 %v1436, %v1433
        %v1524 = vpack.c.b16 %v1440, %v1437
        %v1525 = vpack.c.b16 %v1441, %v1438
        %v1526 = vpack.c.b16 %v1442, %v1439
        %v1527 = vpack.c.b16 %v1446, %v1443
        %v1528 = vpack.c.b16 %v1447, %v1444
        %v1529 = vpack.c.b16 %v1448, %v1445
        %v1530 = vpack.c.b16 %v1452, %v1449
        %v1531 = vpack.c.b16 %v1453, %v1450
        %v1532 = vpack.c.b16 %v1454, %v1451
        %v1533 = vpack.c.b16 %v1458, %v1455
        %v1534 = vpack.c.b16 %v1459, %v1456
        %v1535 = vpack.c.b16 %v1460, %v1457
        %v1536 = vpack.c.b16 %v1464, %v1461
        %v1537 = vpack.c.b16 %v1465, %v1462
        %v1538 = vpack.c.b16 %v1466, %v1463
        %v1539 = vpack.c.b16 %v1470, %v1467
        %v1540 = vpack.c.b16 %v1471, %v1468
        %v1541 = vpack.c.b16 %v1472, %v1469
        %v1542 = vpack.c.b16 %v1476, %v1473
        %v1543 = vpack.c.b16 %v1477, %v1474
        %v1544 = vpack.c.b16 %v1478, %v1475
        %v1545 = vpack.c.b16 %v1482, %v1479
        %v1546 = vpack.c.b16 %v1483, %v1480
        %v1547 = vpack.c.b16 %v1484, %v1481
        %v1548 = vpack.c.b16 %v1488, %v1485
        %v1549 = vpack.c.b16 %v1489, %v1486
        %v1550 = vpack.c.b16 %v1490, %v1487
        %v1551 = vpack.c.b16 %v1494, %v1491
        %v1552 = vpack.c.b16 %v1495, %v1492
        %v1553 = vpack.c.b16 %v1496, %v1493
        %v1554 = vpack.c.b16 %v1500, %v1497
        %v1555 = vpack.c.b16 %v1501, %v1498
        %v1556 = vpack.c.b16 %v1502, %v1499
        %v1612 = vsel %vm1118, %v558, 0
        %v1615 = vsel %vm1118, %v561, 0
        %1617 = vmatprep.subr.bf16.mxu0 %v1504
        %1618 = vmatpush1.bf16.msra.mxu0 %v1503
        %1619 = vmatprep.subr.bf16.mxu0 %v1507
        %1620 = vmatpush1.bf16.msra.mxu0 %v1506
        %1621 = vmatprep.subr.bf16.mxu0 %v1510
        %1622 = vmatpush1.bf16.msra.mxu0 %v1509
        %1623 = vmatprep.subr.bf16.mxu0 %v1513
        %1624 = vmatpush1.bf16.msra.mxu0 %v1512
        %1625 = vmatprep.subr.bf16.mxu0 %v1516
        %1626 = vmatpush1.bf16.msra.mxu0 %v1515
        %1627 = vmatprep.subr.bf16.mxu0 %v1519
        %1628 = vmatpush1.bf16.msra.mxu0 %v1518
        %1629 = vmatprep.subr.bf16.mxu0 %v1522
        %1630 = vmatpush1.bf16.msra.mxu0 %v1521
        %1631 = vmatprep.subr.bf16.mxu0 %v1525
        %1632 = vmatpush1.bf16.msra.mxu0 %v1524
        %1633 = vmatprep.subr.bf16.mxu0 %v1528
        %1634 = vmatpush1.bf16.msra.mxu0 %v1527
        %1635 = vmatprep.subr.bf16.mxu0 %v1531
        %1636 = vmatpush1.bf16.msra.mxu0 %v1530
        %1637 = vmatprep.subr.bf16.mxu0 %v1534
        %1638 = vmatpush1.bf16.msra.mxu0 %v1533
        %1639 = vmatprep.subr.bf16.mxu0 %v1537
        %1640 = vmatpush1.bf16.msra.mxu0 %v1536
        %1641 = vmatprep.subr.bf16.mxu0 %v1540
        %1642 = vmatpush1.bf16.msra.mxu0 %v1539
        %1643 = vmatprep.subr.bf16.mxu0 %v1543
        %1644 = vmatpush1.bf16.msra.mxu0 %v1542
        %1645 = vmatprep.subr.bf16.mxu0 %v1546
        %1646 = vmatpush1.bf16.msra.mxu0 %v1545
        %1647 = vmatprep.subr.bf16.mxu0 %v1549
        %1648 = vmatpush1.bf16.msra.mxu0 %v1548
        %1649 = vmatprep.mubr.bf16.mxu0 %v557
        %1650 = vmatmul.mubr.bf16.gmra.mrb[0].mxu0 %v556
        %v1651 = vpop.f32.mrb[0].mxu0
        %v1652 = vadd.f32 %v1211, %v1651
        %v1653 = vpop.f32.mrb[0].mxu0
        %v1654 = vadd.f32 %v1213, %v1653
        %v1655 = vpop.f32.mrb[0].mxu0
        %v1656 = vadd.f32 %v1215, %v1655
        %v1657 = vpop.f32.mrb[0].mxu0
        %v1658 = vadd.f32 %v1217, %v1657
        %1659 = vmatprep.mubr.bf16.mxu0 %v560
        %1660 = vmatmul.mubr.bf16.gmra.mrb[0].mxu0 %v559
        %v1661 = vpop.f32.mrb[0].mxu0
        %v1662 = vadd.f32 %v1221, %v1661
        %v1663 = vpop.f32.mrb[0].mxu0
        %v1664 = vadd.f32 %v1223, %v1663
        %v1665 = vpop.f32.mrb[0].mxu0
        %v1666 = vpop.f32.mrb[0].mxu0
        %1667 = vdwg.mxu0
        %1668 = vmatprep.subr.bf16.mxu0 %v1552
        %1669 = vmatpush1.bf16.msra.mxu0 %v1551
        %1670 = vmatprep.subr.bf16.mxu0 %v1555
        %1671 = vmatpush1.bf16.msra.mxu0 %v1554
        %1672 = vmatprep.subr.bf16.mxu0 0
        %1673 = vmatpush1.bf16.msra.mxu0 0
        %1674 = vmatprep.subr.bf16.mxu0 0
        %1675 = vmatpush1.bf16.msra.mxu0 0
        %1676 = vmatprep.subr.bf16.mxu0 0
        %1677 = vmatpush1.bf16.msra.mxu0 0
        %1678 = vmatprep.subr.bf16.mxu0 0
        %1679 = vmatpush1.bf16.msra.mxu0 0
        %1680 = vmatprep.subr.bf16.mxu0 0
        %1681 = vmatpush1.bf16.msra.mxu0 0
        %1682 = vmatprep.subr.bf16.mxu0 0
        %1683 = vmatpush1.bf16.msra.mxu0 0
        %1684 = vmatprep.subr.bf16.mxu0 0
        %1685 = vmatpush1.bf16.msra.mxu0 0
        %1686 = vmatprep.subr.bf16.mxu0 0
        %1687 = vmatpush1.bf16.msra.mxu0 0
        %1688 = vmatprep.subr.bf16.mxu0 0
        %1689 = vmatpush1.bf16.msra.mxu0 0
        %1690 = vmatprep.subr.bf16.mxu0 0
        %1691 = vmatpush1.bf16.msra.mxu0 0
        %1692 = vmatprep.subr.bf16.mxu0 0
        %1693 = vmatpush1.bf16.msra.mxu0 0
        %1694 = vmatprep.subr.bf16.mxu0 0
        %1695 = vmatpush1.bf16.msra.mxu0 0
        %1696 = vmatprep.subr.bf16.mxu0 0
        %1697 = vmatpush1.bf16.msra.mxu0 0
        %1698 = vmatprep.subr.bf16.mxu0 0
        %1699 = vmatpush1.bf16.msra.mxu0 0
        %1700 = vmatprep.mubr.bf16.mxu0 0
        %1701 = vmatmul.mubr.bf16.gmra.mrb[0].mxu0 %v1612
        %v1702 = vpop.f32.mrb[0].mxu0
        %v1703 = vadd.f32 %v1652, %v1702
        %v1704 = vpop.f32.mrb[0].mxu0
        %v1705 = vadd.f32 %v1654, %v1704
        %v1706 = vpop.f32.mrb[0].mxu0
        %v1707 = vadd.f32 %v1656, %v1706
        %v1708 = vpop.f32.mrb[0].mxu0
        %v1709 = vadd.f32 %v1658, %v1708
        %1710 = vmatprep.mubr.bf16.mxu0 0
        %1711 = vmatmul.mubr.bf16.gmra.mrb[0].mxu0 %v1615
        %v1712 = vpop.f32.mrb[0].mxu0
        %v1713 = vadd.f32 %v1662, %v1712
        %v1714 = vpop.f32.mrb[0].mxu0
        %v1715 = vadd.f32 %v1664, %v1714
        %v1716 = vpop.f32.mrb[0].mxu0
        %v1717 = vpop.f32.mrb[0].mxu0
        %1718 = vdwg.mxu0
        %1719 = vmatprep.subr.bf16.mxu0 0
        %1720 = vmatpush1.bf16.msra.mxu0 %v1505
        %1721 = vmatprep.subr.bf16.mxu0 0
        %1722 = vmatpush1.bf16.msra.mxu0 %v1508
        %1723 = vmatprep.subr.bf16.mxu0 0
        %1724 = vmatpush1.bf16.msra.mxu0 %v1511
        %1725 = vmatprep.subr.bf16.mxu0 0
        %1726 = vmatpush1.bf16.msra.mxu0 %v1514
        %1727 = vmatprep.subr.bf16.mxu0 0
        %1728 = vmatpush1.bf16.msra.mxu0 %v1517
        %1729 = vmatprep.subr.bf16.mxu0 0
        %1730 = vmatpush1.bf16.msra.mxu0 %v1520
        %1731 = vmatprep.subr.bf16.mxu0 0
        %1732 = vmatpush1.bf16.msra.mxu0 %v1523
        %1733 = vmatprep.subr.bf16.mxu0 0
        %1734 = vmatpush1.bf16.msra.mxu0 %v1526
        %1735 = vmatprep.subr.bf16.mxu0 0
        %1736 = vmatpush1.bf16.msra.mxu0 %v1529
        %1737 = vmatprep.subr.bf16.mxu0 0
        %1738 = vmatpush1.bf16.msra.mxu0 %v1532
        %1739 = vmatprep.subr.bf16.mxu0 0
        %1740 = vmatpush1.bf16.msra.mxu0 %v1535
        %1741 = vmatprep.subr.bf16.mxu0 0
        %1742 = vmatpush1.bf16.msra.mxu0 %v1538
        %1743 = vmatprep.subr.bf16.mxu0 0
        %1744 = vmatpush1.bf16.msra.mxu0 %v1541
        %1745 = vmatprep.subr.bf16.mxu0 0
        %1746 = vmatpush1.bf16.msra.mxu0 %v1544
        %1747 = vmatprep.subr.bf16.mxu0 0
        %1748 = vmatpush1.bf16.msra.mxu0 %v1547
        %1749 = vmatprep.subr.bf16.mxu0 0
        %1750 = vmatpush1.bf16.msra.mxu0 %v1550
        %1751 = vmatprep.mubr.bf16.mxu0 %v557
        %1752 = vmatmul.mubr.bf16.gmra.mrb[0].mxu0 %v556
        %v1753 = vpop.f32.mrb[0].mxu0
        %v1754 = vadd.f32 %v1310, %v1753
        %v1755 = vpop.f32.mrb[0].mxu0
        %v1756 = vpop.f32.mrb[0].mxu0
        %v1757 = vadd.f32 %v1313, %v1756
        %v1758 = vpop.f32.mrb[0].mxu0
        %1759 = vmatprep.mubr.bf16.mxu0 %v560
        %1760 = vmatmul.mubr.bf16.gmra.mrb[0].mxu0 %v559
        %v1761 = vpop.f32.mrb[0].mxu0
        %v1762 = vadd.f32 %v1318, %v1761
        %v1763 = vpop.f32.mrb[0].mxu0
        %v1764 = vpop.f32.mrb[0].mxu0
        %v1765 = vpop.f32.mrb[0].mxu0
        %1766 = vdwg.mxu0
        %1767 = vmatprep.subr.bf16.mxu0 0
        %1768 = vmatpush1.bf16.msra.mxu0 %v1553
        %1769 = vmatprep.subr.bf16.mxu0 0
        %1770 = vmatpush1.bf16.msra.mxu0 %v1556
        %1771 = vmatprep.subr.bf16.mxu0 0
        %1772 = vmatpush1.bf16.msra.mxu0 0
        %1773 = vmatprep.subr.bf16.mxu0 0
        %1774 = vmatpush1.bf16.msra.mxu0 0
        %1775 = vmatprep.subr.bf16.mxu0 0
        %1776 = vmatpush1.bf16.msra.mxu0 0
        %1777 = vmatprep.subr.bf16.mxu0 0
        %1778 = vmatpush1.bf16.msra.mxu0 0
        %1779 = vmatprep.subr.bf16.mxu0 0
        %1780 = vmatpush1.bf16.msra.mxu0 0
        %1781 = vmatprep.subr.bf16.mxu0 0
        %1782 = vmatpush1.bf16.msra.mxu0 0
        %1783 = vmatprep.subr.bf16.mxu0 0
        %1784 = vmatpush1.bf16.msra.mxu0 0
        %1785 = vmatprep.subr.bf16.mxu0 0
        %1786 = vmatpush1.bf16.msra.mxu0 0
        %1787 = vmatprep.subr.bf16.mxu0 0
        %1788 = vmatpush1.bf16.msra.mxu0 0
        %1789 = vmatprep.subr.bf16.mxu0 0
        %1790 = vmatpush1.bf16.msra.mxu0 0
        %1791 = vmatprep.subr.bf16.mxu0 0
        %1792 = vmatpush1.bf16.msra.mxu0 0
        %1793 = vmatprep.subr.bf16.mxu0 0
        %1794 = vmatpush1.bf16.msra.mxu0 0
        %1795 = vmatprep.subr.bf16.mxu0 0
        %1796 = vmatpush1.bf16.msra.mxu0 0
        %1797 = vmatprep.subr.bf16.mxu0 0
        %1798 = vmatpush1.bf16.msra.mxu0 0
        %1799 = vmatprep.mubr.bf16.mxu0 0
        %1800 = vmatmul.mubr.bf16.gmra.mrb[0].mxu0 %v1612
        %v1801 = vpop.f32.mrb[0].mxu0
        %v1802 = vadd.f32 %v1754, %v1801
        %v1803 = vpop.f32.mrb[0].mxu0
        %v1804 = vpop.f32.mrb[0].mxu0
        %v1805 = vadd.f32 %v1757, %v1804
        %v1806 = vpop.f32.mrb[0].mxu0
        %1807 = vmatprep.mubr.bf16.mxu0 0
        %1808 = vmatmul.mubr.bf16.gmra.mrb[0].mxu0 %v1615
        %v1809 = vpop.f32.mrb[0].mxu0
        %v1810 = vadd.f32 %v1762, %v1809
        %v1811 = vpop.f32.mrb[0].mxu0
        %v1812 = vpop.f32.mrb[0].mxu0
        %v1813 = vpop.f32.mrb[0].mxu0
        %1814 = vdwg.mxu0
        %s1815 = scalar_lea.vmem %s1, 24
        %v1816 = vld [vmem:[%s1815] sm:$0xf]
        %v1817 = vld [vmem:[%s1815 + $0x4] sm:$0xf]
        %v1818 = vld [vmem:[%s1815 + $0x8] sm:$0xf]
        %v1822 = vunpack.c.l.b16 %v1816
        %v1823 = vunpack.c.l.b16 %v1817
        %v1824 = vunpack.c.l.b16 %v1818
        %v1825 = vpack.c.b16 %v1823, %v1822
        %v1826 = vpack.c.b16 %v1824, %v1824
        %v1828 = vsel %vm450, %v1825, 0
        %v1831 = vsel %vm450, %v1826, 0
        %1833 = vmatprep.subr.bf16.mxu0 %v422
        %1834 = vmatpush1.bf16.msra.mxu0 %v421
        %1835 = vmatprep.subr.bf16.mxu0 %v425
        %1836 = vmatpush1.bf16.msra.mxu0 %v424
        %1837 = vmatprep.subr.bf16.mxu0 %v428
        %1838 = vmatpush1.bf16.msra.mxu0 %v427
        %1839 = vmatprep.subr.bf16.mxu0 %v431
        %1840 = vmatpush1.bf16.msra.mxu0 %v430
        %1841 = vmatprep.subr.bf16.mxu0 %v434
        %1842 = vmatpush1.bf16.msra.mxu0 %v433
        %1843 = vmatprep.subr.bf16.mxu0 %v437
        %1844 = vmatpush1.bf16.msra.mxu0 %v436
        %1845 = vmatprep.subr.bf16.mxu0 0
        %1846 = vmatpush1.bf16.msra.mxu0 0
        %1847 = vmatprep.subr.bf16.mxu0 0
        %1848 = vmatpush1.bf16.msra.mxu0 0
        %1849 = vmatprep.subr.bf16.mxu0 0
        %1850 = vmatpush1.bf16.msra.mxu0 0
        %1851 = vmatprep.subr.bf16.mxu0 0
        %1852 = vmatpush1.bf16.msra.mxu0 0
        %1853 = vmatprep.subr.bf16.mxu0 0
        %1854 = vmatpush1.bf16.msra.mxu0 0
        %1855 = vmatprep.subr.bf16.mxu0 0
        %1856 = vmatpush1.bf16.msra.mxu0 0
        %1857 = vmatprep.subr.bf16.mxu0 0
        %1858 = vmatpush1.bf16.msra.mxu0 0
        %1859 = vmatprep.subr.bf16.mxu0 0
        %1860 = vmatpush1.bf16.msra.mxu0 0
        %1861 = vmatprep.subr.bf16.mxu0 0
        %1862 = vmatpush1.bf16.msra.mxu0 0
        %1863 = vmatprep.subr.bf16.mxu0 0
        %1864 = vmatpush1.bf16.msra.mxu0 0
        %1865 = vmatprep.mubr.bf16.mxu0 0
        %1866 = vmatmul.mubr.bf16.gmra.mrb[0].mxu0 %v1828
        %v1867 = vpop.f32.mrb[0].mxu0
        %v1868 = vadd.f32 0.0, %v1867
        %v1869 = vpop.f32.mrb[0].mxu0
        %v1870 = vadd.f32 0.0, %v1869
        %v1871 = vpop.f32.mrb[0].mxu0
        %v1872 = vadd.f32 0.0, %v1871
        %v1873 = vpop.f32.mrb[0].mxu0
        %v1874 = vadd.f32 0.0, %v1873
        %1875 = vmatprep.mubr.bf16.mxu0 0
        %1876 = vmatmul.mubr.bf16.gmra.mrb[0].mxu0 %v1831
        %v1877 = vpop.f32.mrb[0].mxu0
        %v1878 = vadd.f32 0.0, %v1877
        %v1879 = vpop.f32.mrb[0].mxu0
        %v1880 = vadd.f32 0.0, %v1879
        %v1881 = vpop.f32.mrb[0].mxu0
        %v1882 = vpop.f32.mrb[0].mxu0
        %1883 = vdwg.mxu0
        %1884 = vmatprep.subr.bf16.mxu0 0
        %1885 = vmatpush1.bf16.msra.mxu0 %v423
        %1886 = vmatprep.subr.bf16.mxu0 0
        %1887 = vmatpush1.bf16.msra.mxu0 %v426
        %1888 = vmatprep.subr.bf16.mxu0 0
        %1889 = vmatpush1.bf16.msra.mxu0 %v429
        %1890 = vmatprep.subr.bf16.mxu0 0
        %1891 = vmatpush1.bf16.msra.mxu0 %v432
        %1892 = vmatprep.subr.bf16.mxu0 0
        %1893 = vmatpush1.bf16.msra.mxu0 %v435
        %1894 = vmatprep.subr.bf16.mxu0 0
        %1895 = vmatpush1.bf16.msra.mxu0 %v438
        %1896 = vmatprep.subr.bf16.mxu0 0
        %1897 = vmatpush1.bf16.msra.mxu0 0
        %1898 = vmatprep.subr.bf16.mxu0 0
        %1899 = vmatpush1.bf16.msra.mxu0 0
        %1900 = vmatprep.subr.bf16.mxu0 0
        %1901 = vmatpush1.bf16.msra.mxu0 0
        %1902 = vmatprep.subr.bf16.mxu0 0
        %1903 = vmatpush1.bf16.msra.mxu0 0
        %1904 = vmatprep.subr.bf16.mxu0 0
        %1905 = vmatpush1.bf16.msra.mxu0 0
        %1906 = vmatprep.subr.bf16.mxu0 0
        %1907 = vmatpush1.bf16.msra.mxu0 0
        %1908 = vmatprep.subr.bf16.mxu0 0
        %1909 = vmatpush1.bf16.msra.mxu0 0
        %1910 = vmatprep.subr.bf16.mxu0 0
        %1911 = vmatpush1.bf16.msra.mxu0 0
        %1912 = vmatprep.subr.bf16.mxu0 0
        %1913 = vmatpush1.bf16.msra.mxu0 0
        %1914 = vmatprep.subr.bf16.mxu0 0
        %1915 = vmatpush1.bf16.msra.mxu0 0
        %1916 = vmatprep.mubr.bf16.mxu0 0
        %1917 = vmatmul.mubr.bf16.gmra.mrb[0].mxu0 %v1828
        %v1918 = vpop.f32.mrb[0].mxu0
        %v1919 = vadd.f32 0.0, %v1918
        %v1920 = vpop.f32.mrb[0].mxu0
        %v1921 = vpop.f32.mrb[0].mxu0
        %v1922 = vadd.f32 0.0, %v1921
        %v1923 = vpop.f32.mrb[0].mxu0
        %1924 = vmatprep.mubr.bf16.mxu0 0
        %1925 = vmatmul.mubr.bf16.gmra.mrb[0].mxu0 %v1831
        %v1926 = vpop.f32.mrb[0].mxu0
        %v1927 = vadd.f32 0.0, %v1926
        %v1928 = vpop.f32.mrb[0].mxu0
        %v1929 = vpop.f32.mrb[0].mxu0
        %v1930 = vpop.f32.mrb[0].mxu0
        %1931 = vdwg.mxu0
        %v1932 = vpack.c.bf16 %v1872, %v1868
        %v1933 = vpack.c.bf16 %v1874, %v1870
        %v1934 = vpack.c.bf16 %v1922, %v1919
        %v1935 = vpack.c.bf16 %v1878, %v1878
        %v1936 = vpack.c.bf16 %v1880, %v1880
        %v1937 = vpack.c.bf16 %v1927, %v1927
        %s1938 = scalar_lea.vmem %s2, 864
        %v1939 = vld [vmem:[%s1938] sm:$0xff]
        %v1940 = vld [vmem:[%s1938 + $0x8] sm:$0xf]
        %v1941 = vld [vmem:[%s1938 + $0xc] sm:$0xff]
        %v1942 = vld [vmem:[%s1938 + $0x14] sm:$0xf]
        %v1943 = vld [vmem:[%s1938 + $0x18] sm:$0xff]
        %v1944 = vld [vmem:[%s1938 + $0x20] sm:$0xf]
        %v1945 = vld [vmem:[%s1938 + $0x24] sm:$0xff]
        %v1946 = vld [vmem:[%s1938 + $0x2c] sm:$0xf]
        %v1947 = vld [vmem:[%s1938 + $0x30] sm:$0xff]
        %v1948 = vld [vmem:[%s1938 + $0x38] sm:$0xf]
        %v1949 = vld [vmem:[%s1938 + $0x3c] sm:$0xff]
        %v1950 = vld [vmem:[%s1938 + $0x44] sm:$0xf]
        %v1951 = vld [vmem:[%s1938 + $0x48] sm:$0xff]
        %v1952 = vld [vmem:[%s1938 + $0x50] sm:$0xf]
        %v1953 = vld [vmem:[%s1938 + $0x54] sm:$0xff]
        %v1954 = vld [vmem:[%s1938 + $0x5c] sm:$0xf]
        %v1955 = vld [vmem:[%s1938 + $0x60] sm:$0xff]
        %v1956 = vld [vmem:[%s1938 + $0x68] sm:$0xf]
        %v1957 = vld [vmem:[%s1938 + $0x6c] sm:$0xff]
        %v1958 = vld [vmem:[%s1938 + $0x74] sm:$0xf]
        %v1959 = vld [vmem:[%s1938 + $0x78] sm:$0xff]
        %v1960 = vld [vmem:[%s1938 + $0x80] sm:$0xf]
        %v1961 = vld [vmem:[%s1938 + $0x84] sm:$0xff]
        %v1962 = vld [vmem:[%s1938 + $0x8c] sm:$0xf]
        %v1963 = vld [vmem:[%s1938 + $0x90] sm:$0xff]
        %v1964 = vld [vmem:[%s1938 + $0x98] sm:$0xf]
        %v1965 = vld [vmem:[%s1938 + $0x9c] sm:$0xff]
        %v1966 = vld [vmem:[%s1938 + $0xa4] sm:$0xf]
        %v1967 = vld [vmem:[%s1938 + $0xa8] sm:$0xff]
        %v1968 = vld [vmem:[%s1938 + $0xb0] sm:$0xf]
        %v1969 = vld [vmem:[%s1938 + $0xb4] sm:$0xff]
        %v1970 = vld [vmem:[%s1938 + $0xbc] sm:$0xf]
        %v1971 = vld [vmem:[%s1938 + $0xc0] sm:$0xff]
        %v1972 = vld [vmem:[%s1938 + $0xc8] sm:$0xf]
        %v1973 = vld [vmem:[%s1938 + $0xcc] sm:$0xff]
        %v1974 = vld [vmem:[%s1938 + $0xd4] sm:$0xf]
        %v1975 = vld [vmem:[%s1938 + $0xd8] sm:$0xff]
        %v1976 = vld [vmem:[%s1938 + $0xe0] sm:$0xf]
        %v1977 = vld [vmem:[%s1938 + $0xe4] sm:$0xff]
        %v1978 = vld [vmem:[%s1938 + $0xec] sm:$0xf]
        %v1979 = vld [vmem:[%s1938 + $0xf0] sm:$0xff]
        %v1980 = vld [vmem:[%s1938 + $0xf8] sm:$0xf]
        %v1981 = vld [vmem:[%s1938 + $0xfc] sm:$0xff]
        %v1982 = vld [vmem:[%s1938 + $0x104] sm:$0xf]
        %v1983 = vld [vmem:[%s1938 + $0x108] sm:$0xff]
        %v1984 = vld [vmem:[%s1938 + $0x110] sm:$0xf]
        %v1985 = vld [vmem:[%s1938 + $0x114] sm:$0xff]
        %v1986 = vld [vmem:[%s1938 + $0x11c] sm:$0xf]
        %v1987 = vld [vmem:[%s1938 + $0x120] sm:$0xff]
        %v1988 = vld [vmem:[%s1938 + $0x128] sm:$0xf]
        %v1989 = vld [vmem:[%s1938 + $0x12c] sm:$0xff]
        %v1990 = vld [vmem:[%s1938 + $0x134] sm:$0xf]
        %v1991 = vld [vmem:[%s1938 + $0x138] sm:$0xff]
        %v1992 = vld [vmem:[%s1938 + $0x140] sm:$0xf]
        %v1993 = vld [vmem:[%s1938 + $0x144] sm:$0xff]
        %v1994 = vld [vmem:[%s1938 + $0x14c] sm:$0xf]
        %v1995 = vld [vmem:[%s1938 + $0x150] sm:$0xff]
        %v1996 = vld [vmem:[%s1938 + $0x158] sm:$0xf]
        %v1997 = vld [vmem:[%s1938 + $0x15c] sm:$0xff]
        %v1998 = vld [vmem:[%s1938 + $0x164] sm:$0xf]
        %v1999 = vld [vmem:[%s1938 + $0x168] sm:$0xff]
        %v2000 = vld [vmem:[%s1938 + $0x170] sm:$0xf]
        %v2001 = vld [vmem:[%s1938 + $0x174] sm:$0xff]
        %v2002 = vld [vmem:[%s1938 + $0x17c] sm:$0xf]
        %v2003 = vld [vmem:[%s1938 + $0x180] sm:$0xff]
        %v2004 = vld [vmem:[%s1938 + $0x188] sm:$0xf]
        %v2005 = vld [vmem:[%s1938 + $0x18c] sm:$0xff]
        %v2006 = vld [vmem:[%s1938 + $0x194] sm:$0xf]
        %v2007 = vld [vmem:[%s1938 + $0x198] sm:$0xff]
        %v2008 = vld [vmem:[%s1938 + $0x1a0] sm:$0xf]
        %v2009 = vld [vmem:[%s1938 + $0x1a4] sm:$0xff]
        %v2010 = vld [vmem:[%s1938 + $0x1ac] sm:$0xf]
        %v2083 = vunpack.c.l.b16 %v1939
        %v2084 = vunpack.c.h.b16 %v1939
        %v2085 = vunpack.c.l.b16 %v1940
        %v2086 = vunpack.c.l.b16 %v1941
        %v2087 = vunpack.c.h.b16 %v1941
        %v2088 = vunpack.c.l.b16 %v1942
        %v2089 = vunpack.c.l.b16 %v1943
        %v2090 = vunpack.c.h.b16 %v1943
        %v2091 = vunpack.c.l.b16 %v1944
        %v2092 = vunpack.c.l.b16 %v1945
        %v2093 = vunpack.c.h.b16 %v1945
        %v2094 = vunpack.c.l.b16 %v1946
        %v2095 = vunpack.c.l.b16 %v1947
        %v2096 = vunpack.c.h.b16 %v1947
        %v2097 = vunpack.c.l.b16 %v1948
        %v2098 = vunpack.c.l.b16 %v1949
        %v2099 = vunpack.c.h.b16 %v1949
        %v2100 = vunpack.c.l.b16 %v1950
        %v2101 = vunpack.c.l.b16 %v1951
        %v2102 = vunpack.c.h.b16 %v1951
        %v2103 = vunpack.c.l.b16 %v1952
        %v2104 = vunpack.c.l.b16 %v1953
        %v2105 = vunpack.c.h.b16 %v1953
        %v2106 = vunpack.c.l.b16 %v1954
        %v2107 = vunpack.c.l.b16 %v1955
        %v2108 = vunpack.c.h.b16 %v1955
        %v2109 = vunpack.c.l.b16 %v1956
        %v2110 = vunpack.c.l.b16 %v1957
        %v2111 = vunpack.c.h.b16 %v1957
        %v2112 = vunpack.c.l.b16 %v1958
        %v2113 = vunpack.c.l.b16 %v1959
        %v2114 = vunpack.c.h.b16 %v1959
        %v2115 = vunpack.c.l.b16 %v1960
        %v2116 = vunpack.c.l.b16 %v1961
        %v2117 = vunpack.c.h.b16 %v1961
        %v2118 = vunpack.c.l.b16 %v1962
        %v2119 = vunpack.c.l.b16 %v1963
        %v2120 = vunpack.c.h.b16 %v1963
        %v2121 = vunpack.c.l.b16 %v1964
        %v2122 = vunpack.c.l.b16 %v1965
        %v2123 = vunpack.c.h.b16 %v1965
        %v2124 = vunpack.c.l.b16 %v1966
        %v2125 = vunpack.c.l.b16 %v1967
        %v2126 = vunpack.c.h.b16 %v1967
        %v2127 = vunpack.c.l.b16 %v1968
        %v2128 = vunpack.c.l.b16 %v1969
        %v2129 = vunpack.c.h.b16 %v1969
        %v2130 = vunpack.c.l.b16 %v1970
        %v2131 = vunpack.c.l.b16 %v1971
        %v2132 = vunpack.c.h.b16 %v1971
        %v2133 = vunpack.c.l.b16 %v1972
        %v2134 = vunpack.c.l.b16 %v1973
        %v2135 = vunpack.c.h.b16 %v1973
        %v2136 = vunpack.c.l.b16 %v1974
        %v2137 = vunpack.c.l.b16 %v1975
        %v2138 = vunpack.c.h.b16 %v1975
        %v2139 = vunpack.c.l.b16 %v1976
        %v2140 = vunpack.c.l.b16 %v1977
        %v2141 = vunpack.c.h.b16 %v1977
        %v2142 = vunpack.c.l.b16 %v1978
        %v2143 = vunpack.c.l.b16 %v1979
        %v2144 = vunpack.c.h.b16 %v1979
        %v2145 = vunpack.c.l.b16 %v1980
        %v2146 = vunpack.c.l.b16 %v1981
        %v2147 = vunpack.c.h.b16 %v1981
        %v2148 = vunpack.c.l.b16 %v1982
        %v2149 = vunpack.c.l.b16 %v1983
        %v2150 = vunpack.c.h.b16 %v1983
        %v2151 = vunpack.c.l.b16 %v1984
        %v2152 = vunpack.c.l.b16 %v1985
        %v2153 = vunpack.c.h.b16 %v1985
        %v2154 = vunpack.c.l.b16 %v1986
        %v2155 = vunpack.c.l.b16 %v1987
        %v2156 = vunpack.c.h.b16 %v1987
        %v2157 = vunpack.c.l.b16 %v1988
        %v2158 = vunpack.c.l.b16 %v1989
        %v2159 = vunpack.c.h.b16 %v1989
        %v2160 = vunpack.c.l.b16 %v1990
        %v2161 = vunpack.c.l.b16 %v1991
        %v2162 = vunpack.c.h.b16 %v1991
        %v2163 = vunpack.c.l.b16 %v1992
        %v2164 = vunpack.c.l.b16 %v1993
        %v2165 = vunpack.c.h.b16 %v1993
        %v2166 = vunpack.c.l.b16 %v1994
        %v2167 = vunpack.c.l.b16 %v1995
        %v2168 = vunpack.c.h.b16 %v1995
        %v2169 = vunpack.c.l.b16 %v1996
        %v2170 = vunpack.c.l.b16 %v1997
        %v2171 = vunpack.c.h.b16 %v1997
        %v2172 = vunpack.c.l.b16 %v1998
        %v2173 = vunpack.c.l.b16 %v1999
        %v2174 = vunpack.c.h.b16 %v1999
        %v2175 = vunpack.c.l.b16 %v2000
        %v2176 = vunpack.c.l.b16 %v2001
        %v2177 = vunpack.c.h.b16 %v2001
        %v2178 = vunpack.c.l.b16 %v2002
        %v2179 = vunpack.c.l.b16 %v2003
        %v2180 = vunpack.c.h.b16 %v2003
        %v2181 = vunpack.c.l.b16 %v2004
        %v2182 = vunpack.c.l.b16 %v2005
        %v2183 = vunpack.c.h.b16 %v2005
        %v2184 = vunpack.c.l.b16 %v2006
        %v2185 = vunpack.c.l.b16 %v2007
        %v2186 = vunpack.c.h.b16 %v2007
        %v2187 = vunpack.c.l.b16 %v2008
        %v2188 = vunpack.c.l.b16 %v2009
        %v2189 = vunpack.c.h.b16 %v2009
        %v2190 = vunpack.c.l.b16 %v2010
        %v2191 = vpack.c.b16 %v2086, %v2083
        %v2192 = vpack.c.b16 %v2087, %v2084
        %v2193 = vpack.c.b16 %v2088, %v2085
        %v2194 = vpack.c.b16 %v2092, %v2089
        %v2195 = vpack.c.b16 %v2093, %v2090
        %v2196 = vpack.c.b16 %v2094, %v2091
        %v2197 = vpack.c.b16 %v2098, %v2095
        %v2198 = vpack.c.b16 %v2099, %v2096
        %v2199 = vpack.c.b16 %v2100, %v2097
        %v2200 = vpack.c.b16 %v2104, %v2101
        %v2201 = vpack.c.b16 %v2105, %v2102
        %v2202 = vpack.c.b16 %v2106, %v2103
        %v2203 = vpack.c.b16 %v2110, %v2107
        %v2204 = vpack.c.b16 %v2111, %v2108
        %v2205 = vpack.c.b16 %v2112, %v2109
        %v2206 = vpack.c.b16 %v2116, %v2113
        %v2207 = vpack.c.b16 %v2117, %v2114
        %v2208 = vpack.c.b16 %v2118, %v2115
        %v2209 = vpack.c.b16 %v2122, %v2119
        %v2210 = vpack.c.b16 %v2123, %v2120
        %v2211 = vpack.c.b16 %v2124, %v2121
        %v2212 = vpack.c.b16 %v2128, %v2125
        %v2213 = vpack.c.b16 %v2129, %v2126
        %v2214 = vpack.c.b16 %v2130, %v2127
        %v2215 = vpack.c.b16 %v2134, %v2131
        %v2216 = vpack.c.b16 %v2135, %v2132
        %v2217 = vpack.c.b16 %v2136, %v2133
        %v2218 = vpack.c.b16 %v2140, %v2137
        %v2219 = vpack.c.b16 %v2141, %v2138
        %v2220 = vpack.c.b16 %v2142, %v2139
        %v2221 = vpack.c.b16 %v2146, %v2143
        %v2222 = vpack.c.b16 %v2147, %v2144
        %v2223 = vpack.c.b16 %v2148, %v2145
        %v2224 = vpack.c.b16 %v2152, %v2149
        %v2225 = vpack.c.b16 %v2153, %v2150
        %v2226 = vpack.c.b16 %v2154, %v2151
        %v2227 = vpack.c.b16 %v2158, %v2155
        %v2228 = vpack.c.b16 %v2159, %v2156
        %v2229 = vpack.c.b16 %v2160, %v2157
        %v2230 = vpack.c.b16 %v2164, %v2161
        %v2231 = vpack.c.b16 %v2165, %v2162
        %v2232 = vpack.c.b16 %v2166, %v2163
        %v2233 = vpack.c.b16 %v2170, %v2167
        %v2234 = vpack.c.b16 %v2171, %v2168
        %v2235 = vpack.c.b16 %v2172, %v2169
        %v2236 = vpack.c.b16 %v2176, %v2173
        %v2237 = vpack.c.b16 %v2177, %v2174
        %v2238 = vpack.c.b16 %v2178, %v2175
        %v2239 = vpack.c.b16 %v2182, %v2179
        %v2240 = vpack.c.b16 %v2183, %v2180
        %v2241 = vpack.c.b16 %v2184, %v2181
        %v2242 = vpack.c.b16 %v2188, %v2185
        %v2243 = vpack.c.b16 %v2189, %v2186
        %v2244 = vpack.c.b16 %v2190, %v2187
        %v2300 = vsel %vm1118, %v1934, 0
        %v2303 = vsel %vm1118, %v1937, 0
        %2305 = vmatprep.subr.bf16.mxu0 %v2192
        %2306 = vmatpush1.bf16.msra.mxu0 %v2191
        %2307 = vmatprep.subr.bf16.mxu0 %v2195
        %2308 = vmatpush1.bf16.msra.mxu0 %v2194
        %2309 = vmatprep.subr.bf16.mxu0 %v2198
        %2310 = vmatpush1.bf16.msra.mxu0 %v2197
        %2311 = vmatprep.subr.bf16.mxu0 %v2201
        %2312 = vmatpush1.bf16.msra.mxu0 %v2200
        %2313 = vmatprep.subr.bf16.mxu0 %v2204
        %2314 = vmatpush1.bf16.msra.mxu0 %v2203
        %2315 = vmatprep.subr.bf16.mxu0 %v2207
        %2316 = vmatpush1.bf16.msra.mxu0 %v2206
        %2317 = vmatprep.subr.bf16.mxu0 %v2210
        %2318 = vmatpush1.bf16.msra.mxu0 %v2209
        %2319 = vmatprep.subr.bf16.mxu0 %v2213
        %2320 = vmatpush1.bf16.msra.mxu0 %v2212
        %2321 = vmatprep.subr.bf16.mxu0 %v2216
        %2322 = vmatpush1.bf16.msra.mxu0 %v2215
        %2323 = vmatprep.subr.bf16.mxu0 %v2219
        %2324 = vmatpush1.bf16.msra.mxu0 %v2218
        %2325 = vmatprep.subr.bf16.mxu0 %v2222
        %2326 = vmatpush1.bf16.msra.mxu0 %v2221
        %2327 = vmatprep.subr.bf16.mxu0 %v2225
        %2328 = vmatpush1.bf16.msra.mxu0 %v2224
        %2329 = vmatprep.subr.bf16.mxu0 %v2228
        %2330 = vmatpush1.bf16.msra.mxu0 %v2227
        %2331 = vmatprep.subr.bf16.mxu0 %v2231
        %2332 = vmatpush1.bf16.msra.mxu0 %v2230
        %2333 = vmatprep.subr.bf16.mxu0 %v2234
        %2334 = vmatpush1.bf16.msra.mxu0 %v2233
        %2335 = vmatprep.subr.bf16.mxu0 %v2237
        %2336 = vmatpush1.bf16.msra.mxu0 %v2236
        %2337 = vmatprep.mubr.bf16.mxu0 %v1933
        %2338 = vmatmul.mubr.bf16.gmra.mrb[0].mxu0 %v1932
        %v2339 = vpop.f32.mrb[0].mxu0
        %v2340 = vadd.f32 0.0, %v2339
        %v2341 = vpop.f32.mrb[0].mxu0
        %v2342 = vadd.f32 0.0, %v2341
        %v2343 = vpop.f32.mrb[0].mxu0
        %v2344 = vadd.f32 0.0, %v2343
        %v2345 = vpop.f32.mrb[0].mxu0
        %v2346 = vadd.f32 0.0, %v2345
        %2347 = vmatprep.mubr.bf16.mxu0 %v1936
        %2348 = vmatmul.mubr.bf16.gmra.mrb[0].mxu0 %v1935
        %v2349 = vpop.f32.mrb[0].mxu0
        %v2350 = vadd.f32 0.0, %v2349
        %v2351 = vpop.f32.mrb[0].mxu0
        %v2352 = vadd.f32 0.0, %v2351
        %v2353 = vpop.f32.mrb[0].mxu0
        %v2354 = vpop.f32.mrb[0].mxu0
        %2355 = vdwg.mxu0
        %2356 = vmatprep.subr.bf16.mxu0 %v2240
        %2357 = vmatpush1.bf16.msra.mxu0 %v2239
        %2358 = vmatprep.subr.bf16.mxu0 %v2243
        %2359 = vmatpush1.bf16.msra.mxu0 %v2242
        %2360 = vmatprep.subr.bf16.mxu0 0
        %2361 = vmatpush1.bf16.msra.mxu0 0
        %2362 = vmatprep.subr.bf16.mxu0 0
        %2363 = vmatpush1.bf16.msra.mxu0 0
        %2364 = vmatprep.subr.bf16.mxu0 0
        %2365 = vmatpush1.bf16.msra.mxu0 0
        %2366 = vmatprep.subr.bf16.mxu0 0
        %2367 = vmatpush1.bf16.msra.mxu0 0
        %2368 = vmatprep.subr.bf16.mxu0 0
        %2369 = vmatpush1.bf16.msra.mxu0 0
        %2370 = vmatprep.subr.bf16.mxu0 0
        %2371 = vmatpush1.bf16.msra.mxu0 0
        %2372 = vmatprep.subr.bf16.mxu0 0
        %2373 = vmatpush1.bf16.msra.mxu0 0
        %2374 = vmatprep.subr.bf16.mxu0 0
        %2375 = vmatpush1.bf16.msra.mxu0 0
        %2376 = vmatprep.subr.bf16.mxu0 0
        %2377 = vmatpush1.bf16.msra.mxu0 0
        %2378 = vmatprep.subr.bf16.mxu0 0
        %2379 = vmatpush1.bf16.msra.mxu0 0
        %2380 = vmatprep.subr.bf16.mxu0 0
        %2381 = vmatpush1.bf16.msra.mxu0 0
        %2382 = vmatprep.subr.bf16.mxu0 0
        %2383 = vmatpush1.bf16.msra.mxu0 0
        %2384 = vmatprep.subr.bf16.mxu0 0
        %2385 = vmatpush1.bf16.msra.mxu0 0
        %2386 = vmatprep.subr.bf16.mxu0 0
        %2387 = vmatpush1.bf16.msra.mxu0 0
        %2388 = vmatprep.mubr.bf16.mxu0 0
        %2389 = vmatmul.mubr.bf16.gmra.mrb[0].mxu0 %v2300
        %v2390 = vpop.f32.mrb[0].mxu0
        %v2391 = vadd.f32 %v2340, %v2390
        %v2392 = vpop.f32.mrb[0].mxu0
        %v2393 = vadd.f32 %v2342, %v2392
        %v2394 = vpop.f32.mrb[0].mxu0
        %v2395 = vadd.f32 %v2344, %v2394
        %v2396 = vpop.f32.mrb[0].mxu0
        %v2397 = vadd.f32 %v2346, %v2396
        %2398 = vmatprep.mubr.bf16.mxu0 0
        %2399 = vmatmul.mubr.bf16.gmra.mrb[0].mxu0 %v2303
        %v2400 = vpop.f32.mrb[0].mxu0
        %v2401 = vadd.f32 %v2350, %v2400
        %v2402 = vpop.f32.mrb[0].mxu0
        %v2403 = vadd.f32 %v2352, %v2402
        %v2404 = vpop.f32.mrb[0].mxu0
        %v2405 = vpop.f32.mrb[0].mxu0
        %2406 = vdwg.mxu0
        %2407 = vmatprep.subr.bf16.mxu0 0
        %2408 = vmatpush1.bf16.msra.mxu0 %v2193
        %2409 = vmatprep.subr.bf16.mxu0 0
        %2410 = vmatpush1.bf16.msra.mxu0 %v2196
        %2411 = vmatprep.subr.bf16.mxu0 0
        %2412 = vmatpush1.bf16.msra.mxu0 %v2199
        %2413 = vmatprep.subr.bf16.mxu0 0
        %2414 = vmatpush1.bf16.msra.mxu0 %v2202
        %2415 = vmatprep.subr.bf16.mxu0 0
        %2416 = vmatpush1.bf16.msra.mxu0 %v2205
        %2417 = vmatprep.subr.bf16.mxu0 0
        %2418 = vmatpush1.bf16.msra.mxu0 %v2208
        %2419 = vmatprep.subr.bf16.mxu0 0
        %2420 = vmatpush1.bf16.msra.mxu0 %v2211
        %2421 = vmatprep.subr.bf16.mxu0 0
        %2422 = vmatpush1.bf16.msra.mxu0 %v2214
        %2423 = vmatprep.subr.bf16.mxu0 0
        %2424 = vmatpush1.bf16.msra.mxu0 %v2217
        %2425 = vmatprep.subr.bf16.mxu0 0
        %2426 = vmatpush1.bf16.msra.mxu0 %v2220
        %2427 = vmatprep.subr.bf16.mxu0 0
        %2428 = vmatpush1.bf16.msra.mxu0 %v2223
        %2429 = vmatprep.subr.bf16.mxu0 0
        %2430 = vmatpush1.bf16.msra.mxu0 %v2226
        %2431 = vmatprep.subr.bf16.mxu0 0
        %2432 = vmatpush1.bf16.msra.mxu0 %v2229
        %2433 = vmatprep.subr.bf16.mxu0 0
        %2434 = vmatpush1.bf16.msra.mxu0 %v2232
        %2435 = vmatprep.subr.bf16.mxu0 0
        %2436 = vmatpush1.bf16.msra.mxu0 %v2235
        %2437 = vmatprep.subr.bf16.mxu0 0
        %2438 = vmatpush1.bf16.msra.mxu0 %v2238
        %2439 = vmatprep.mubr.bf16.mxu0 %v1933
        %2440 = vmatmul.mubr.bf16.gmra.mrb[0].mxu0 %v1932
        %v2441 = vpop.f32.mrb[0].mxu0
        %v2442 = vadd.f32 0.0, %v2441
        %v2443 = vpop.f32.mrb[0].mxu0
        %v2444 = vpop.f32.mrb[0].mxu0
        %v2445 = vadd.f32 0.0, %v2444
        %v2446 = vpop.f32.mrb[0].mxu0
        %2447 = vmatprep.mubr.bf16.mxu0 %v1936
        %2448 = vmatmul.mubr.bf16.gmra.mrb[0].mxu0 %v1935
        %v2449 = vpop.f32.mrb[0].mxu0
        %v2450 = vadd.f32 0.0, %v2449
        %v2451 = vpop.f32.mrb[0].mxu0
        %v2452 = vpop.f32.mrb[0].mxu0
        %v2453 = vpop.f32.mrb[0].mxu0
        %2454 = vdwg.mxu0
        %2455 = vmatprep.subr.bf16.mxu0 0
        %2456 = vmatpush1.bf16.msra.mxu0 %v2241
        %2457 = vmatprep.subr.bf16.mxu0 0
        %2458 = vmatpush1.bf16.msra.mxu0 %v2244
        %2459 = vmatprep.subr.bf16.mxu0 0
        %2460 = vmatpush1.bf16.msra.mxu0 0
        %2461 = vmatprep.subr.bf16.mxu0 0
        %2462 = vmatpush1.bf16.msra.mxu0 0
        %2463 = vmatprep.subr.bf16.mxu0 0
        %2464 = vmatpush1.bf16.msra.mxu0 0
        %2465 = vmatprep.subr.bf16.mxu0 0
        %2466 = vmatpush1.bf16.msra.mxu0 0
        %2467 = vmatprep.subr.bf16.mxu0 0
        %2468 = vmatpush1.bf16.msra.mxu0 0
        %2469 = vmatprep.subr.bf16.mxu0 0
        %2470 = vmatpush1.bf16.msra.mxu0 0
        %2471 = vmatprep.subr.bf16.mxu0 0
        %2472 = vmatpush1.bf16.msra.mxu0 0
        %2473 = vmatprep.subr.bf16.mxu0 0
        %2474 = vmatpush1.bf16.msra.mxu0 0
        %2475 = vmatprep.subr.bf16.mxu0 0
        %2476 = vmatpush1.bf16.msra.mxu0 0
        %2477 = vmatprep.subr.bf16.mxu0 0
        %2478 = vmatpush1.bf16.msra.mxu0 0
        %2479 = vmatprep.subr.bf16.mxu0 0
        %2480 = vmatpush1.bf16.msra.mxu0 0
        %2481 = vmatprep.subr.bf16.mxu0 0
        %2482 = vmatpush1.bf16.msra.mxu0 0
        %2483 = vmatprep.subr.bf16.mxu0 0
        %2484 = vmatpush1.bf16.msra.mxu0 0
        %2485 = vmatprep.subr.bf16.mxu0 0
        %2486 = vmatpush1.bf16.msra.mxu0 0
        %2487 = vmatprep.mubr.bf16.mxu0 0
        %2488 = vmatmul.mubr.bf16.gmra.mrb[0].mxu0 %v2300
        %v2489 = vpop.f32.mrb[0].mxu0
        %v2490 = vadd.f32 %v2442, %v2489
        %v2491 = vpop.f32.mrb[0].mxu0
        %v2492 = vpop.f32.mrb[0].mxu0
        %v2493 = vadd.f32 %v2445, %v2492
        %v2494 = vpop.f32.mrb[0].mxu0
        %2495 = vmatprep.mubr.bf16.mxu0 0
        %2496 = vmatmul.mubr.bf16.gmra.mrb[0].mxu0 %v2303
        %v2497 = vpop.f32.mrb[0].mxu0
        %v2498 = vadd.f32 %v2450, %v2497
        %v2499 = vpop.f32.mrb[0].mxu0
        %v2500 = vpop.f32.mrb[0].mxu0
        %v2501 = vpop.f32.mrb[0].mxu0
        %2502 = vdwg.mxu0
        %v2503 = vadd.f32 %v1703, %v2391
        %v2504 = vadd.f32 %v1705, %v2393
        %v2505 = vadd.f32 %v1802, %v2490
        %v2506 = vadd.f32 %v1707, %v2395
        %v2507 = vadd.f32 %v1709, %v2397
        %v2508 = vadd.f32 %v1805, %v2493
        %v2509 = vadd.f32 %v1713, %v2401
        %v2510 = vadd.f32 %v1715, %v2403
        %v2511 = vadd.f32 %v1810, %v2498
        %s2512 = scalar_lea.vmem %s1, 36
        %v2513 = vld [vmem:[%s2512] sm:$0xf]
        %v2514 = vld [vmem:[%s2512 + $0x4] sm:$0xf]
        %v2515 = vld [vmem:[%s2512 + $0x8] sm:$0xf]
        %v2519 = vunpack.c.l.b16 %v2513
        %v2520 = vunpack.c.l.b16 %v2514
        %v2521 = vunpack.c.l.b16 %v2515
        %v2522 = vpack.c.b16 %v2520, %v2519
        %v2523 = vpack.c.b16 %v2521, %v2521
        %v2525 = vsel %vm450, %v2522, 0
        %v2528 = vsel %vm450, %v2523, 0
        %2530 = vmatprep.subr.bf16.mxu0 %v422
        %2531 = vmatpush1.bf16.msra.mxu0 %v421
        %2532 = vmatprep.subr.bf16.mxu0 %v425
        %2533 = vmatpush1.bf16.msra.mxu0 %v424
        %2534 = vmatprep.subr.bf16.mxu0 %v428
        %2535 = vmatpush1.bf16.msra.mxu0 %v427
        %2536 = vmatprep.subr.bf16.mxu0 %v431
        %2537 = vmatpush1.bf16.msra.mxu0 %v430
        %2538 = vmatprep.subr.bf16.mxu0 %v434
        %2539 = vmatpush1.bf16.msra.mxu0 %v433
        %2540 = vmatprep.subr.bf16.mxu0 %v437
        %2541 = vmatpush1.bf16.msra.mxu0 %v436
        %2542 = vmatprep.subr.bf16.mxu0 0
        %2543 = vmatpush1.bf16.msra.mxu0 0
        %2544 = vmatprep.subr.bf16.mxu0 0
        %2545 = vmatpush1.bf16.msra.mxu0 0
        %2546 = vmatprep.subr.bf16.mxu0 0
        %2547 = vmatpush1.bf16.msra.mxu0 0
        %2548 = vmatprep.subr.bf16.mxu0 0
        %2549 = vmatpush1.bf16.msra.mxu0 0
        %2550 = vmatprep.subr.bf16.mxu0 0
        %2551 = vmatpush1.bf16.msra.mxu0 0
        %2552 = vmatprep.subr.bf16.mxu0 0
        %2553 = vmatpush1.bf16.msra.mxu0 0
        %2554 = vmatprep.subr.bf16.mxu0 0
        %2555 = vmatpush1.bf16.msra.mxu0 0
        %2556 = vmatprep.subr.bf16.mxu0 0
        %2557 = vmatpush1.bf16.msra.mxu0 0
        %2558 = vmatprep.subr.bf16.mxu0 0
        %2559 = vmatpush1.bf16.msra.mxu0 0
        %2560 = vmatprep.subr.bf16.mxu0 0
        %2561 = vmatpush1.bf16.msra.mxu0 0
        %2562 = vmatprep.mubr.bf16.mxu0 0
        %2563 = vmatmul.mubr.bf16.gmra.mrb[0].mxu0 %v2525
        %v2564 = vpop.f32.mrb[0].mxu0
        %v2565 = vadd.f32 0.0, %v2564
        %v2566 = vpop.f32.mrb[0].mxu0
        %v2567 = vadd.f32 0.0, %v2566
        %v2568 = vpop.f32.mrb[0].mxu0
        %v2569 = vadd.f32 0.0, %v2568
        %v2570 = vpop.f32.mrb[0].mxu0
        %v2571 = vadd.f32 0.0, %v2570
        %2572 = vmatprep.mubr.bf16.mxu0 0
        %2573 = vmatmul.mubr.bf16.gmra.mrb[0].mxu0 %v2528
        %v2574 = vpop.f32.mrb[0].mxu0
        %v2575 = vadd.f32 0.0, %v2574
        %v2576 = vpop.f32.mrb[0].mxu0
        %v2577 = vadd.f32 0.0, %v2576
        %v2578 = vpop.f32.mrb[0].mxu0
        %v2579 = vpop.f32.mrb[0].mxu0
        %2580 = vdwg.mxu0
        %2581 = vmatprep.subr.bf16.mxu0 0
        %2582 = vmatpush1.bf16.msra.mxu0 %v423
        %2583 = vmatprep.subr.bf16.mxu0 0
        %2584 = vmatpush1.bf16.msra.mxu0 %v426
        %2585 = vmatprep.subr.bf16.mxu0 0
        %2586 = vmatpush1.bf16.msra.mxu0 %v429
        %2587 = vmatprep.subr.bf16.mxu0 0
        %2588 = vmatpush1.bf16.msra.mxu0 %v432
        %2589 = vmatprep.subr.bf16.mxu0 0
        %2590 = vmatpush1.bf16.msra.mxu0 %v435
        %2591 = vmatprep.subr.bf16.mxu0 0
        %2592 = vmatpush1.bf16.msra.mxu0 %v438
        %2593 = vmatprep.subr.bf16.mxu0 0
        %2594 = vmatpush1.bf16.msra.mxu0 0
        %2595 = vmatprep.subr.bf16.mxu0 0
        %2596 = vmatpush1.bf16.msra.mxu0 0
        %2597 = vmatprep.subr.bf16.mxu0 0
        %2598 = vmatpush1.bf16.msra.mxu0 0
        %2599 = vmatprep.subr.bf16.mxu0 0
        %2600 = vmatpush1.bf16.msra.mxu0 0
        %2601 = vmatprep.subr.bf16.mxu0 0
        %2602 = vmatpush1.bf16.msra.mxu0 0
        %2603 = vmatprep.subr.bf16.mxu0 0
        %2604 = vmatpush1.bf16.msra.mxu0 0
        %2605 = vmatprep.subr.bf16.mxu0 0
        %2606 = vmatpush1.bf16.msra.mxu0 0
        %2607 = vmatprep.subr.bf16.mxu0 0
        %2608 = vmatpush1.bf16.msra.mxu0 0
        %2609 = vmatprep.subr.bf16.mxu0 0
        %2610 = vmatpush1.bf16.msra.mxu0 0
        %2611 = vmatprep.subr.bf16.mxu0 0
        %2612 = vmatpush1.bf16.msra.mxu0 0
        %2613 = vmatprep.mubr.bf16.mxu0 0
        %2614 = vmatmul.mubr.bf16.gmra.mrb[0].mxu0 %v2525
        %v2615 = vpop.f32.mrb[0].mxu0
        %v2616 = vadd.f32 0.0, %v2615
        %v2617 = vpop.f32.mrb[0].mxu0
        %v2618 = vpop.f32.mrb[0].mxu0
        %v2619 = vadd.f32 0.0, %v2618
        %v2620 = vpop.f32.mrb[0].mxu0
        %2621 = vmatprep.mubr.bf16.mxu0 0
        %2622 = vmatmul.mubr.bf16.gmra.mrb[0].mxu0 %v2528
        %v2623 = vpop.f32.mrb[0].mxu0
        %v2624 = vadd.f32 0.0, %v2623
        %v2625 = vpop.f32.mrb[0].mxu0
        %v2626 = vpop.f32.mrb[0].mxu0
        %v2627 = vpop.f32.mrb[0].mxu0
        %2628 = vdwg.mxu0
        %v2629 = vpack.c.bf16 %v2569, %v2565
        %v2630 = vpack.c.bf16 %v2571, %v2567
        %v2631 = vpack.c.bf16 %v2619, %v2616
        %v2632 = vpack.c.bf16 %v2575, %v2575
        %v2633 = vpack.c.bf16 %v2577, %v2577
        %v2634 = vpack.c.bf16 %v2624, %v2624
        %s2635 = scalar_lea.vmem %s2, 1296
        %v2636 = vld [vmem:[%s2635] sm:$0xff]
        %v2637 = vld [vmem:[%s2635 + $0x8] sm:$0xf]
        %v2638 = vld [vmem:[%s2635 + $0xc] sm:$0xff]
        %v2639 = vld [vmem:[%s2635 + $0x14] sm:$0xf]
        %v2640 = vld [vmem:[%s2635 + $0x18] sm:$0xff]
        %v2641 = vld [vmem:[%s2635 + $0x20] sm:$0xf]
        %v2642 = vld [vmem:[%s2635 + $0x24] sm:$0xff]
        %v2643 = vld [vmem:[%s2635 + $0x2c] sm:$0xf]
        %v2644 = vld [vmem:[%s2635 + $0x30] sm:$0xff]
        %v2645 = vld [vmem:[%s2635 + $0x38] sm:$0xf]
        %v2646 = vld [vmem:[%s2635 + $0x3c] sm:$0xff]
        %v2647 = vld [vmem:[%s2635 + $0x44] sm:$0xf]
        %v2648 = vld [vmem:[%s2635 + $0x48] sm:$0xff]
        %v2649 = vld [vmem:[%s2635 + $0x50] sm:$0xf]
        %v2650 = vld [vmem:[%s2635 + $0x54] sm:$0xff]
        %v2651 = vld [vmem:[%s2635 + $0x5c] sm:$0xf]
        %v2652 = vld [vmem:[%s2635 + $0x60] sm:$0xff]
        %v2653 = vld [vmem:[%s2635 + $0x68] sm:$0xf]
        %v2654 = vld [vmem:[%s2635 + $0x6c] sm:$0xff]
        %v2655 = vld [vmem:[%s2635 + $0x74] sm:$0xf]
        %v2656 = vld [vmem:[%s2635 + $0x78] sm:$0xff]
        %v2657 = vld [vmem:[%s2635 + $0x80] sm:$0xf]
        %v2658 = vld [vmem:[%s2635 + $0x84] sm:$0xff]
        %v2659 = vld [vmem:[%s2635 + $0x8c] sm:$0xf]
        %v2660 = vld [vmem:[%s2635 + $0x90] sm:$0xff]
        %v2661 = vld [vmem:[%s2635 + $0x98] sm:$0xf]
        %v2662 = vld [vmem:[%s2635 + $0x9c] sm:$0xff]
        %v2663 = vld [vmem:[%s2635 + $0xa4] sm:$0xf]
        %v2664 = vld [vmem:[%s2635 + $0xa8] sm:$0xff]
        %v2665 = vld [vmem:[%s2635 + $0xb0] sm:$0xf]
        %v2666 = vld [vmem:[%s2635 + $0xb4] sm:$0xff]
        %v2667 = vld [vmem:[%s2635 + $0xbc] sm:$0xf]
        %v2668 = vld [vmem:[%s2635 + $0xc0] sm:$0xff]
        %v2669 = vld [vmem:[%s2635 + $0xc8] sm:$0xf]
        %v2670 = vld [vmem:[%s2635 + $0xcc] sm:$0xff]
        %v2671 = vld [vmem:[%s2635 + $0xd4] sm:$0xf]
        %v2672 = vld [vmem:[%s2635 + $0xd8] sm:$0xff]
        %v2673 = vld [vmem:[%s2635 + $0xe0] sm:$0xf]
        %v2674 = vld [vmem:[%s2635 + $0xe4] sm:$0xff]
        %v2675 = vld [vmem:[%s2635 + $0xec] sm:$0xf]
        %v2676 = vld [vmem:[%s2635 + $0xf0] sm:$0xff]
        %v2677 = vld [vmem:[%s2635 + $0xf8] sm:$0xf]
        %v2678 = vld [vmem:[%s2635 + $0xfc] sm:$0xff]
        %v2679 = vld [vmem:[%s2635 + $0x104] sm:$0xf]
        %v2680 = vld [vmem:[%s2635 + $0x108] sm:$0xff]
        %v2681 = vld [vmem:[%s2635 + $0x110] sm:$0xf]
        %v2682 = vld [vmem:[%s2635 + $0x114] sm:$0xff]
        %v2683 = vld [vmem:[%s2635 + $0x11c] sm:$0xf]
        %v2684 = vld [vmem:[%s2635 + $0x120] sm:$0xff]
        %v2685 = vld [vmem:[%s2635 + $0x128] sm:$0xf]
        %v2686 = vld [vmem:[%s2635 + $0x12c] sm:$0xff]
        %v2687 = vld [vmem:[%s2635 + $0x134] sm:$0xf]
        %v2688 = vld [vmem:[%s2635 + $0x138] sm:$0xff]
        %v2689 = vld [vmem:[%s2635 + $0x140] sm:$0xf]
        %v2690 = vld [vmem:[%s2635 + $0x144] sm:$0xff]
        %v2691 = vld [vmem:[%s2635 + $0x14c] sm:$0xf]
        %v2692 = vld [vmem:[%s2635 + $0x150] sm:$0xff]
        %v2693 = vld [vmem:[%s2635 + $0x158] sm:$0xf]
        %v2694 = vld [vmem:[%s2635 + $0x15c] sm:$0xff]
        %v2695 = vld [vmem:[%s2635 + $0x164] sm:$0xf]
        %v2696 = vld [vmem:[%s2635 + $0x168] sm:$0xff]
        %v2697 = vld [vmem:[%s2635 + $0x170] sm:$0xf]
        %v2698 = vld [vmem:[%s2635 + $0x174] sm:$0xff]
        %v2699 = vld [vmem:[%s2635 + $0x17c] sm:$0xf]
        %v2700 = vld [vmem:[%s2635 + $0x180] sm:$0xff]
        %v2701 = vld [vmem:[%s2635 + $0x188] sm:$0xf]
        %v2702 = vld [vmem:[%s2635 + $0x18c] sm:$0xff]
        %v2703 = vld [vmem:[%s2635 + $0x194] sm:$0xf]
        %v2704 = vld [vmem:[%s2635 + $0x198] sm:$0xff]
        %v2705 = vld [vmem:[%s2635 + $0x1a0] sm:$0xf]
        %v2706 = vld [vmem:[%s2635 + $0x1a4] sm:$0xff]
        %v2707 = vld [vmem:[%s2635 + $0x1ac] sm:$0xf]
        %v2780 = vunpack.c.l.b16 %v2636
        %v2781 = vunpack.c.h.b16 %v2636
        %v2782 = vunpack.c.l.b16 %v2637
        %v2783 = vunpack.c.l.b16 %v2638
        %v2784 = vunpack.c.h.b16 %v2638
        %v2785 = vunpack.c.l.b16 %v2639
        %v2786 = vunpack.c.l.b16 %v2640
        %v2787 = vunpack.c.h.b16 %v2640
        %v2788 = vunpack.c.l.b16 %v2641
        %v2789 = vunpack.c.l.b16 %v2642
        %v2790 = vunpack.c.h.b16 %v2642
        %v2791 = vunpack.c.l.b16 %v2643
        %v2792 = vunpack.c.l.b16 %v2644
        %v2793 = vunpack.c.h.b16 %v2644
        %v2794 = vunpack.c.l.b16 %v2645
        %v2795 = vunpack.c.l.b16 %v2646
        %v2796 = vunpack.c.h.b16 %v2646
        %v2797 = vunpack.c.l.b16 %v2647
        %v2798 = vunpack.c.l.b16 %v2648
        %v2799 = vunpack.c.h.b16 %v2648
        %v2800 = vunpack.c.l.b16 %v2649
        %v2801 = vunpack.c.l.b16 %v2650
        %v2802 = vunpack.c.h.b16 %v2650
        %v2803 = vunpack.c.l.b16 %v2651
        %v2804 = vunpack.c.l.b16 %v2652
        %v2805 = vunpack.c.h.b16 %v2652
        %v2806 = vunpack.c.l.b16 %v2653
        %v2807 = vunpack.c.l.b16 %v2654
        %v2808 = vunpack.c.h.b16 %v2654
        %v2809 = vunpack.c.l.b16 %v2655
        %v2810 = vunpack.c.l.b16 %v2656
        %v2811 = vunpack.c.h.b16 %v2656
        %v2812 = vunpack.c.l.b16 %v2657
        %v2813 = vunpack.c.l.b16 %v2658
        %v2814 = vunpack.c.h.b16 %v2658
        %v2815 = vunpack.c.l.b16 %v2659
        %v2816 = vunpack.c.l.b16 %v2660
        %v2817 = vunpack.c.h.b16 %v2660
        %v2818 = vunpack.c.l.b16 %v2661
        %v2819 = vunpack.c.l.b16 %v2662
        %v2820 = vunpack.c.h.b16 %v2662
        %v2821 = vunpack.c.l.b16 %v2663
        %v2822 = vunpack.c.l.b16 %v2664
        %v2823 = vunpack.c.h.b16 %v2664
        %v2824 = vunpack.c.l.b16 %v2665
        %v2825 = vunpack.c.l.b16 %v2666
        %v2826 = vunpack.c.h.b16 %v2666
        %v2827 = vunpack.c.l.b16 %v2667
        %v2828 = vunpack.c.l.b16 %v2668
        %v2829 = vunpack.c.h.b16 %v2668
        %v2830 = vunpack.c.l.b16 %v2669
        %v2831 = vunpack.c.l.b16 %v2670
        %v2832 = vunpack.c.h.b16 %v2670
        %v2833 = vunpack.c.l.b16 %v2671
        %v2834 = vunpack.c.l.b16 %v2672
        %v2835 = vunpack.c.h.b16 %v2672
        %v2836 = vunpack.c.l.b16 %v2673
        %v2837 = vunpack.c.l.b16 %v2674
        %v2838 = vunpack.c.h.b16 %v2674
        %v2839 = vunpack.c.l.b16 %v2675
        %v2840 = vunpack.c.l.b16 %v2676
        %v2841 = vunpack.c.h.b16 %v2676
        %v2842 = vunpack.c.l.b16 %v2677
        %v2843 = vunpack.c.l.b16 %v2678
        %v2844 = vunpack.c.h.b16 %v2678
        %v2845 = vunpack.c.l.b16 %v2679
        %v2846 = vunpack.c.l.b16 %v2680
        %v2847 = vunpack.c.h.b16 %v2680
        %v2848 = vunpack.c.l.b16 %v2681
        %v2849 = vunpack.c.l.b16 %v2682
        %v2850 = vunpack.c.h.b16 %v2682
        %v2851 = vunpack.c.l.b16 %v2683
        %v2852 = vunpack.c.l.b16 %v2684
        %v2853 = vunpack.c.h.b16 %v2684
        %v2854 = vunpack.c.l.b16 %v2685
        %v2855 = vunpack.c.l.b16 %v2686
        %v2856 = vunpack.c.h.b16 %v2686
        %v2857 = vunpack.c.l.b16 %v2687
        %v2858 = vunpack.c.l.b16 %v2688
        %v2859 = vunpack.c.h.b16 %v2688
        %v2860 = vunpack.c.l.b16 %v2689
        %v2861 = vunpack.c.l.b16 %v2690
        %v2862 = vunpack.c.h.b16 %v2690
        %v2863 = vunpack.c.l.b16 %v2691
        %v2864 = vunpack.c.l.b16 %v2692
        %v2865 = vunpack.c.h.b16 %v2692
        %v2866 = vunpack.c.l.b16 %v2693
        %v2867 = vunpack.c.l.b16 %v2694
        %v2868 = vunpack.c.h.b16 %v2694
        %v2869 = vunpack.c.l.b16 %v2695
        %v2870 = vunpack.c.l.b16 %v2696
        %v2871 = vunpack.c.h.b16 %v2696
        %v2872 = vunpack.c.l.b16 %v2697
        %v2873 = vunpack.c.l.b16 %v2698
        %v2874 = vunpack.c.h.b16 %v2698
        %v2875 = vunpack.c.l.b16 %v2699
        %v2876 = vunpack.c.l.b16 %v2700
        %v2877 = vunpack.c.h.b16 %v2700
        %v2878 = vunpack.c.l.b16 %v2701
        %v2879 = vunpack.c.l.b16 %v2702
        %v2880 = vunpack.c.h.b16 %v2702
        %v2881 = vunpack.c.l.b16 %v2703
        %v2882 = vunpack.c.l.b16 %v2704
        %v2883 = vunpack.c.h.b16 %v2704
        %v2884 = vunpack.c.l.b16 %v2705
        %v2885 = vunpack.c.l.b16 %v2706
        %v2886 = vunpack.c.h.b16 %v2706
        %v2887 = vunpack.c.l.b16 %v2707
        %v2888 = vpack.c.b16 %v2783, %v2780
        %v2889 = vpack.c.b16 %v2784, %v2781
        %v2890 = vpack.c.b16 %v2785, %v2782
        %v2891 = vpack.c.b16 %v2789, %v2786
        %v2892 = vpack.c.b16 %v2790, %v2787
        %v2893 = vpack.c.b16 %v2791, %v2788
        %v2894 = vpack.c.b16 %v2795, %v2792
        %v2895 = vpack.c.b16 %v2796, %v2793
        %v2896 = vpack.c.b16 %v2797, %v2794
        %v2897 = vpack.c.b16 %v2801, %v2798
        %v2898 = vpack.c.b16 %v2802, %v2799
        %v2899 = vpack.c.b16 %v2803, %v2800
        %v2900 = vpack.c.b16 %v2807, %v2804
        %v2901 = vpack.c.b16 %v2808, %v2805
        %v2902 = vpack.c.b16 %v2809, %v2806
        %v2903 = vpack.c.b16 %v2813, %v2810
        %v2904 = vpack.c.b16 %v2814, %v2811
        %v2905 = vpack.c.b16 %v2815, %v2812
        %v2906 = vpack.c.b16 %v2819, %v2816
        %v2907 = vpack.c.b16 %v2820, %v2817
        %v2908 = vpack.c.b16 %v2821, %v2818
        %v2909 = vpack.c.b16 %v2825, %v2822
        %v2910 = vpack.c.b16 %v2826, %v2823
        %v2911 = vpack.c.b16 %v2827, %v2824
        %v2912 = vpack.c.b16 %v2831, %v2828
        %v2913 = vpack.c.b16 %v2832, %v2829
        %v2914 = vpack.c.b16 %v2833, %v2830
        %v2915 = vpack.c.b16 %v2837, %v2834
        %v2916 = vpack.c.b16 %v2838, %v2835
        %v2917 = vpack.c.b16 %v2839, %v2836
        %v2918 = vpack.c.b16 %v2843, %v2840
        %v2919 = vpack.c.b16 %v2844, %v2841
        %v2920 = vpack.c.b16 %v2845, %v2842
        %v2921 = vpack.c.b16 %v2849, %v2846
        %v2922 = vpack.c.b16 %v2850, %v2847
        %v2923 = vpack.c.b16 %v2851, %v2848
        %v2924 = vpack.c.b16 %v2855, %v2852
        %v2925 = vpack.c.b16 %v2856, %v2853
        %v2926 = vpack.c.b16 %v2857, %v2854
        %v2927 = vpack.c.b16 %v2861, %v2858
        %v2928 = vpack.c.b16 %v2862, %v2859
        %v2929 = vpack.c.b16 %v2863, %v2860
        %v2930 = vpack.c.b16 %v2867, %v2864
        %v2931 = vpack.c.b16 %v2868, %v2865
        %v2932 = vpack.c.b16 %v2869, %v2866
        %v2933 = vpack.c.b16 %v2873, %v2870
        %v2934 = vpack.c.b16 %v2874, %v2871
        %v2935 = vpack.c.b16 %v2875, %v2872
        %v2936 = vpack.c.b16 %v2879, %v2876
        %v2937 = vpack.c.b16 %v2880, %v2877
        %v2938 = vpack.c.b16 %v2881, %v2878
        %v2939 = vpack.c.b16 %v2885, %v2882
        %v2940 = vpack.c.b16 %v2886, %v2883
        %v2941 = vpack.c.b16 %v2887, %v2884
        %v2997 = vsel %vm1118, %v2631, 0
        %v3000 = vsel %vm1118, %v2634, 0
        %3002 = vmatprep.subr.bf16.mxu0 %v2889
        %3003 = vmatpush1.bf16.msra.mxu0 %v2888
        %3004 = vmatprep.subr.bf16.mxu0 %v2892
        %3005 = vmatpush1.bf16.msra.mxu0 %v2891
        %3006 = vmatprep.subr.bf16.mxu0 %v2895
        %3007 = vmatpush1.bf16.msra.mxu0 %v2894
        %3008 = vmatprep.subr.bf16.mxu0 %v2898
        %3009 = vmatpush1.bf16.msra.mxu0 %v2897
        %3010 = vmatprep.subr.bf16.mxu0 %v2901
        %3011 = vmatpush1.bf16.msra.mxu0 %v2900
        %3012 = vmatprep.subr.bf16.mxu0 %v2904
        %3013 = vmatpush1.bf16.msra.mxu0 %v2903
        %3014 = vmatprep.subr.bf16.mxu0 %v2907
        %3015 = vmatpush1.bf16.msra.mxu0 %v2906
        %3016 = vmatprep.subr.bf16.mxu0 %v2910
        %3017 = vmatpush1.bf16.msra.mxu0 %v2909
        %3018 = vmatprep.subr.bf16.mxu0 %v2913
        %3019 = vmatpush1.bf16.msra.mxu0 %v2912
        %3020 = vmatprep.subr.bf16.mxu0 %v2916
        %3021 = vmatpush1.bf16.msra.mxu0 %v2915
        %3022 = vmatprep.subr.bf16.mxu0 %v2919
        %3023 = vmatpush1.bf16.msra.mxu0 %v2918
        %3024 = vmatprep.subr.bf16.mxu0 %v2922
        %3025 = vmatpush1.bf16.msra.mxu0 %v2921
        %3026 = vmatprep.subr.bf16.mxu0 %v2925
        %3027 = vmatpush1.bf16.msra.mxu0 %v2924
        %3028 = vmatprep.subr.bf16.mxu0 %v2928
        %3029 = vmatpush1.bf16.msra.mxu0 %v2927
        %3030 = vmatprep.subr.bf16.mxu0 %v2931
        %3031 = vmatpush1.bf16.msra.mxu0 %v2930
        %3032 = vmatprep.subr.bf16.mxu0 %v2934
        %3033 = vmatpush1.bf16.msra.mxu0 %v2933
        %3034 = vmatprep.mubr.bf16.mxu0 %v2630
        %3035 = vmatmul.mubr.bf16.gmra.mrb[0].mxu0 %v2629
        %v3036 = vpop.f32.mrb[0].mxu0
        %v3037 = vadd.f32 0.0, %v3036
        %v3038 = vpop.f32.mrb[0].mxu0
        %v3039 = vadd.f32 0.0, %v3038
        %v3040 = vpop.f32.mrb[0].mxu0
        %v3041 = vadd.f32 0.0, %v3040
        %v3042 = vpop.f32.mrb[0].mxu0
        %v3043 = vadd.f32 0.0, %v3042
        %3044 = vmatprep.mubr.bf16.mxu0 %v2633
        %3045 = vmatmul.mubr.bf16.gmra.mrb[0].mxu0 %v2632
        %v3046 = vpop.f32.mrb[0].mxu0
        %v3047 = vadd.f32 0.0, %v3046
        %v3048 = vpop.f32.mrb[0].mxu0
        %v3049 = vadd.f32 0.0, %v3048
        %v3050 = vpop.f32.mrb[0].mxu0
        %v3051 = vpop.f32.mrb[0].mxu0
        %3052 = vdwg.mxu0
        %3053 = vmatprep.subr.bf16.mxu0 %v2937
        %3054 = vmatpush1.bf16.msra.mxu0 %v2936
        %3055 = vmatprep.subr.bf16.mxu0 %v2940
        %3056 = vmatpush1.bf16.msra.mxu0 %v2939
        %3057 = vmatprep.subr.bf16.mxu0 0
        %3058 = vmatpush1.bf16.msra.mxu0 0
        %3059 = vmatprep.subr.bf16.mxu0 0
        %3060 = vmatpush1.bf16.msra.mxu0 0
        %3061 = vmatprep.subr.bf16.mxu0 0
        %3062 = vmatpush1.bf16.msra.mxu0 0
        %3063 = vmatprep.subr.bf16.mxu0 0
        %3064 = vmatpush1.bf16.msra.mxu0 0
        %3065 = vmatprep.subr.bf16.mxu0 0
        %3066 = vmatpush1.bf16.msra.mxu0 0
        %3067 = vmatprep.subr.bf16.mxu0 0
        %3068 = vmatpush1.bf16.msra.mxu0 0
        %3069 = vmatprep.subr.bf16.mxu0 0
        %3070 = vmatpush1.bf16.msra.mxu0 0
        %3071 = vmatprep.subr.bf16.mxu0 0
        %3072 = vmatpush1.bf16.msra.mxu0 0
        %3073 = vmatprep.subr.bf16.mxu0 0
        %3074 = vmatpush1.bf16.msra.mxu0 0
        %3075 = vmatprep.subr.bf16.mxu0 0
        %3076 = vmatpush1.bf16.msra.mxu0 0
        %3077 = vmatprep.subr.bf16.mxu0 0
        %3078 = vmatpush1.bf16.msra.mxu0 0
        %3079 = vmatprep.subr.bf16.mxu0 0
        %3080 = vmatpush1.bf16.msra.mxu0 0
        %3081 = vmatprep.subr.bf16.mxu0 0
        %3082 = vmatpush1.bf16.msra.mxu0 0
        %3083 = vmatprep.subr.bf16.mxu0 0
        %3084 = vmatpush1.bf16.msra.mxu0 0
        %3085 = vmatprep.mubr.bf16.mxu0 0
        %3086 = vmatmul.mubr.bf16.gmra.mrb[0].mxu0 %v2997
        %v3087 = vpop.f32.mrb[0].mxu0
        %v3088 = vadd.f32 %v3037, %v3087
        %v3089 = vpop.f32.mrb[0].mxu0
        %v3090 = vadd.f32 %v3039, %v3089
        %v3091 = vpop.f32.mrb[0].mxu0
        %v3092 = vadd.f32 %v3041, %v3091
        %v3093 = vpop.f32.mrb[0].mxu0
        %v3094 = vadd.f32 %v3043, %v3093
        %3095 = vmatprep.mubr.bf16.mxu0 0
        %3096 = vmatmul.mubr.bf16.gmra.mrb[0].mxu0 %v3000
        %v3097 = vpop.f32.mrb[0].mxu0
        %v3098 = vadd.f32 %v3047, %v3097
        %v3099 = vpop.f32.mrb[0].mxu0
        %v3100 = vadd.f32 %v3049, %v3099
        %v3101 = vpop.f32.mrb[0].mxu0
        %v3102 = vpop.f32.mrb[0].mxu0
        %3103 = vdwg.mxu0
        %3104 = vmatprep.subr.bf16.mxu0 0
        %3105 = vmatpush1.bf16.msra.mxu0 %v2890
        %3106 = vmatprep.subr.bf16.mxu0 0
        %3107 = vmatpush1.bf16.msra.mxu0 %v2893
        %3108 = vmatprep.subr.bf16.mxu0 0
        %3109 = vmatpush1.bf16.msra.mxu0 %v2896
        %3110 = vmatprep.subr.bf16.mxu0 0
        %3111 = vmatpush1.bf16.msra.mxu0 %v2899
        %3112 = vmatprep.subr.bf16.mxu0 0
        %3113 = vmatpush1.bf16.msra.mxu0 %v2902
        %3114 = vmatprep.subr.bf16.mxu0 0
        %3115 = vmatpush1.bf16.msra.mxu0 %v2905
        %3116 = vmatprep.subr.bf16.mxu0 0
        %3117 = vmatpush1.bf16.msra.mxu0 %v2908
        %3118 = vmatprep.subr.bf16.mxu0 0
        %3119 = vmatpush1.bf16.msra.mxu0 %v2911
        %3120 = vmatprep.subr.bf16.mxu0 0
        %3121 = vmatpush1.bf16.msra.mxu0 %v2914
        %3122 = vmatprep.subr.bf16.mxu0 0
        %3123 = vmatpush1.bf16.msra.mxu0 %v2917
        %3124 = vmatprep.subr.bf16.mxu0 0
        %3125 = vmatpush1.bf16.msra.mxu0 %v2920
        %3126 = vmatprep.subr.bf16.mxu0 0
        %3127 = vmatpush1.bf16.msra.mxu0 %v2923
        %3128 = vmatprep.subr.bf16.mxu0 0
        %3129 = vmatpush1.bf16.msra.mxu0 %v2926
        %3130 = vmatprep.subr.bf16.mxu0 0
        %3131 = vmatpush1.bf16.msra.mxu0 %v2929
        %3132 = vmatprep.subr.bf16.mxu0 0
        %3133 = vmatpush1.bf16.msra.mxu0 %v2932
        %3134 = vmatprep.subr.bf16.mxu0 0
        %3135 = vmatpush1.bf16.msra.mxu0 %v2935
        %3136 = vmatprep.mubr.bf16.mxu0 %v2630
        %3137 = vmatmul.mubr.bf16.gmra.mrb[0].mxu0 %v2629
        %v3138 = vpop.f32.mrb[0].mxu0
        %v3139 = vadd.f32 0.0, %v3138
        %v3140 = vpop.f32.mrb[0].mxu0
        %v3141 = vpop.f32.mrb[0].mxu0
        %v3142 = vadd.f32 0.0, %v3141
        %v3143 = vpop.f32.mrb[0].mxu0
        %3144 = vmatprep.mubr.bf16.mxu0 %v2633
        %3145 = vmatmul.mubr.bf16.gmra.mrb[0].mxu0 %v2632
        %v3146 = vpop.f32.mrb[0].mxu0
        %v3147 = vadd.f32 0.0, %v3146
        %v3148 = vpop.f32.mrb[0].mxu0
        %v3149 = vpop.f32.mrb[0].mxu0
        %v3150 = vpop.f32.mrb[0].mxu0
        %3151 = vdwg.mxu0
        %3152 = vmatprep.subr.bf16.mxu0 0
        %3153 = vmatpush1.bf16.msra.mxu0 %v2938
        %3154 = vmatprep.subr.bf16.mxu0 0
        %3155 = vmatpush1.bf16.msra.mxu0 %v2941
        %3156 = vmatprep.subr.bf16.mxu0 0
        %3157 = vmatpush1.bf16.msra.mxu0 0
        %3158 = vmatprep.subr.bf16.mxu0 0
        %3159 = vmatpush1.bf16.msra.mxu0 0
        %3160 = vmatprep.subr.bf16.mxu0 0
        %3161 = vmatpush1.bf16.msra.mxu0 0
        %3162 = vmatprep.subr.bf16.mxu0 0
        %3163 = vmatpush1.bf16.msra.mxu0 0
        %3164 = vmatprep.subr.bf16.mxu0 0
        %3165 = vmatpush1.bf16.msra.mxu0 0
        %3166 = vmatprep.subr.bf16.mxu0 0
        %3167 = vmatpush1.bf16.msra.mxu0 0
        %3168 = vmatprep.subr.bf16.mxu0 0
        %3169 = vmatpush1.bf16.msra.mxu0 0
        %3170 = vmatprep.subr.bf16.mxu0 0
        %3171 = vmatpush1.bf16.msra.mxu0 0
        %3172 = vmatprep.subr.bf16.mxu0 0
        %3173 = vmatpush1.bf16.msra.mxu0 0
        %3174 = vmatprep.subr.bf16.mxu0 0
        %3175 = vmatpush1.bf16.msra.mxu0 0
        %3176 = vmatprep.subr.bf16.mxu0 0
        %3177 = vmatpush1.bf16.msra.mxu0 0
        %3178 = vmatprep.subr.bf16.mxu0 0
        %3179 = vmatpush1.bf16.msra.mxu0 0
        %3180 = vmatprep.subr.bf16.mxu0 0
        %3181 = vmatpush1.bf16.msra.mxu0 0
        %3182 = vmatprep.subr.bf16.mxu0 0
        %3183 = vmatpush1.bf16.msra.mxu0 0
        %3184 = vmatprep.mubr.bf16.mxu0 0
        %3185 = vmatmul.mubr.bf16.gmra.mrb[0].mxu0 %v2997
        %v3186 = vpop.f32.mrb[0].mxu0
        %v3187 = vadd.f32 %v3139, %v3186
        %v3188 = vpop.f32.mrb[0].mxu0
        %v3189 = vpop.f32.mrb[0].mxu0
        %v3190 = vadd.f32 %v3142, %v3189
        %v3191 = vpop.f32.mrb[0].mxu0
        %3192 = vmatprep.mubr.bf16.mxu0 0
        %3193 = vmatmul.mubr.bf16.gmra.mrb[0].mxu0 %v3000
        %v3194 = vpop.f32.mrb[0].mxu0
        %v3195 = vadd.f32 %v3147, %v3194
        %v3196 = vpop.f32.mrb[0].mxu0
        %v3197 = vpop.f32.mrb[0].mxu0
        %v3198 = vpop.f32.mrb[0].mxu0
        %3199 = vdwg.mxu0
        %v3200 = vadd.f32 %v2503, %v3088
        %v3201 = vadd.f32 %v2504, %v3090
        %v3202 = vadd.f32 %v2505, %v3187
        %v3203 = vadd.f32 %v2506, %v3092
        %v3204 = vadd.f32 %v2507, %v3094
        %v3205 = vadd.f32 %v2508, %v3190
        %v3206 = vadd.f32 %v2509, %v3098
        %v3207 = vadd.f32 %v2510, %v3100
        %v3208 = vadd.f32 %v2511, %v3195
        %s3209 = scalar_lea.vmem %s1, 48
        %v3210 = vld [vmem:[%s3209] sm:$0xf]
        %v3211 = vld [vmem:[%s3209 + $0x4] sm:$0xf]
        %v3212 = vld [vmem:[%s3209 + $0x8] sm:$0xf]
        %v3216 = vunpack.c.l.b16 %v3210
        %v3217 = vunpack.c.l.b16 %v3211
        %v3218 = vunpack.c.l.b16 %v3212
        %v3219 = vpack.c.b16 %v3217, %v3216
        %v3220 = vpack.c.b16 %v3218, %v3218
        %v3222 = vsel %vm450, %v3219, 0
        %v3225 = vsel %vm450, %v3220, 0
        %3227 = vmatprep.subr.bf16.mxu0 %v422
        %3228 = vmatpush1.bf16.msra.mxu0 %v421
        %3229 = vmatprep.subr.bf16.mxu0 %v425
        %3230 = vmatpush1.bf16.msra.mxu0 %v424
        %3231 = vmatprep.subr.bf16.mxu0 %v428
        %3232 = vmatpush1.bf16.msra.mxu0 %v427
        %3233 = vmatprep.subr.bf16.mxu0 %v431
        %3234 = vmatpush1.bf16.msra.mxu0 %v430
        %3235 = vmatprep.subr.bf16.mxu0 %v434
        %3236 = vmatpush1.bf16.msra.mxu0 %v433
        %3237 = vmatprep.subr.bf16.mxu0 %v437
        %3238 = vmatpush1.bf16.msra.mxu0 %v436
        %3239 = vmatprep.subr.bf16.mxu0 0
        %3240 = vmatpush1.bf16.msra.mxu0 0
        %3241 = vmatprep.subr.bf16.mxu0 0
        %3242 = vmatpush1.bf16.msra.mxu0 0
        %3243 = vmatprep.subr.bf16.mxu0 0
        %3244 = vmatpush1.bf16.msra.mxu0 0
        %3245 = vmatprep.subr.bf16.mxu0 0
        %3246 = vmatpush1.bf16.msra.mxu0 0
        %3247 = vmatprep.subr.bf16.mxu0 0
        %3248 = vmatpush1.bf16.msra.mxu0 0
        %3249 = vmatprep.subr.bf16.mxu0 0
        %3250 = vmatpush1.bf16.msra.mxu0 0
        %3251 = vmatprep.subr.bf16.mxu0 0
        %3252 = vmatpush1.bf16.msra.mxu0 0
        %3253 = vmatprep.subr.bf16.mxu0 0
        %3254 = vmatpush1.bf16.msra.mxu0 0
        %3255 = vmatprep.subr.bf16.mxu0 0
        %3256 = vmatpush1.bf16.msra.mxu0 0
        %3257 = vmatprep.subr.bf16.mxu0 0
        %3258 = vmatpush1.bf16.msra.mxu0 0
        %3259 = vmatprep.mubr.bf16.mxu0 0
        %3260 = vmatmul.mubr.bf16.gmra.mrb[0].mxu0 %v3222
        %v3261 = vpop.f32.mrb[0].mxu0
        %v3262 = vadd.f32 0.0, %v3261
        %v3263 = vpop.f32.mrb[0].mxu0
        %v3264 = vadd.f32 0.0, %v3263
        %v3265 = vpop.f32.mrb[0].mxu0
        %v3266 = vadd.f32 0.0, %v3265
        %v3267 = vpop.f32.mrb[0].mxu0
        %v3268 = vadd.f32 0.0, %v3267
        %3269 = vmatprep.mubr.bf16.mxu0 0
        %3270 = vmatmul.mubr.bf16.gmra.mrb[0].mxu0 %v3225
        %v3271 = vpop.f32.mrb[0].mxu0
        %v3272 = vadd.f32 0.0, %v3271
        %v3273 = vpop.f32.mrb[0].mxu0
        %v3274 = vadd.f32 0.0, %v3273
        %v3275 = vpop.f32.mrb[0].mxu0
        %v3276 = vpop.f32.mrb[0].mxu0
        %3277 = vdwg.mxu0
        %3278 = vmatprep.subr.bf16.mxu0 0
        %3279 = vmatpush1.bf16.msra.mxu0 %v423
        %3280 = vmatprep.subr.bf16.mxu0 0
        %3281 = vmatpush1.bf16.msra.mxu0 %v426
        %3282 = vmatprep.subr.bf16.mxu0 0
        %3283 = vmatpush1.bf16.msra.mxu0 %v429
        %3284 = vmatprep.subr.bf16.mxu0 0
        %3285 = vmatpush1.bf16.msra.mxu0 %v432
        %3286 = vmatprep.subr.bf16.mxu0 0
        %3287 = vmatpush1.bf16.msra.mxu0 %v435
        %3288 = vmatprep.subr.bf16.mxu0 0
        %3289 = vmatpush1.bf16.msra.mxu0 %v438
        %3290 = vmatprep.subr.bf16.mxu0 0
        %3291 = vmatpush1.bf16.msra.mxu0 0
        %3292 = vmatprep.subr.bf16.mxu0 0
        %3293 = vmatpush1.bf16.msra.mxu0 0
        %3294 = vmatprep.subr.bf16.mxu0 0
        %3295 = vmatpush1.bf16.msra.mxu0 0
        %3296 = vmatprep.subr.bf16.mxu0 0
        %3297 = vmatpush1.bf16.msra.mxu0 0
        %3298 = vmatprep.subr.bf16.mxu0 0
        %3299 = vmatpush1.bf16.msra.mxu0 0
        %3300 = vmatprep.subr.bf16.mxu0 0
        %3301 = vmatpush1.bf16.msra.mxu0 0
        %3302 = vmatprep.subr.bf16.mxu0 0
        %3303 = vmatpush1.bf16.msra.mxu0 0
        %3304 = vmatprep.subr.bf16.mxu0 0
        %3305 = vmatpush1.bf16.msra.mxu0 0
        %3306 = vmatprep.subr.bf16.mxu0 0
        %3307 = vmatpush1.bf16.msra.mxu0 0
        %3308 = vmatprep.subr.bf16.mxu0 0
        %3309 = vmatpush1.bf16.msra.mxu0 0
        %3310 = vmatprep.mubr.bf16.mxu0 0
        %3311 = vmatmul.mubr.bf16.gmra.mrb[0].mxu0 %v3222
        %v3312 = vpop.f32.mrb[0].mxu0
        %v3313 = vadd.f32 0.0, %v3312
        %v3314 = vpop.f32.mrb[0].mxu0
        %v3315 = vpop.f32.mrb[0].mxu0
        %v3316 = vadd.f32 0.0, %v3315
        %v3317 = vpop.f32.mrb[0].mxu0
        %3318 = vmatprep.mubr.bf16.mxu0 0
        %3319 = vmatmul.mubr.bf16.gmra.mrb[0].mxu0 %v3225
        %v3320 = vpop.f32.mrb[0].mxu0
        %v3321 = vadd.f32 0.0, %v3320
        %v3322 = vpop.f32.mrb[0].mxu0
        %v3323 = vpop.f32.mrb[0].mxu0
        %v3324 = vpop.f32.mrb[0].mxu0
        %3325 = vdwg.mxu0
        %v3326 = vpack.c.bf16 %v3266, %v3262
        %v3327 = vpack.c.bf16 %v3268, %v3264
        %v3328 = vpack.c.bf16 %v3316, %v3313
        %v3329 = vpack.c.bf16 %v3272, %v3272
        %v3330 = vpack.c.bf16 %v3274, %v3274
        %v3331 = vpack.c.bf16 %v3321, %v3321
        %s3332 = scalar_lea.vmem %s2, 1728
        %v3333 = vld [vmem:[%s3332] sm:$0xff]
        %v3334 = vld [vmem:[%s3332 + $0x8] sm:$0xf]
        %v3335 = vld [vmem:[%s3332 + $0xc] sm:$0xff]
        %v3336 = vld [vmem:[%s3332 + $0x14] sm:$0xf]
        %v3337 = vld [vmem:[%s3332 + $0x18] sm:$0xff]
        %v3338 = vld [vmem:[%s3332 + $0x20] sm:$0xf]
        %v3339 = vld [vmem:[%s3332 + $0x24] sm:$0xff]
        %v3340 = vld [vmem:[%s3332 + $0x2c] sm:$0xf]
        %v3341 = vld [vmem:[%s3332 + $0x30] sm:$0xff]
        %v3342 = vld [vmem:[%s3332 + $0x38] sm:$0xf]
        %v3343 = vld [vmem:[%s3332 + $0x3c] sm:$0xff]
        %v3344 = vld [vmem:[%s3332 + $0x44] sm:$0xf]
        %v3345 = vld [vmem:[%s3332 + $0x48] sm:$0xff]
        %v3346 = vld [vmem:[%s3332 + $0x50] sm:$0xf]
        %v3347 = vld [vmem:[%s3332 + $0x54] sm:$0xff]
        %v3348 = vld [vmem:[%s3332 + $0x5c] sm:$0xf]
        %v3349 = vld [vmem:[%s3332 + $0x60] sm:$0xff]
        %v3350 = vld [vmem:[%s3332 + $0x68] sm:$0xf]
        %v3351 = vld [vmem:[%s3332 + $0x6c] sm:$0xff]
        %v3352 = vld [vmem:[%s3332 + $0x74] sm:$0xf]
        %v3353 = vld [vmem:[%s3332 + $0x78] sm:$0xff]
        %v3354 = vld [vmem:[%s3332 + $0x80] sm:$0xf]
        %v3355 = vld [vmem:[%s3332 + $0x84] sm:$0xff]
        %v3356 = vld [vmem:[%s3332 + $0x8c] sm:$0xf]
        %v3357 = vld [vmem:[%s3332 + $0x90] sm:$0xff]
        %v3358 = vld [vmem:[%s3332 + $0x98] sm:$0xf]
        %v3359 = vld [vmem:[%s3332 + $0x9c] sm:$0xff]
        %v3360 = vld [vmem:[%s3332 + $0xa4] sm:$0xf]
        %v3361 = vld [vmem:[%s3332 + $0xa8] sm:$0xff]
        %v3362 = vld [vmem:[%s3332 + $0xb0] sm:$0xf]
        %v3363 = vld [vmem:[%s3332 + $0xb4] sm:$0xff]
        %v3364 = vld [vmem:[%s3332 + $0xbc] sm:$0xf]
        %v3365 = vld [vmem:[%s3332 + $0xc0] sm:$0xff]
        %v3366 = vld [vmem:[%s3332 + $0xc8] sm:$0xf]
        %v3367 = vld [vmem:[%s3332 + $0xcc] sm:$0xff]
        %v3368 = vld [vmem:[%s3332 + $0xd4] sm:$0xf]
        %v3369 = vld [vmem:[%s3332 + $0xd8] sm:$0xff]
        %v3370 = vld [vmem:[%s3332 + $0xe0] sm:$0xf]
        %v3371 = vld [vmem:[%s3332 + $0xe4] sm:$0xff]
        %v3372 = vld [vmem:[%s3332 + $0xec] sm:$0xf]
        %v3373 = vld [vmem:[%s3332 + $0xf0] sm:$0xff]
        %v3374 = vld [vmem:[%s3332 + $0xf8] sm:$0xf]
        %v3375 = vld [vmem:[%s3332 + $0xfc] sm:$0xff]
        %v3376 = vld [vmem:[%s3332 + $0x104] sm:$0xf]
        %v3377 = vld [vmem:[%s3332 + $0x108] sm:$0xff]
        %v3378 = vld [vmem:[%s3332 + $0x110] sm:$0xf]
        %v3379 = vld [vmem:[%s3332 + $0x114] sm:$0xff]
        %v3380 = vld [vmem:[%s3332 + $0x11c] sm:$0xf]
        %v3381 = vld [vmem:[%s3332 + $0x120] sm:$0xff]
        %v3382 = vld [vmem:[%s3332 + $0x128] sm:$0xf]
        %v3383 = vld [vmem:[%s3332 + $0x12c] sm:$0xff]
        %v3384 = vld [vmem:[%s3332 + $0x134] sm:$0xf]
        %v3385 = vld [vmem:[%s3332 + $0x138] sm:$0xff]
        %v3386 = vld [vmem:[%s3332 + $0x140] sm:$0xf]
        %v3387 = vld [vmem:[%s3332 + $0x144] sm:$0xff]
        %v3388 = vld [vmem:[%s3332 + $0x14c] sm:$0xf]
        %v3389 = vld [vmem:[%s3332 + $0x150] sm:$0xff]
        %v3390 = vld [vmem:[%s3332 + $0x158] sm:$0xf]
        %v3391 = vld [vmem:[%s3332 + $0x15c] sm:$0xff]
        %v3392 = vld [vmem:[%s3332 + $0x164] sm:$0xf]
        %v3393 = vld [vmem:[%s3332 + $0x168] sm:$0xff]
        %v3394 = vld [vmem:[%s3332 + $0x170] sm:$0xf]
        %v3395 = vld [vmem:[%s3332 + $0x174] sm:$0xff]
        %v3396 = vld [vmem:[%s3332 + $0x17c] sm:$0xf]
        %v3397 = vld [vmem:[%s3332 + $0x180] sm:$0xff]
        %v3398 = vld [vmem:[%s3332 + $0x188] sm:$0xf]
        %v3399 = vld [vmem:[%s3332 + $0x18c] sm:$0xff]
        %v3400 = vld [vmem:[%s3332 + $0x194] sm:$0xf]
        %v3401 = vld [vmem:[%s3332 + $0x198] sm:$0xff]
        %v3402 = vld [vmem:[%s3332 + $0x1a0] sm:$0xf]
        %v3403 = vld [vmem:[%s3332 + $0x1a4] sm:$0xff]
        %v3404 = vld [vmem:[%s3332 + $0x1ac] sm:$0xf]
        %v3477 = vunpack.c.l.b16 %v3333
        %v3478 = vunpack.c.h.b16 %v3333
        %v3479 = vunpack.c.l.b16 %v3334
        %v3480 = vunpack.c.l.b16 %v3335
        %v3481 = vunpack.c.h.b16 %v3335
        %v3482 = vunpack.c.l.b16 %v3336
        %v3483 = vunpack.c.l.b16 %v3337
        %v3484 = vunpack.c.h.b16 %v3337
        %v3485 = vunpack.c.l.b16 %v3338
        %v3486 = vunpack.c.l.b16 %v3339
        %v3487 = vunpack.c.h.b16 %v3339
        %v3488 = vunpack.c.l.b16 %v3340
        %v3489 = vunpack.c.l.b16 %v3341
        %v3490 = vunpack.c.h.b16 %v3341
        %v3491 = vunpack.c.l.b16 %v3342
        %v3492 = vunpack.c.l.b16 %v3343
        %v3493 = vunpack.c.h.b16 %v3343
        %v3494 = vunpack.c.l.b16 %v3344
        %v3495 = vunpack.c.l.b16 %v3345
        %v3496 = vunpack.c.h.b16 %v3345
        %v3497 = vunpack.c.l.b16 %v3346
        %v3498 = vunpack.c.l.b16 %v3347
        %v3499 = vunpack.c.h.b16 %v3347
        %v3500 = vunpack.c.l.b16 %v3348
        %v3501 = vunpack.c.l.b16 %v3349
        %v3502 = vunpack.c.h.b16 %v3349
        %v3503 = vunpack.c.l.b16 %v3350
        %v3504 = vunpack.c.l.b16 %v3351
        %v3505 = vunpack.c.h.b16 %v3351
        %v3506 = vunpack.c.l.b16 %v3352
        %v3507 = vunpack.c.l.b16 %v3353
        %v3508 = vunpack.c.h.b16 %v3353
        %v3509 = vunpack.c.l.b16 %v3354
        %v3510 = vunpack.c.l.b16 %v3355
        %v3511 = vunpack.c.h.b16 %v3355
        %v3512 = vunpack.c.l.b16 %v3356
        %v3513 = vunpack.c.l.b16 %v3357
        %v3514 = vunpack.c.h.b16 %v3357
        %v3515 = vunpack.c.l.b16 %v3358
        %v3516 = vunpack.c.l.b16 %v3359
        %v3517 = vunpack.c.h.b16 %v3359
        %v3518 = vunpack.c.l.b16 %v3360
        %v3519 = vunpack.c.l.b16 %v3361
        %v3520 = vunpack.c.h.b16 %v3361
        %v3521 = vunpack.c.l.b16 %v3362
        %v3522 = vunpack.c.l.b16 %v3363
        %v3523 = vunpack.c.h.b16 %v3363
        %v3524 = vunpack.c.l.b16 %v3364
        %v3525 = vunpack.c.l.b16 %v3365
        %v3526 = vunpack.c.h.b16 %v3365
        %v3527 = vunpack.c.l.b16 %v3366
        %v3528 = vunpack.c.l.b16 %v3367
        %v3529 = vunpack.c.h.b16 %v3367
        %v3530 = vunpack.c.l.b16 %v3368
        %v3531 = vunpack.c.l.b16 %v3369
        %v3532 = vunpack.c.h.b16 %v3369
        %v3533 = vunpack.c.l.b16 %v3370
        %v3534 = vunpack.c.l.b16 %v3371
        %v3535 = vunpack.c.h.b16 %v3371
        %v3536 = vunpack.c.l.b16 %v3372
        %v3537 = vunpack.c.l.b16 %v3373
        %v3538 = vunpack.c.h.b16 %v3373
        %v3539 = vunpack.c.l.b16 %v3374
        %v3540 = vunpack.c.l.b16 %v3375
        %v3541 = vunpack.c.h.b16 %v3375
        %v3542 = vunpack.c.l.b16 %v3376
        %v3543 = vunpack.c.l.b16 %v3377
        %v3544 = vunpack.c.h.b16 %v3377
        %v3545 = vunpack.c.l.b16 %v3378
        %v3546 = vunpack.c.l.b16 %v3379
        %v3547 = vunpack.c.h.b16 %v3379
        %v3548 = vunpack.c.l.b16 %v3380
        %v3549 = vunpack.c.l.b16 %v3381
        %v3550 = vunpack.c.h.b16 %v3381
        %v3551 = vunpack.c.l.b16 %v3382
        %v3552 = vunpack.c.l.b16 %v3383
        %v3553 = vunpack.c.h.b16 %v3383
        %v3554 = vunpack.c.l.b16 %v3384
        %v3555 = vunpack.c.l.b16 %v3385
        %v3556 = vunpack.c.h.b16 %v3385
        %v3557 = vunpack.c.l.b16 %v3386
        %v3558 = vunpack.c.l.b16 %v3387
        %v3559 = vunpack.c.h.b16 %v3387
        %v3560 = vunpack.c.l.b16 %v3388
        %v3561 = vunpack.c.l.b16 %v3389
        %v3562 = vunpack.c.h.b16 %v3389
        %v3563 = vunpack.c.l.b16 %v3390
        %v3564 = vunpack.c.l.b16 %v3391
        %v3565 = vunpack.c.h.b16 %v3391
        %v3566 = vunpack.c.l.b16 %v3392
        %v3567 = vunpack.c.l.b16 %v3393
        %v3568 = vunpack.c.h.b16 %v3393
        %v3569 = vunpack.c.l.b16 %v3394
        %v3570 = vunpack.c.l.b16 %v3395
        %v3571 = vunpack.c.h.b16 %v3395
        %v3572 = vunpack.c.l.b16 %v3396
        %v3573 = vunpack.c.l.b16 %v3397
        %v3574 = vunpack.c.h.b16 %v3397
        %v3575 = vunpack.c.l.b16 %v3398
        %v3576 = vunpack.c.l.b16 %v3399
        %v3577 = vunpack.c.h.b16 %v3399
        %v3578 = vunpack.c.l.b16 %v3400
        %v3579 = vunpack.c.l.b16 %v3401
        %v3580 = vunpack.c.h.b16 %v3401
        %v3581 = vunpack.c.l.b16 %v3402
        %v3582 = vunpack.c.l.b16 %v3403
        %v3583 = vunpack.c.h.b16 %v3403
        %v3584 = vunpack.c.l.b16 %v3404
        %v3585 = vpack.c.b16 %v3480, %v3477
        %v3586 = vpack.c.b16 %v3481, %v3478
        %v3587 = vpack.c.b16 %v3482, %v3479
        %v3588 = vpack.c.b16 %v3486, %v3483
        %v3589 = vpack.c.b16 %v3487, %v3484
        %v3590 = vpack.c.b16 %v3488, %v3485
        %v3591 = vpack.c.b16 %v3492, %v3489
        %v3592 = vpack.c.b16 %v3493, %v3490
        %v3593 = vpack.c.b16 %v3494, %v3491
        %v3594 = vpack.c.b16 %v3498, %v3495
        %v3595 = vpack.c.b16 %v3499, %v3496
        %v3596 = vpack.c.b16 %v3500, %v3497
        %v3597 = vpack.c.b16 %v3504, %v3501
        %v3598 = vpack.c.b16 %v3505, %v3502
        %v3599 = vpack.c.b16 %v3506, %v3503
        %v3600 = vpack.c.b16 %v3510, %v3507
        %v3601 = vpack.c.b16 %v3511, %v3508
        %v3602 = vpack.c.b16 %v3512, %v3509
        %v3603 = vpack.c.b16 %v3516, %v3513
        %v3604 = vpack.c.b16 %v3517, %v3514
        %v3605 = vpack.c.b16 %v3518, %v3515
        %v3606 = vpack.c.b16 %v3522, %v3519
        %v3607 = vpack.c.b16 %v3523, %v3520
        %v3608 = vpack.c.b16 %v3524, %v3521
        %v3609 = vpack.c.b16 %v3528, %v3525
        %v3610 = vpack.c.b16 %v3529, %v3526
        %v3611 = vpack.c.b16 %v3530, %v3527
        %v3612 = vpack.c.b16 %v3534, %v3531
        %v3613 = vpack.c.b16 %v3535, %v3532
        %v3614 = vpack.c.b16 %v3536, %v3533
        %v3615 = vpack.c.b16 %v3540, %v3537
        %v3616 = vpack.c.b16 %v3541, %v3538
        %v3617 = vpack.c.b16 %v3542, %v3539
        %v3618 = vpack.c.b16 %v3546, %v3543
        %v3619 = vpack.c.b16 %v3547, %v3544
        %v3620 = vpack.c.b16 %v3548, %v3545
        %v3621 = vpack.c.b16 %v3552, %v3549
        %v3622 = vpack.c.b16 %v3553, %v3550
        %v3623 = vpack.c.b16 %v3554, %v3551
        %v3624 = vpack.c.b16 %v3558, %v3555
        %v3625 = vpack.c.b16 %v3559, %v3556
        %v3626 = vpack.c.b16 %v3560, %v3557
        %v3627 = vpack.c.b16 %v3564, %v3561
        %v3628 = vpack.c.b16 %v3565, %v3562
        %v3629 = vpack.c.b16 %v3566, %v3563
        %v3630 = vpack.c.b16 %v3570, %v3567
        %v3631 = vpack.c.b16 %v3571, %v3568
        %v3632 = vpack.c.b16 %v3572, %v3569
        %v3633 = vpack.c.b16 %v3576, %v3573
        %v3634 = vpack.c.b16 %v3577, %v3574
        %v3635 = vpack.c.b16 %v3578, %v3575
        %v3636 = vpack.c.b16 %v3582, %v3579
        %v3637 = vpack.c.b16 %v3583, %v3580
        %v3638 = vpack.c.b16 %v3584, %v3581
        %v3694 = vsel %vm1118, %v3328, 0
        %v3697 = vsel %vm1118, %v3331, 0
        %3699 = vmatprep.subr.bf16.mxu0 %v3586
        %3700 = vmatpush1.bf16.msra.mxu0 %v3585
        %3701 = vmatprep.subr.bf16.mxu0 %v3589
        %3702 = vmatpush1.bf16.msra.mxu0 %v3588
        %3703 = vmatprep.subr.bf16.mxu0 %v3592
        %3704 = vmatpush1.bf16.msra.mxu0 %v3591
        %3705 = vmatprep.subr.bf16.mxu0 %v3595
        %3706 = vmatpush1.bf16.msra.mxu0 %v3594
        %3707 = vmatprep.subr.bf16.mxu0 %v3598
        %3708 = vmatpush1.bf16.msra.mxu0 %v3597
        %3709 = vmatprep.subr.bf16.mxu0 %v3601
        %3710 = vmatpush1.bf16.msra.mxu0 %v3600
        %3711 = vmatprep.subr.bf16.mxu0 %v3604
        %3712 = vmatpush1.bf16.msra.mxu0 %v3603
        %3713 = vmatprep.subr.bf16.mxu0 %v3607
        %3714 = vmatpush1.bf16.msra.mxu0 %v3606
        %3715 = vmatprep.subr.bf16.mxu0 %v3610
        %3716 = vmatpush1.bf16.msra.mxu0 %v3609
        %3717 = vmatprep.subr.bf16.mxu0 %v3613
        %3718 = vmatpush1.bf16.msra.mxu0 %v3612
        %3719 = vmatprep.subr.bf16.mxu0 %v3616
        %3720 = vmatpush1.bf16.msra.mxu0 %v3615
        %3721 = vmatprep.subr.bf16.mxu0 %v3619
        %3722 = vmatpush1.bf16.msra.mxu0 %v3618
        %3723 = vmatprep.subr.bf16.mxu0 %v3622
        %3724 = vmatpush1.bf16.msra.mxu0 %v3621
        %3725 = vmatprep.subr.bf16.mxu0 %v3625
        %3726 = vmatpush1.bf16.msra.mxu0 %v3624
        %3727 = vmatprep.subr.bf16.mxu0 %v3628
        %3728 = vmatpush1.bf16.msra.mxu0 %v3627
        %3729 = vmatprep.subr.bf16.mxu0 %v3631
        %3730 = vmatpush1.bf16.msra.mxu0 %v3630
        %3731 = vmatprep.mubr.bf16.mxu0 %v3327
        %3732 = vmatmul.mubr.bf16.gmra.mrb[0].mxu0 %v3326
        %v3733 = vpop.f32.mrb[0].mxu0
        %v3734 = vadd.f32 0.0, %v3733
        %v3735 = vpop.f32.mrb[0].mxu0
        %v3736 = vadd.f32 0.0, %v3735
        %v3737 = vpop.f32.mrb[0].mxu0
        %v3738 = vadd.f32 0.0, %v3737
        %v3739 = vpop.f32.mrb[0].mxu0
        %v3740 = vadd.f32 0.0, %v3739
        %3741 = vmatprep.mubr.bf16.mxu0 %v3330
        %3742 = vmatmul.mubr.bf16.gmra.mrb[0].mxu0 %v3329
        %v3743 = vpop.f32.mrb[0].mxu0
        %v3744 = vadd.f32 0.0, %v3743
        %v3745 = vpop.f32.mrb[0].mxu0
        %v3746 = vadd.f32 0.0, %v3745
        %v3747 = vpop.f32.mrb[0].mxu0
        %v3748 = vpop.f32.mrb[0].mxu0
        %3749 = vdwg.mxu0
        %3750 = vmatprep.subr.bf16.mxu0 %v3634
        %3751 = vmatpush1.bf16.msra.mxu0 %v3633
        %3752 = vmatprep.subr.bf16.mxu0 %v3637
        %3753 = vmatpush1.bf16.msra.mxu0 %v3636
        %3754 = vmatprep.subr.bf16.mxu0 0
        %3755 = vmatpush1.bf16.msra.mxu0 0
        %3756 = vmatprep.subr.bf16.mxu0 0
        %3757 = vmatpush1.bf16.msra.mxu0 0
        %3758 = vmatprep.subr.bf16.mxu0 0
        %3759 = vmatpush1.bf16.msra.mxu0 0
        %3760 = vmatprep.subr.bf16.mxu0 0
        %3761 = vmatpush1.bf16.msra.mxu0 0
        %3762 = vmatprep.subr.bf16.mxu0 0
        %3763 = vmatpush1.bf16.msra.mxu0 0
        %3764 = vmatprep.subr.bf16.mxu0 0
        %3765 = vmatpush1.bf16.msra.mxu0 0
        %3766 = vmatprep.subr.bf16.mxu0 0
        %3767 = vmatpush1.bf16.msra.mxu0 0
        %3768 = vmatprep.subr.bf16.mxu0 0
        %3769 = vmatpush1.bf16.msra.mxu0 0
        %3770 = vmatprep.subr.bf16.mxu0 0
        %3771 = vmatpush1.bf16.msra.mxu0 0
        %3772 = vmatprep.subr.bf16.mxu0 0
        %3773 = vmatpush1.bf16.msra.mxu0 0
        %3774 = vmatprep.subr.bf16.mxu0 0
        %3775 = vmatpush1.bf16.msra.mxu0 0
        %3776 = vmatprep.subr.bf16.mxu0 0
        %3777 = vmatpush1.bf16.msra.mxu0 0
        %3778 = vmatprep.subr.bf16.mxu0 0
        %3779 = vmatpush1.bf16.msra.mxu0 0
        %3780 = vmatprep.subr.bf16.mxu0 0
        %3781 = vmatpush1.bf16.msra.mxu0 0
        %3782 = vmatprep.mubr.bf16.mxu0 0
        %3783 = vmatmul.mubr.bf16.gmra.mrb[0].mxu0 %v3694
        %v3784 = vpop.f32.mrb[0].mxu0
        %v3785 = vadd.f32 %v3734, %v3784
        %v3786 = vpop.f32.mrb[0].mxu0
        %v3787 = vadd.f32 %v3736, %v3786
        %v3788 = vpop.f32.mrb[0].mxu0
        %v3789 = vadd.f32 %v3738, %v3788
        %v3790 = vpop.f32.mrb[0].mxu0
        %v3791 = vadd.f32 %v3740, %v3790
        %3792 = vmatprep.mubr.bf16.mxu0 0
        %3793 = vmatmul.mubr.bf16.gmra.mrb[0].mxu0 %v3697
        %v3794 = vpop.f32.mrb[0].mxu0
        %v3795 = vadd.f32 %v3744, %v3794
        %v3796 = vpop.f32.mrb[0].mxu0
        %v3797 = vadd.f32 %v3746, %v3796
        %v3798 = vpop.f32.mrb[0].mxu0
        %v3799 = vpop.f32.mrb[0].mxu0
        %3800 = vdwg.mxu0
        %3801 = vmatprep.subr.bf16.mxu0 0
        %3802 = vmatpush1.bf16.msra.mxu0 %v3587
        %3803 = vmatprep.subr.bf16.mxu0 0
        %3804 = vmatpush1.bf16.msra.mxu0 %v3590
        %3805 = vmatprep.subr.bf16.mxu0 0
        %3806 = vmatpush1.bf16.msra.mxu0 %v3593
        %3807 = vmatprep.subr.bf16.mxu0 0
        %3808 = vmatpush1.bf16.msra.mxu0 %v3596
        %3809 = vmatprep.subr.bf16.mxu0 0
        %3810 = vmatpush1.bf16.msra.mxu0 %v3599
        %3811 = vmatprep.subr.bf16.mxu0 0
        %3812 = vmatpush1.bf16.msra.mxu0 %v3602
        %3813 = vmatprep.subr.bf16.mxu0 0
        %3814 = vmatpush1.bf16.msra.mxu0 %v3605
        %3815 = vmatprep.subr.bf16.mxu0 0
        %3816 = vmatpush1.bf16.msra.mxu0 %v3608
        %3817 = vmatprep.subr.bf16.mxu0 0
        %3818 = vmatpush1.bf16.msra.mxu0 %v3611
        %3819 = vmatprep.subr.bf16.mxu0 0
        %3820 = vmatpush1.bf16.msra.mxu0 %v3614
        %3821 = vmatprep.subr.bf16.mxu0 0
        %3822 = vmatpush1.bf16.msra.mxu0 %v3617
        %3823 = vmatprep.subr.bf16.mxu0 0
        %3824 = vmatpush1.bf16.msra.mxu0 %v3620
        %3825 = vmatprep.subr.bf16.mxu0 0
        %3826 = vmatpush1.bf16.msra.mxu0 %v3623
        %3827 = vmatprep.subr.bf16.mxu0 0
        %3828 = vmatpush1.bf16.msra.mxu0 %v3626
        %3829 = vmatprep.subr.bf16.mxu0 0
        %3830 = vmatpush1.bf16.msra.mxu0 %v3629
        %3831 = vmatprep.subr.bf16.mxu0 0
        %3832 = vmatpush1.bf16.msra.mxu0 %v3632
        %3833 = vmatprep.mubr.bf16.mxu0 %v3327
        %3834 = vmatmul.mubr.bf16.gmra.mrb[0].mxu0 %v3326
        %v3835 = vpop.f32.mrb[0].mxu0
        %v3836 = vadd.f32 0.0, %v3835
        %v3837 = vpop.f32.mrb[0].mxu0
        %v3838 = vpop.f32.mrb[0].mxu0
        %v3839 = vadd.f32 0.0, %v3838
        %v3840 = vpop.f32.mrb[0].mxu0
        %3841 = vmatprep.mubr.bf16.mxu0 %v3330
        %3842 = vmatmul.mubr.bf16.gmra.mrb[0].mxu0 %v3329
        %v3843 = vpop.f32.mrb[0].mxu0
        %v3844 = vadd.f32 0.0, %v3843
        %v3845 = vpop.f32.mrb[0].mxu0
        %v3846 = vpop.f32.mrb[0].mxu0
        %v3847 = vpop.f32.mrb[0].mxu0
        %3848 = vdwg.mxu0
        %3849 = vmatprep.subr.bf16.mxu0 0
        %3850 = vmatpush1.bf16.msra.mxu0 %v3635
        %3851 = vmatprep.subr.bf16.mxu0 0
        %3852 = vmatpush1.bf16.msra.mxu0 %v3638
        %3853 = vmatprep.subr.bf16.mxu0 0
        %3854 = vmatpush1.bf16.msra.mxu0 0
        %3855 = vmatprep.subr.bf16.mxu0 0
        %3856 = vmatpush1.bf16.msra.mxu0 0
        %3857 = vmatprep.subr.bf16.mxu0 0
        %3858 = vmatpush1.bf16.msra.mxu0 0
        %3859 = vmatprep.subr.bf16.mxu0 0
        %3860 = vmatpush1.bf16.msra.mxu0 0
        %3861 = vmatprep.subr.bf16.mxu0 0
        %3862 = vmatpush1.bf16.msra.mxu0 0
        %3863 = vmatprep.subr.bf16.mxu0 0
        %3864 = vmatpush1.bf16.msra.mxu0 0
        %3865 = vmatprep.subr.bf16.mxu0 0
        %3866 = vmatpush1.bf16.msra.mxu0 0
        %3867 = vmatprep.subr.bf16.mxu0 0
        %3868 = vmatpush1.bf16.msra.mxu0 0
        %3869 = vmatprep.subr.bf16.mxu0 0
        %3870 = vmatpush1.bf16.msra.mxu0 0
        %3871 = vmatprep.subr.bf16.mxu0 0
        %3872 = vmatpush1.bf16.msra.mxu0 0
        %3873 = vmatprep.subr.bf16.mxu0 0
        %3874 = vmatpush1.bf16.msra.mxu0 0
        %3875 = vmatprep.subr.bf16.mxu0 0
        %3876 = vmatpush1.bf16.msra.mxu0 0
        %3877 = vmatprep.subr.bf16.mxu0 0
        %3878 = vmatpush1.bf16.msra.mxu0 0
        %3879 = vmatprep.subr.bf16.mxu0 0
        %3880 = vmatpush1.bf16.msra.mxu0 0
        %3881 = vmatprep.mubr.bf16.mxu0 0
        %3882 = vmatmul.mubr.bf16.gmra.mrb[0].mxu0 %v3694
        %v3883 = vpop.f32.mrb[0].mxu0
        %v3884 = vadd.f32 %v3836, %v3883
        %v3885 = vpop.f32.mrb[0].mxu0
        %v3886 = vpop.f32.mrb[0].mxu0
        %v3887 = vadd.f32 %v3839, %v3886
        %v3888 = vpop.f32.mrb[0].mxu0
        %3889 = vmatprep.mubr.bf16.mxu0 0
        %3890 = vmatmul.mubr.bf16.gmra.mrb[0].mxu0 %v3697
        %v3891 = vpop.f32.mrb[0].mxu0
        %v3892 = vadd.f32 %v3844, %v3891
        %v3893 = vpop.f32.mrb[0].mxu0
        %v3894 = vpop.f32.mrb[0].mxu0
        %v3895 = vpop.f32.mrb[0].mxu0
        %3896 = vdwg.mxu0
        %v3897 = vadd.f32 %v3200, %v3785
        %v3898 = vadd.f32 %v3201, %v3787
        %v3899 = vadd.f32 %v3202, %v3884
        %v3900 = vadd.f32 %v3203, %v3789
        %v3901 = vadd.f32 %v3204, %v3791
        %v3902 = vadd.f32 %v3205, %v3887
        %v3903 = vadd.f32 %v3206, %v3795
        %v3904 = vadd.f32 %v3207, %v3797
        %v3905 = vadd.f32 %v3208, %v3892
        %v3906 = vld [vmem:[%s3] sm:$0x7]
        %v3908 = vlaneseq
        %v3909 = vshrl.u32 %v3908, 7
        %v3910 = vsub.s32 0, %v3909
        %v3911 = vrot.slane %v3906, %v3910
        %v3912 = vlaneseq
        %v3913 = vshrl.u32 %v3912, 7
        %v3914 = vsub.s32 1, %v3913
        %v3915 = vrot.slane %v3906, %v3914
        %v3916 = vlaneseq
        %v3917 = vshrl.u32 %v3916, 7
        %v3918 = vsub.s32 2, %v3917
        %v3919 = vrot.slane %v3906, %v3918
        %v3923 = vadd.f32 %v3897, %v3911
        %v3924 = vadd.f32 %v3898, %v3915
        %v3925 = vadd.f32 %v3899, %v3919
        %v3926 = vadd.f32 %v3900, %v3911
        %v3927 = vadd.f32 %v3901, %v3915
        %v3928 = vadd.f32 %v3902, %v3919
        %v3929 = vadd.f32 %v3903, %v3911
        %v3930 = vadd.f32 %v3904, %v3915
        %v3931 = vadd.f32 %v3905, %v3919
        %v3932 = vmax.f32 %v3923, 0.0
        %v3933 = vmax.f32 %v3924, 0.0
        %v3934 = vmax.f32 %v3925, 0.0
        %v3935 = vmax.f32 %v3926, 0.0
        %v3936 = vmax.f32 %v3927, 0.0
        %v3937 = vmax.f32 %v3928, 0.0
        %v3938 = vmax.f32 %v3929, 0.0
        %v3939 = vmax.f32 %v3930, 0.0
        %v3940 = vmax.f32 %v3931, 0.0
        %v3941 = vpack.c.bf16 %v3935, %v3932
        %v3942 = vpack.c.bf16 %v3936, %v3933
        %v3943 = vpack.c.bf16 %v3937, %v3934
        %v3944 = vpack.c.bf16 %v3938, %v3938
        %v3945 = vpack.c.bf16 %v3939, %v3939
        %v3946 = vpack.c.bf16 %v3940, %v3940
        %v3947 = vld [vmem:[%s4] sm:$0xf]
        %v3948 = vld [vmem:[%s4 + $0x4] sm:$0x3]
        %v3951 = vunpack.c.l.b16 %v3947
        %v3952 = vunpack.c.l.b16 %v3948
        %v3953 = vpack.c.b16 %v3952, %v3951
        %vm3954 = vcmask 187392
        %v3956 = vsel %vm3954, %v3953, 0
        %vm3958 = vcmask 1042432
        %vm3959 = vcmask 1043456
        %v3960 = vsel %vm3958, 4294967295, 65535
        %v3961 = vsel %vm3959, %v3960, 0
        %v3963 = vand.u32 %v3944, %v3961
        %v3966 = vand.u32 %v3945, %v3961
        %v3969 = vand.u32 %v3946, %v3961
        %3971 = vmatprep.subr.bf16.mxu0 %v3942
        %3972 = vmatpush1.bf16.msra.mxu0 %v3941
        %3973 = vmatprep.subr.bf16.mxu0 %v3966
        %3974 = vmatpush1.bf16.msra.mxu0 %v3963
        %3975 = vmatprep.subr.bf16.mxu0 0
        %3976 = vmatpush1.bf16.msra.mxu0 0
        %3977 = vmatprep.subr.bf16.mxu0 0
        %3978 = vmatpush1.bf16.msra.mxu0 0
        %3979 = vmatprep.subr.bf16.mxu0 0
        %3980 = vmatpush1.bf16.msra.mxu0 0
        %3981 = vmatprep.subr.bf16.mxu0 0
        %3982 = vmatpush1.bf16.msra.mxu0 0
        %3983 = vmatprep.subr.bf16.mxu0 0
        %3984 = vmatpush1.bf16.msra.mxu0 0
        %3985 = vmatprep.subr.bf16.mxu0 0
        %3986 = vmatpush1.bf16.msra.mxu0 0
        %3987 = vmatprep.subr.bf16.mxu0 0
        %3988 = vmatpush1.bf16.msra.mxu0 0
        %3989 = vmatprep.subr.bf16.mxu0 0
        %3990 = vmatpush1.bf16.msra.mxu0 0
        %3991 = vmatprep.subr.bf16.mxu0 0
        %3992 = vmatpush1.bf16.msra.mxu0 0
        %3993 = vmatprep.subr.bf16.mxu0 0
        %3994 = vmatpush1.bf16.msra.mxu0 0
        %3995 = vmatprep.subr.bf16.mxu0 0
        %3996 = vmatpush1.bf16.msra.mxu0 0
        %3997 = vmatprep.subr.bf16.mxu0 0
        %3998 = vmatpush1.bf16.msra.mxu0 0
        %3999 = vmatprep.subr.bf16.mxu0 0
        %4000 = vmatpush1.bf16.msra.mxu0 0
        %4001 = vmatprep.subr.bf16.mxu0 0
        %4002 = vmatpush1.bf16.msra.mxu0 0
        %4003 = vmatprep.mubr.bf16.mxu0 0
        %4004 = vmatmul.mubr.bf16.gmra.mrb[0].mxu0 %v3956
        %v4005 = vpop.f32.mrb[0].mxu0
        %v4006 = vadd.f32 0.0, %v4005
        %v4007 = vpop.f32.mrb[0].mxu0
        %v4008 = vadd.f32 0.0, %v4007
        %v4009 = vpop.f32.mrb[0].mxu0
        %v4010 = vadd.f32 0.0, %v4009
        %v4011 = vpop.f32.mrb[0].mxu0
        %v4012 = vadd.f32 0.0, %v4011
        %4013 = vdwg.mxu0
        %4014 = vmatprep.subr.bf16.mxu0 0
        %4015 = vmatpush1.bf16.msra.mxu0 %v3943
        %4016 = vmatprep.subr.bf16.mxu0 0
        %4017 = vmatpush1.bf16.msra.mxu0 %v3969
        %4018 = vmatprep.subr.bf16.mxu0 0
        %4019 = vmatpush1.bf16.msra.mxu0 0
        %4020 = vmatprep.subr.bf16.mxu0 0
        %4021 = vmatpush1.bf16.msra.mxu0 0
        %4022 = vmatprep.subr.bf16.mxu0 0
        %4023 = vmatpush1.bf16.msra.mxu0 0
        %4024 = vmatprep.subr.bf16.mxu0 0
        %4025 = vmatpush1.bf16.msra.mxu0 0
        %4026 = vmatprep.subr.bf16.mxu0 0
        %4027 = vmatpush1.bf16.msra.mxu0 0
        %4028 = vmatprep.subr.bf16.mxu0 0
        %4029 = vmatpush1.bf16.msra.mxu0 0
        %4030 = vmatprep.subr.bf16.mxu0 0
        %4031 = vmatpush1.bf16.msra.mxu0 0
        %4032 = vmatprep.subr.bf16.mxu0 0
        %4033 = vmatpush1.bf16.msra.mxu0 0
        %4034 = vmatprep.subr.bf16.mxu0 0
        %4035 = vmatpush1.bf16.msra.mxu0 0
        %4036 = vmatprep.subr.bf16.mxu0 0
        %4037 = vmatpush1.bf16.msra.mxu0 0
        %4038 = vmatprep.subr.bf16.mxu0 0
        %4039 = vmatpush1.bf16.msra.mxu0 0
        %4040 = vmatprep.subr.bf16.mxu0 0
        %4041 = vmatpush1.bf16.msra.mxu0 0
        %4042 = vmatprep.subr.bf16.mxu0 0
        %4043 = vmatpush1.bf16.msra.mxu0 0
        %4044 = vmatprep.subr.bf16.mxu0 0
        %4045 = vmatpush1.bf16.msra.mxu0 0
        %4046 = vmatprep.mubr.bf16.mxu0 0
        %4047 = vmatmul.mubr.bf16.gmra.mrb[0].mxu0 %v3956
        %v4048 = vpop.f32.mrb[0].mxu0
        %v4049 = vadd.f32 0.0, %v4048
        %v4050 = vpop.f32.mrb[0].mxu0
        %v4051 = vpop.f32.mrb[0].mxu0
        %v4052 = vadd.f32 0.0, %v4051
        %v4053 = vpop.f32.mrb[0].mxu0
        %4054 = vdwg.mxu0
        %v4055 = vpack.c.bf16 %v4010, %v4006
        %v4056 = vpack.c.bf16 %v4012, %v4008
        %v4057 = vpack.c.bf16 %v4052, %v4049
        %v4058 = vld [vmem:[%s5] sm:$0xff]
        %v4059 = vld [vmem:[%s5 + $0x8] sm:$0xf]
        %v4060 = vld [vmem:[%s5 + $0xc] sm:$0xff]
        %v4061 = vld [vmem:[%s5 + $0x14] sm:$0xf]
        %v4062 = vld [vmem:[%s5 + $0x18] sm:$0xff]
        %v4063 = vld [vmem:[%s5 + $0x20] sm:$0xf]
        %v4064 = vld [vmem:[%s5 + $0x24] sm:$0xff]
        %v4065 = vld [vmem:[%s5 + $0x2c] sm:$0xf]
        %v4066 = vld [vmem:[%s5 + $0x30] sm:$0xff]
        %v4067 = vld [vmem:[%s5 + $0x38] sm:$0xf]
        %v4068 = vld [vmem:[%s5 + $0x3c] sm:$0xff]
        %v4069 = vld [vmem:[%s5 + $0x44] sm:$0xf]
        %v4070 = vld [vmem:[%s5 + $0x48] sm:$0xff]
        %v4071 = vld [vmem:[%s5 + $0x50] sm:$0xf]
        %v4072 = vld [vmem:[%s5 + $0x54] sm:$0xff]
        %v4073 = vld [vmem:[%s5 + $0x5c] sm:$0xf]
        %v4074 = vld [vmem:[%s5 + $0x60] sm:$0xff]
        %v4075 = vld [vmem:[%s5 + $0x68] sm:$0xf]
        %v4076 = vld [vmem:[%s5 + $0x6c] sm:$0xff]
        %v4077 = vld [vmem:[%s5 + $0x74] sm:$0xf]
        %v4078 = vld [vmem:[%s5 + $0x78] sm:$0xff]
        %v4079 = vld [vmem:[%s5 + $0x80] sm:$0xf]
        %v4080 = vld [vmem:[%s5 + $0x84] sm:$0xff]
        %v4081 = vld [vmem:[%s5 + $0x8c] sm:$0xf]
        %v4082 = vld [vmem:[%s5 + $0x90] sm:$0xff]
        %v4083 = vld [vmem:[%s5 + $0x98] sm:$0xf]
        %v4084 = vld [vmem:[%s5 + $0x9c] sm:$0xff]
        %v4085 = vld [vmem:[%s5 + $0xa4] sm:$0xf]
        %v4086 = vld [vmem:[%s5 + $0xa8] sm:$0xff]
        %v4087 = vld [vmem:[%s5 + $0xb0] sm:$0xf]
        %v4088 = vld [vmem:[%s5 + $0xb4] sm:$0xff]
        %v4089 = vld [vmem:[%s5 + $0xbc] sm:$0xf]
        %v4090 = vld [vmem:[%s5 + $0xc0] sm:$0xff]
        %v4091 = vld [vmem:[%s5 + $0xc8] sm:$0xf]
        %v4092 = vld [vmem:[%s5 + $0xcc] sm:$0xff]
        %v4093 = vld [vmem:[%s5 + $0xd4] sm:$0xf]
        %v4094 = vld [vmem:[%s5 + $0xd8] sm:$0xff]
        %v4095 = vld [vmem:[%s5 + $0xe0] sm:$0xf]
        %v4096 = vld [vmem:[%s5 + $0xe4] sm:$0xff]
        %v4097 = vld [vmem:[%s5 + $0xec] sm:$0xf]
        %v4098 = vld [vmem:[%s5 + $0xf0] sm:$0xff]
        %v4099 = vld [vmem:[%s5 + $0xf8] sm:$0xf]
        %v4100 = vld [vmem:[%s5 + $0xfc] sm:$0xff]
        %v4101 = vld [vmem:[%s5 + $0x104] sm:$0xf]
        %v4102 = vld [vmem:[%s5 + $0x108] sm:$0xff]
        %v4103 = vld [vmem:[%s5 + $0x110] sm:$0xf]
        %v4104 = vld [vmem:[%s5 + $0x114] sm:$0xff]
        %v4105 = vld [vmem:[%s5 + $0x11c] sm:$0xf]
        %v4106 = vld [vmem:[%s5 + $0x120] sm:$0xff]
        %v4107 = vld [vmem:[%s5 + $0x128] sm:$0xf]
        %v4108 = vld [vmem:[%s5 + $0x12c] sm:$0xff]
        %v4109 = vld [vmem:[%s5 + $0x134] sm:$0xf]
        %v4110 = vld [vmem:[%s5 + $0x138] sm:$0xff]
        %v4111 = vld [vmem:[%s5 + $0x140] sm:$0xf]
        %v4112 = vld [vmem:[%s5 + $0x144] sm:$0xff]
        %v4113 = vld [vmem:[%s5 + $0x14c] sm:$0xf]
        %v4114 = vld [vmem:[%s5 + $0x150] sm:$0xff]
        %v4115 = vld [vmem:[%s5 + $0x158] sm:$0xf]
        %v4116 = vld [vmem:[%s5 + $0x15c] sm:$0xff]
        %v4117 = vld [vmem:[%s5 + $0x164] sm:$0xf]
        %v4118 = vld [vmem:[%s5 + $0x168] sm:$0xff]
        %v4119 = vld [vmem:[%s5 + $0x170] sm:$0xf]
        %v4120 = vld [vmem:[%s5 + $0x174] sm:$0xff]
        %v4121 = vld [vmem:[%s5 + $0x17c] sm:$0xf]
        %v4122 = vld [vmem:[%s5 + $0x180] sm:$0xff]
        %v4123 = vld [vmem:[%s5 + $0x188] sm:$0xf]
        %v4124 = vld [vmem:[%s5 + $0x18c] sm:$0xff]
        %v4125 = vld [vmem:[%s5 + $0x194] sm:$0xf]
        %v4126 = vld [vmem:[%s5 + $0x198] sm:$0xff]
        %v4127 = vld [vmem:[%s5 + $0x1a0] sm:$0xf]
        %v4128 = vld [vmem:[%s5 + $0x1a4] sm:$0xff]
        %v4129 = vld [vmem:[%s5 + $0x1ac] sm:$0xf]
        %v4130 = vld [vmem:[%s5 + $0x1b0] sm:$0xff]
        %v4131 = vld [vmem:[%s5 + $0x1b8] sm:$0xf]
        %v4132 = vld [vmem:[%s5 + $0x1bc] sm:$0xff]
        %v4133 = vld [vmem:[%s5 + $0x1c4] sm:$0xf]
        %v4134 = vld [vmem:[%s5 + $0x1c8] sm:$0xff]
        %v4135 = vld [vmem:[%s5 + $0x1d0] sm:$0xf]
        %v4136 = vld [vmem:[%s5 + $0x1d4] sm:$0xff]
        %v4137 = vld [vmem:[%s5 + $0x1dc] sm:$0xf]
        %v4138 = vld [vmem:[%s5 + $0x1e0] sm:$0xff]
        %v4139 = vld [vmem:[%s5 + $0x1e8] sm:$0xf]
        %v4140 = vld [vmem:[%s5 + $0x1ec] sm:$0xff]
        %v4141 = vld [vmem:[%s5 + $0x1f4] sm:$0xf]
        %v4142 = vld [vmem:[%s5 + $0x1f8] sm:$0xff]
        %v4143 = vld [vmem:[%s5 + $0x200] sm:$0xf]
        %v4144 = vld [vmem:[%s5 + $0x204] sm:$0xff]
        %v4145 = vld [vmem:[%s5 + $0x20c] sm:$0xf]
        %v4146 = vld [vmem:[%s5 + $0x210] sm:$0xff]
        %v4147 = vld [vmem:[%s5 + $0x218] sm:$0xf]
        %v4148 = vld [vmem:[%s5 + $0x21c] sm:$0xff]
        %v4149 = vld [vmem:[%s5 + $0x224] sm:$0xf]
        %s4150 = scalar_lea.vmem %s4, 8
        %v4151 = vld [vmem:[%s4150] sm:$0xf]
        %v4152 = vld [vmem:[%s4150 + $0x4] sm:$0x3]
        %v4155 = vunpack.c.l.b16 %v4151
        %v4156 = vunpack.c.l.b16 %v4152
        %v4157 = vpack.c.b16 %v4156, %v4155
        %v4159 = vsel %vm3954, %v4157, 0
        %4161 = vmatprep.subr.bf16.mxu0 %v3942
        %4162 = vmatpush1.bf16.msra.mxu0 %v3941
        %4163 = vmatprep.subr.bf16.mxu0 %v3966
        %4164 = vmatpush1.bf16.msra.mxu0 %v3963
        %4165 = vmatprep.subr.bf16.mxu0 0
        %4166 = vmatpush1.bf16.msra.mxu0 0
        %4167 = vmatprep.subr.bf16.mxu0 0
        %4168 = vmatpush1.bf16.msra.mxu0 0
        %4169 = vmatprep.subr.bf16.mxu0 0
        %4170 = vmatpush1.bf16.msra.mxu0 0
        %4171 = vmatprep.subr.bf16.mxu0 0
        %4172 = vmatpush1.bf16.msra.mxu0 0
        %4173 = vmatprep.subr.bf16.mxu0 0
        %4174 = vmatpush1.bf16.msra.mxu0 0
        %4175 = vmatprep.subr.bf16.mxu0 0
        %4176 = vmatpush1.bf16.msra.mxu0 0
        %4177 = vmatprep.subr.bf16.mxu0 0
        %4178 = vmatpush1.bf16.msra.mxu0 0
        %4179 = vmatprep.subr.bf16.mxu0 0
        %4180 = vmatpush1.bf16.msra.mxu0 0
        %4181 = vmatprep.subr.bf16.mxu0 0
        %4182 = vmatpush1.bf16.msra.mxu0 0
        %4183 = vmatprep.subr.bf16.mxu0 0
        %4184 = vmatpush1.bf16.msra.mxu0 0
        %4185 = vmatprep.subr.bf16.mxu0 0
        %4186 = vmatpush1.bf16.msra.mxu0 0
        %4187 = vmatprep.subr.bf16.mxu0 0
        %4188 = vmatpush1.bf16.msra.mxu0 0
        %4189 = vmatprep.subr.bf16.mxu0 0
        %4190 = vmatpush1.bf16.msra.mxu0 0
        %4191 = vmatprep.subr.bf16.mxu0 0
        %4192 = vmatpush1.bf16.msra.mxu0 0
        %4193 = vmatprep.mubr.bf16.mxu0 0
        %4194 = vmatmul.mubr.bf16.gmra.mrb[0].mxu0 %v4159
        %v4195 = vpop.f32.mrb[0].mxu0
        %v4196 = vadd.f32 0.0, %v4195
        %v4197 = vpop.f32.mrb[0].mxu0
        %v4198 = vadd.f32 0.0, %v4197
        %v4199 = vpop.f32.mrb[0].mxu0
        %v4200 = vadd.f32 0.0, %v4199
        %v4201 = vpop.f32.mrb[0].mxu0
        %v4202 = vadd.f32 0.0, %v4201
        %4203 = vdwg.mxu0
        %4204 = vmatprep.subr.bf16.mxu0 0
        %4205 = vmatpush1.bf16.msra.mxu0 %v3943
        %4206 = vmatprep.subr.bf16.mxu0 0
        %4207 = vmatpush1.bf16.msra.mxu0 %v3969
        %4208 = vmatprep.subr.bf16.mxu0 0
        %4209 = vmatpush1.bf16.msra.mxu0 0
        %4210 = vmatprep.subr.bf16.mxu0 0
        %4211 = vmatpush1.bf16.msra.mxu0 0
        %4212 = vmatprep.subr.bf16.mxu0 0
        %4213 = vmatpush1.bf16.msra.mxu0 0
        %4214 = vmatprep.subr.bf16.mxu0 0
        %4215 = vmatpush1.bf16.msra.mxu0 0
        %4216 = vmatprep.subr.bf16.mxu0 0
        %4217 = vmatpush1.bf16.msra.mxu0 0
        %4218 = vmatprep.subr.bf16.mxu0 0
        %4219 = vmatpush1.bf16.msra.mxu0 0
        %4220 = vmatprep.subr.bf16.mxu0 0
        %4221 = vmatpush1.bf16.msra.mxu0 0
        %4222 = vmatprep.subr.bf16.mxu0 0
        %4223 = vmatpush1.bf16.msra.mxu0 0
        %4224 = vmatprep.subr.bf16.mxu0 0
        %4225 = vmatpush1.bf16.msra.mxu0 0
        %4226 = vmatprep.subr.bf16.mxu0 0
        %4227 = vmatpush1.bf16.msra.mxu0 0
        %4228 = vmatprep.subr.bf16.mxu0 0
        %4229 = vmatpush1.bf16.msra.mxu0 0
        %4230 = vmatprep.subr.bf16.mxu0 0
        %4231 = vmatpush1.bf16.msra.mxu0 0
        %4232 = vmatprep.subr.bf16.mxu0 0
        %4233 = vmatpush1.bf16.msra.mxu0 0
        %4234 = vmatprep.subr.bf16.mxu0 0
        %4235 = vmatpush1.bf16.msra.mxu0 0
        %4236 = vmatprep.mubr.bf16.mxu0 0
        %4237 = vmatmul.mubr.bf16.gmra.mrb[0].mxu0 %v4159
        %v4238 = vpop.f32.mrb[0].mxu0
        %v4239 = vadd.f32 0.0, %v4238
        %v4240 = vpop.f32.mrb[0].mxu0
        %v4241 = vpop.f32.mrb[0].mxu0
        %v4242 = vadd.f32 0.0, %v4241
        %v4243 = vpop.f32.mrb[0].mxu0
        %4244 = vdwg.mxu0
        %v4245 = vpack.c.bf16 %v4200, %v4196
        %v4246 = vpack.c.bf16 %v4202, %v4198
        %v4247 = vpack.c.bf16 %v4242, %v4239
        %s4248 = scalar_lea.vmem %s5, 552
        %v4249 = vld [vmem:[%s4248] sm:$0xff]
        %v4250 = vld [vmem:[%s4248 + $0x8] sm:$0xf]
        %v4251 = vld [vmem:[%s4248 + $0xc] sm:$0xff]
        %v4252 = vld [vmem:[%s4248 + $0x14] sm:$0xf]
        %v4253 = vld [vmem:[%s4248 + $0x18] sm:$0xff]
        %v4254 = vld [vmem:[%s4248 + $0x20] sm:$0xf]
        %v4255 = vld [vmem:[%s4248 + $0x24] sm:$0xff]
        %v4256 = vld [vmem:[%s4248 + $0x2c] sm:$0xf]
        %v4257 = vld [vmem:[%s4248 + $0x30] sm:$0xff]
        %v4258 = vld [vmem:[%s4248 + $0x38] sm:$0xf]
        %v4259 = vld [vmem:[%s4248 + $0x3c] sm:$0xff]
        %v4260 = vld [vmem:[%s4248 + $0x44] sm:$0xf]
        %v4261 = vld [vmem:[%s4248 + $0x48] sm:$0xff]
        %v4262 = vld [vmem:[%s4248 + $0x50] sm:$0xf]
        %v4263 = vld [vmem:[%s4248 + $0x54] sm:$0xff]
        %v4264 = vld [vmem:[%s4248 + $0x5c] sm:$0xf]
        %v4265 = vld [vmem:[%s4248 + $0x60] sm:$0xff]
        %v4266 = vld [vmem:[%s4248 + $0x68] sm:$0xf]
        %v4267 = vld [vmem:[%s4248 + $0x6c] sm:$0xff]
        %v4268 = vld [vmem:[%s4248 + $0x74] sm:$0xf]
        %v4269 = vld [vmem:[%s4248 + $0x78] sm:$0xff]
        %v4270 = vld [vmem:[%s4248 + $0x80] sm:$0xf]
        %v4271 = vld [vmem:[%s4248 + $0x84] sm:$0xff]
        %v4272 = vld [vmem:[%s4248 + $0x8c] sm:$0xf]
        %v4273 = vld [vmem:[%s4248 + $0x90] sm:$0xff]
        %v4274 = vld [vmem:[%s4248 + $0x98] sm:$0xf]
        %v4275 = vld [vmem:[%s4248 + $0x9c] sm:$0xff]
        %v4276 = vld [vmem:[%s4248 + $0xa4] sm:$0xf]
        %v4277 = vld [vmem:[%s4248 + $0xa8] sm:$0xff]
        %v4278 = vld [vmem:[%s4248 + $0xb0] sm:$0xf]
        %v4279 = vld [vmem:[%s4248 + $0xb4] sm:$0xff]
        %v4280 = vld [vmem:[%s4248 + $0xbc] sm:$0xf]
        %v4281 = vld [vmem:[%s4248 + $0xc0] sm:$0xff]
        %v4282 = vld [vmem:[%s4248 + $0xc8] sm:$0xf]
        %v4283 = vld [vmem:[%s4248 + $0xcc] sm:$0xff]
        %v4284 = vld [vmem:[%s4248 + $0xd4] sm:$0xf]
        %v4285 = vld [vmem:[%s4248 + $0xd8] sm:$0xff]
        %v4286 = vld [vmem:[%s4248 + $0xe0] sm:$0xf]
        %v4287 = vld [vmem:[%s4248 + $0xe4] sm:$0xff]
        %v4288 = vld [vmem:[%s4248 + $0xec] sm:$0xf]
        %v4289 = vld [vmem:[%s4248 + $0xf0] sm:$0xff]
        %v4290 = vld [vmem:[%s4248 + $0xf8] sm:$0xf]
        %v4291 = vld [vmem:[%s4248 + $0xfc] sm:$0xff]
        %v4292 = vld [vmem:[%s4248 + $0x104] sm:$0xf]
        %v4293 = vld [vmem:[%s4248 + $0x108] sm:$0xff]
        %v4294 = vld [vmem:[%s4248 + $0x110] sm:$0xf]
        %v4295 = vld [vmem:[%s4248 + $0x114] sm:$0xff]
        %v4296 = vld [vmem:[%s4248 + $0x11c] sm:$0xf]
        %v4297 = vld [vmem:[%s4248 + $0x120] sm:$0xff]
        %v4298 = vld [vmem:[%s4248 + $0x128] sm:$0xf]
        %v4299 = vld [vmem:[%s4248 + $0x12c] sm:$0xff]
        %v4300 = vld [vmem:[%s4248 + $0x134] sm:$0xf]
        %v4301 = vld [vmem:[%s4248 + $0x138] sm:$0xff]
        %v4302 = vld [vmem:[%s4248 + $0x140] sm:$0xf]
        %v4303 = vld [vmem:[%s4248 + $0x144] sm:$0xff]
        %v4304 = vld [vmem:[%s4248 + $0x14c] sm:$0xf]
        %v4305 = vld [vmem:[%s4248 + $0x150] sm:$0xff]
        %v4306 = vld [vmem:[%s4248 + $0x158] sm:$0xf]
        %v4307 = vld [vmem:[%s4248 + $0x15c] sm:$0xff]
        %v4308 = vld [vmem:[%s4248 + $0x164] sm:$0xf]
        %v4309 = vld [vmem:[%s4248 + $0x168] sm:$0xff]
        %v4310 = vld [vmem:[%s4248 + $0x170] sm:$0xf]
        %v4311 = vld [vmem:[%s4248 + $0x174] sm:$0xff]
        %v4312 = vld [vmem:[%s4248 + $0x17c] sm:$0xf]
        %v4313 = vld [vmem:[%s4248 + $0x180] sm:$0xff]
        %v4314 = vld [vmem:[%s4248 + $0x188] sm:$0xf]
        %v4315 = vld [vmem:[%s4248 + $0x18c] sm:$0xff]
        %v4316 = vld [vmem:[%s4248 + $0x194] sm:$0xf]
        %v4317 = vld [vmem:[%s4248 + $0x198] sm:$0xff]
        %v4318 = vld [vmem:[%s4248 + $0x1a0] sm:$0xf]
        %v4319 = vld [vmem:[%s4248 + $0x1a4] sm:$0xff]
        %v4320 = vld [vmem:[%s4248 + $0x1ac] sm:$0xf]
        %v4321 = vld [vmem:[%s4248 + $0x1b0] sm:$0xff]
        %v4322 = vld [vmem:[%s4248 + $0x1b8] sm:$0xf]
        %v4323 = vld [vmem:[%s4248 + $0x1bc] sm:$0xff]
        %v4324 = vld [vmem:[%s4248 + $0x1c4] sm:$0xf]
        %v4325 = vld [vmem:[%s4248 + $0x1c8] sm:$0xff]
        %v4326 = vld [vmem:[%s4248 + $0x1d0] sm:$0xf]
        %v4327 = vld [vmem:[%s4248 + $0x1d4] sm:$0xff]
        %v4328 = vld [vmem:[%s4248 + $0x1dc] sm:$0xf]
        %v4329 = vld [vmem:[%s4248 + $0x1e0] sm:$0xff]
        %v4330 = vld [vmem:[%s4248 + $0x1e8] sm:$0xf]
        %v4331 = vld [vmem:[%s4248 + $0x1ec] sm:$0xff]
        %v4332 = vld [vmem:[%s4248 + $0x1f4] sm:$0xf]
        %v4333 = vld [vmem:[%s4248 + $0x1f8] sm:$0xff]
        %v4334 = vld [vmem:[%s4248 + $0x200] sm:$0xf]
        %v4335 = vld [vmem:[%s4248 + $0x204] sm:$0xff]
        %v4336 = vld [vmem:[%s4248 + $0x20c] sm:$0xf]
        %v4337 = vld [vmem:[%s4248 + $0x210] sm:$0xff]
        %v4338 = vld [vmem:[%s4248 + $0x218] sm:$0xf]
        %v4339 = vld [vmem:[%s4248 + $0x21c] sm:$0xff]
        %v4340 = vld [vmem:[%s4248 + $0x224] sm:$0xf]
        %v4433 = vunpack.c.l.b16 %v4249
        %v4434 = vunpack.c.h.b16 %v4249
        %v4435 = vunpack.c.l.b16 %v4250
        %v4436 = vunpack.c.l.b16 %v4251
        %v4437 = vunpack.c.h.b16 %v4251
        %v4438 = vunpack.c.l.b16 %v4252
        %v4439 = vunpack.c.l.b16 %v4253
        %v4440 = vunpack.c.h.b16 %v4253
        %v4441 = vunpack.c.l.b16 %v4254
        %v4442 = vunpack.c.l.b16 %v4255
        %v4443 = vunpack.c.h.b16 %v4255
        %v4444 = vunpack.c.l.b16 %v4256
        %v4445 = vunpack.c.l.b16 %v4257
        %v4446 = vunpack.c.h.b16 %v4257
        %v4447 = vunpack.c.l.b16 %v4258
        %v4448 = vunpack.c.l.b16 %v4259
        %v4449 = vunpack.c.h.b16 %v4259
        %v4450 = vunpack.c.l.b16 %v4260
        %v4451 = vunpack.c.l.b16 %v4261
        %v4452 = vunpack.c.h.b16 %v4261
        %v4453 = vunpack.c.l.b16 %v4262
        %v4454 = vunpack.c.l.b16 %v4263
        %v4455 = vunpack.c.h.b16 %v4263
        %v4456 = vunpack.c.l.b16 %v4264
        %v4457 = vunpack.c.l.b16 %v4265
        %v4458 = vunpack.c.h.b16 %v4265
        %v4459 = vunpack.c.l.b16 %v4266
        %v4460 = vunpack.c.l.b16 %v4267
        %v4461 = vunpack.c.h.b16 %v4267
        %v4462 = vunpack.c.l.b16 %v4268
        %v4463 = vunpack.c.l.b16 %v4269
        %v4464 = vunpack.c.h.b16 %v4269
        %v4465 = vunpack.c.l.b16 %v4270
        %v4466 = vunpack.c.l.b16 %v4271
        %v4467 = vunpack.c.h.b16 %v4271
        %v4468 = vunpack.c.l.b16 %v4272
        %v4469 = vunpack.c.l.b16 %v4273
        %v4470 = vunpack.c.h.b16 %v4273
        %v4471 = vunpack.c.l.b16 %v4274
        %v4472 = vunpack.c.l.b16 %v4275
        %v4473 = vunpack.c.h.b16 %v4275
        %v4474 = vunpack.c.l.b16 %v4276
        %v4475 = vunpack.c.l.b16 %v4277
        %v4476 = vunpack.c.h.b16 %v4277
        %v4477 = vunpack.c.l.b16 %v4278
        %v4478 = vunpack.c.l.b16 %v4279
        %v4479 = vunpack.c.h.b16 %v4279
        %v4480 = vunpack.c.l.b16 %v4280
        %v4481 = vunpack.c.l.b16 %v4281
        %v4482 = vunpack.c.h.b16 %v4281
        %v4483 = vunpack.c.l.b16 %v4282
        %v4484 = vunpack.c.l.b16 %v4283
        %v4485 = vunpack.c.h.b16 %v4283
        %v4486 = vunpack.c.l.b16 %v4284
        %v4487 = vunpack.c.l.b16 %v4285
        %v4488 = vunpack.c.h.b16 %v4285
        %v4489 = vunpack.c.l.b16 %v4286
        %v4490 = vunpack.c.l.b16 %v4287
        %v4491 = vunpack.c.h.b16 %v4287
        %v4492 = vunpack.c.l.b16 %v4288
        %v4493 = vunpack.c.l.b16 %v4289
        %v4494 = vunpack.c.h.b16 %v4289
        %v4495 = vunpack.c.l.b16 %v4290
        %v4496 = vunpack.c.l.b16 %v4291
        %v4497 = vunpack.c.h.b16 %v4291
        %v4498 = vunpack.c.l.b16 %v4292
        %v4499 = vunpack.c.l.b16 %v4293
        %v4500 = vunpack.c.h.b16 %v4293
        %v4501 = vunpack.c.l.b16 %v4294
        %v4502 = vunpack.c.l.b16 %v4295
        %v4503 = vunpack.c.h.b16 %v4295
        %v4504 = vunpack.c.l.b16 %v4296
        %v4505 = vunpack.c.l.b16 %v4297
        %v4506 = vunpack.c.h.b16 %v4297
        %v4507 = vunpack.c.l.b16 %v4298
        %v4508 = vunpack.c.l.b16 %v4299
        %v4509 = vunpack.c.h.b16 %v4299
        %v4510 = vunpack.c.l.b16 %v4300
        %v4511 = vunpack.c.l.b16 %v4301
        %v4512 = vunpack.c.h.b16 %v4301
        %v4513 = vunpack.c.l.b16 %v4302
        %v4514 = vunpack.c.l.b16 %v4303
        %v4515 = vunpack.c.h.b16 %v4303
        %v4516 = vunpack.c.l.b16 %v4304
        %v4517 = vunpack.c.l.b16 %v4305
        %v4518 = vunpack.c.h.b16 %v4305
        %v4519 = vunpack.c.l.b16 %v4306
        %v4520 = vunpack.c.l.b16 %v4307
        %v4521 = vunpack.c.h.b16 %v4307
        %v4522 = vunpack.c.l.b16 %v4308
        %v4523 = vunpack.c.l.b16 %v4309
        %v4524 = vunpack.c.h.b16 %v4309
        %v4525 = vunpack.c.l.b16 %v4310
        %v4526 = vunpack.c.l.b16 %v4311
        %v4527 = vunpack.c.h.b16 %v4311
        %v4528 = vunpack.c.l.b16 %v4312
        %v4529 = vunpack.c.l.b16 %v4313
        %v4530 = vunpack.c.h.b16 %v4313
        %v4531 = vunpack.c.l.b16 %v4314
        %v4532 = vunpack.c.l.b16 %v4315
        %v4533 = vunpack.c.h.b16 %v4315
        %v4534 = vunpack.c.l.b16 %v4316
        %v4535 = vunpack.c.l.b16 %v4317
        %v4536 = vunpack.c.h.b16 %v4317
        %v4537 = vunpack.c.l.b16 %v4318
        %v4538 = vunpack.c.l.b16 %v4319
        %v4539 = vunpack.c.h.b16 %v4319
        %v4540 = vunpack.c.l.b16 %v4320
        %v4541 = vunpack.c.l.b16 %v4321
        %v4542 = vunpack.c.h.b16 %v4321
        %v4543 = vunpack.c.l.b16 %v4322
        %v4544 = vunpack.c.l.b16 %v4323
        %v4545 = vunpack.c.h.b16 %v4323
        %v4546 = vunpack.c.l.b16 %v4324
        %v4547 = vunpack.c.l.b16 %v4325
        %v4548 = vunpack.c.h.b16 %v4325
        %v4549 = vunpack.c.l.b16 %v4326
        %v4550 = vunpack.c.l.b16 %v4327
        %v4551 = vunpack.c.h.b16 %v4327
        %v4552 = vunpack.c.l.b16 %v4328
        %v4553 = vunpack.c.l.b16 %v4329
        %v4554 = vunpack.c.h.b16 %v4329
        %v4555 = vunpack.c.l.b16 %v4330
        %v4556 = vunpack.c.l.b16 %v4331
        %v4557 = vunpack.c.h.b16 %v4331
        %v4558 = vunpack.c.l.b16 %v4332
        %v4559 = vunpack.c.l.b16 %v4333
        %v4560 = vunpack.c.h.b16 %v4333
        %v4561 = vunpack.c.l.b16 %v4334
        %v4562 = vunpack.c.l.b16 %v4335
        %v4563 = vunpack.c.h.b16 %v4335
        %v4564 = vunpack.c.l.b16 %v4336
        %v4565 = vunpack.c.l.b16 %v4337
        %v4566 = vunpack.c.h.b16 %v4337
        %v4567 = vunpack.c.l.b16 %v4338
        %v4568 = vunpack.c.l.b16 %v4339
        %v4569 = vunpack.c.h.b16 %v4339
        %v4570 = vunpack.c.l.b16 %v4340
        %v4571 = vpack.c.b16 %v4436, %v4433
        %v4572 = vpack.c.b16 %v4437, %v4434
        %v4573 = vpack.c.b16 %v4438, %v4435
        %v4574 = vpack.c.b16 %v4442, %v4439
        %v4575 = vpack.c.b16 %v4443, %v4440
        %v4576 = vpack.c.b16 %v4444, %v4441
        %v4577 = vpack.c.b16 %v4448, %v4445
        %v4578 = vpack.c.b16 %v4449, %v4446
        %v4579 = vpack.c.b16 %v4450, %v4447
        %v4580 = vpack.c.b16 %v4454, %v4451
        %v4581 = vpack.c.b16 %v4455, %v4452
        %v4582 = vpack.c.b16 %v4456, %v4453
        %v4583 = vpack.c.b16 %v4460, %v4457
        %v4584 = vpack.c.b16 %v4461, %v4458
        %v4585 = vpack.c.b16 %v4462, %v4459
        %v4586 = vpack.c.b16 %v4466, %v4463
        %v4587 = vpack.c.b16 %v4467, %v4464
        %v4588 = vpack.c.b16 %v4468, %v4465
        %v4589 = vpack.c.b16 %v4472, %v4469
        %v4590 = vpack.c.b16 %v4473, %v4470
        %v4591 = vpack.c.b16 %v4474, %v4471
        %v4592 = vpack.c.b16 %v4478, %v4475
        %v4593 = vpack.c.b16 %v4479, %v4476
        %v4594 = vpack.c.b16 %v4480, %v4477
        %v4595 = vpack.c.b16 %v4484, %v4481
        %v4596 = vpack.c.b16 %v4485, %v4482
        %v4597 = vpack.c.b16 %v4486, %v4483
        %v4598 = vpack.c.b16 %v4490, %v4487
        %v4599 = vpack.c.b16 %v4491, %v4488
        %v4600 = vpack.c.b16 %v4492, %v4489
        %v4601 = vpack.c.b16 %v4496, %v4493
        %v4602 = vpack.c.b16 %v4497, %v4494
        %v4603 = vpack.c.b16 %v4498, %v4495
        %v4604 = vpack.c.b16 %v4502, %v4499
        %v4605 = vpack.c.b16 %v4503, %v4500
        %v4606 = vpack.c.b16 %v4504, %v4501
        %v4607 = vpack.c.b16 %v4508, %v4505
        %v4608 = vpack.c.b16 %v4509, %v4506
        %v4609 = vpack.c.b16 %v4510, %v4507
        %v4610 = vpack.c.b16 %v4514, %v4511
        %v4611 = vpack.c.b16 %v4515, %v4512
        %v4612 = vpack.c.b16 %v4516, %v4513
        %v4613 = vpack.c.b16 %v4520, %v4517
        %v4614 = vpack.c.b16 %v4521, %v4518
        %v4615 = vpack.c.b16 %v4522, %v4519
        %v4616 = vpack.c.b16 %v4526, %v4523
        %v4617 = vpack.c.b16 %v4527, %v4524
        %v4618 = vpack.c.b16 %v4528, %v4525
        %v4619 = vpack.c.b16 %v4532, %v4529
        %v4620 = vpack.c.b16 %v4533, %v4530
        %v4621 = vpack.c.b16 %v4534, %v4531
        %v4622 = vpack.c.b16 %v4538, %v4535
        %v4623 = vpack.c.b16 %v4539, %v4536
        %v4624 = vpack.c.b16 %v4540, %v4537
        %v4625 = vpack.c.b16 %v4544, %v4541
        %v4626 = vpack.c.b16 %v4545, %v4542
        %v4627 = vpack.c.b16 %v4546, %v4543
        %v4628 = vpack.c.b16 %v4550, %v4547
        %v4629 = vpack.c.b16 %v4551, %v4548
        %v4630 = vpack.c.b16 %v4552, %v4549
        %v4631 = vpack.c.b16 %v4556, %v4553
        %v4632 = vpack.c.b16 %v4557, %v4554
        %v4633 = vpack.c.b16 %v4558, %v4555
        %v4634 = vpack.c.b16 %v4562, %v4559
        %v4635 = vpack.c.b16 %v4563, %v4560
        %v4636 = vpack.c.b16 %v4564, %v4561
        %v4637 = vpack.c.b16 %v4568, %v4565
        %v4638 = vpack.c.b16 %v4569, %v4566
        %v4639 = vpack.c.b16 %v4570, %v4567
        %vm4709 = vcmask 916480
        %v4711 = vsel %vm4709, %v4247, 0
        %4713 = vmatprep.subr.bf16.mxu0 %v4572
        %4714 = vmatpush1.bf16.msra.mxu0 %v4571
        %4715 = vmatprep.subr.bf16.mxu0 %v4575
        %4716 = vmatpush1.bf16.msra.mxu0 %v4574
        %4717 = vmatprep.subr.bf16.mxu0 %v4578
        %4718 = vmatpush1.bf16.msra.mxu0 %v4577
        %4719 = vmatprep.subr.bf16.mxu0 %v4581
        %4720 = vmatpush1.bf16.msra.mxu0 %v4580
        %4721 = vmatprep.subr.bf16.mxu0 %v4584
        %4722 = vmatpush1.bf16.msra.mxu0 %v4583
        %4723 = vmatprep.subr.bf16.mxu0 %v4587
        %4724 = vmatpush1.bf16.msra.mxu0 %v4586
        %4725 = vmatprep.subr.bf16.mxu0 %v4590
        %4726 = vmatpush1.bf16.msra.mxu0 %v4589
        %4727 = vmatprep.subr.bf16.mxu0 %v4593
        %4728 = vmatpush1.bf16.msra.mxu0 %v4592
        %4729 = vmatprep.subr.bf16.mxu0 %v4596
        %4730 = vmatpush1.bf16.msra.mxu0 %v4595
        %4731 = vmatprep.subr.bf16.mxu0 %v4599
        %4732 = vmatpush1.bf16.msra.mxu0 %v4598
        %4733 = vmatprep.subr.bf16.mxu0 %v4602
        %4734 = vmatpush1.bf16.msra.mxu0 %v4601
        %4735 = vmatprep.subr.bf16.mxu0 %v4605
        %4736 = vmatpush1.bf16.msra.mxu0 %v4604
        %4737 = vmatprep.subr.bf16.mxu0 %v4608
        %4738 = vmatpush1.bf16.msra.mxu0 %v4607
        %4739 = vmatprep.subr.bf16.mxu0 %v4611
        %4740 = vmatpush1.bf16.msra.mxu0 %v4610
        %4741 = vmatprep.subr.bf16.mxu0 %v4614
        %4742 = vmatpush1.bf16.msra.mxu0 %v4613
        %4743 = vmatprep.subr.bf16.mxu0 %v4617
        %4744 = vmatpush1.bf16.msra.mxu0 %v4616
        %4745 = vmatprep.mubr.bf16.mxu0 %v4246
        %4746 = vmatmul.mubr.bf16.gmra.mrb[0].mxu0 %v4245
        %v4747 = vpop.f32.mrb[0].mxu0
        %v4748 = vadd.f32 0.0, %v4747
        %v4749 = vpop.f32.mrb[0].mxu0
        %v4750 = vadd.f32 0.0, %v4749
        %v4751 = vpop.f32.mrb[0].mxu0
        %v4752 = vadd.f32 0.0, %v4751
        %v4753 = vpop.f32.mrb[0].mxu0
        %v4754 = vadd.f32 0.0, %v4753
        %4755 = vdwg.mxu0
        %4756 = vmatprep.subr.bf16.mxu0 %v4620
        %4757 = vmatpush1.bf16.msra.mxu0 %v4619
        %4758 = vmatprep.subr.bf16.mxu0 %v4623
        %4759 = vmatpush1.bf16.msra.mxu0 %v4622
        %4760 = vmatprep.subr.bf16.mxu0 %v4626
        %4761 = vmatpush1.bf16.msra.mxu0 %v4625
        %4762 = vmatprep.subr.bf16.mxu0 %v4629
        %4763 = vmatpush1.bf16.msra.mxu0 %v4628
        %4764 = vmatprep.subr.bf16.mxu0 %v4632
        %4765 = vmatpush1.bf16.msra.mxu0 %v4631
        %4766 = vmatprep.subr.bf16.mxu0 %v4635
        %4767 = vmatpush1.bf16.msra.mxu0 %v4634
        %4768 = vmatprep.subr.bf16.mxu0 %v4638
        %4769 = vmatpush1.bf16.msra.mxu0 %v4637
        %4770 = vmatprep.subr.bf16.mxu0 0
        %4771 = vmatpush1.bf16.msra.mxu0 0
        %4772 = vmatprep.subr.bf16.mxu0 0
        %4773 = vmatpush1.bf16.msra.mxu0 0
        %4774 = vmatprep.subr.bf16.mxu0 0
        %4775 = vmatpush1.bf16.msra.mxu0 0
        %4776 = vmatprep.subr.bf16.mxu0 0
        %4777 = vmatpush1.bf16.msra.mxu0 0
        %4778 = vmatprep.subr.bf16.mxu0 0
        %4779 = vmatpush1.bf16.msra.mxu0 0
        %4780 = vmatprep.subr.bf16.mxu0 0
        %4781 = vmatpush1.bf16.msra.mxu0 0
        %4782 = vmatprep.subr.bf16.mxu0 0
        %4783 = vmatpush1.bf16.msra.mxu0 0
        %4784 = vmatprep.subr.bf16.mxu0 0
        %4785 = vmatpush1.bf16.msra.mxu0 0
        %4786 = vmatprep.subr.bf16.mxu0 0
        %4787 = vmatpush1.bf16.msra.mxu0 0
        %4788 = vmatprep.mubr.bf16.mxu0 0
        %4789 = vmatmul.mubr.bf16.gmra.mrb[0].mxu0 %v4711
        %v4790 = vpop.f32.mrb[0].mxu0
        %v4791 = vadd.f32 %v4748, %v4790
        %v4792 = vpop.f32.mrb[0].mxu0
        %v4793 = vadd.f32 %v4750, %v4792
        %v4794 = vpop.f32.mrb[0].mxu0
        %v4795 = vadd.f32 %v4752, %v4794
        %v4796 = vpop.f32.mrb[0].mxu0
        %v4797 = vadd.f32 %v4754, %v4796
        %4798 = vdwg.mxu0
        %4799 = vmatprep.subr.bf16.mxu0 0
        %4800 = vmatpush1.bf16.msra.mxu0 %v4573
        %4801 = vmatprep.subr.bf16.mxu0 0
        %4802 = vmatpush1.bf16.msra.mxu0 %v4576
        %4803 = vmatprep.subr.bf16.mxu0 0
        %4804 = vmatpush1.bf16.msra.mxu0 %v4579
        %4805 = vmatprep.subr.bf16.mxu0 0
        %4806 = vmatpush1.bf16.msra.mxu0 %v4582
        %4807 = vmatprep.subr.bf16.mxu0 0
        %4808 = vmatpush1.bf16.msra.mxu0 %v4585
        %4809 = vmatprep.subr.bf16.mxu0 0
        %4810 = vmatpush1.bf16.msra.mxu0 %v4588
        %4811 = vmatprep.subr.bf16.mxu0 0
        %4812 = vmatpush1.bf16.msra.mxu0 %v4591
        %4813 = vmatprep.subr.bf16.mxu0 0
        %4814 = vmatpush1.bf16.msra.mxu0 %v4594
        %4815 = vmatprep.subr.bf16.mxu0 0
        %4816 = vmatpush1.bf16.msra.mxu0 %v4597
        %4817 = vmatprep.subr.bf16.mxu0 0
        %4818 = vmatpush1.bf16.msra.mxu0 %v4600
        %4819 = vmatprep.subr.bf16.mxu0 0
        %4820 = vmatpush1.bf16.msra.mxu0 %v4603
        %4821 = vmatprep.subr.bf16.mxu0 0
        %4822 = vmatpush1.bf16.msra.mxu0 %v4606
        %4823 = vmatprep.subr.bf16.mxu0 0
        %4824 = vmatpush1.bf16.msra.mxu0 %v4609
        %4825 = vmatprep.subr.bf16.mxu0 0
        %4826 = vmatpush1.bf16.msra.mxu0 %v4612
        %4827 = vmatprep.subr.bf16.mxu0 0
        %4828 = vmatpush1.bf16.msra.mxu0 %v4615
        %4829 = vmatprep.subr.bf16.mxu0 0
        %4830 = vmatpush1.bf16.msra.mxu0 %v4618
        %4831 = vmatprep.mubr.bf16.mxu0 %v4246
        %4832 = vmatmul.mubr.bf16.gmra.mrb[0].mxu0 %v4245
        %v4833 = vpop.f32.mrb[0].mxu0
        %v4834 = vadd.f32 0.0, %v4833
        %v4835 = vpop.f32.mrb[0].mxu0
        %v4836 = vpop.f32.mrb[0].mxu0
        %v4837 = vadd.f32 0.0, %v4836
        %v4838 = vpop.f32.mrb[0].mxu0
        %4839 = vdwg.mxu0
        %4840 = vmatprep.subr.bf16.mxu0 0
        %4841 = vmatpush1.bf16.msra.mxu0 %v4621
        %4842 = vmatprep.subr.bf16.mxu0 0
        %4843 = vmatpush1.bf16.msra.mxu0 %v4624
        %4844 = vmatprep.subr.bf16.mxu0 0
        %4845 = vmatpush1.bf16.msra.mxu0 %v4627
        %4846 = vmatprep.subr.bf16.mxu0 0
        %4847 = vmatpush1.bf16.msra.mxu0 %v4630
        %4848 = vmatprep.subr.bf16.mxu0 0
        %4849 = vmatpush1.bf16.msra.mxu0 %v4633
        %4850 = vmatprep.subr.bf16.mxu0 0
        %4851 = vmatpush1.bf16.msra.mxu0 %v4636
        %4852 = vmatprep.subr.bf16.mxu0 0
        %4853 = vmatpush1.bf16.msra.mxu0 %v4639
        %4854 = vmatprep.subr.bf16.mxu0 0
        %4855 = vmatpush1.bf16.msra.mxu0 0
        %4856 = vmatprep.subr.bf16.mxu0 0
        %4857 = vmatpush1.bf16.msra.mxu0 0
        %4858 = vmatprep.subr.bf16.mxu0 0
        %4859 = vmatpush1.bf16.msra.mxu0 0
        %4860 = vmatprep.subr.bf16.mxu0 0
        %4861 = vmatpush1.bf16.msra.mxu0 0
        %4862 = vmatprep.subr.bf16.mxu0 0
        %4863 = vmatpush1.bf16.msra.mxu0 0
        %4864 = vmatprep.subr.bf16.mxu0 0
        %4865 = vmatpush1.bf16.msra.mxu0 0
        %4866 = vmatprep.subr.bf16.mxu0 0
        %4867 = vmatpush1.bf16.msra.mxu0 0
        %4868 = vmatprep.subr.bf16.mxu0 0
        %4869 = vmatpush1.bf16.msra.mxu0 0
        %4870 = vmatprep.subr.bf16.mxu0 0
        %4871 = vmatpush1.bf16.msra.mxu0 0
        %4872 = vmatprep.mubr.bf16.mxu0 0
        %4873 = vmatmul.mubr.bf16.gmra.mrb[0].mxu0 %v4711
        %v4874 = vpop.f32.mrb[0].mxu0
        %v4875 = vadd.f32 %v4834, %v4874
        %v4876 = vpop.f32.mrb[0].mxu0
        %v4877 = vpop.f32.mrb[0].mxu0
        %v4878 = vadd.f32 %v4837, %v4877
        %v4879 = vpop.f32.mrb[0].mxu0
        %4880 = vdwg.mxu0
        %v4973 = vunpack.c.l.b16 %v4058
        %v4974 = vunpack.c.h.b16 %v4058
        %v4975 = vunpack.c.l.b16 %v4059
        %v4976 = vunpack.c.l.b16 %v4060
        %v4977 = vunpack.c.h.b16 %v4060
        %v4978 = vunpack.c.l.b16 %v4061
        %v4979 = vunpack.c.l.b16 %v4062
        %v4980 = vunpack.c.h.b16 %v4062
        %v4981 = vunpack.c.l.b16 %v4063
        %v4982 = vunpack.c.l.b16 %v4064
        %v4983 = vunpack.c.h.b16 %v4064
        %v4984 = vunpack.c.l.b16 %v4065
        %v4985 = vunpack.c.l.b16 %v4066
        %v4986 = vunpack.c.h.b16 %v4066
        %v4987 = vunpack.c.l.b16 %v4067
        %v4988 = vunpack.c.l.b16 %v4068
        %v4989 = vunpack.c.h.b16 %v4068
        %v4990 = vunpack.c.l.b16 %v4069
        %v4991 = vunpack.c.l.b16 %v4070
        %v4992 = vunpack.c.h.b16 %v4070
        %v4993 = vunpack.c.l.b16 %v4071
        %v4994 = vunpack.c.l.b16 %v4072
        %v4995 = vunpack.c.h.b16 %v4072
        %v4996 = vunpack.c.l.b16 %v4073
        %v4997 = vunpack.c.l.b16 %v4074
        %v4998 = vunpack.c.h.b16 %v4074
        %v4999 = vunpack.c.l.b16 %v4075
        %v5000 = vunpack.c.l.b16 %v4076
        %v5001 = vunpack.c.h.b16 %v4076
        %v5002 = vunpack.c.l.b16 %v4077
        %v5003 = vunpack.c.l.b16 %v4078
        %v5004 = vunpack.c.h.b16 %v4078
        %v5005 = vunpack.c.l.b16 %v4079
        %v5006 = vunpack.c.l.b16 %v4080
        %v5007 = vunpack.c.h.b16 %v4080
        %v5008 = vunpack.c.l.b16 %v4081
        %v5009 = vunpack.c.l.b16 %v4082
        %v5010 = vunpack.c.h.b16 %v4082
        %v5011 = vunpack.c.l.b16 %v4083
        %v5012 = vunpack.c.l.b16 %v4084
        %v5013 = vunpack.c.h.b16 %v4084
        %v5014 = vunpack.c.l.b16 %v4085
        %v5015 = vunpack.c.l.b16 %v4086
        %v5016 = vunpack.c.h.b16 %v4086
        %v5017 = vunpack.c.l.b16 %v4087
        %v5018 = vunpack.c.l.b16 %v4088
        %v5019 = vunpack.c.h.b16 %v4088
        %v5020 = vunpack.c.l.b16 %v4089
        %v5021 = vunpack.c.l.b16 %v4090
        %v5022 = vunpack.c.h.b16 %v4090
        %v5023 = vunpack.c.l.b16 %v4091
        %v5024 = vunpack.c.l.b16 %v4092
        %v5025 = vunpack.c.h.b16 %v4092
        %v5026 = vunpack.c.l.b16 %v4093
        %v5027 = vunpack.c.l.b16 %v4094
        %v5028 = vunpack.c.h.b16 %v4094
        %v5029 = vunpack.c.l.b16 %v4095
        %v5030 = vunpack.c.l.b16 %v4096
        %v5031 = vunpack.c.h.b16 %v4096
        %v5032 = vunpack.c.l.b16 %v4097
        %v5033 = vunpack.c.l.b16 %v4098
        %v5034 = vunpack.c.h.b16 %v4098
        %v5035 = vunpack.c.l.b16 %v4099
        %v5036 = vunpack.c.l.b16 %v4100
        %v5037 = vunpack.c.h.b16 %v4100
        %v5038 = vunpack.c.l.b16 %v4101
        %v5039 = vunpack.c.l.b16 %v4102
        %v5040 = vunpack.c.h.b16 %v4102
        %v5041 = vunpack.c.l.b16 %v4103
        %v5042 = vunpack.c.l.b16 %v4104
        %v5043 = vunpack.c.h.b16 %v4104
        %v5044 = vunpack.c.l.b16 %v4105
        %v5045 = vunpack.c.l.b16 %v4106
        %v5046 = vunpack.c.h.b16 %v4106
        %v5047 = vunpack.c.l.b16 %v4107
        %v5048 = vunpack.c.l.b16 %v4108
        %v5049 = vunpack.c.h.b16 %v4108
        %v5050 = vunpack.c.l.b16 %v4109
        %v5051 = vunpack.c.l.b16 %v4110
        %v5052 = vunpack.c.h.b16 %v4110
        %v5053 = vunpack.c.l.b16 %v4111
        %v5054 = vunpack.c.l.b16 %v4112
        %v5055 = vunpack.c.h.b16 %v4112
        %v5056 = vunpack.c.l.b16 %v4113
        %v5057 = vunpack.c.l.b16 %v4114
        %v5058 = vunpack.c.h.b16 %v4114
        %v5059 = vunpack.c.l.b16 %v4115
        %v5060 = vunpack.c.l.b16 %v4116
        %v5061 = vunpack.c.h.b16 %v4116
        %v5062 = vunpack.c.l.b16 %v4117
        %v5063 = vunpack.c.l.b16 %v4118
        %v5064 = vunpack.c.h.b16 %v4118
        %v5065 = vunpack.c.l.b16 %v4119
        %v5066 = vunpack.c.l.b16 %v4120
        %v5067 = vunpack.c.h.b16 %v4120
        %v5068 = vunpack.c.l.b16 %v4121
        %v5069 = vunpack.c.l.b16 %v4122
        %v5070 = vunpack.c.h.b16 %v4122
        %v5071 = vunpack.c.l.b16 %v4123
        %v5072 = vunpack.c.l.b16 %v4124
        %v5073 = vunpack.c.h.b16 %v4124
        %v5074 = vunpack.c.l.b16 %v4125
        %v5075 = vunpack.c.l.b16 %v4126
        %v5076 = vunpack.c.h.b16 %v4126
        %v5077 = vunpack.c.l.b16 %v4127
        %v5078 = vunpack.c.l.b16 %v4128
        %v5079 = vunpack.c.h.b16 %v4128
        %v5080 = vunpack.c.l.b16 %v4129
        %v5081 = vunpack.c.l.b16 %v4130
        %v5082 = vunpack.c.h.b16 %v4130
        %v5083 = vunpack.c.l.b16 %v4131
        %v5084 = vunpack.c.l.b16 %v4132
        %v5085 = vunpack.c.h.b16 %v4132
        %v5086 = vunpack.c.l.b16 %v4133
        %v5087 = vunpack.c.l.b16 %v4134
        %v5088 = vunpack.c.h.b16 %v4134
        %v5089 = vunpack.c.l.b16 %v4135
        %v5090 = vunpack.c.l.b16 %v4136
        %v5091 = vunpack.c.h.b16 %v4136
        %v5092 = vunpack.c.l.b16 %v4137
        %v5093 = vunpack.c.l.b16 %v4138
        %v5094 = vunpack.c.h.b16 %v4138
        %v5095 = vunpack.c.l.b16 %v4139
        %v5096 = vunpack.c.l.b16 %v4140
        %v5097 = vunpack.c.h.b16 %v4140
        %v5098 = vunpack.c.l.b16 %v4141
        %v5099 = vunpack.c.l.b16 %v4142
        %v5100 = vunpack.c.h.b16 %v4142
        %v5101 = vunpack.c.l.b16 %v4143
        %v5102 = vunpack.c.l.b16 %v4144
        %v5103 = vunpack.c.h.b16 %v4144
        %v5104 = vunpack.c.l.b16 %v4145
        %v5105 = vunpack.c.l.b16 %v4146
        %v5106 = vunpack.c.h.b16 %v4146
        %v5107 = vunpack.c.l.b16 %v4147
        %v5108 = vunpack.c.l.b16 %v4148
        %v5109 = vunpack.c.h.b16 %v4148
        %v5110 = vunpack.c.l.b16 %v4149
        %v5111 = vpack.c.b16 %v4976, %v4973
        %v5112 = vpack.c.b16 %v4977, %v4974
        %v5113 = vpack.c.b16 %v4978, %v4975
        %v5114 = vpack.c.b16 %v4982, %v4979
        %v5115 = vpack.c.b16 %v4983, %v4980
        %v5116 = vpack.c.b16 %v4984, %v4981
        %v5117 = vpack.c.b16 %v4988, %v4985
        %v5118 = vpack.c.b16 %v4989, %v4986
        %v5119 = vpack.c.b16 %v4990, %v4987
        %v5120 = vpack.c.b16 %v4994, %v4991
        %v5121 = vpack.c.b16 %v4995, %v4992
        %v5122 = vpack.c.b16 %v4996, %v4993
        %v5123 = vpack.c.b16 %v5000, %v4997
        %v5124 = vpack.c.b16 %v5001, %v4998
        %v5125 = vpack.c.b16 %v5002, %v4999
        %v5126 = vpack.c.b16 %v5006, %v5003
        %v5127 = vpack.c.b16 %v5007, %v5004
        %v5128 = vpack.c.b16 %v5008, %v5005
        %v5129 = vpack.c.b16 %v5012, %v5009
        %v5130 = vpack.c.b16 %v5013, %v5010
        %v5131 = vpack.c.b16 %v5014, %v5011
        %v5132 = vpack.c.b16 %v5018, %v5015
        %v5133 = vpack.c.b16 %v5019, %v5016
        %v5134 = vpack.c.b16 %v5020, %v5017
        %v5135 = vpack.c.b16 %v5024, %v5021
        %v5136 = vpack.c.b16 %v5025, %v5022
        %v5137 = vpack.c.b16 %v5026, %v5023
        %v5138 = vpack.c.b16 %v5030, %v5027
        %v5139 = vpack.c.b16 %v5031, %v5028
        %v5140 = vpack.c.b16 %v5032, %v5029
        %v5141 = vpack.c.b16 %v5036, %v5033
        %v5142 = vpack.c.b16 %v5037, %v5034
        %v5143 = vpack.c.b16 %v5038, %v5035
        %v5144 = vpack.c.b16 %v5042, %v5039
        %v5145 = vpack.c.b16 %v5043, %v5040
        %v5146 = vpack.c.b16 %v5044, %v5041
        %v5147 = vpack.c.b16 %v5048, %v5045
        %v5148 = vpack.c.b16 %v5049, %v5046
        %v5149 = vpack.c.b16 %v5050, %v5047
        %v5150 = vpack.c.b16 %v5054, %v5051
        %v5151 = vpack.c.b16 %v5055, %v5052
        %v5152 = vpack.c.b16 %v5056, %v5053
        %v5153 = vpack.c.b16 %v5060, %v5057
        %v5154 = vpack.c.b16 %v5061, %v5058
        %v5155 = vpack.c.b16 %v5062, %v5059
        %v5156 = vpack.c.b16 %v5066, %v5063
        %v5157 = vpack.c.b16 %v5067, %v5064
        %v5158 = vpack.c.b16 %v5068, %v5065
        %v5159 = vpack.c.b16 %v5072, %v5069
        %v5160 = vpack.c.b16 %v5073, %v5070
        %v5161 = vpack.c.b16 %v5074, %v5071
        %v5162 = vpack.c.b16 %v5078, %v5075
        %v5163 = vpack.c.b16 %v5079, %v5076
        %v5164 = vpack.c.b16 %v5080, %v5077
        %v5165 = vpack.c.b16 %v5084, %v5081
        %v5166 = vpack.c.b16 %v5085, %v5082
        %v5167 = vpack.c.b16 %v5086, %v5083
        %v5168 = vpack.c.b16 %v5090, %v5087
        %v5169 = vpack.c.b16 %v5091, %v5088
        %v5170 = vpack.c.b16 %v5092, %v5089
        %v5171 = vpack.c.b16 %v5096, %v5093
        %v5172 = vpack.c.b16 %v5097, %v5094
        %v5173 = vpack.c.b16 %v5098, %v5095
        %v5174 = vpack.c.b16 %v5102, %v5099
        %v5175 = vpack.c.b16 %v5103, %v5100
        %v5176 = vpack.c.b16 %v5104, %v5101
        %v5177 = vpack.c.b16 %v5108, %v5105
        %v5178 = vpack.c.b16 %v5109, %v5106
        %v5179 = vpack.c.b16 %v5110, %v5107
        %v5250 = vsel %vm4709, %v4057, 0
        %5252 = vmatprep.subr.bf16.mxu0 %v5112
        %5253 = vmatpush1.bf16.msra.mxu0 %v5111
        %5254 = vmatprep.subr.bf16.mxu0 %v5115
        %5255 = vmatpush1.bf16.msra.mxu0 %v5114
        %5256 = vmatprep.subr.bf16.mxu0 %v5118
        %5257 = vmatpush1.bf16.msra.mxu0 %v5117
        %5258 = vmatprep.subr.bf16.mxu0 %v5121
        %5259 = vmatpush1.bf16.msra.mxu0 %v5120
        %5260 = vmatprep.subr.bf16.mxu0 %v5124
        %5261 = vmatpush1.bf16.msra.mxu0 %v5123
        %5262 = vmatprep.subr.bf16.mxu0 %v5127
        %5263 = vmatpush1.bf16.msra.mxu0 %v5126
        %5264 = vmatprep.subr.bf16.mxu0 %v5130
        %5265 = vmatpush1.bf16.msra.mxu0 %v5129
        %5266 = vmatprep.subr.bf16.mxu0 %v5133
        %5267 = vmatpush1.bf16.msra.mxu0 %v5132
        %5268 = vmatprep.subr.bf16.mxu0 %v5136
        %5269 = vmatpush1.bf16.msra.mxu0 %v5135
        %5270 = vmatprep.subr.bf16.mxu0 %v5139
        %5271 = vmatpush1.bf16.msra.mxu0 %v5138
        %5272 = vmatprep.subr.bf16.mxu0 %v5142
        %5273 = vmatpush1.bf16.msra.mxu0 %v5141
        %5274 = vmatprep.subr.bf16.mxu0 %v5145
        %5275 = vmatpush1.bf16.msra.mxu0 %v5144
        %5276 = vmatprep.subr.bf16.mxu0 %v5148
        %5277 = vmatpush1.bf16.msra.mxu0 %v5147
        %5278 = vmatprep.subr.bf16.mxu0 %v5151
        %5279 = vmatpush1.bf16.msra.mxu0 %v5150
        %5280 = vmatprep.subr.bf16.mxu0 %v5154
        %5281 = vmatpush1.bf16.msra.mxu0 %v5153
        %5282 = vmatprep.subr.bf16.mxu0 %v5157
        %5283 = vmatpush1.bf16.msra.mxu0 %v5156
        %5284 = vmatprep.mubr.bf16.mxu0 %v4056
        %5285 = vmatmul.mubr.bf16.gmra.mrb[0].mxu0 %v4055
        %v5286 = vpop.f32.mrb[0].mxu0
        %v5287 = vadd.f32 %v4791, %v5286
        %v5288 = vpop.f32.mrb[0].mxu0
        %v5289 = vadd.f32 %v4793, %v5288
        %v5290 = vpop.f32.mrb[0].mxu0
        %v5291 = vadd.f32 %v4795, %v5290
        %v5292 = vpop.f32.mrb[0].mxu0
        %v5293 = vadd.f32 %v4797, %v5292
        %5294 = vdwg.mxu0
        %5295 = vmatprep.subr.bf16.mxu0 %v5160
        %5296 = vmatpush1.bf16.msra.mxu0 %v5159
        %5297 = vmatprep.subr.bf16.mxu0 %v5163
        %5298 = vmatpush1.bf16.msra.mxu0 %v5162
        %5299 = vmatprep.subr.bf16.mxu0 %v5166
        %5300 = vmatpush1.bf16.msra.mxu0 %v5165
        %5301 = vmatprep.subr.bf16.mxu0 %v5169
        %5302 = vmatpush1.bf16.msra.mxu0 %v5168
        %5303 = vmatprep.subr.bf16.mxu0 %v5172
        %5304 = vmatpush1.bf16.msra.mxu0 %v5171
        %5305 = vmatprep.subr.bf16.mxu0 %v5175
        %5306 = vmatpush1.bf16.msra.mxu0 %v5174
        %5307 = vmatprep.subr.bf16.mxu0 %v5178
        %5308 = vmatpush1.bf16.msra.mxu0 %v5177
        %5309 = vmatprep.subr.bf16.mxu0 0
        %5310 = vmatpush1.bf16.msra.mxu0 0
        %5311 = vmatprep.subr.bf16.mxu0 0
        %5312 = vmatpush1.bf16.msra.mxu0 0
        %5313 = vmatprep.subr.bf16.mxu0 0
        %5314 = vmatpush1.bf16.msra.mxu0 0
        %5315 = vmatprep.subr.bf16.mxu0 0
        %5316 = vmatpush1.bf16.msra.mxu0 0
        %5317 = vmatprep.subr.bf16.mxu0 0
        %5318 = vmatpush1.bf16.msra.mxu0 0
        %5319 = vmatprep.subr.bf16.mxu0 0
        %5320 = vmatpush1.bf16.msra.mxu0 0
        %5321 = vmatprep.subr.bf16.mxu0 0
        %5322 = vmatpush1.bf16.msra.mxu0 0
        %5323 = vmatprep.subr.bf16.mxu0 0
        %5324 = vmatpush1.bf16.msra.mxu0 0
        %5325 = vmatprep.subr.bf16.mxu0 0
        %5326 = vmatpush1.bf16.msra.mxu0 0
        %5327 = vmatprep.mubr.bf16.mxu0 0
        %5328 = vmatmul.mubr.bf16.gmra.mrb[0].mxu0 %v5250
        %v5329 = vpop.f32.mrb[0].mxu0
        %v5330 = vadd.f32 %v5287, %v5329
        %v5331 = vpop.f32.mrb[0].mxu0
        %v5332 = vadd.f32 %v5289, %v5331
        %v5333 = vpop.f32.mrb[0].mxu0
        %v5334 = vadd.f32 %v5291, %v5333
        %v5335 = vpop.f32.mrb[0].mxu0
        %v5336 = vadd.f32 %v5293, %v5335
        %5337 = vdwg.mxu0
        %5338 = vmatprep.subr.bf16.mxu0 0
        %5339 = vmatpush1.bf16.msra.mxu0 %v5113
        %5340 = vmatprep.subr.bf16.mxu0 0
        %5341 = vmatpush1.bf16.msra.mxu0 %v5116
        %5342 = vmatprep.subr.bf16.mxu0 0
        %5343 = vmatpush1.bf16.msra.mxu0 %v5119
        %5344 = vmatprep.subr.bf16.mxu0 0
        %5345 = vmatpush1.bf16.msra.mxu0 %v5122
        %5346 = vmatprep.subr.bf16.mxu0 0
        %5347 = vmatpush1.bf16.msra.mxu0 %v5125
        %5348 = vmatprep.subr.bf16.mxu0 0
        %5349 = vmatpush1.bf16.msra.mxu0 %v5128
        %5350 = vmatprep.subr.bf16.mxu0 0
        %5351 = vmatpush1.bf16.msra.mxu0 %v5131
        %5352 = vmatprep.subr.bf16.mxu0 0
        %5353 = vmatpush1.bf16.msra.mxu0 %v5134
        %5354 = vmatprep.subr.bf16.mxu0 0
        %5355 = vmatpush1.bf16.msra.mxu0 %v5137
        %5356 = vmatprep.subr.bf16.mxu0 0
        %5357 = vmatpush1.bf16.msra.mxu0 %v5140
        %5358 = vmatprep.subr.bf16.mxu0 0
        %5359 = vmatpush1.bf16.msra.mxu0 %v5143
        %5360 = vmatprep.subr.bf16.mxu0 0
        %5361 = vmatpush1.bf16.msra.mxu0 %v5146
        %5362 = vmatprep.subr.bf16.mxu0 0
        %5363 = vmatpush1.bf16.msra.mxu0 %v5149
        %5364 = vmatprep.subr.bf16.mxu0 0
        %5365 = vmatpush1.bf16.msra.mxu0 %v5152
        %5366 = vmatprep.subr.bf16.mxu0 0
        %5367 = vmatpush1.bf16.msra.mxu0 %v5155
        %5368 = vmatprep.subr.bf16.mxu0 0
        %5369 = vmatpush1.bf16.msra.mxu0 %v5158
        %5370 = vmatprep.mubr.bf16.mxu0 %v4056
        %5371 = vmatmul.mubr.bf16.gmra.mrb[0].mxu0 %v4055
        %v5372 = vpop.f32.mrb[0].mxu0
        %v5373 = vadd.f32 %v4875, %v5372
        %v5374 = vpop.f32.mrb[0].mxu0
        %v5375 = vpop.f32.mrb[0].mxu0
        %v5376 = vadd.f32 %v4878, %v5375
        %v5377 = vpop.f32.mrb[0].mxu0
        %5378 = vdwg.mxu0
        %5379 = vmatprep.subr.bf16.mxu0 0
        %5380 = vmatpush1.bf16.msra.mxu0 %v5161
        %5381 = vmatprep.subr.bf16.mxu0 0
        %5382 = vmatpush1.bf16.msra.mxu0 %v5164
        %5383 = vmatprep.subr.bf16.mxu0 0
        %5384 = vmatpush1.bf16.msra.mxu0 %v5167
        %5385 = vmatprep.subr.bf16.mxu0 0
        %5386 = vmatpush1.bf16.msra.mxu0 %v5170
        %5387 = vmatprep.subr.bf16.mxu0 0
        %5388 = vmatpush1.bf16.msra.mxu0 %v5173
        %5389 = vmatprep.subr.bf16.mxu0 0
        %5390 = vmatpush1.bf16.msra.mxu0 %v5176
        %5391 = vmatprep.subr.bf16.mxu0 0
        %5392 = vmatpush1.bf16.msra.mxu0 %v5179
        %5393 = vmatprep.subr.bf16.mxu0 0
        %5394 = vmatpush1.bf16.msra.mxu0 0
        %5395 = vmatprep.subr.bf16.mxu0 0
        %5396 = vmatpush1.bf16.msra.mxu0 0
        %5397 = vmatprep.subr.bf16.mxu0 0
        %5398 = vmatpush1.bf16.msra.mxu0 0
        %5399 = vmatprep.subr.bf16.mxu0 0
        %5400 = vmatpush1.bf16.msra.mxu0 0
        %5401 = vmatprep.subr.bf16.mxu0 0
        %5402 = vmatpush1.bf16.msra.mxu0 0
        %5403 = vmatprep.subr.bf16.mxu0 0
        %5404 = vmatpush1.bf16.msra.mxu0 0
        %5405 = vmatprep.subr.bf16.mxu0 0
        %5406 = vmatpush1.bf16.msra.mxu0 0
        %5407 = vmatprep.subr.bf16.mxu0 0
        %5408 = vmatpush1.bf16.msra.mxu0 0
        %5409 = vmatprep.subr.bf16.mxu0 0
        %5410 = vmatpush1.bf16.msra.mxu0 0
        %5411 = vmatprep.mubr.bf16.mxu0 0
        %5412 = vmatmul.mubr.bf16.gmra.mrb[0].mxu0 %v5250
        %v5413 = vpop.f32.mrb[0].mxu0
        %v5414 = vadd.f32 %v5373, %v5413
        %v5415 = vpop.f32.mrb[0].mxu0
        %v5416 = vpop.f32.mrb[0].mxu0
        %v5417 = vadd.f32 %v5376, %v5416
        %v5418 = vpop.f32.mrb[0].mxu0
        %5419 = vdwg.mxu0
        %s5420 = scalar_lea.vmem %s4, 16
        %v5421 = vld [vmem:[%s5420] sm:$0xf]
        %v5422 = vld [vmem:[%s5420 + $0x4] sm:$0x3]
        %v5425 = vunpack.c.l.b16 %v5421
        %v5426 = vunpack.c.l.b16 %v5422
        %v5427 = vpack.c.b16 %v5426, %v5425
        %v5429 = vsel %vm3954, %v5427, 0
        %5431 = vmatprep.subr.bf16.mxu0 %v3942
        %5432 = vmatpush1.bf16.msra.mxu0 %v3941
        %5433 = vmatprep.subr.bf16.mxu0 %v3966
        %5434 = vmatpush1.bf16.msra.mxu0 %v3963
        %5435 = vmatprep.subr.bf16.mxu0 0
        %5436 = vmatpush1.bf16.msra.mxu0 0
        %5437 = vmatprep.subr.bf16.mxu0 0
        %5438 = vmatpush1.bf16.msra.mxu0 0
        %5439 = vmatprep.subr.bf16.mxu0 0
        %5440 = vmatpush1.bf16.msra.mxu0 0
        %5441 = vmatprep.subr.bf16.mxu0 0
        %5442 = vmatpush1.bf16.msra.mxu0 0
        %5443 = vmatprep.subr.bf16.mxu0 0
        %5444 = vmatpush1.bf16.msra.mxu0 0
        %5445 = vmatprep.subr.bf16.mxu0 0
        %5446 = vmatpush1.bf16.msra.mxu0 0
        %5447 = vmatprep.subr.bf16.mxu0 0
        %5448 = vmatpush1.bf16.msra.mxu0 0
        %5449 = vmatprep.subr.bf16.mxu0 0
        %5450 = vmatpush1.bf16.msra.mxu0 0
        %5451 = vmatprep.subr.bf16.mxu0 0
        %5452 = vmatpush1.bf16.msra.mxu0 0
        %5453 = vmatprep.subr.bf16.mxu0 0
        %5454 = vmatpush1.bf16.msra.mxu0 0
        %5455 = vmatprep.subr.bf16.mxu0 0
        %5456 = vmatpush1.bf16.msra.mxu0 0
        %5457 = vmatprep.subr.bf16.mxu0 0
        %5458 = vmatpush1.bf16.msra.mxu0 0
        %5459 = vmatprep.subr.bf16.mxu0 0
        %5460 = vmatpush1.bf16.msra.mxu0 0
        %5461 = vmatprep.subr.bf16.mxu0 0
        %5462 = vmatpush1.bf16.msra.mxu0 0
        %5463 = vmatprep.mubr.bf16.mxu0 0
        %5464 = vmatmul.mubr.bf16.gmra.mrb[0].mxu0 %v5429
        %v5465 = vpop.f32.mrb[0].mxu0
        %v5466 = vadd.f32 0.0, %v5465
        %v5467 = vpop.f32.mrb[0].mxu0
        %v5468 = vadd.f32 0.0, %v5467
        %v5469 = vpop.f32.mrb[0].mxu0
        %v5470 = vadd.f32 0.0, %v5469
        %v5471 = vpop.f32.mrb[0].mxu0
        %v5472 = vadd.f32 0.0, %v5471
        %5473 = vdwg.mxu0
        %5474 = vmatprep.subr.bf16.mxu0 0
        %5475 = vmatpush1.bf16.msra.mxu0 %v3943
        %5476 = vmatprep.subr.bf16.mxu0 0
        %5477 = vmatpush1.bf16.msra.mxu0 %v3969
        %5478 = vmatprep.subr.bf16.mxu0 0
        %5479 = vmatpush1.bf16.msra.mxu0 0
        %5480 = vmatprep.subr.bf16.mxu0 0
        %5481 = vmatpush1.bf16.msra.mxu0 0
        %5482 = vmatprep.subr.bf16.mxu0 0
        %5483 = vmatpush1.bf16.msra.mxu0 0
        %5484 = vmatprep.subr.bf16.mxu0 0
        %5485 = vmatpush1.bf16.msra.mxu0 0
        %5486 = vmatprep.subr.bf16.mxu0 0
        %5487 = vmatpush1.bf16.msra.mxu0 0
        %5488 = vmatprep.subr.bf16.mxu0 0
        %5489 = vmatpush1.bf16.msra.mxu0 0
        %5490 = vmatprep.subr.bf16.mxu0 0
        %5491 = vmatpush1.bf16.msra.mxu0 0
        %5492 = vmatprep.subr.bf16.mxu0 0
        %5493 = vmatpush1.bf16.msra.mxu0 0
        %5494 = vmatprep.subr.bf16.mxu0 0
        %5495 = vmatpush1.bf16.msra.mxu0 0
        %5496 = vmatprep.subr.bf16.mxu0 0
        %5497 = vmatpush1.bf16.msra.mxu0 0
        %5498 = vmatprep.subr.bf16.mxu0 0
        %5499 = vmatpush1.bf16.msra.mxu0 0
        %5500 = vmatprep.subr.bf16.mxu0 0
        %5501 = vmatpush1.bf16.msra.mxu0 0
        %5502 = vmatprep.subr.bf16.mxu0 0
        %5503 = vmatpush1.bf16.msra.mxu0 0
        %5504 = vmatprep.subr.bf16.mxu0 0
        %5505 = vmatpush1.bf16.msra.mxu0 0
        %5506 = vmatprep.mubr.bf16.mxu0 0
        %5507 = vmatmul.mubr.bf16.gmra.mrb[0].mxu0 %v5429
        %v5508 = vpop.f32.mrb[0].mxu0
        %v5509 = vadd.f32 0.0, %v5508
        %v5510 = vpop.f32.mrb[0].mxu0
        %v5511 = vpop.f32.mrb[0].mxu0
        %v5512 = vadd.f32 0.0, %v5511
        %v5513 = vpop.f32.mrb[0].mxu0
        %5514 = vdwg.mxu0
        %v5515 = vpack.c.bf16 %v5470, %v5466
        %v5516 = vpack.c.bf16 %v5472, %v5468
        %v5517 = vpack.c.bf16 %v5512, %v5509
        %s5518 = scalar_lea.vmem %s5, 1104
        %v5519 = vld [vmem:[%s5518] sm:$0xff]
        %v5520 = vld [vmem:[%s5518 + $0x8] sm:$0xf]
        %v5521 = vld [vmem:[%s5518 + $0xc] sm:$0xff]
        %v5522 = vld [vmem:[%s5518 + $0x14] sm:$0xf]
        %v5523 = vld [vmem:[%s5518 + $0x18] sm:$0xff]
        %v5524 = vld [vmem:[%s5518 + $0x20] sm:$0xf]
        %v5525 = vld [vmem:[%s5518 + $0x24] sm:$0xff]
        %v5526 = vld [vmem:[%s5518 + $0x2c] sm:$0xf]
        %v5527 = vld [vmem:[%s5518 + $0x30] sm:$0xff]
        %v5528 = vld [vmem:[%s5518 + $0x38] sm:$0xf]
        %v5529 = vld [vmem:[%s5518 + $0x3c] sm:$0xff]
        %v5530 = vld [vmem:[%s5518 + $0x44] sm:$0xf]
        %v5531 = vld [vmem:[%s5518 + $0x48] sm:$0xff]
        %v5532 = vld [vmem:[%s5518 + $0x50] sm:$0xf]
        %v5533 = vld [vmem:[%s5518 + $0x54] sm:$0xff]
        %v5534 = vld [vmem:[%s5518 + $0x5c] sm:$0xf]
        %v5535 = vld [vmem:[%s5518 + $0x60] sm:$0xff]
        %v5536 = vld [vmem:[%s5518 + $0x68] sm:$0xf]
        %v5537 = vld [vmem:[%s5518 + $0x6c] sm:$0xff]
        %v5538 = vld [vmem:[%s5518 + $0x74] sm:$0xf]
        %v5539 = vld [vmem:[%s5518 + $0x78] sm:$0xff]
        %v5540 = vld [vmem:[%s5518 + $0x80] sm:$0xf]
        %v5541 = vld [vmem:[%s5518 + $0x84] sm:$0xff]
        %v5542 = vld [vmem:[%s5518 + $0x8c] sm:$0xf]
        %v5543 = vld [vmem:[%s5518 + $0x90] sm:$0xff]
        %v5544 = vld [vmem:[%s5518 + $0x98] sm:$0xf]
        %v5545 = vld [vmem:[%s5518 + $0x9c] sm:$0xff]
        %v5546 = vld [vmem:[%s5518 + $0xa4] sm:$0xf]
        %v5547 = vld [vmem:[%s5518 + $0xa8] sm:$0xff]
        %v5548 = vld [vmem:[%s5518 + $0xb0] sm:$0xf]
        %v5549 = vld [vmem:[%s5518 + $0xb4] sm:$0xff]
        %v5550 = vld [vmem:[%s5518 + $0xbc] sm:$0xf]
        %v5551 = vld [vmem:[%s5518 + $0xc0] sm:$0xff]
        %v5552 = vld [vmem:[%s5518 + $0xc8] sm:$0xf]
        %v5553 = vld [vmem:[%s5518 + $0xcc] sm:$0xff]
        %v5554 = vld [vmem:[%s5518 + $0xd4] sm:$0xf]
        %v5555 = vld [vmem:[%s5518 + $0xd8] sm:$0xff]
        %v5556 = vld [vmem:[%s5518 + $0xe0] sm:$0xf]
        %v5557 = vld [vmem:[%s5518 + $0xe4] sm:$0xff]
        %v5558 = vld [vmem:[%s5518 + $0xec] sm:$0xf]
        %v5559 = vld [vmem:[%s5518 + $0xf0] sm:$0xff]
        %v5560 = vld [vmem:[%s5518 + $0xf8] sm:$0xf]
        %v5561 = vld [vmem:[%s5518 + $0xfc] sm:$0xff]
        %v5562 = vld [vmem:[%s5518 + $0x104] sm:$0xf]
        %v5563 = vld [vmem:[%s5518 + $0x108] sm:$0xff]
        %v5564 = vld [vmem:[%s5518 + $0x110] sm:$0xf]
        %v5565 = vld [vmem:[%s5518 + $0x114] sm:$0xff]
        %v5566 = vld [vmem:[%s5518 + $0x11c] sm:$0xf]
        %v5567 = vld [vmem:[%s5518 + $0x120] sm:$0xff]
        %v5568 = vld [vmem:[%s5518 + $0x128] sm:$0xf]
        %v5569 = vld [vmem:[%s5518 + $0x12c] sm:$0xff]
        %v5570 = vld [vmem:[%s5518 + $0x134] sm:$0xf]
        %v5571 = vld [vmem:[%s5518 + $0x138] sm:$0xff]
        %v5572 = vld [vmem:[%s5518 + $0x140] sm:$0xf]
        %v5573 = vld [vmem:[%s5518 + $0x144] sm:$0xff]
        %v5574 = vld [vmem:[%s5518 + $0x14c] sm:$0xf]
        %v5575 = vld [vmem:[%s5518 + $0x150] sm:$0xff]
        %v5576 = vld [vmem:[%s5518 + $0x158] sm:$0xf]
        %v5577 = vld [vmem:[%s5518 + $0x15c] sm:$0xff]
        %v5578 = vld [vmem:[%s5518 + $0x164] sm:$0xf]
        %v5579 = vld [vmem:[%s5518 + $0x168] sm:$0xff]
        %v5580 = vld [vmem:[%s5518 + $0x170] sm:$0xf]
        %v5581 = vld [vmem:[%s5518 + $0x174] sm:$0xff]
        %v5582 = vld [vmem:[%s5518 + $0x17c] sm:$0xf]
        %v5583 = vld [vmem:[%s5518 + $0x180] sm:$0xff]
        %v5584 = vld [vmem:[%s5518 + $0x188] sm:$0xf]
        %v5585 = vld [vmem:[%s5518 + $0x18c] sm:$0xff]
        %v5586 = vld [vmem:[%s5518 + $0x194] sm:$0xf]
        %v5587 = vld [vmem:[%s5518 + $0x198] sm:$0xff]
        %v5588 = vld [vmem:[%s5518 + $0x1a0] sm:$0xf]
        %v5589 = vld [vmem:[%s5518 + $0x1a4] sm:$0xff]
        %v5590 = vld [vmem:[%s5518 + $0x1ac] sm:$0xf]
        %v5591 = vld [vmem:[%s5518 + $0x1b0] sm:$0xff]
        %v5592 = vld [vmem:[%s5518 + $0x1b8] sm:$0xf]
        %v5593 = vld [vmem:[%s5518 + $0x1bc] sm:$0xff]
        %v5594 = vld [vmem:[%s5518 + $0x1c4] sm:$0xf]
        %v5595 = vld [vmem:[%s5518 + $0x1c8] sm:$0xff]
        %v5596 = vld [vmem:[%s5518 + $0x1d0] sm:$0xf]
        %v5597 = vld [vmem:[%s5518 + $0x1d4] sm:$0xff]
        %v5598 = vld [vmem:[%s5518 + $0x1dc] sm:$0xf]
        %v5599 = vld [vmem:[%s5518 + $0x1e0] sm:$0xff]
        %v5600 = vld [vmem:[%s5518 + $0x1e8] sm:$0xf]
        %v5601 = vld [vmem:[%s5518 + $0x1ec] sm:$0xff]
        %v5602 = vld [vmem:[%s5518 + $0x1f4] sm:$0xf]
        %v5603 = vld [vmem:[%s5518 + $0x1f8] sm:$0xff]
        %v5604 = vld [vmem:[%s5518 + $0x200] sm:$0xf]
        %v5605 = vld [vmem:[%s5518 + $0x204] sm:$0xff]
        %v5606 = vld [vmem:[%s5518 + $0x20c] sm:$0xf]
        %v5607 = vld [vmem:[%s5518 + $0x210] sm:$0xff]
        %v5608 = vld [vmem:[%s5518 + $0x218] sm:$0xf]
        %v5609 = vld [vmem:[%s5518 + $0x21c] sm:$0xff]
        %v5610 = vld [vmem:[%s5518 + $0x224] sm:$0xf]
        %v5703 = vunpack.c.l.b16 %v5519
        %v5704 = vunpack.c.h.b16 %v5519
        %v5705 = vunpack.c.l.b16 %v5520
        %v5706 = vunpack.c.l.b16 %v5521
        %v5707 = vunpack.c.h.b16 %v5521
        %v5708 = vunpack.c.l.b16 %v5522
        %v5709 = vunpack.c.l.b16 %v5523
        %v5710 = vunpack.c.h.b16 %v5523
        %v5711 = vunpack.c.l.b16 %v5524
        %v5712 = vunpack.c.l.b16 %v5525
        %v5713 = vunpack.c.h.b16 %v5525
        %v5714 = vunpack.c.l.b16 %v5526
        %v5715 = vunpack.c.l.b16 %v5527
        %v5716 = vunpack.c.h.b16 %v5527
        %v5717 = vunpack.c.l.b16 %v5528
        %v5718 = vunpack.c.l.b16 %v5529
        %v5719 = vunpack.c.h.b16 %v5529
        %v5720 = vunpack.c.l.b16 %v5530
        %v5721 = vunpack.c.l.b16 %v5531
        %v5722 = vunpack.c.h.b16 %v5531
        %v5723 = vunpack.c.l.b16 %v5532
        %v5724 = vunpack.c.l.b16 %v5533
        %v5725 = vunpack.c.h.b16 %v5533
        %v5726 = vunpack.c.l.b16 %v5534
        %v5727 = vunpack.c.l.b16 %v5535
        %v5728 = vunpack.c.h.b16 %v5535
        %v5729 = vunpack.c.l.b16 %v5536
        %v5730 = vunpack.c.l.b16 %v5537
        %v5731 = vunpack.c.h.b16 %v5537
        %v5732 = vunpack.c.l.b16 %v5538
        %v5733 = vunpack.c.l.b16 %v5539
        %v5734 = vunpack.c.h.b16 %v5539
        %v5735 = vunpack.c.l.b16 %v5540
        %v5736 = vunpack.c.l.b16 %v5541
        %v5737 = vunpack.c.h.b16 %v5541
        %v5738 = vunpack.c.l.b16 %v5542
        %v5739 = vunpack.c.l.b16 %v5543
        %v5740 = vunpack.c.h.b16 %v5543
        %v5741 = vunpack.c.l.b16 %v5544
        %v5742 = vunpack.c.l.b16 %v5545
        %v5743 = vunpack.c.h.b16 %v5545
        %v5744 = vunpack.c.l.b16 %v5546
        %v5745 = vunpack.c.l.b16 %v5547
        %v5746 = vunpack.c.h.b16 %v5547
        %v5747 = vunpack.c.l.b16 %v5548
        %v5748 = vunpack.c.l.b16 %v5549
        %v5749 = vunpack.c.h.b16 %v5549
        %v5750 = vunpack.c.l.b16 %v5550
        %v5751 = vunpack.c.l.b16 %v5551
        %v5752 = vunpack.c.h.b16 %v5551
        %v5753 = vunpack.c.l.b16 %v5552
        %v5754 = vunpack.c.l.b16 %v5553
        %v5755 = vunpack.c.h.b16 %v5553
        %v5756 = vunpack.c.l.b16 %v5554
        %v5757 = vunpack.c.l.b16 %v5555
        %v5758 = vunpack.c.h.b16 %v5555
        %v5759 = vunpack.c.l.b16 %v5556
        %v5760 = vunpack.c.l.b16 %v5557
        %v5761 = vunpack.c.h.b16 %v5557
        %v5762 = vunpack.c.l.b16 %v5558
        %v5763 = vunpack.c.l.b16 %v5559
        %v5764 = vunpack.c.h.b16 %v5559
        %v5765 = vunpack.c.l.b16 %v5560
        %v5766 = vunpack.c.l.b16 %v5561
        %v5767 = vunpack.c.h.b16 %v5561
        %v5768 = vunpack.c.l.b16 %v5562
        %v5769 = vunpack.c.l.b16 %v5563
        %v5770 = vunpack.c.h.b16 %v5563
        %v5771 = vunpack.c.l.b16 %v5564
        %v5772 = vunpack.c.l.b16 %v5565
        %v5773 = vunpack.c.h.b16 %v5565
        %v5774 = vunpack.c.l.b16 %v5566
        %v5775 = vunpack.c.l.b16 %v5567
        %v5776 = vunpack.c.h.b16 %v5567
        %v5777 = vunpack.c.l.b16 %v5568
        %v5778 = vunpack.c.l.b16 %v5569
        %v5779 = vunpack.c.h.b16 %v5569
        %v5780 = vunpack.c.l.b16 %v5570
        %v5781 = vunpack.c.l.b16 %v5571
        %v5782 = vunpack.c.h.b16 %v5571
        %v5783 = vunpack.c.l.b16 %v5572
        %v5784 = vunpack.c.l.b16 %v5573
        %v5785 = vunpack.c.h.b16 %v5573
        %v5786 = vunpack.c.l.b16 %v5574
        %v5787 = vunpack.c.l.b16 %v5575
        %v5788 = vunpack.c.h.b16 %v5575
        %v5789 = vunpack.c.l.b16 %v5576
        %v5790 = vunpack.c.l.b16 %v5577
        %v5791 = vunpack.c.h.b16 %v5577
        %v5792 = vunpack.c.l.b16 %v5578
        %v5793 = vunpack.c.l.b16 %v5579
        %v5794 = vunpack.c.h.b16 %v5579
        %v5795 = vunpack.c.l.b16 %v5580
        %v5796 = vunpack.c.l.b16 %v5581
        %v5797 = vunpack.c.h.b16 %v5581
        %v5798 = vunpack.c.l.b16 %v5582
        %v5799 = vunpack.c.l.b16 %v5583
        %v5800 = vunpack.c.h.b16 %v5583
        %v5801 = vunpack.c.l.b16 %v5584
        %v5802 = vunpack.c.l.b16 %v5585
        %v5803 = vunpack.c.h.b16 %v5585
        %v5804 = vunpack.c.l.b16 %v5586
        %v5805 = vunpack.c.l.b16 %v5587
        %v5806 = vunpack.c.h.b16 %v5587
        %v5807 = vunpack.c.l.b16 %v5588
        %v5808 = vunpack.c.l.b16 %v5589
        %v5809 = vunpack.c.h.b16 %v5589
        %v5810 = vunpack.c.l.b16 %v5590
        %v5811 = vunpack.c.l.b16 %v5591
        %v5812 = vunpack.c.h.b16 %v5591
        %v5813 = vunpack.c.l.b16 %v5592
        %v5814 = vunpack.c.l.b16 %v5593
        %v5815 = vunpack.c.h.b16 %v5593
        %v5816 = vunpack.c.l.b16 %v5594
        %v5817 = vunpack.c.l.b16 %v5595
        %v5818 = vunpack.c.h.b16 %v5595
        %v5819 = vunpack.c.l.b16 %v5596
        %v5820 = vunpack.c.l.b16 %v5597
        %v5821 = vunpack.c.h.b16 %v5597
        %v5822 = vunpack.c.l.b16 %v5598
        %v5823 = vunpack.c.l.b16 %v5599
        %v5824 = vunpack.c.h.b16 %v5599
        %v5825 = vunpack.c.l.b16 %v5600
        %v5826 = vunpack.c.l.b16 %v5601
        %v5827 = vunpack.c.h.b16 %v5601
        %v5828 = vunpack.c.l.b16 %v5602
        %v5829 = vunpack.c.l.b16 %v5603
        %v5830 = vunpack.c.h.b16 %v5603
        %v5831 = vunpack.c.l.b16 %v5604
        %v5832 = vunpack.c.l.b16 %v5605
        %v5833 = vunpack.c.h.b16 %v5605
        %v5834 = vunpack.c.l.b16 %v5606
        %v5835 = vunpack.c.l.b16 %v5607
        %v5836 = vunpack.c.h.b16 %v5607
        %v5837 = vunpack.c.l.b16 %v5608
        %v5838 = vunpack.c.l.b16 %v5609
        %v5839 = vunpack.c.h.b16 %v5609
        %v5840 = vunpack.c.l.b16 %v5610
        %v5841 = vpack.c.b16 %v5706, %v5703
        %v5842 = vpack.c.b16 %v5707, %v5704
        %v5843 = vpack.c.b16 %v5708, %v5705
        %v5844 = vpack.c.b16 %v5712, %v5709
        %v5845 = vpack.c.b16 %v5713, %v5710
        %v5846 = vpack.c.b16 %v5714, %v5711
        %v5847 = vpack.c.b16 %v5718, %v5715
        %v5848 = vpack.c.b16 %v5719, %v5716
        %v5849 = vpack.c.b16 %v5720, %v5717
        %v5850 = vpack.c.b16 %v5724, %v5721
        %v5851 = vpack.c.b16 %v5725, %v5722
        %v5852 = vpack.c.b16 %v5726, %v5723
        %v5853 = vpack.c.b16 %v5730, %v5727
        %v5854 = vpack.c.b16 %v5731, %v5728
        %v5855 = vpack.c.b16 %v5732, %v5729
        %v5856 = vpack.c.b16 %v5736, %v5733
        %v5857 = vpack.c.b16 %v5737, %v5734
        %v5858 = vpack.c.b16 %v5738, %v5735
        %v5859 = vpack.c.b16 %v5742, %v5739
        %v5860 = vpack.c.b16 %v5743, %v5740
        %v5861 = vpack.c.b16 %v5744, %v5741
        %v5862 = vpack.c.b16 %v5748, %v5745
        %v5863 = vpack.c.b16 %v5749, %v5746
        %v5864 = vpack.c.b16 %v5750, %v5747
        %v5865 = vpack.c.b16 %v5754, %v5751
        %v5866 = vpack.c.b16 %v5755, %v5752
        %v5867 = vpack.c.b16 %v5756, %v5753
        %v5868 = vpack.c.b16 %v5760, %v5757
        %v5869 = vpack.c.b16 %v5761, %v5758
        %v5870 = vpack.c.b16 %v5762, %v5759
        %v5871 = vpack.c.b16 %v5766, %v5763
        %v5872 = vpack.c.b16 %v5767, %v5764
        %v5873 = vpack.c.b16 %v5768, %v5765
        %v5874 = vpack.c.b16 %v5772, %v5769
        %v5875 = vpack.c.b16 %v5773, %v5770
        %v5876 = vpack.c.b16 %v5774, %v5771
        %v5877 = vpack.c.b16 %v5778, %v5775
        %v5878 = vpack.c.b16 %v5779, %v5776
        %v5879 = vpack.c.b16 %v5780, %v5777
        %v5880 = vpack.c.b16 %v5784, %v5781
        %v5881 = vpack.c.b16 %v5785, %v5782
        %v5882 = vpack.c.b16 %v5786, %v5783
        %v5883 = vpack.c.b16 %v5790, %v5787
        %v5884 = vpack.c.b16 %v5791, %v5788
        %v5885 = vpack.c.b16 %v5792, %v5789
        %v5886 = vpack.c.b16 %v5796, %v5793
        %v5887 = vpack.c.b16 %v5797, %v5794
        %v5888 = vpack.c.b16 %v5798, %v5795
        %v5889 = vpack.c.b16 %v5802, %v5799
        %v5890 = vpack.c.b16 %v5803, %v5800
        %v5891 = vpack.c.b16 %v5804, %v5801
        %v5892 = vpack.c.b16 %v5808, %v5805
        %v5893 = vpack.c.b16 %v5809, %v5806
        %v5894 = vpack.c.b16 %v5810, %v5807
        %v5895 = vpack.c.b16 %v5814, %v5811
        %v5896 = vpack.c.b16 %v5815, %v5812
        %v5897 = vpack.c.b16 %v5816, %v5813
        %v5898 = vpack.c.b16 %v5820, %v5817
        %v5899 = vpack.c.b16 %v5821, %v5818
        %v5900 = vpack.c.b16 %v5822, %v5819
        %v5901 = vpack.c.b16 %v5826, %v5823
        %v5902 = vpack.c.b16 %v5827, %v5824
        %v5903 = vpack.c.b16 %v5828, %v5825
        %v5904 = vpack.c.b16 %v5832, %v5829
        %v5905 = vpack.c.b16 %v5833, %v5830
        %v5906 = vpack.c.b16 %v5834, %v5831
        %v5907 = vpack.c.b16 %v5838, %v5835
        %v5908 = vpack.c.b16 %v5839, %v5836
        %v5909 = vpack.c.b16 %v5840, %v5837
        %v5980 = vsel %vm4709, %v5517, 0
        %5982 = vmatprep.subr.bf16.mxu0 %v5842
        %5983 = vmatpush1.bf16.msra.mxu0 %v5841
        %5984 = vmatprep.subr.bf16.mxu0 %v5845
        %5985 = vmatpush1.bf16.msra.mxu0 %v5844
        %5986 = vmatprep.subr.bf16.mxu0 %v5848
        %5987 = vmatpush1.bf16.msra.mxu0 %v5847
        %5988 = vmatprep.subr.bf16.mxu0 %v5851
        %5989 = vmatpush1.bf16.msra.mxu0 %v5850
        %5990 = vmatprep.subr.bf16.mxu0 %v5854
        %5991 = vmatpush1.bf16.msra.mxu0 %v5853
        %5992 = vmatprep.subr.bf16.mxu0 %v5857
        %5993 = vmatpush1.bf16.msra.mxu0 %v5856
        %5994 = vmatprep.subr.bf16.mxu0 %v5860
        %5995 = vmatpush1.bf16.msra.mxu0 %v5859
        %5996 = vmatprep.subr.bf16.mxu0 %v5863
        %5997 = vmatpush1.bf16.msra.mxu0 %v5862
        %5998 = vmatprep.subr.bf16.mxu0 %v5866
        %5999 = vmatpush1.bf16.msra.mxu0 %v5865
        %6000 = vmatprep.subr.bf16.mxu0 %v5869
        %6001 = vmatpush1.bf16.msra.mxu0 %v5868
        %6002 = vmatprep.subr.bf16.mxu0 %v5872
        %6003 = vmatpush1.bf16.msra.mxu0 %v5871
        %6004 = vmatprep.subr.bf16.mxu0 %v5875
        %6005 = vmatpush1.bf16.msra.mxu0 %v5874
        %6006 = vmatprep.subr.bf16.mxu0 %v5878
        %6007 = vmatpush1.bf16.msra.mxu0 %v5877
        %6008 = vmatprep.subr.bf16.mxu0 %v5881
        %6009 = vmatpush1.bf16.msra.mxu0 %v5880
        %6010 = vmatprep.subr.bf16.mxu0 %v5884
        %6011 = vmatpush1.bf16.msra.mxu0 %v5883
        %6012 = vmatprep.subr.bf16.mxu0 %v5887
        %6013 = vmatpush1.bf16.msra.mxu0 %v5886
        %6014 = vmatprep.mubr.bf16.mxu0 %v5516
        %6015 = vmatmul.mubr.bf16.gmra.mrb[0].mxu0 %v5515
        %v6016 = vpop.f32.mrb[0].mxu0
        %v6017 = vadd.f32 0.0, %v6016
        %v6018 = vpop.f32.mrb[0].mxu0
        %v6019 = vadd.f32 0.0, %v6018
        %v6020 = vpop.f32.mrb[0].mxu0
        %v6021 = vadd.f32 0.0, %v6020
        %v6022 = vpop.f32.mrb[0].mxu0
        %v6023 = vadd.f32 0.0, %v6022
        %6024 = vdwg.mxu0
        %6025 = vmatprep.subr.bf16.mxu0 %v5890
        %6026 = vmatpush1.bf16.msra.mxu0 %v5889
        %6027 = vmatprep.subr.bf16.mxu0 %v5893
        %6028 = vmatpush1.bf16.msra.mxu0 %v5892
        %6029 = vmatprep.subr.bf16.mxu0 %v5896
        %6030 = vmatpush1.bf16.msra.mxu0 %v5895
        %6031 = vmatprep.subr.bf16.mxu0 %v5899
        %6032 = vmatpush1.bf16.msra.mxu0 %v5898
        %6033 = vmatprep.subr.bf16.mxu0 %v5902
        %6034 = vmatpush1.bf16.msra.mxu0 %v5901
        %6035 = vmatprep.subr.bf16.mxu0 %v5905
        %6036 = vmatpush1.bf16.msra.mxu0 %v5904
        %6037 = vmatprep.subr.bf16.mxu0 %v5908
        %6038 = vmatpush1.bf16.msra.mxu0 %v5907
        %6039 = vmatprep.subr.bf16.mxu0 0
        %6040 = vmatpush1.bf16.msra.mxu0 0
        %6041 = vmatprep.subr.bf16.mxu0 0
        %6042 = vmatpush1.bf16.msra.mxu0 0
        %6043 = vmatprep.subr.bf16.mxu0 0
        %6044 = vmatpush1.bf16.msra.mxu0 0
        %6045 = vmatprep.subr.bf16.mxu0 0
        %6046 = vmatpush1.bf16.msra.mxu0 0
        %6047 = vmatprep.subr.bf16.mxu0 0
        %6048 = vmatpush1.bf16.msra.mxu0 0
        %6049 = vmatprep.subr.bf16.mxu0 0
        %6050 = vmatpush1.bf16.msra.mxu0 0
        %6051 = vmatprep.subr.bf16.mxu0 0
        %6052 = vmatpush1.bf16.msra.mxu0 0
        %6053 = vmatprep.subr.bf16.mxu0 0
        %6054 = vmatpush1.bf16.msra.mxu0 0
        %6055 = vmatprep.subr.bf16.mxu0 0
        %6056 = vmatpush1.bf16.msra.mxu0 0
        %6057 = vmatprep.mubr.bf16.mxu0 0
        %6058 = vmatmul.mubr.bf16.gmra.mrb[0].mxu0 %v5980
        %v6059 = vpop.f32.mrb[0].mxu0
        %v6060 = vadd.f32 %v6017, %v6059
        %v6061 = vpop.f32.mrb[0].mxu0
        %v6062 = vadd.f32 %v6019, %v6061
        %v6063 = vpop.f32.mrb[0].mxu0
        %v6064 = vadd.f32 %v6021, %v6063
        %v6065 = vpop.f32.mrb[0].mxu0
        %v6066 = vadd.f32 %v6023, %v6065
        %6067 = vdwg.mxu0
        %6068 = vmatprep.subr.bf16.mxu0 0
        %6069 = vmatpush1.bf16.msra.mxu0 %v5843
        %6070 = vmatprep.subr.bf16.mxu0 0
        %6071 = vmatpush1.bf16.msra.mxu0 %v5846
        %6072 = vmatprep.subr.bf16.mxu0 0
        %6073 = vmatpush1.bf16.msra.mxu0 %v5849
        %6074 = vmatprep.subr.bf16.mxu0 0
        %6075 = vmatpush1.bf16.msra.mxu0 %v5852
        %6076 = vmatprep.subr.bf16.mxu0 0
        %6077 = vmatpush1.bf16.msra.mxu0 %v5855
        %6078 = vmatprep.subr.bf16.mxu0 0
        %6079 = vmatpush1.bf16.msra.mxu0 %v5858
        %6080 = vmatprep.subr.bf16.mxu0 0
        %6081 = vmatpush1.bf16.msra.mxu0 %v5861
        %6082 = vmatprep.subr.bf16.mxu0 0
        %6083 = vmatpush1.bf16.msra.mxu0 %v5864
        %6084 = vmatprep.subr.bf16.mxu0 0
        %6085 = vmatpush1.bf16.msra.mxu0 %v5867
        %6086 = vmatprep.subr.bf16.mxu0 0
        %6087 = vmatpush1.bf16.msra.mxu0 %v5870
        %6088 = vmatprep.subr.bf16.mxu0 0
        %6089 = vmatpush1.bf16.msra.mxu0 %v5873
        %6090 = vmatprep.subr.bf16.mxu0 0
        %6091 = vmatpush1.bf16.msra.mxu0 %v5876
        %6092 = vmatprep.subr.bf16.mxu0 0
        %6093 = vmatpush1.bf16.msra.mxu0 %v5879
        %6094 = vmatprep.subr.bf16.mxu0 0
        %6095 = vmatpush1.bf16.msra.mxu0 %v5882
        %6096 = vmatprep.subr.bf16.mxu0 0
        %6097 = vmatpush1.bf16.msra.mxu0 %v5885
        %6098 = vmatprep.subr.bf16.mxu0 0
        %6099 = vmatpush1.bf16.msra.mxu0 %v5888
        %6100 = vmatprep.mubr.bf16.mxu0 %v5516
        %6101 = vmatmul.mubr.bf16.gmra.mrb[0].mxu0 %v5515
        %v6102 = vpop.f32.mrb[0].mxu0
        %v6103 = vadd.f32 0.0, %v6102
        %v6104 = vpop.f32.mrb[0].mxu0
        %v6105 = vpop.f32.mrb[0].mxu0
        %v6106 = vadd.f32 0.0, %v6105
        %v6107 = vpop.f32.mrb[0].mxu0
        %6108 = vdwg.mxu0
        %6109 = vmatprep.subr.bf16.mxu0 0
        %6110 = vmatpush1.bf16.msra.mxu0 %v5891
        %6111 = vmatprep.subr.bf16.mxu0 0
        %6112 = vmatpush1.bf16.msra.mxu0 %v5894
        %6113 = vmatprep.subr.bf16.mxu0 0
        %6114 = vmatpush1.bf16.msra.mxu0 %v5897
        %6115 = vmatprep.subr.bf16.mxu0 0
        %6116 = vmatpush1.bf16.msra.mxu0 %v5900
        %6117 = vmatprep.subr.bf16.mxu0 0
        %6118 = vmatpush1.bf16.msra.mxu0 %v5903
        %6119 = vmatprep.subr.bf16.mxu0 0
        %6120 = vmatpush1.bf16.msra.mxu0 %v5906
        %6121 = vmatprep.subr.bf16.mxu0 0
        %6122 = vmatpush1.bf16.msra.mxu0 %v5909
        %6123 = vmatprep.subr.bf16.mxu0 0
        %6124 = vmatpush1.bf16.msra.mxu0 0
        %6125 = vmatprep.subr.bf16.mxu0 0
        %6126 = vmatpush1.bf16.msra.mxu0 0
        %6127 = vmatprep.subr.bf16.mxu0 0
        %6128 = vmatpush1.bf16.msra.mxu0 0
        %6129 = vmatprep.subr.bf16.mxu0 0
        %6130 = vmatpush1.bf16.msra.mxu0 0
        %6131 = vmatprep.subr.bf16.mxu0 0
        %6132 = vmatpush1.bf16.msra.mxu0 0
        %6133 = vmatprep.subr.bf16.mxu0 0
        %6134 = vmatpush1.bf16.msra.mxu0 0
        %6135 = vmatprep.subr.bf16.mxu0 0
        %6136 = vmatpush1.bf16.msra.mxu0 0
        %6137 = vmatprep.subr.bf16.mxu0 0
        %6138 = vmatpush1.bf16.msra.mxu0 0
        %6139 = vmatprep.subr.bf16.mxu0 0
        %6140 = vmatpush1.bf16.msra.mxu0 0
        %6141 = vmatprep.mubr.bf16.mxu0 0
        %6142 = vmatmul.mubr.bf16.gmra.mrb[0].mxu0 %v5980
        %v6143 = vpop.f32.mrb[0].mxu0
        %v6144 = vadd.f32 %v6103, %v6143
        %v6145 = vpop.f32.mrb[0].mxu0
        %v6146 = vpop.f32.mrb[0].mxu0
        %v6147 = vadd.f32 %v6106, %v6146
        %v6148 = vpop.f32.mrb[0].mxu0
        %6149 = vdwg.mxu0
        %v6150 = vadd.f32 %v5330, %v6060
        %v6151 = vadd.f32 %v5332, %v6062
        %v6152 = vadd.f32 %v5414, %v6144
        %v6153 = vadd.f32 %v5334, %v6064
        %v6154 = vadd.f32 %v5336, %v6066
        %v6155 = vadd.f32 %v5417, %v6147
        %v6156 = vld [vmem:[%s6] sm:$0x7]
        %v6158 = vlaneseq
        %v6159 = vshrl.u32 %v6158, 7
        %v6160 = vsub.s32 0, %v6159
        %v6161 = vrot.slane %v6156, %v6160
        %v6162 = vlaneseq
        %v6163 = vshrl.u32 %v6162, 7
        %v6164 = vsub.s32 1, %v6163
        %v6165 = vrot.slane %v6156, %v6164
        %v6166 = vlaneseq
        %v6167 = vshrl.u32 %v6166, 7
        %v6168 = vsub.s32 2, %v6167
        %v6169 = vrot.slane %v6156, %v6168
        %v6173 = vadd.f32 %v6150, %v6161
        %v6174 = vadd.f32 %v6151, %v6165
        %v6175 = vadd.f32 %v6152, %v6169
        %v6176 = vadd.f32 %v6153, %v6161
        %v6177 = vadd.f32 %v6154, %v6165
        %v6178 = vadd.f32 %v6155, %v6169
        %v6179 = vmax.f32 %v6173, 0.0
        %v6180 = vmax.f32 %v6174, 0.0
        %v6181 = vmax.f32 %v6175, 0.0
        %v6182 = vmax.f32 %v6176, 0.0
        %v6183 = vmax.f32 %v6177, 0.0
        %v6184 = vmax.f32 %v6178, 0.0
        %v6185 = vpack.c.bf16 %v6182, %v6179
        %v6186 = vpack.c.bf16 %v6183, %v6180
        %v6187 = vpack.c.bf16 %v6184, %v6181
        %v6188 = vld [vmem:[%s8] sm:$0x1]
        %v6189 = vld [vmem:[%s7] sm:$0xf]
        %v6190 = vld [vmem:[%s7 + $0x4] sm:$0xf]
        %v6191 = vld [vmem:[%s7 + $0x8] sm:$0xf]
        %v6192 = vld [vmem:[%s7 + $0xc] sm:$0xf]
        %v6193 = vld [vmem:[%s7 + $0x10] sm:$0xf]
        %v6194 = vld [vmem:[%s7 + $0x14] sm:$0xf]
        %v6195 = vld [vmem:[%s7 + $0x18] sm:$0xf]
        %v6196 = vld [vmem:[%s7 + $0x1c] sm:$0xf]
        %v6197 = vld [vmem:[%s7 + $0x20] sm:$0xf]
        %v6198 = vld [vmem:[%s7 + $0x24] sm:$0xf]
        %v6199 = vld [vmem:[%s7 + $0x28] sm:$0xf]
        %v6200 = vld [vmem:[%s7 + $0x2c] sm:$0xf]
        %v6201 = vld [vmem:[%s7 + $0x30] sm:$0xf]
        %v6202 = vld [vmem:[%s7 + $0x34] sm:$0xf]
        %v6203 = vld [vmem:[%s7 + $0x38] sm:$0xf]
        %v6204 = vld [vmem:[%s7 + $0x3c] sm:$0xf]
        %v6205 = vld [vmem:[%s7 + $0x40] sm:$0xf]
        %v6206 = vld [vmem:[%s7 + $0x44] sm:$0xf]
        %v6207 = vld [vmem:[%s7 + $0x48] sm:$0xf]
        %v6208 = vld [vmem:[%s7 + $0x4c] sm:$0xf]
        %v6209 = vld [vmem:[%s7 + $0x50] sm:$0xf]
        %v6210 = vld [vmem:[%s7 + $0x54] sm:$0xf]
        %v6211 = vld [vmem:[%s7 + $0x58] sm:$0xf]
        %v6212 = vld [vmem:[%s7 + $0x5c] sm:$0xf]
        %v6213 = vld [vmem:[%s7 + $0x60] sm:$0xf]
        %v6214 = vld [vmem:[%s7 + $0x64] sm:$0xf]
        %v6215 = vld [vmem:[%s7 + $0x68] sm:$0xf]
        %v6216 = vld [vmem:[%s7 + $0x6c] sm:$0xf]
        %v6217 = vld [vmem:[%s7 + $0x70] sm:$0xf]
        %v6218 = vld [vmem:[%s7 + $0x74] sm:$0xf]
        %v6219 = vld [vmem:[%s7 + $0x78] sm:$0xf]
        %v6220 = vld [vmem:[%s7 + $0x7c] sm:$0xf]
        %v6221 = vld [vmem:[%s7 + $0x80] sm:$0xf]
        %v6222 = vld [vmem:[%s7 + $0x84] sm:$0xf]
        %v6223 = vld [vmem:[%s7 + $0x88] sm:$0xf]
        %v6224 = vld [vmem:[%s7 + $0x8c] sm:$0xf]
        %v6225 = vld [vmem:[%s7 + $0x90] sm:$0xf]
        %v6226 = vld [vmem:[%s7 + $0x94] sm:$0xf]
        %v6227 = vld [vmem:[%s7 + $0x98] sm:$0xf]
        %v6228 = vld [vmem:[%s7 + $0x9c] sm:$0xf]
        %v6229 = vld [vmem:[%s7 + $0xa0] sm:$0xf]
        %v6230 = vld [vmem:[%s7 + $0xa4] sm:$0xf]
        %v6231 = vld [vmem:[%s7 + $0xa8] sm:$0xf]
        %v6232 = vld [vmem:[%s7 + $0xac] sm:$0xf]
        %v6277 = vunpack.c.l.b16 %v6189
        %v6278 = vunpack.c.l.b16 %v6190
        %v6279 = vunpack.c.l.b16 %v6191
        %v6280 = vunpack.c.l.b16 %v6192
        %v6281 = vunpack.c.l.b16 %v6193
        %v6282 = vunpack.c.l.b16 %v6194
        %v6283 = vunpack.c.l.b16 %v6195
        %v6284 = vunpack.c.l.b16 %v6196
        %v6285 = vunpack.c.l.b16 %v6197
        %v6286 = vunpack.c.l.b16 %v6198
        %v6287 = vunpack.c.l.b16 %v6199
        %v6288 = vunpack.c.l.b16 %v6200
        %v6289 = vunpack.c.l.b16 %v6201
        %v6290 = vunpack.c.l.b16 %v6202
        %v6291 = vunpack.c.l.b16 %v6203
        %v6292 = vunpack.c.l.b16 %v6204
        %v6293 = vunpack.c.l.b16 %v6205
        %v6294 = vunpack.c.l.b16 %v6206
        %v6295 = vunpack.c.l.b16 %v6207
        %v6296 = vunpack.c.l.b16 %v6208
        %v6297 = vunpack.c.l.b16 %v6209
        %v6298 = vunpack.c.l.b16 %v6210
        %v6299 = vunpack.c.l.b16 %v6211
        %v6300 = vunpack.c.l.b16 %v6212
        %v6301 = vunpack.c.l.b16 %v6213
        %v6302 = vunpack.c.l.b16 %v6214
        %v6303 = vunpack.c.l.b16 %v6215
        %v6304 = vunpack.c.l.b16 %v6216
        %v6305 = vunpack.c.l.b16 %v6217
        %v6306 = vunpack.c.l.b16 %v6218
        %v6307 = vunpack.c.l.b16 %v6219
        %v6308 = vunpack.c.l.b16 %v6220
        %v6309 = vunpack.c.l.b16 %v6221
        %v6310 = vunpack.c.l.b16 %v6222
        %v6311 = vunpack.c.l.b16 %v6223
        %v6312 = vunpack.c.l.b16 %v6224
        %v6313 = vunpack.c.l.b16 %v6225
        %v6314 = vunpack.c.l.b16 %v6226
        %v6315 = vunpack.c.l.b16 %v6227
        %v6316 = vunpack.c.l.b16 %v6228
        %v6317 = vunpack.c.l.b16 %v6229
        %v6318 = vunpack.c.l.b16 %v6230
        %v6319 = vunpack.c.l.b16 %v6231
        %v6320 = vunpack.c.l.b16 %v6232
        %v6321 = vpack.c.b16 %v6278, %v6277
        %v6322 = vpack.c.b16 %v6280, %v6279
        %v6323 = vpack.c.b16 %v6282, %v6281
        %v6324 = vpack.c.b16 %v6284, %v6283
        %v6325 = vpack.c.b16 %v6286, %v6285
        %v6326 = vpack.c.b16 %v6288, %v6287
        %v6327 = vpack.c.b16 %v6290, %v6289
        %v6328 = vpack.c.b16 %v6292, %v6291
        %v6329 = vpack.c.b16 %v6294, %v6293
        %v6330 = vpack.c.b16 %v6296, %v6295
        %v6331 = vpack.c.b16 %v6298, %v6297
        %v6332 = vpack.c.b16 %v6300, %v6299
        %v6333 = vpack.c.b16 %v6302, %v6301
        %v6334 = vpack.c.b16 %v6304, %v6303
        %v6335 = vpack.c.b16 %v6306, %v6305
        %v6336 = vpack.c.b16 %v6308, %v6307
        %v6337 = vpack.c.b16 %v6310, %v6309
        %v6338 = vpack.c.b16 %v6312, %v6311
        %v6339 = vpack.c.b16 %v6314, %v6313
        %v6340 = vpack.c.b16 %v6316, %v6315
        %v6341 = vpack.c.b16 %v6318, %v6317
        %v6342 = vpack.c.b16 %v6320, %v6319
        %v6366 = vsel %vm450, %v6187, 0
        %6368 = vmatprep.subr.bf16.mxu0 0
        %6369 = vmatpush1.bf16.msra.mxu0 %v6321
        %6370 = vmatprep.subr.bf16.mxu0 0
        %6371 = vmatpush1.bf16.msra.mxu0 %v6322
        %6372 = vmatprep.subr.bf16.mxu0 0
        %6373 = vmatpush1.bf16.msra.mxu0 %v6323
        %6374 = vmatprep.subr.bf16.mxu0 0
        %6375 = vmatpush1.bf16.msra.mxu0 %v6324
        %6376 = vmatprep.subr.bf16.mxu0 0
        %6377 = vmatpush1.bf16.msra.mxu0 %v6325
        %6378 = vmatprep.subr.bf16.mxu0 0
        %6379 = vmatpush1.bf16.msra.mxu0 %v6326
        %6380 = vmatprep.subr.bf16.mxu0 0
        %6381 = vmatpush1.bf16.msra.mxu0 %v6327
        %6382 = vmatprep.subr.bf16.mxu0 0
        %6383 = vmatpush1.bf16.msra.mxu0 %v6328
        %6384 = vmatprep.subr.bf16.mxu0 0
        %6385 = vmatpush1.bf16.msra.mxu0 %v6329
        %6386 = vmatprep.subr.bf16.mxu0 0
        %6387 = vmatpush1.bf16.msra.mxu0 %v6330
        %6388 = vmatprep.subr.bf16.mxu0 0
        %6389 = vmatpush1.bf16.msra.mxu0 %v6331
        %6390 = vmatprep.subr.bf16.mxu0 0
        %6391 = vmatpush1.bf16.msra.mxu0 %v6332
        %6392 = vmatprep.subr.bf16.mxu0 0
        %6393 = vmatpush1.bf16.msra.mxu0 %v6333
        %6394 = vmatprep.subr.bf16.mxu0 0
        %6395 = vmatpush1.bf16.msra.mxu0 %v6334
        %6396 = vmatprep.subr.bf16.mxu0 0
        %6397 = vmatpush1.bf16.msra.mxu0 %v6335
        %6398 = vmatprep.subr.bf16.mxu0 0
        %6399 = vmatpush1.bf16.msra.mxu0 %v6336
        %6400 = vmatprep.mubr.bf16.mxu0 %v6186
        %6401 = vmatmul.mubr.bf16.gmra.mrb[0].mxu0 %v6185
        %v6402 = vpop.f32.mrb[0].mxu0
        %v6403 = vadd.f32 0.0, %v6402
        %v6404 = vpop.f32.mrb[0].mxu0
        %v6405 = vpop.f32.mrb[0].mxu0
        %v6406 = vpop.f32.mrb[0].mxu0
        %6407 = vdwg.mxu0
        %6408 = vmatprep.subr.bf16.mxu0 0
        %6409 = vmatpush1.bf16.msra.mxu0 %v6337
        %6410 = vmatprep.subr.bf16.mxu0 0
        %6411 = vmatpush1.bf16.msra.mxu0 %v6338
        %6412 = vmatprep.subr.bf16.mxu0 0
        %6413 = vmatpush1.bf16.msra.mxu0 %v6339
        %6414 = vmatprep.subr.bf16.mxu0 0
        %6415 = vmatpush1.bf16.msra.mxu0 %v6340
        %6416 = vmatprep.subr.bf16.mxu0 0
        %6417 = vmatpush1.bf16.msra.mxu0 %v6341
        %6418 = vmatprep.subr.bf16.mxu0 0
        %6419 = vmatpush1.bf16.msra.mxu0 %v6342
        %6420 = vmatprep.subr.bf16.mxu0 0
        %6421 = vmatpush1.bf16.msra.mxu0 0
        %6422 = vmatprep.subr.bf16.mxu0 0
        %6423 = vmatpush1.bf16.msra.mxu0 0
        %6424 = vmatprep.subr.bf16.mxu0 0
        %6425 = vmatpush1.bf16.msra.mxu0 0
        %6426 = vmatprep.subr.bf16.mxu0 0
        %6427 = vmatpush1.bf16.msra.mxu0 0
        %6428 = vmatprep.subr.bf16.mxu0 0
        %6429 = vmatpush1.bf16.msra.mxu0 0
        %6430 = vmatprep.subr.bf16.mxu0 0
        %6431 = vmatpush1.bf16.msra.mxu0 0
        %6432 = vmatprep.subr.bf16.mxu0 0
        %6433 = vmatpush1.bf16.msra.mxu0 0
        %6434 = vmatprep.subr.bf16.mxu0 0
        %6435 = vmatpush1.bf16.msra.mxu0 0
        %6436 = vmatprep.subr.bf16.mxu0 0
        %6437 = vmatpush1.bf16.msra.mxu0 0
        %6438 = vmatprep.subr.bf16.mxu0 0
        %6439 = vmatpush1.bf16.msra.mxu0 0
        %6440 = vmatprep.mubr.bf16.mxu0 0
        %6441 = vmatmul.mubr.bf16.gmra.mrb[0].mxu0 %v6366
        %v6442 = vpop.f32.mrb[0].mxu0
        %v6443 = vadd.f32 %v6403, %v6442
        %v6444 = vpop.f32.mrb[0].mxu0
        %v6445 = vpop.f32.mrb[0].mxu0
        %v6446 = vpop.f32.mrb[0].mxu0
        %6447 = vdwg.mxu0
        %v6448 = vadd.f32 %v6188, %v6443
        %s6449 = scalar_lea.vmem %s7, 176
        %v6450 = vld [vmem:[%s6449] sm:$0xf]
        %v6451 = vld [vmem:[%s6449 + $0x4] sm:$0xf]
        %v6452 = vld [vmem:[%s6449 + $0x8] sm:$0xf]
        %v6453 = vld [vmem:[%s6449 + $0xc] sm:$0xf]
        %v6454 = vld [vmem:[%s6449 + $0x10] sm:$0xf]
        %v6455 = vld [vmem:[%s6449 + $0x14] sm:$0xf]
        %v6456 = vld [vmem:[%s6449 + $0x18] sm:$0xf]
        %v6457 = vld [vmem:[%s6449 + $0x1c] sm:$0xf]
        %v6458 = vld [vmem:[%s6449 + $0x20] sm:$0xf]
        %v6459 = vld [vmem:[%s6449 + $0x24] sm:$0xf]
        %v6460 = vld [vmem:[%s6449 + $0x28] sm:$0xf]
        %v6461 = vld [vmem:[%s6449 + $0x2c] sm:$0xf]
        %v6462 = vld [vmem:[%s6449 + $0x30] sm:$0xf]
        %v6463 = vld [vmem:[%s6449 + $0x34] sm:$0xf]
        %v6464 = vld [vmem:[%s6449 + $0x38] sm:$0xf]
        %v6465 = vld [vmem:[%s6449 + $0x3c] sm:$0xf]
        %v6466 = vld [vmem:[%s6449 + $0x40] sm:$0xf]
        %v6467 = vld [vmem:[%s6449 + $0x44] sm:$0xf]
        %v6468 = vld [vmem:[%s6449 + $0x48] sm:$0xf]
        %v6469 = vld [vmem:[%s6449 + $0x4c] sm:$0xf]
        %v6470 = vld [vmem:[%s6449 + $0x50] sm:$0xf]
        %v6471 = vld [vmem:[%s6449 + $0x54] sm:$0xf]
        %v6472 = vld [vmem:[%s6449 + $0x58] sm:$0xf]
        %v6473 = vld [vmem:[%s6449 + $0x5c] sm:$0xf]
        %v6474 = vld [vmem:[%s6449 + $0x60] sm:$0xf]
        %v6475 = vld [vmem:[%s6449 + $0x64] sm:$0xf]
        %v6476 = vld [vmem:[%s6449 + $0x68] sm:$0xf]
        %v6477 = vld [vmem:[%s6449 + $0x6c] sm:$0xf]
        %v6478 = vld [vmem:[%s6449 + $0x70] sm:$0xf]
        %v6479 = vld [vmem:[%s6449 + $0x74] sm:$0xf]
        %v6480 = vld [vmem:[%s6449 + $0x78] sm:$0xf]
        %v6481 = vld [vmem:[%s6449 + $0x7c] sm:$0xf]
        %v6482 = vld [vmem:[%s6449 + $0x80] sm:$0xf]
        %v6483 = vld [vmem:[%s6449 + $0x84] sm:$0xf]
        %v6484 = vld [vmem:[%s6449 + $0x88] sm:$0xf]
        %v6485 = vld [vmem:[%s6449 + $0x8c] sm:$0xf]
        %v6486 = vld [vmem:[%s6449 + $0x90] sm:$0xf]
        %v6487 = vld [vmem:[%s6449 + $0x94] sm:$0xf]
        %v6488 = vld [vmem:[%s6449 + $0x98] sm:$0xf]
        %v6489 = vld [vmem:[%s6449 + $0x9c] sm:$0xf]
        %v6490 = vld [vmem:[%s6449 + $0xa0] sm:$0xf]
        %v6491 = vld [vmem:[%s6449 + $0xa4] sm:$0xf]
        %v6492 = vld [vmem:[%s6449 + $0xa8] sm:$0xf]
        %v6493 = vld [vmem:[%s6449 + $0xac] sm:$0xf]
        %v6495 = vshrl.u32 %v6185, 16
        %v6498 = vshrl.u32 %v6186, 16
        %v6500 = vshrl.u32 %v6187, 16
        %v6548 = vunpack.c.l.b16 %v6450
        %v6549 = vunpack.c.l.b16 %v6451
        %v6550 = vunpack.c.l.b16 %v6452
        %v6551 = vunpack.c.l.b16 %v6453
        %v6552 = vunpack.c.l.b16 %v6454
        %v6553 = vunpack.c.l.b16 %v6455
        %v6554 = vunpack.c.l.b16 %v6456
        %v6555 = vunpack.c.l.b16 %v6457
        %v6556 = vunpack.c.l.b16 %v6458
        %v6557 = vunpack.c.l.b16 %v6459
        %v6558 = vunpack.c.l.b16 %v6460
        %v6559 = vunpack.c.l.b16 %v6461
        %v6560 = vunpack.c.l.b16 %v6462
        %v6561 = vunpack.c.l.b16 %v6463
        %v6562 = vunpack.c.l.b16 %v6464
        %v6563 = vunpack.c.l.b16 %v6465
        %v6564 = vunpack.c.l.b16 %v6466
        %v6565 = vunpack.c.l.b16 %v6467
        %v6566 = vunpack.c.l.b16 %v6468
        %v6567 = vunpack.c.l.b16 %v6469
        %v6568 = vunpack.c.l.b16 %v6470
        %v6569 = vunpack.c.l.b16 %v6471
        %v6570 = vunpack.c.l.b16 %v6472
        %v6571 = vunpack.c.l.b16 %v6473
        %v6572 = vunpack.c.l.b16 %v6474
        %v6573 = vunpack.c.l.b16 %v6475
        %v6574 = vunpack.c.l.b16 %v6476
        %v6575 = vunpack.c.l.b16 %v6477
        %v6576 = vunpack.c.l.b16 %v6478
        %v6577 = vunpack.c.l.b16 %v6479
        %v6578 = vunpack.c.l.b16 %v6480
        %v6579 = vunpack.c.l.b16 %v6481
        %v6580 = vunpack.c.l.b16 %v6482
        %v6581 = vunpack.c.l.b16 %v6483
        %v6582 = vunpack.c.l.b16 %v6484
        %v6583 = vunpack.c.l.b16 %v6485
        %v6584 = vunpack.c.l.b16 %v6486
        %v6585 = vunpack.c.l.b16 %v6487
        %v6586 = vunpack.c.l.b16 %v6488
        %v6587 = vunpack.c.l.b16 %v6489
        %v6588 = vunpack.c.l.b16 %v6490
        %v6589 = vunpack.c.l.b16 %v6491
        %v6590 = vunpack.c.l.b16 %v6492
        %v6591 = vunpack.c.l.b16 %v6493
        %v6592 = vpack.c.b16 %v6549, %v6548
        %v6593 = vpack.c.b16 %v6551, %v6550
        %v6594 = vpack.c.b16 %v6553, %v6552
        %v6595 = vpack.c.b16 %v6555, %v6554
        %v6596 = vpack.c.b16 %v6557, %v6556
        %v6597 = vpack.c.b16 %v6559, %v6558
        %v6598 = vpack.c.b16 %v6561, %v6560
        %v6599 = vpack.c.b16 %v6563, %v6562
        %v6600 = vpack.c.b16 %v6565, %v6564
        %v6601 = vpack.c.b16 %v6567, %v6566
        %v6602 = vpack.c.b16 %v6569, %v6568
        %v6603 = vpack.c.b16 %v6571, %v6570
        %v6604 = vpack.c.b16 %v6573, %v6572
        %v6605 = vpack.c.b16 %v6575, %v6574
        %v6606 = vpack.c.b16 %v6577, %v6576
        %v6607 = vpack.c.b16 %v6579, %v6578
        %v6608 = vpack.c.b16 %v6581, %v6580
        %v6609 = vpack.c.b16 %v6583, %v6582
        %v6610 = vpack.c.b16 %v6585, %v6584
        %v6611 = vpack.c.b16 %v6587, %v6586
        %v6612 = vpack.c.b16 %v6589, %v6588
        %v6613 = vpack.c.b16 %v6591, %v6590
        %v6637 = vsel %vm450, %v6500, 0
        %6639 = vmatprep.subr.bf16.mxu0 0
        %6640 = vmatpush1.bf16.msra.mxu0 %v6592
        %6641 = vmatprep.subr.bf16.mxu0 0
        %6642 = vmatpush1.bf16.msra.mxu0 %v6593
        %6643 = vmatprep.subr.bf16.mxu0 0
        %6644 = vmatpush1.bf16.msra.mxu0 %v6594
        %6645 = vmatprep.subr.bf16.mxu0 0
        %6646 = vmatpush1.bf16.msra.mxu0 %v6595
        %6647 = vmatprep.subr.bf16.mxu0 0
        %6648 = vmatpush1.bf16.msra.mxu0 %v6596
        %6649 = vmatprep.subr.bf16.mxu0 0
        %6650 = vmatpush1.bf16.msra.mxu0 %v6597
        %6651 = vmatprep.subr.bf16.mxu0 0
        %6652 = vmatpush1.bf16.msra.mxu0 %v6598
        %6653 = vmatprep.subr.bf16.mxu0 0
        %6654 = vmatpush1.bf16.msra.mxu0 %v6599
        %6655 = vmatprep.subr.bf16.mxu0 0
        %6656 = vmatpush1.bf16.msra.mxu0 %v6600
        %6657 = vmatprep.subr.bf16.mxu0 0
        %6658 = vmatpush1.bf16.msra.mxu0 %v6601
        %6659 = vmatprep.subr.bf16.mxu0 0
        %6660 = vmatpush1.bf16.msra.mxu0 %v6602
        %6661 = vmatprep.subr.bf16.mxu0 0
        %6662 = vmatpush1.bf16.msra.mxu0 %v6603
        %6663 = vmatprep.subr.bf16.mxu0 0
        %6664 = vmatpush1.bf16.msra.mxu0 %v6604
        %6665 = vmatprep.subr.bf16.mxu0 0
        %6666 = vmatpush1.bf16.msra.mxu0 %v6605
        %6667 = vmatprep.subr.bf16.mxu0 0
        %6668 = vmatpush1.bf16.msra.mxu0 %v6606
        %6669 = vmatprep.subr.bf16.mxu0 0
        %6670 = vmatpush1.bf16.msra.mxu0 %v6607
        %6671 = vmatprep.mubr.bf16.mxu0 %v6498
        %6672 = vmatmul.mubr.bf16.gmra.mrb[0].mxu0 %v6495
        %v6673 = vpop.f32.mrb[0].mxu0
        %v6674 = vadd.f32 0.0, %v6673
        %v6675 = vpop.f32.mrb[0].mxu0
        %v6676 = vpop.f32.mrb[0].mxu0
        %v6677 = vpop.f32.mrb[0].mxu0
        %6678 = vdwg.mxu0
        %6679 = vmatprep.subr.bf16.mxu0 0
        %6680 = vmatpush1.bf16.msra.mxu0 %v6608
        %6681 = vmatprep.subr.bf16.mxu0 0
        %6682 = vmatpush1.bf16.msra.mxu0 %v6609
        %6683 = vmatprep.subr.bf16.mxu0 0
        %6684 = vmatpush1.bf16.msra.mxu0 %v6610
        %6685 = vmatprep.subr.bf16.mxu0 0
        %6686 = vmatpush1.bf16.msra.mxu0 %v6611
        %6687 = vmatprep.subr.bf16.mxu0 0
        %6688 = vmatpush1.bf16.msra.mxu0 %v6612
        %6689 = vmatprep.subr.bf16.mxu0 0
        %6690 = vmatpush1.bf16.msra.mxu0 %v6613
        %6691 = vmatprep.subr.bf16.mxu0 0
        %6692 = vmatpush1.bf16.msra.mxu0 0
        %6693 = vmatprep.subr.bf16.mxu0 0
        %6694 = vmatpush1.bf16.msra.mxu0 0
        %6695 = vmatprep.subr.bf16.mxu0 0
        %6696 = vmatpush1.bf16.msra.mxu0 0
        %6697 = vmatprep.subr.bf16.mxu0 0
        %6698 = vmatpush1.bf16.msra.mxu0 0
        %6699 = vmatprep.subr.bf16.mxu0 0
        %6700 = vmatpush1.bf16.msra.mxu0 0
        %6701 = vmatprep.subr.bf16.mxu0 0
        %6702 = vmatpush1.bf16.msra.mxu0 0
        %6703 = vmatprep.subr.bf16.mxu0 0
        %6704 = vmatpush1.bf16.msra.mxu0 0
        %6705 = vmatprep.subr.bf16.mxu0 0
        %6706 = vmatpush1.bf16.msra.mxu0 0
        %6707 = vmatprep.subr.bf16.mxu0 0
        %6708 = vmatpush1.bf16.msra.mxu0 0
        %6709 = vmatprep.subr.bf16.mxu0 0
        %6710 = vmatpush1.bf16.msra.mxu0 0
        %6711 = vmatprep.mubr.bf16.mxu0 0
        %6712 = vmatmul.mubr.bf16.gmra.mrb[0].mxu0 %v6637
        %v6713 = vpop.f32.mrb[0].mxu0
        %v6714 = vadd.f32 %v6674, %v6713
        %v6715 = vpop.f32.mrb[0].mxu0
        %v6716 = vpop.f32.mrb[0].mxu0
        %v6717 = vpop.f32.mrb[0].mxu0
        %6718 = vdwg.mxu0
        %v6719 = vadd.f32 %v6448, %v6714
        %s6720 = scalar_lea.vmem %s7, 352
        %v6721 = vld [vmem:[%s6720] sm:$0xf]
        %v6722 = vld [vmem:[%s6720 + $0x4] sm:$0xf]
        %v6723 = vld [vmem:[%s6720 + $0x8] sm:$0xf]
        %v6724 = vld [vmem:[%s6720 + $0xc] sm:$0xf]
        %v6725 = vld [vmem:[%s6720 + $0x10] sm:$0xf]
        %v6726 = vld [vmem:[%s6720 + $0x14] sm:$0xf]
        %v6727 = vld [vmem:[%s6720 + $0x18] sm:$0xf]
        %v6728 = vld [vmem:[%s6720 + $0x1c] sm:$0xf]
        %v6729 = vld [vmem:[%s6720 + $0x20] sm:$0xf]
        %v6730 = vld [vmem:[%s6720 + $0x24] sm:$0xf]
        %v6731 = vld [vmem:[%s6720 + $0x28] sm:$0xf]
        %v6732 = vld [vmem:[%s6720 + $0x2c] sm:$0xf]
        %v6733 = vld [vmem:[%s6720 + $0x30] sm:$0xf]
        %v6734 = vld [vmem:[%s6720 + $0x34] sm:$0xf]
        %v6735 = vld [vmem:[%s6720 + $0x38] sm:$0xf]
        %v6736 = vld [vmem:[%s6720 + $0x3c] sm:$0xf]
        %v6737 = vld [vmem:[%s6720 + $0x40] sm:$0xf]
        %v6738 = vld [vmem:[%s6720 + $0x44] sm:$0xf]
        %v6739 = vld [vmem:[%s6720 + $0x48] sm:$0xf]
        %v6740 = vld [vmem:[%s6720 + $0x4c] sm:$0xf]
        %v6741 = vld [vmem:[%s6720 + $0x50] sm:$0xf]
        %v6742 = vld [vmem:[%s6720 + $0x54] sm:$0xf]
        %v6743 = vld [vmem:[%s6720 + $0x58] sm:$0xf]
        %v6744 = vld [vmem:[%s6720 + $0x5c] sm:$0xf]
        %v6745 = vld [vmem:[%s6720 + $0x60] sm:$0xf]
        %v6746 = vld [vmem:[%s6720 + $0x64] sm:$0xf]
        %v6747 = vld [vmem:[%s6720 + $0x68] sm:$0xf]
        %v6748 = vld [vmem:[%s6720 + $0x6c] sm:$0xf]
        %v6749 = vld [vmem:[%s6720 + $0x70] sm:$0xf]
        %v6750 = vld [vmem:[%s6720 + $0x74] sm:$0xf]
        %v6751 = vld [vmem:[%s6720 + $0x78] sm:$0xf]
        %v6752 = vld [vmem:[%s6720 + $0x7c] sm:$0xf]
        %v6753 = vld [vmem:[%s6720 + $0x80] sm:$0xf]
        %v6754 = vld [vmem:[%s6720 + $0x84] sm:$0xf]
        %v6755 = vld [vmem:[%s6720 + $0x88] sm:$0xf]
        %v6756 = vld [vmem:[%s6720 + $0x8c] sm:$0xf]
        %v6757 = vld [vmem:[%s6720 + $0x90] sm:$0xf]
        %v6758 = vld [vmem:[%s6720 + $0x94] sm:$0xf]
        %v6759 = vld [vmem:[%s6720 + $0x98] sm:$0xf]
        %v6760 = vld [vmem:[%s6720 + $0x9c] sm:$0xf]
        %v6761 = vld [vmem:[%s6720 + $0xa0] sm:$0xf]
        %v6762 = vld [vmem:[%s6720 + $0xa4] sm:$0xf]
        %v6763 = vld [vmem:[%s6720 + $0xa8] sm:$0xf]
        %v6764 = vld [vmem:[%s6720 + $0xac] sm:$0xf]
        %v6768 = vrot.slane %v6185, 1
        %v6769 = vrot.slane %v6186, 1
        %v6770 = vrot.slane %v6187, 1
        %v6817 = vunpack.c.l.b16 %v6721
        %v6818 = vunpack.c.l.b16 %v6722
        %v6819 = vunpack.c.l.b16 %v6723
        %v6820 = vunpack.c.l.b16 %v6724
        %v6821 = vunpack.c.l.b16 %v6725
        %v6822 = vunpack.c.l.b16 %v6726
        %v6823 = vunpack.c.l.b16 %v6727
        %v6824 = vunpack.c.l.b16 %v6728
        %v6825 = vunpack.c.l.b16 %v6729
        %v6826 = vunpack.c.l.b16 %v6730
        %v6827 = vunpack.c.l.b16 %v6731
        %v6828 = vunpack.c.l.b16 %v6732
        %v6829 = vunpack.c.l.b16 %v6733
        %v6830 = vunpack.c.l.b16 %v6734
        %v6831 = vunpack.c.l.b16 %v6735
        %v6832 = vunpack.c.l.b16 %v6736
        %v6833 = vunpack.c.l.b16 %v6737
        %v6834 = vunpack.c.l.b16 %v6738
        %v6835 = vunpack.c.l.b16 %v6739
        %v6836 = vunpack.c.l.b16 %v6740
        %v6837 = vunpack.c.l.b16 %v6741
        %v6838 = vunpack.c.l.b16 %v6742
        %v6839 = vunpack.c.l.b16 %v6743
        %v6840 = vunpack.c.l.b16 %v6744
        %v6841 = vunpack.c.l.b16 %v6745
        %v6842 = vunpack.c.l.b16 %v6746
        %v6843 = vunpack.c.l.b16 %v6747
        %v6844 = vunpack.c.l.b16 %v6748
        %v6845 = vunpack.c.l.b16 %v6749
        %v6846 = vunpack.c.l.b16 %v6750
        %v6847 = vunpack.c.l.b16 %v6751
        %v6848 = vunpack.c.l.b16 %v6752
        %v6849 = vunpack.c.l.b16 %v6753
        %v6850 = vunpack.c.l.b16 %v6754
        %v6851 = vunpack.c.l.b16 %v6755
        %v6852 = vunpack.c.l.b16 %v6756
        %v6853 = vunpack.c.l.b16 %v6757
        %v6854 = vunpack.c.l.b16 %v6758
        %v6855 = vunpack.c.l.b16 %v6759
        %v6856 = vunpack.c.l.b16 %v6760
        %v6857 = vunpack.c.l.b16 %v6761
        %v6858 = vunpack.c.l.b16 %v6762
        %v6859 = vunpack.c.l.b16 %v6763
        %v6860 = vunpack.c.l.b16 %v6764
        %v6861 = vpack.c.b16 %v6818, %v6817
        %v6862 = vpack.c.b16 %v6820, %v6819
        %v6863 = vpack.c.b16 %v6822, %v6821
        %v6864 = vpack.c.b16 %v6824, %v6823
        %v6865 = vpack.c.b16 %v6826, %v6825
        %v6866 = vpack.c.b16 %v6828, %v6827
        %v6867 = vpack.c.b16 %v6830, %v6829
        %v6868 = vpack.c.b16 %v6832, %v6831
        %v6869 = vpack.c.b16 %v6834, %v6833
        %v6870 = vpack.c.b16 %v6836, %v6835
        %v6871 = vpack.c.b16 %v6838, %v6837
        %v6872 = vpack.c.b16 %v6840, %v6839
        %v6873 = vpack.c.b16 %v6842, %v6841
        %v6874 = vpack.c.b16 %v6844, %v6843
        %v6875 = vpack.c.b16 %v6846, %v6845
        %v6876 = vpack.c.b16 %v6848, %v6847
        %v6877 = vpack.c.b16 %v6850, %v6849
        %v6878 = vpack.c.b16 %v6852, %v6851
        %v6879 = vpack.c.b16 %v6854, %v6853
        %v6880 = vpack.c.b16 %v6856, %v6855
        %v6881 = vpack.c.b16 %v6858, %v6857
        %v6882 = vpack.c.b16 %v6860, %v6859
        %v6906 = vsel %vm450, %v6770, 0
        %6908 = vmatprep.subr.bf16.mxu0 0
        %6909 = vmatpush1.bf16.msra.mxu0 %v6861
        %6910 = vmatprep.subr.bf16.mxu0 0
        %6911 = vmatpush1.bf16.msra.mxu0 %v6862
        %6912 = vmatprep.subr.bf16.mxu0 0
        %6913 = vmatpush1.bf16.msra.mxu0 %v6863
        %6914 = vmatprep.subr.bf16.mxu0 0
        %6915 = vmatpush1.bf16.msra.mxu0 %v6864
        %6916 = vmatprep.subr.bf16.mxu0 0
        %6917 = vmatpush1.bf16.msra.mxu0 %v6865
        %6918 = vmatprep.subr.bf16.mxu0 0
        %6919 = vmatpush1.bf16.msra.mxu0 %v6866
        %6920 = vmatprep.subr.bf16.mxu0 0
        %6921 = vmatpush1.bf16.msra.mxu0 %v6867
        %6922 = vmatprep.subr.bf16.mxu0 0
        %6923 = vmatpush1.bf16.msra.mxu0 %v6868
        %6924 = vmatprep.subr.bf16.mxu0 0
        %6925 = vmatpush1.bf16.msra.mxu0 %v6869
        %6926 = vmatprep.subr.bf16.mxu0 0
        %6927 = vmatpush1.bf16.msra.mxu0 %v6870
        %6928 = vmatprep.subr.bf16.mxu0 0
        %6929 = vmatpush1.bf16.msra.mxu0 %v6871
        %6930 = vmatprep.subr.bf16.mxu0 0
        %6931 = vmatpush1.bf16.msra.mxu0 %v6872
        %6932 = vmatprep.subr.bf16.mxu0 0
        %6933 = vmatpush1.bf16.msra.mxu0 %v6873
        %6934 = vmatprep.subr.bf16.mxu0 0
        %6935 = vmatpush1.bf16.msra.mxu0 %v6874
        %6936 = vmatprep.subr.bf16.mxu0 0
        %6937 = vmatpush1.bf16.msra.mxu0 %v6875
        %6938 = vmatprep.subr.bf16.mxu0 0
        %6939 = vmatpush1.bf16.msra.mxu0 %v6876
        %6940 = vmatprep.mubr.bf16.mxu0 %v6769
        %6941 = vmatmul.mubr.bf16.gmra.mrb[0].mxu0 %v6768
        %v6942 = vpop.f32.mrb[0].mxu0
        %v6943 = vadd.f32 0.0, %v6942
        %v6944 = vpop.f32.mrb[0].mxu0
        %v6945 = vpop.f32.mrb[0].mxu0
        %v6946 = vpop.f32.mrb[0].mxu0
        %6947 = vdwg.mxu0
        %6948 = vmatprep.subr.bf16.mxu0 0
        %6949 = vmatpush1.bf16.msra.mxu0 %v6877
        %6950 = vmatprep.subr.bf16.mxu0 0
        %6951 = vmatpush1.bf16.msra.mxu0 %v6878
        %6952 = vmatprep.subr.bf16.mxu0 0
        %6953 = vmatpush1.bf16.msra.mxu0 %v6879
        %6954 = vmatprep.subr.bf16.mxu0 0
        %6955 = vmatpush1.bf16.msra.mxu0 %v6880
        %6956 = vmatprep.subr.bf16.mxu0 0
        %6957 = vmatpush1.bf16.msra.mxu0 %v6881
        %6958 = vmatprep.subr.bf16.mxu0 0
        %6959 = vmatpush1.bf16.msra.mxu0 %v6882
        %6960 = vmatprep.subr.bf16.mxu0 0
        %6961 = vmatpush1.bf16.msra.mxu0 0
        %6962 = vmatprep.subr.bf16.mxu0 0
        %6963 = vmatpush1.bf16.msra.mxu0 0
        %6964 = vmatprep.subr.bf16.mxu0 0
        %6965 = vmatpush1.bf16.msra.mxu0 0
        %6966 = vmatprep.subr.bf16.mxu0 0
        %6967 = vmatpush1.bf16.msra.mxu0 0
        %6968 = vmatprep.subr.bf16.mxu0 0
        %6969 = vmatpush1.bf16.msra.mxu0 0
        %6970 = vmatprep.subr.bf16.mxu0 0
        %6971 = vmatpush1.bf16.msra.mxu0 0
        %6972 = vmatprep.subr.bf16.mxu0 0
        %6973 = vmatpush1.bf16.msra.mxu0 0
        %6974 = vmatprep.subr.bf16.mxu0 0
        %6975 = vmatpush1.bf16.msra.mxu0 0
        %6976 = vmatprep.subr.bf16.mxu0 0
        %6977 = vmatpush1.bf16.msra.mxu0 0
        %6978 = vmatprep.subr.bf16.mxu0 0
        %6979 = vmatpush1.bf16.msra.mxu0 0
        %6980 = vmatprep.mubr.bf16.mxu0 0
        %6981 = vmatmul.mubr.bf16.gmra.mrb[0].mxu0 %v6906
        %v6982 = vpop.f32.mrb[0].mxu0
        %v6983 = vadd.f32 %v6943, %v6982
        %v6984 = vpop.f32.mrb[0].mxu0
        %v6985 = vpop.f32.mrb[0].mxu0
        %v6986 = vpop.f32.mrb[0].mxu0
        %6987 = vdwg.mxu0
        %v6988 = vadd.f32 %v6719, %v6983
        %s6989 = scalar_lea.vmem %s7, 528
        %v6990 = vld [vmem:[%s6989] sm:$0xf]
        %v6991 = vld [vmem:[%s6989 + $0x4] sm:$0xf]
        %v6992 = vld [vmem:[%s6989 + $0x8] sm:$0xf]
        %v6993 = vld [vmem:[%s6989 + $0xc] sm:$0xf]
        %v6994 = vld [vmem:[%s6989 + $0x10] sm:$0xf]
        %v6995 = vld [vmem:[%s6989 + $0x14] sm:$0xf]
        %v6996 = vld [vmem:[%s6989 + $0x18] sm:$0xf]
        %v6997 = vld [vmem:[%s6989 + $0x1c] sm:$0xf]
        %v6998 = vld [vmem:[%s6989 + $0x20] sm:$0xf]
        %v6999 = vld [vmem:[%s6989 + $0x24] sm:$0xf]
        %v7000 = vld [vmem:[%s6989 + $0x28] sm:$0xf]
        %v7001 = vld [vmem:[%s6989 + $0x2c] sm:$0xf]
        %v7002 = vld [vmem:[%s6989 + $0x30] sm:$0xf]
        %v7003 = vld [vmem:[%s6989 + $0x34] sm:$0xf]
        %v7004 = vld [vmem:[%s6989 + $0x38] sm:$0xf]
        %v7005 = vld [vmem:[%s6989 + $0x3c] sm:$0xf]
        %v7006 = vld [vmem:[%s6989 + $0x40] sm:$0xf]
        %v7007 = vld [vmem:[%s6989 + $0x44] sm:$0xf]
        %v7008 = vld [vmem:[%s6989 + $0x48] sm:$0xf]
        %v7009 = vld [vmem:[%s6989 + $0x4c] sm:$0xf]
        %v7010 = vld [vmem:[%s6989 + $0x50] sm:$0xf]
        %v7011 = vld [vmem:[%s6989 + $0x54] sm:$0xf]
        %v7012 = vld [vmem:[%s6989 + $0x58] sm:$0xf]
        %v7013 = vld [vmem:[%s6989 + $0x5c] sm:$0xf]
        %v7014 = vld [vmem:[%s6989 + $0x60] sm:$0xf]
        %v7015 = vld [vmem:[%s6989 + $0x64] sm:$0xf]
        %v7016 = vld [vmem:[%s6989 + $0x68] sm:$0xf]
        %v7017 = vld [vmem:[%s6989 + $0x6c] sm:$0xf]
        %v7018 = vld [vmem:[%s6989 + $0x70] sm:$0xf]
        %v7019 = vld [vmem:[%s6989 + $0x74] sm:$0xf]
        %v7020 = vld [vmem:[%s6989 + $0x78] sm:$0xf]
        %v7021 = vld [vmem:[%s6989 + $0x7c] sm:$0xf]
        %v7022 = vld [vmem:[%s6989 + $0x80] sm:$0xf]
        %v7023 = vld [vmem:[%s6989 + $0x84] sm:$0xf]
        %v7024 = vld [vmem:[%s6989 + $0x88] sm:$0xf]
        %v7025 = vld [vmem:[%s6989 + $0x8c] sm:$0xf]
        %v7026 = vld [vmem:[%s6989 + $0x90] sm:$0xf]
        %v7027 = vld [vmem:[%s6989 + $0x94] sm:$0xf]
        %v7028 = vld [vmem:[%s6989 + $0x98] sm:$0xf]
        %v7029 = vld [vmem:[%s6989 + $0x9c] sm:$0xf]
        %v7030 = vld [vmem:[%s6989 + $0xa0] sm:$0xf]
        %v7031 = vld [vmem:[%s6989 + $0xa4] sm:$0xf]
        %v7032 = vld [vmem:[%s6989 + $0xa8] sm:$0xf]
        %v7033 = vld [vmem:[%s6989 + $0xac] sm:$0xf]
        %v7034 = vrot.slane %v6495, 1
        %v7035 = vrot.slane %v6498, 1
        %v7036 = vrot.slane %v6500, 1
        %v7083 = vunpack.c.l.b16 %v6990
        %v7084 = vunpack.c.l.b16 %v6991
        %v7085 = vunpack.c.l.b16 %v6992
        %v7086 = vunpack.c.l.b16 %v6993
        %v7087 = vunpack.c.l.b16 %v6994
        %v7088 = vunpack.c.l.b16 %v6995
        %v7089 = vunpack.c.l.b16 %v6996
        %v7090 = vunpack.c.l.b16 %v6997
        %v7091 = vunpack.c.l.b16 %v6998
        %v7092 = vunpack.c.l.b16 %v6999
        %v7093 = vunpack.c.l.b16 %v7000
        %v7094 = vunpack.c.l.b16 %v7001
        %v7095 = vunpack.c.l.b16 %v7002
        %v7096 = vunpack.c.l.b16 %v7003
        %v7097 = vunpack.c.l.b16 %v7004
        %v7098 = vunpack.c.l.b16 %v7005
        %v7099 = vunpack.c.l.b16 %v7006
        %v7100 = vunpack.c.l.b16 %v7007
        %v7101 = vunpack.c.l.b16 %v7008
        %v7102 = vunpack.c.l.b16 %v7009
        %v7103 = vunpack.c.l.b16 %v7010
        %v7104 = vunpack.c.l.b16 %v7011
        %v7105 = vunpack.c.l.b16 %v7012
        %v7106 = vunpack.c.l.b16 %v7013
        %v7107 = vunpack.c.l.b16 %v7014
        %v7108 = vunpack.c.l.b16 %v7015
        %v7109 = vunpack.c.l.b16 %v7016
        %v7110 = vunpack.c.l.b16 %v7017
        %v7111 = vunpack.c.l.b16 %v7018
        %v7112 = vunpack.c.l.b16 %v7019
        %v7113 = vunpack.c.l.b16 %v7020
        %v7114 = vunpack.c.l.b16 %v7021
        %v7115 = vunpack.c.l.b16 %v7022
        %v7116 = vunpack.c.l.b16 %v7023
        %v7117 = vunpack.c.l.b16 %v7024
        %v7118 = vunpack.c.l.b16 %v7025
        %v7119 = vunpack.c.l.b16 %v7026
        %v7120 = vunpack.c.l.b16 %v7027
        %v7121 = vunpack.c.l.b16 %v7028
        %v7122 = vunpack.c.l.b16 %v7029
        %v7123 = vunpack.c.l.b16 %v7030
        %v7124 = vunpack.c.l.b16 %v7031
        %v7125 = vunpack.c.l.b16 %v7032
        %v7126 = vunpack.c.l.b16 %v7033
        %v7127 = vpack.c.b16 %v7084, %v7083
        %v7128 = vpack.c.b16 %v7086, %v7085
        %v7129 = vpack.c.b16 %v7088, %v7087
        %v7130 = vpack.c.b16 %v7090, %v7089
        %v7131 = vpack.c.b16 %v7092, %v7091
        %v7132 = vpack.c.b16 %v7094, %v7093
        %v7133 = vpack.c.b16 %v7096, %v7095
        %v7134 = vpack.c.b16 %v7098, %v7097
        %v7135 = vpack.c.b16 %v7100, %v7099
        %v7136 = vpack.c.b16 %v7102, %v7101
        %v7137 = vpack.c.b16 %v7104, %v7103
        %v7138 = vpack.c.b16 %v7106, %v7105
        %v7139 = vpack.c.b16 %v7108, %v7107
        %v7140 = vpack.c.b16 %v7110, %v7109
        %v7141 = vpack.c.b16 %v7112, %v7111
        %v7142 = vpack.c.b16 %v7114, %v7113
        %v7143 = vpack.c.b16 %v7116, %v7115
        %v7144 = vpack.c.b16 %v7118, %v7117
        %v7145 = vpack.c.b16 %v7120, %v7119
        %v7146 = vpack.c.b16 %v7122, %v7121
        %v7147 = vpack.c.b16 %v7124, %v7123
        %v7148 = vpack.c.b16 %v7126, %v7125
        %v7172 = vsel %vm450, %v7036, 0
        %7174 = vmatprep.subr.bf16.mxu0 0
        %7175 = vmatpush1.bf16.msra.mxu0 %v7127
        %7176 = vmatprep.subr.bf16.mxu0 0
        %7177 = vmatpush1.bf16.msra.mxu0 %v7128
        %7178 = vmatprep.subr.bf16.mxu0 0
        %7179 = vmatpush1.bf16.msra.mxu0 %v7129
        %7180 = vmatprep.subr.bf16.mxu0 0
        %7181 = vmatpush1.bf16.msra.mxu0 %v7130
        %7182 = vmatprep.subr.bf16.mxu0 0
        %7183 = vmatpush1.bf16.msra.mxu0 %v7131
        %7184 = vmatprep.subr.bf16.mxu0 0
        %7185 = vmatpush1.bf16.msra.mxu0 %v7132
        %7186 = vmatprep.subr.bf16.mxu0 0
        %7187 = vmatpush1.bf16.msra.mxu0 %v7133
        %7188 = vmatprep.subr.bf16.mxu0 0
        %7189 = vmatpush1.bf16.msra.mxu0 %v7134
        %7190 = vmatprep.subr.bf16.mxu0 0
        %7191 = vmatpush1.bf16.msra.mxu0 %v7135
        %7192 = vmatprep.subr.bf16.mxu0 0
        %7193 = vmatpush1.bf16.msra.mxu0 %v7136
        %7194 = vmatprep.subr.bf16.mxu0 0
        %7195 = vmatpush1.bf16.msra.mxu0 %v7137
        %7196 = vmatprep.subr.bf16.mxu0 0
        %7197 = vmatpush1.bf16.msra.mxu0 %v7138
        %7198 = vmatprep.subr.bf16.mxu0 0
        %7199 = vmatpush1.bf16.msra.mxu0 %v7139
        %7200 = vmatprep.subr.bf16.mxu0 0
        %7201 = vmatpush1.bf16.msra.mxu0 %v7140
        %7202 = vmatprep.subr.bf16.mxu0 0
        %7203 = vmatpush1.bf16.msra.mxu0 %v7141
        %7204 = vmatprep.subr.bf16.mxu0 0
        %7205 = vmatpush1.bf16.msra.mxu0 %v7142
        %7206 = vmatprep.mubr.bf16.mxu0 %v7035
        %7207 = vmatmul.mubr.bf16.gmra.mrb[0].mxu0 %v7034
        %v7208 = vpop.f32.mrb[0].mxu0
        %v7209 = vadd.f32 0.0, %v7208
        %v7210 = vpop.f32.mrb[0].mxu0
        %v7211 = vpop.f32.mrb[0].mxu0
        %v7212 = vpop.f32.mrb[0].mxu0
        %7213 = vdwg.mxu0
        %7214 = vmatprep.subr.bf16.mxu0 0
        %7215 = vmatpush1.bf16.msra.mxu0 %v7143
        %7216 = vmatprep.subr.bf16.mxu0 0
        %7217 = vmatpush1.bf16.msra.mxu0 %v7144
        %7218 = vmatprep.subr.bf16.mxu0 0
        %7219 = vmatpush1.bf16.msra.mxu0 %v7145
        %7220 = vmatprep.subr.bf16.mxu0 0
        %7221 = vmatpush1.bf16.msra.mxu0 %v7146
        %7222 = vmatprep.subr.bf16.mxu0 0
        %7223 = vmatpush1.bf16.msra.mxu0 %v7147
        %7224 = vmatprep.subr.bf16.mxu0 0
        %7225 = vmatpush1.bf16.msra.mxu0 %v7148
        %7226 = vmatprep.subr.bf16.mxu0 0
        %7227 = vmatpush1.bf16.msra.mxu0 0
        %7228 = vmatprep.subr.bf16.mxu0 0
        %7229 = vmatpush1.bf16.msra.mxu0 0
        %7230 = vmatprep.subr.bf16.mxu0 0
        %7231 = vmatpush1.bf16.msra.mxu0 0
        %7232 = vmatprep.subr.bf16.mxu0 0
        %7233 = vmatpush1.bf16.msra.mxu0 0
        %7234 = vmatprep.subr.bf16.mxu0 0
        %7235 = vmatpush1.bf16.msra.mxu0 0
        %7236 = vmatprep.subr.bf16.mxu0 0
        %7237 = vmatpush1.bf16.msra.mxu0 0
        %7238 = vmatprep.subr.bf16.mxu0 0
        %7239 = vmatpush1.bf16.msra.mxu0 0
        %7240 = vmatprep.subr.bf16.mxu0 0
        %7241 = vmatpush1.bf16.msra.mxu0 0
        %7242 = vmatprep.subr.bf16.mxu0 0
        %7243 = vmatpush1.bf16.msra.mxu0 0
        %7244 = vmatprep.subr.bf16.mxu0 0
        %7245 = vmatpush1.bf16.msra.mxu0 0
        %7246 = vmatprep.mubr.bf16.mxu0 0
        %7247 = vmatmul.mubr.bf16.gmra.mrb[0].mxu0 %v7172
        %v7248 = vpop.f32.mrb[0].mxu0
        %v7249 = vadd.f32 %v7209, %v7248
        %v7250 = vpop.f32.mrb[0].mxu0
        %v7251 = vpop.f32.mrb[0].mxu0
        %v7252 = vpop.f32.mrb[0].mxu0
        %7253 = vdwg.mxu0
        %v7254 = vadd.f32 %v6988, %v7249
        %s7255 = scalar_lea.vmem %s7, 704
        %v7256 = vld [vmem:[%s7255] sm:$0xf]
        %v7257 = vld [vmem:[%s7255 + $0x4] sm:$0xf]
        %v7258 = vld [vmem:[%s7255 + $0x8] sm:$0xf]
        %v7259 = vld [vmem:[%s7255 + $0xc] sm:$0xf]
        %v7260 = vld [vmem:[%s7255 + $0x10] sm:$0xf]
        %v7261 = vld [vmem:[%s7255 + $0x14] sm:$0xf]
        %v7262 = vld [vmem:[%s7255 + $0x18] sm:$0xf]
        %v7263 = vld [vmem:[%s7255 + $0x1c] sm:$0xf]
        %v7264 = vld [vmem:[%s7255 + $0x20] sm:$0xf]
        %v7265 = vld [vmem:[%s7255 + $0x24] sm:$0xf]
        %v7266 = vld [vmem:[%s7255 + $0x28] sm:$0xf]
        %v7267 = vld [vmem:[%s7255 + $0x2c] sm:$0xf]
        %v7268 = vld [vmem:[%s7255 + $0x30] sm:$0xf]
        %v7269 = vld [vmem:[%s7255 + $0x34] sm:$0xf]
        %v7270 = vld [vmem:[%s7255 + $0x38] sm:$0xf]
        %v7271 = vld [vmem:[%s7255 + $0x3c] sm:$0xf]
        %v7272 = vld [vmem:[%s7255 + $0x40] sm:$0xf]
        %v7273 = vld [vmem:[%s7255 + $0x44] sm:$0xf]
        %v7274 = vld [vmem:[%s7255 + $0x48] sm:$0xf]
        %v7275 = vld [vmem:[%s7255 + $0x4c] sm:$0xf]
        %v7276 = vld [vmem:[%s7255 + $0x50] sm:$0xf]
        %v7277 = vld [vmem:[%s7255 + $0x54] sm:$0xf]
        %v7278 = vld [vmem:[%s7255 + $0x58] sm:$0xf]
        %v7279 = vld [vmem:[%s7255 + $0x5c] sm:$0xf]
        %v7280 = vld [vmem:[%s7255 + $0x60] sm:$0xf]
        %v7281 = vld [vmem:[%s7255 + $0x64] sm:$0xf]
        %v7282 = vld [vmem:[%s7255 + $0x68] sm:$0xf]
        %v7283 = vld [vmem:[%s7255 + $0x6c] sm:$0xf]
        %v7284 = vld [vmem:[%s7255 + $0x70] sm:$0xf]
        %v7285 = vld [vmem:[%s7255 + $0x74] sm:$0xf]
        %v7286 = vld [vmem:[%s7255 + $0x78] sm:$0xf]
        %v7287 = vld [vmem:[%s7255 + $0x7c] sm:$0xf]
        %v7288 = vld [vmem:[%s7255 + $0x80] sm:$0xf]
        %v7289 = vld [vmem:[%s7255 + $0x84] sm:$0xf]
        %v7290 = vld [vmem:[%s7255 + $0x88] sm:$0xf]
        %v7291 = vld [vmem:[%s7255 + $0x8c] sm:$0xf]
        %v7292 = vld [vmem:[%s7255 + $0x90] sm:$0xf]
        %v7293 = vld [vmem:[%s7255 + $0x94] sm:$0xf]
        %v7294 = vld [vmem:[%s7255 + $0x98] sm:$0xf]
        %v7295 = vld [vmem:[%s7255 + $0x9c] sm:$0xf]
        %v7296 = vld [vmem:[%s7255 + $0xa0] sm:$0xf]
        %v7297 = vld [vmem:[%s7255 + $0xa4] sm:$0xf]
        %v7298 = vld [vmem:[%s7255 + $0xa8] sm:$0xf]
        %v7299 = vld [vmem:[%s7255 + $0xac] sm:$0xf]
        %v7300 = vrot.slane %v6185, 2
        %v7301 = vrot.slane %v6186, 2
        %v7302 = vrot.slane %v6187, 2
        %v7349 = vunpack.c.l.b16 %v7256
        %v7350 = vunpack.c.l.b16 %v7257
        %v7351 = vunpack.c.l.b16 %v7258
        %v7352 = vunpack.c.l.b16 %v7259
        %v7353 = vunpack.c.l.b16 %v7260
        %v7354 = vunpack.c.l.b16 %v7261
        %v7355 = vunpack.c.l.b16 %v7262
        %v7356 = vunpack.c.l.b16 %v7263
        %v7357 = vunpack.c.l.b16 %v7264
        %v7358 = vunpack.c.l.b16 %v7265
        %v7359 = vunpack.c.l.b16 %v7266
        %v7360 = vunpack.c.l.b16 %v7267
        %v7361 = vunpack.c.l.b16 %v7268
        %v7362 = vunpack.c.l.b16 %v7269
        %v7363 = vunpack.c.l.b16 %v7270
        %v7364 = vunpack.c.l.b16 %v7271
        %v7365 = vunpack.c.l.b16 %v7272
        %v7366 = vunpack.c.l.b16 %v7273
        %v7367 = vunpack.c.l.b16 %v7274
        %v7368 = vunpack.c.l.b16 %v7275
        %v7369 = vunpack.c.l.b16 %v7276
        %v7370 = vunpack.c.l.b16 %v7277
        %v7371 = vunpack.c.l.b16 %v7278
        %v7372 = vunpack.c.l.b16 %v7279
        %v7373 = vunpack.c.l.b16 %v7280
        %v7374 = vunpack.c.l.b16 %v7281
        %v7375 = vunpack.c.l.b16 %v7282
        %v7376 = vunpack.c.l.b16 %v7283
        %v7377 = vunpack.c.l.b16 %v7284
        %v7378 = vunpack.c.l.b16 %v7285
        %v7379 = vunpack.c.l.b16 %v7286
        %v7380 = vunpack.c.l.b16 %v7287
        %v7381 = vunpack.c.l.b16 %v7288
        %v7382 = vunpack.c.l.b16 %v7289
        %v7383 = vunpack.c.l.b16 %v7290
        %v7384 = vunpack.c.l.b16 %v7291
        %v7385 = vunpack.c.l.b16 %v7292
        %v7386 = vunpack.c.l.b16 %v7293
        %v7387 = vunpack.c.l.b16 %v7294
        %v7388 = vunpack.c.l.b16 %v7295
        %v7389 = vunpack.c.l.b16 %v7296
        %v7390 = vunpack.c.l.b16 %v7297
        %v7391 = vunpack.c.l.b16 %v7298
        %v7392 = vunpack.c.l.b16 %v7299
        %v7393 = vpack.c.b16 %v7350, %v7349
        %v7394 = vpack.c.b16 %v7352, %v7351
        %v7395 = vpack.c.b16 %v7354, %v7353
        %v7396 = vpack.c.b16 %v7356, %v7355
        %v7397 = vpack.c.b16 %v7358, %v7357
        %v7398 = vpack.c.b16 %v7360, %v7359
        %v7399 = vpack.c.b16 %v7362, %v7361
        %v7400 = vpack.c.b16 %v7364, %v7363
        %v7401 = vpack.c.b16 %v7366, %v7365
        %v7402 = vpack.c.b16 %v7368, %v7367
        %v7403 = vpack.c.b16 %v7370, %v7369
        %v7404 = vpack.c.b16 %v7372, %v7371
        %v7405 = vpack.c.b16 %v7374, %v7373
        %v7406 = vpack.c.b16 %v7376, %v7375
        %v7407 = vpack.c.b16 %v7378, %v7377
        %v7408 = vpack.c.b16 %v7380, %v7379
        %v7409 = vpack.c.b16 %v7382, %v7381
        %v7410 = vpack.c.b16 %v7384, %v7383
        %v7411 = vpack.c.b16 %v7386, %v7385
        %v7412 = vpack.c.b16 %v7388, %v7387
        %v7413 = vpack.c.b16 %v7390, %v7389
        %v7414 = vpack.c.b16 %v7392, %v7391
        %v7438 = vsel %vm450, %v7302, 0
        %7440 = vmatprep.subr.bf16.mxu0 0
        %7441 = vmatpush1.bf16.msra.mxu0 %v7393
        %7442 = vmatprep.subr.bf16.mxu0 0
        %7443 = vmatpush1.bf16.msra.mxu0 %v7394
        %7444 = vmatprep.subr.bf16.mxu0 0
        %7445 = vmatpush1.bf16.msra.mxu0 %v7395
        %7446 = vmatprep.subr.bf16.mxu0 0
        %7447 = vmatpush1.bf16.msra.mxu0 %v7396
        %7448 = vmatprep.subr.bf16.mxu0 0
        %7449 = vmatpush1.bf16.msra.mxu0 %v7397
        %7450 = vmatprep.subr.bf16.mxu0 0
        %7451 = vmatpush1.bf16.msra.mxu0 %v7398
        %7452 = vmatprep.subr.bf16.mxu0 0
        %7453 = vmatpush1.bf16.msra.mxu0 %v7399
        %7454 = vmatprep.subr.bf16.mxu0 0
        %7455 = vmatpush1.bf16.msra.mxu0 %v7400
        %7456 = vmatprep.subr.bf16.mxu0 0
        %7457 = vmatpush1.bf16.msra.mxu0 %v7401
        %7458 = vmatprep.subr.bf16.mxu0 0
        %7459 = vmatpush1.bf16.msra.mxu0 %v7402
        %7460 = vmatprep.subr.bf16.mxu0 0
        %7461 = vmatpush1.bf16.msra.mxu0 %v7403
        %7462 = vmatprep.subr.bf16.mxu0 0
        %7463 = vmatpush1.bf16.msra.mxu0 %v7404
        %7464 = vmatprep.subr.bf16.mxu0 0
        %7465 = vmatpush1.bf16.msra.mxu0 %v7405
        %7466 = vmatprep.subr.bf16.mxu0 0
        %7467 = vmatpush1.bf16.msra.mxu0 %v7406
        %7468 = vmatprep.subr.bf16.mxu0 0
        %7469 = vmatpush1.bf16.msra.mxu0 %v7407
        %7470 = vmatprep.subr.bf16.mxu0 0
        %7471 = vmatpush1.bf16.msra.mxu0 %v7408
        %7472 = vmatprep.mubr.bf16.mxu0 %v7301
        %7473 = vmatmul.mubr.bf16.gmra.mrb[0].mxu0 %v7300
        %v7474 = vpop.f32.mrb[0].mxu0
        %v7475 = vadd.f32 0.0, %v7474
        %v7476 = vpop.f32.mrb[0].mxu0
        %v7477 = vpop.f32.mrb[0].mxu0
        %v7478 = vpop.f32.mrb[0].mxu0
        %7479 = vdwg.mxu0
        %7480 = vmatprep.subr.bf16.mxu0 0
        %7481 = vmatpush1.bf16.msra.mxu0 %v7409
        %7482 = vmatprep.subr.bf16.mxu0 0
        %7483 = vmatpush1.bf16.msra.mxu0 %v7410
        %7484 = vmatprep.subr.bf16.mxu0 0
        %7485 = vmatpush1.bf16.msra.mxu0 %v7411
        %7486 = vmatprep.subr.bf16.mxu0 0
        %7487 = vmatpush1.bf16.msra.mxu0 %v7412
        %7488 = vmatprep.subr.bf16.mxu0 0
        %7489 = vmatpush1.bf16.msra.mxu0 %v7413
        %7490 = vmatprep.subr.bf16.mxu0 0
        %7491 = vmatpush1.bf16.msra.mxu0 %v7414
        %7492 = vmatprep.subr.bf16.mxu0 0
        %7493 = vmatpush1.bf16.msra.mxu0 0
        %7494 = vmatprep.subr.bf16.mxu0 0
        %7495 = vmatpush1.bf16.msra.mxu0 0
        %7496 = vmatprep.subr.bf16.mxu0 0
        %7497 = vmatpush1.bf16.msra.mxu0 0
        %7498 = vmatprep.subr.bf16.mxu0 0
        %7499 = vmatpush1.bf16.msra.mxu0 0
        %7500 = vmatprep.subr.bf16.mxu0 0
        %7501 = vmatpush1.bf16.msra.mxu0 0
        %7502 = vmatprep.subr.bf16.mxu0 0
        %7503 = vmatpush1.bf16.msra.mxu0 0
        %7504 = vmatprep.subr.bf16.mxu0 0
        %7505 = vmatpush1.bf16.msra.mxu0 0
        %7506 = vmatprep.subr.bf16.mxu0 0
        %7507 = vmatpush1.bf16.msra.mxu0 0
        %7508 = vmatprep.subr.bf16.mxu0 0
        %7509 = vmatpush1.bf16.msra.mxu0 0
        %7510 = vmatprep.subr.bf16.mxu0 0
        %7511 = vmatpush1.bf16.msra.mxu0 0
        %7512 = vmatprep.mubr.bf16.mxu0 0
        %7513 = vmatmul.mubr.bf16.gmra.mrb[0].mxu0 %v7438
        %v7514 = vpop.f32.mrb[0].mxu0
        %v7515 = vadd.f32 %v7475, %v7514
        %v7516 = vpop.f32.mrb[0].mxu0
        %v7517 = vpop.f32.mrb[0].mxu0
        %v7518 = vpop.f32.mrb[0].mxu0
        %7519 = vdwg.mxu0
        %v7520 = vadd.f32 %v7254, %v7515
        %s7521 = scalar_lea.vmem %s7, 880
        %v7522 = vld [vmem:[%s7521] sm:$0xf]
        %v7523 = vld [vmem:[%s7521 + $0x4] sm:$0xf]
        %v7524 = vld [vmem:[%s7521 + $0x8] sm:$0xf]
        %v7525 = vld [vmem:[%s7521 + $0xc] sm:$0xf]
        %v7526 = vld [vmem:[%s7521 + $0x10] sm:$0xf]
        %v7527 = vld [vmem:[%s7521 + $0x14] sm:$0xf]
        %v7528 = vld [vmem:[%s7521 + $0x18] sm:$0xf]
        %v7529 = vld [vmem:[%s7521 + $0x1c] sm:$0xf]
        %v7530 = vld [vmem:[%s7521 + $0x20] sm:$0xf]
        %v7531 = vld [vmem:[%s7521 + $0x24] sm:$0xf]
        %v7532 = vld [vmem:[%s7521 + $0x28] sm:$0xf]
        %v7533 = vld [vmem:[%s7521 + $0x2c] sm:$0xf]
        %v7534 = vld [vmem:[%s7521 + $0x30] sm:$0xf]
        %v7535 = vld [vmem:[%s7521 + $0x34] sm:$0xf]
        %v7536 = vld [vmem:[%s7521 + $0x38] sm:$0xf]
        %v7537 = vld [vmem:[%s7521 + $0x3c] sm:$0xf]
        %v7538 = vld [vmem:[%s7521 + $0x40] sm:$0xf]
        %v7539 = vld [vmem:[%s7521 + $0x44] sm:$0xf]
        %v7540 = vld [vmem:[%s7521 + $0x48] sm:$0xf]
        %v7541 = vld [vmem:[%s7521 + $0x4c] sm:$0xf]
        %v7542 = vld [vmem:[%s7521 + $0x50] sm:$0xf]
        %v7543 = vld [vmem:[%s7521 + $0x54] sm:$0xf]
        %v7544 = vld [vmem:[%s7521 + $0x58] sm:$0xf]
        %v7545 = vld [vmem:[%s7521 + $0x5c] sm:$0xf]
        %v7546 = vld [vmem:[%s7521 + $0x60] sm:$0xf]
        %v7547 = vld [vmem:[%s7521 + $0x64] sm:$0xf]
        %v7548 = vld [vmem:[%s7521 + $0x68] sm:$0xf]
        %v7549 = vld [vmem:[%s7521 + $0x6c] sm:$0xf]
        %v7550 = vld [vmem:[%s7521 + $0x70] sm:$0xf]
        %v7551 = vld [vmem:[%s7521 + $0x74] sm:$0xf]
        %v7552 = vld [vmem:[%s7521 + $0x78] sm:$0xf]
        %v7553 = vld [vmem:[%s7521 + $0x7c] sm:$0xf]
        %v7554 = vld [vmem:[%s7521 + $0x80] sm:$0xf]
        %v7555 = vld [vmem:[%s7521 + $0x84] sm:$0xf]
        %v7556 = vld [vmem:[%s7521 + $0x88] sm:$0xf]
        %v7557 = vld [vmem:[%s7521 + $0x8c] sm:$0xf]
        %v7558 = vld [vmem:[%s7521 + $0x90] sm:$0xf]
        %v7559 = vld [vmem:[%s7521 + $0x94] sm:$0xf]
        %v7560 = vld [vmem:[%s7521 + $0x98] sm:$0xf]
        %v7561 = vld [vmem:[%s7521 + $0x9c] sm:$0xf]
        %v7562 = vld [vmem:[%s7521 + $0xa0] sm:$0xf]
        %v7563 = vld [vmem:[%s7521 + $0xa4] sm:$0xf]
        %v7564 = vld [vmem:[%s7521 + $0xa8] sm:$0xf]
        %v7565 = vld [vmem:[%s7521 + $0xac] sm:$0xf]
        %v7566 = vrot.slane %v6495, 2
        %v7567 = vrot.slane %v6498, 2
        %v7568 = vrot.slane %v6500, 2
        %v7615 = vunpack.c.l.b16 %v7522
        %v7616 = vunpack.c.l.b16 %v7523
        %v7617 = vunpack.c.l.b16 %v7524
        %v7618 = vunpack.c.l.b16 %v7525
        %v7619 = vunpack.c.l.b16 %v7526
        %v7620 = vunpack.c.l.b16 %v7527
        %v7621 = vunpack.c.l.b16 %v7528
        %v7622 = vunpack.c.l.b16 %v7529
        %v7623 = vunpack.c.l.b16 %v7530
        %v7624 = vunpack.c.l.b16 %v7531
        %v7625 = vunpack.c.l.b16 %v7532
        %v7626 = vunpack.c.l.b16 %v7533
        %v7627 = vunpack.c.l.b16 %v7534
        %v7628 = vunpack.c.l.b16 %v7535
        %v7629 = vunpack.c.l.b16 %v7536
        %v7630 = vunpack.c.l.b16 %v7537
        %v7631 = vunpack.c.l.b16 %v7538
        %v7632 = vunpack.c.l.b16 %v7539
        %v7633 = vunpack.c.l.b16 %v7540
        %v7634 = vunpack.c.l.b16 %v7541
        %v7635 = vunpack.c.l.b16 %v7542
        %v7636 = vunpack.c.l.b16 %v7543
        %v7637 = vunpack.c.l.b16 %v7544
        %v7638 = vunpack.c.l.b16 %v7545
        %v7639 = vunpack.c.l.b16 %v7546
        %v7640 = vunpack.c.l.b16 %v7547
        %v7641 = vunpack.c.l.b16 %v7548
        %v7642 = vunpack.c.l.b16 %v7549
        %v7643 = vunpack.c.l.b16 %v7550
        %v7644 = vunpack.c.l.b16 %v7551
        %v7645 = vunpack.c.l.b16 %v7552
        %v7646 = vunpack.c.l.b16 %v7553
        %v7647 = vunpack.c.l.b16 %v7554
        %v7648 = vunpack.c.l.b16 %v7555
        %v7649 = vunpack.c.l.b16 %v7556
        %v7650 = vunpack.c.l.b16 %v7557
        %v7651 = vunpack.c.l.b16 %v7558
        %v7652 = vunpack.c.l.b16 %v7559
        %v7653 = vunpack.c.l.b16 %v7560
        %v7654 = vunpack.c.l.b16 %v7561
        %v7655 = vunpack.c.l.b16 %v7562
        %v7656 = vunpack.c.l.b16 %v7563
        %v7657 = vunpack.c.l.b16 %v7564
        %v7658 = vunpack.c.l.b16 %v7565
        %v7659 = vpack.c.b16 %v7616, %v7615
        %v7660 = vpack.c.b16 %v7618, %v7617
        %v7661 = vpack.c.b16 %v7620, %v7619
        %v7662 = vpack.c.b16 %v7622, %v7621
        %v7663 = vpack.c.b16 %v7624, %v7623
        %v7664 = vpack.c.b16 %v7626, %v7625
        %v7665 = vpack.c.b16 %v7628, %v7627
        %v7666 = vpack.c.b16 %v7630, %v7629
        %v7667 = vpack.c.b16 %v7632, %v7631
        %v7668 = vpack.c.b16 %v7634, %v7633
        %v7669 = vpack.c.b16 %v7636, %v7635
        %v7670 = vpack.c.b16 %v7638, %v7637
        %v7671 = vpack.c.b16 %v7640, %v7639
        %v7672 = vpack.c.b16 %v7642, %v7641
        %v7673 = vpack.c.b16 %v7644, %v7643
        %v7674 = vpack.c.b16 %v7646, %v7645
        %v7675 = vpack.c.b16 %v7648, %v7647
        %v7676 = vpack.c.b16 %v7650, %v7649
        %v7677 = vpack.c.b16 %v7652, %v7651
        %v7678 = vpack.c.b16 %v7654, %v7653
        %v7679 = vpack.c.b16 %v7656, %v7655
        %v7680 = vpack.c.b16 %v7658, %v7657
        %v7704 = vsel %vm450, %v7568, 0
        %7706 = vmatprep.subr.bf16.mxu0 0
        %7707 = vmatpush1.bf16.msra.mxu0 %v7659
        %7708 = vmatprep.subr.bf16.mxu0 0
        %7709 = vmatpush1.bf16.msra.mxu0 %v7660
        %7710 = vmatprep.subr.bf16.mxu0 0
        %7711 = vmatpush1.bf16.msra.mxu0 %v7661
        %7712 = vmatprep.subr.bf16.mxu0 0
        %7713 = vmatpush1.bf16.msra.mxu0 %v7662
        %7714 = vmatprep.subr.bf16.mxu0 0
        %7715 = vmatpush1.bf16.msra.mxu0 %v7663
        %7716 = vmatprep.subr.bf16.mxu0 0
        %7717 = vmatpush1.bf16.msra.mxu0 %v7664
        %7718 = vmatprep.subr.bf16.mxu0 0
        %7719 = vmatpush1.bf16.msra.mxu0 %v7665
        %7720 = vmatprep.subr.bf16.mxu0 0
        %7721 = vmatpush1.bf16.msra.mxu0 %v7666
        %7722 = vmatprep.subr.bf16.mxu0 0
        %7723 = vmatpush1.bf16.msra.mxu0 %v7667
        %7724 = vmatprep.subr.bf16.mxu0 0
        %7725 = vmatpush1.bf16.msra.mxu0 %v7668
        %7726 = vmatprep.subr.bf16.mxu0 0
        %7727 = vmatpush1.bf16.msra.mxu0 %v7669
        %7728 = vmatprep.subr.bf16.mxu0 0
        %7729 = vmatpush1.bf16.msra.mxu0 %v7670
        %7730 = vmatprep.subr.bf16.mxu0 0
        %7731 = vmatpush1.bf16.msra.mxu0 %v7671
        %7732 = vmatprep.subr.bf16.mxu0 0
        %7733 = vmatpush1.bf16.msra.mxu0 %v7672
        %7734 = vmatprep.subr.bf16.mxu0 0
        %7735 = vmatpush1.bf16.msra.mxu0 %v7673
        %7736 = vmatprep.subr.bf16.mxu0 0
        %7737 = vmatpush1.bf16.msra.mxu0 %v7674
        %7738 = vmatprep.mubr.bf16.mxu0 %v7567
        %7739 = vmatmul.mubr.bf16.gmra.mrb[0].mxu0 %v7566
        %v7740 = vpop.f32.mrb[0].mxu0
        %v7741 = vadd.f32 0.0, %v7740
        %v7742 = vpop.f32.mrb[0].mxu0
        %v7743 = vpop.f32.mrb[0].mxu0
        %v7744 = vpop.f32.mrb[0].mxu0
        %7745 = vdwg.mxu0
        %7746 = vmatprep.subr.bf16.mxu0 0
        %7747 = vmatpush1.bf16.msra.mxu0 %v7675
        %7748 = vmatprep.subr.bf16.mxu0 0
        %7749 = vmatpush1.bf16.msra.mxu0 %v7676
        %7750 = vmatprep.subr.bf16.mxu0 0
        %7751 = vmatpush1.bf16.msra.mxu0 %v7677
        %7752 = vmatprep.subr.bf16.mxu0 0
        %7753 = vmatpush1.bf16.msra.mxu0 %v7678
        %7754 = vmatprep.subr.bf16.mxu0 0
        %7755 = vmatpush1.bf16.msra.mxu0 %v7679
        %7756 = vmatprep.subr.bf16.mxu0 0
        %7757 = vmatpush1.bf16.msra.mxu0 %v7680
        %7758 = vmatprep.subr.bf16.mxu0 0
        %7759 = vmatpush1.bf16.msra.mxu0 0
        %7760 = vmatprep.subr.bf16.mxu0 0
        %7761 = vmatpush1.bf16.msra.mxu0 0
        %7762 = vmatprep.subr.bf16.mxu0 0
        %7763 = vmatpush1.bf16.msra.mxu0 0
        %7764 = vmatprep.subr.bf16.mxu0 0
        %7765 = vmatpush1.bf16.msra.mxu0 0
        %7766 = vmatprep.subr.bf16.mxu0 0
        %7767 = vmatpush1.bf16.msra.mxu0 0
        %7768 = vmatprep.subr.bf16.mxu0 0
        %7769 = vmatpush1.bf16.msra.mxu0 0
        %7770 = vmatprep.subr.bf16.mxu0 0
        %7771 = vmatpush1.bf16.msra.mxu0 0
        %7772 = vmatprep.subr.bf16.mxu0 0
        %7773 = vmatpush1.bf16.msra.mxu0 0
        %7774 = vmatprep.subr.bf16.mxu0 0
        %7775 = vmatpush1.bf16.msra.mxu0 0
        %7776 = vmatprep.subr.bf16.mxu0 0
        %7777 = vmatpush1.bf16.msra.mxu0 0
        %7778 = vmatprep.mubr.bf16.mxu0 0
        %7779 = vmatmul.mubr.bf16.gmra.mrb[0].mxu0 %v7704
        %v7780 = vpop.f32.mrb[0].mxu0
        %v7781 = vadd.f32 %v7741, %v7780
        %v7782 = vpop.f32.mrb[0].mxu0
        %v7783 = vpop.f32.mrb[0].mxu0
        %v7784 = vpop.f32.mrb[0].mxu0
        %7785 = vdwg.mxu0
        %v7786 = vadd.f32 %v7520, %v7781
        %s7787 = scalar_lea.vmem %s7, 1056
        %v7788 = vld [vmem:[%s7787] sm:$0xf]
        %v7789 = vld [vmem:[%s7787 + $0x4] sm:$0xf]
        %v7790 = vld [vmem:[%s7787 + $0x8] sm:$0xf]
        %v7791 = vld [vmem:[%s7787 + $0xc] sm:$0xf]
        %v7792 = vld [vmem:[%s7787 + $0x10] sm:$0xf]
        %v7793 = vld [vmem:[%s7787 + $0x14] sm:$0xf]
        %v7794 = vld [vmem:[%s7787 + $0x18] sm:$0xf]
        %v7795 = vld [vmem:[%s7787 + $0x1c] sm:$0xf]
        %v7796 = vld [vmem:[%s7787 + $0x20] sm:$0xf]
        %v7797 = vld [vmem:[%s7787 + $0x24] sm:$0xf]
        %v7798 = vld [vmem:[%s7787 + $0x28] sm:$0xf]
        %v7799 = vld [vmem:[%s7787 + $0x2c] sm:$0xf]
        %v7800 = vld [vmem:[%s7787 + $0x30] sm:$0xf]
        %v7801 = vld [vmem:[%s7787 + $0x34] sm:$0xf]
        %v7802 = vld [vmem:[%s7787 + $0x38] sm:$0xf]
        %v7803 = vld [vmem:[%s7787 + $0x3c] sm:$0xf]
        %v7804 = vld [vmem:[%s7787 + $0x40] sm:$0xf]
        %v7805 = vld [vmem:[%s7787 + $0x44] sm:$0xf]
        %v7806 = vld [vmem:[%s7787 + $0x48] sm:$0xf]
        %v7807 = vld [vmem:[%s7787 + $0x4c] sm:$0xf]
        %v7808 = vld [vmem:[%s7787 + $0x50] sm:$0xf]
        %v7809 = vld [vmem:[%s7787 + $0x54] sm:$0xf]
        %v7810 = vld [vmem:[%s7787 + $0x58] sm:$0xf]
        %v7811 = vld [vmem:[%s7787 + $0x5c] sm:$0xf]
        %v7812 = vld [vmem:[%s7787 + $0x60] sm:$0xf]
        %v7813 = vld [vmem:[%s7787 + $0x64] sm:$0xf]
        %v7814 = vld [vmem:[%s7787 + $0x68] sm:$0xf]
        %v7815 = vld [vmem:[%s7787 + $0x6c] sm:$0xf]
        %v7816 = vld [vmem:[%s7787 + $0x70] sm:$0xf]
        %v7817 = vld [vmem:[%s7787 + $0x74] sm:$0xf]
        %v7818 = vld [vmem:[%s7787 + $0x78] sm:$0xf]
        %v7819 = vld [vmem:[%s7787 + $0x7c] sm:$0xf]
        %v7820 = vld [vmem:[%s7787 + $0x80] sm:$0xf]
        %v7821 = vld [vmem:[%s7787 + $0x84] sm:$0xf]
        %v7822 = vld [vmem:[%s7787 + $0x88] sm:$0xf]
        %v7823 = vld [vmem:[%s7787 + $0x8c] sm:$0xf]
        %v7824 = vld [vmem:[%s7787 + $0x90] sm:$0xf]
        %v7825 = vld [vmem:[%s7787 + $0x94] sm:$0xf]
        %v7826 = vld [vmem:[%s7787 + $0x98] sm:$0xf]
        %v7827 = vld [vmem:[%s7787 + $0x9c] sm:$0xf]
        %v7828 = vld [vmem:[%s7787 + $0xa0] sm:$0xf]
        %v7829 = vld [vmem:[%s7787 + $0xa4] sm:$0xf]
        %v7830 = vld [vmem:[%s7787 + $0xa8] sm:$0xf]
        %v7831 = vld [vmem:[%s7787 + $0xac] sm:$0xf]
        %v7832 = vrot.slane %v6185, 3
        %v7833 = vrot.slane %v6186, 3
        %v7834 = vrot.slane %v6187, 3
        %v7881 = vunpack.c.l.b16 %v7788
        %v7882 = vunpack.c.l.b16 %v7789
        %v7883 = vunpack.c.l.b16 %v7790
        %v7884 = vunpack.c.l.b16 %v7791
        %v7885 = vunpack.c.l.b16 %v7792
        %v7886 = vunpack.c.l.b16 %v7793
        %v7887 = vunpack.c.l.b16 %v7794
        %v7888 = vunpack.c.l.b16 %v7795
        %v7889 = vunpack.c.l.b16 %v7796
        %v7890 = vunpack.c.l.b16 %v7797
        %v7891 = vunpack.c.l.b16 %v7798
        %v7892 = vunpack.c.l.b16 %v7799
        %v7893 = vunpack.c.l.b16 %v7800
        %v7894 = vunpack.c.l.b16 %v7801
        %v7895 = vunpack.c.l.b16 %v7802
        %v7896 = vunpack.c.l.b16 %v7803
        %v7897 = vunpack.c.l.b16 %v7804
        %v7898 = vunpack.c.l.b16 %v7805
        %v7899 = vunpack.c.l.b16 %v7806
        %v7900 = vunpack.c.l.b16 %v7807
        %v7901 = vunpack.c.l.b16 %v7808
        %v7902 = vunpack.c.l.b16 %v7809
        %v7903 = vunpack.c.l.b16 %v7810
        %v7904 = vunpack.c.l.b16 %v7811
        %v7905 = vunpack.c.l.b16 %v7812
        %v7906 = vunpack.c.l.b16 %v7813
        %v7907 = vunpack.c.l.b16 %v7814
        %v7908 = vunpack.c.l.b16 %v7815
        %v7909 = vunpack.c.l.b16 %v7816
        %v7910 = vunpack.c.l.b16 %v7817
        %v7911 = vunpack.c.l.b16 %v7818
        %v7912 = vunpack.c.l.b16 %v7819
        %v7913 = vunpack.c.l.b16 %v7820
        %v7914 = vunpack.c.l.b16 %v7821
        %v7915 = vunpack.c.l.b16 %v7822
        %v7916 = vunpack.c.l.b16 %v7823
        %v7917 = vunpack.c.l.b16 %v7824
        %v7918 = vunpack.c.l.b16 %v7825
        %v7919 = vunpack.c.l.b16 %v7826
        %v7920 = vunpack.c.l.b16 %v7827
        %v7921 = vunpack.c.l.b16 %v7828
        %v7922 = vunpack.c.l.b16 %v7829
        %v7923 = vunpack.c.l.b16 %v7830
        %v7924 = vunpack.c.l.b16 %v7831
        %v7925 = vpack.c.b16 %v7882, %v7881
        %v7926 = vpack.c.b16 %v7884, %v7883
        %v7927 = vpack.c.b16 %v7886, %v7885
        %v7928 = vpack.c.b16 %v7888, %v7887
        %v7929 = vpack.c.b16 %v7890, %v7889
        %v7930 = vpack.c.b16 %v7892, %v7891
        %v7931 = vpack.c.b16 %v7894, %v7893
        %v7932 = vpack.c.b16 %v7896, %v7895
        %v7933 = vpack.c.b16 %v7898, %v7897
        %v7934 = vpack.c.b16 %v7900, %v7899
        %v7935 = vpack.c.b16 %v7902, %v7901
        %v7936 = vpack.c.b16 %v7904, %v7903
        %v7937 = vpack.c.b16 %v7906, %v7905
        %v7938 = vpack.c.b16 %v7908, %v7907
        %v7939 = vpack.c.b16 %v7910, %v7909
        %v7940 = vpack.c.b16 %v7912, %v7911
        %v7941 = vpack.c.b16 %v7914, %v7913
        %v7942 = vpack.c.b16 %v7916, %v7915
        %v7943 = vpack.c.b16 %v7918, %v7917
        %v7944 = vpack.c.b16 %v7920, %v7919
        %v7945 = vpack.c.b16 %v7922, %v7921
        %v7946 = vpack.c.b16 %v7924, %v7923
        %v7970 = vsel %vm450, %v7834, 0
        %7972 = vmatprep.subr.bf16.mxu0 0
        %7973 = vmatpush1.bf16.msra.mxu0 %v7925
        %7974 = vmatprep.subr.bf16.mxu0 0
        %7975 = vmatpush1.bf16.msra.mxu0 %v7926
        %7976 = vmatprep.subr.bf16.mxu0 0
        %7977 = vmatpush1.bf16.msra.mxu0 %v7927
        %7978 = vmatprep.subr.bf16.mxu0 0
        %7979 = vmatpush1.bf16.msra.mxu0 %v7928
        %7980 = vmatprep.subr.bf16.mxu0 0
        %7981 = vmatpush1.bf16.msra.mxu0 %v7929
        %7982 = vmatprep.subr.bf16.mxu0 0
        %7983 = vmatpush1.bf16.msra.mxu0 %v7930
        %7984 = vmatprep.subr.bf16.mxu0 0
        %7985 = vmatpush1.bf16.msra.mxu0 %v7931
        %7986 = vmatprep.subr.bf16.mxu0 0
        %7987 = vmatpush1.bf16.msra.mxu0 %v7932
        %7988 = vmatprep.subr.bf16.mxu0 0
        %7989 = vmatpush1.bf16.msra.mxu0 %v7933
        %7990 = vmatprep.subr.bf16.mxu0 0
        %7991 = vmatpush1.bf16.msra.mxu0 %v7934
        %7992 = vmatprep.subr.bf16.mxu0 0
        %7993 = vmatpush1.bf16.msra.mxu0 %v7935
        %7994 = vmatprep.subr.bf16.mxu0 0
        %7995 = vmatpush1.bf16.msra.mxu0 %v7936
        %7996 = vmatprep.subr.bf16.mxu0 0
        %7997 = vmatpush1.bf16.msra.mxu0 %v7937
        %7998 = vmatprep.subr.bf16.mxu0 0
        %7999 = vmatpush1.bf16.msra.mxu0 %v7938
        %8000 = vmatprep.subr.bf16.mxu0 0
        %8001 = vmatpush1.bf16.msra.mxu0 %v7939
        %8002 = vmatprep.subr.bf16.mxu0 0
        %8003 = vmatpush1.bf16.msra.mxu0 %v7940
        %8004 = vmatprep.mubr.bf16.mxu0 %v7833
        %8005 = vmatmul.mubr.bf16.gmra.mrb[0].mxu0 %v7832
        %v8006 = vpop.f32.mrb[0].mxu0
        %v8007 = vadd.f32 0.0, %v8006
        %v8008 = vpop.f32.mrb[0].mxu0
        %v8009 = vpop.f32.mrb[0].mxu0
        %v8010 = vpop.f32.mrb[0].mxu0
        %8011 = vdwg.mxu0
        %8012 = vmatprep.subr.bf16.mxu0 0
        %8013 = vmatpush1.bf16.msra.mxu0 %v7941
        %8014 = vmatprep.subr.bf16.mxu0 0
        %8015 = vmatpush1.bf16.msra.mxu0 %v7942
        %8016 = vmatprep.subr.bf16.mxu0 0
        %8017 = vmatpush1.bf16.msra.mxu0 %v7943
        %8018 = vmatprep.subr.bf16.mxu0 0
        %8019 = vmatpush1.bf16.msra.mxu0 %v7944
        %8020 = vmatprep.subr.bf16.mxu0 0
        %8021 = vmatpush1.bf16.msra.mxu0 %v7945
        %8022 = vmatprep.subr.bf16.mxu0 0
        %8023 = vmatpush1.bf16.msra.mxu0 %v7946
        %8024 = vmatprep.subr.bf16.mxu0 0
        %8025 = vmatpush1.bf16.msra.mxu0 0
        %8026 = vmatprep.subr.bf16.mxu0 0
        %8027 = vmatpush1.bf16.msra.mxu0 0
        %8028 = vmatprep.subr.bf16.mxu0 0
        %8029 = vmatpush1.bf16.msra.mxu0 0
        %8030 = vmatprep.subr.bf16.mxu0 0
        %8031 = vmatpush1.bf16.msra.mxu0 0
        %8032 = vmatprep.subr.bf16.mxu0 0
        %8033 = vmatpush1.bf16.msra.mxu0 0
        %8034 = vmatprep.subr.bf16.mxu0 0
        %8035 = vmatpush1.bf16.msra.mxu0 0
        %8036 = vmatprep.subr.bf16.mxu0 0
        %8037 = vmatpush1.bf16.msra.mxu0 0
        %8038 = vmatprep.subr.bf16.mxu0 0
        %8039 = vmatpush1.bf16.msra.mxu0 0
        %8040 = vmatprep.subr.bf16.mxu0 0
        %8041 = vmatpush1.bf16.msra.mxu0 0
        %8042 = vmatprep.subr.bf16.mxu0 0
        %8043 = vmatpush1.bf16.msra.mxu0 0
        %8044 = vmatprep.mubr.bf16.mxu0 0
        %8045 = vmatmul.mubr.bf16.gmra.mrb[0].mxu0 %v7970
        %v8046 = vpop.f32.mrb[0].mxu0
        %v8047 = vadd.f32 %v8007, %v8046
        %v8048 = vpop.f32.mrb[0].mxu0
        %v8049 = vpop.f32.mrb[0].mxu0
        %v8050 = vpop.f32.mrb[0].mxu0
        %8051 = vdwg.mxu0
        %v8052 = vadd.f32 %v7786, %v8047
        %s8053 = scalar_lea.vmem %s7, 1232
        %v8054 = vld [vmem:[%s8053] sm:$0xf]
        %v8055 = vld [vmem:[%s8053 + $0x4] sm:$0xf]
        %v8056 = vld [vmem:[%s8053 + $0x8] sm:$0xf]
        %v8057 = vld [vmem:[%s8053 + $0xc] sm:$0xf]
        %v8058 = vld [vmem:[%s8053 + $0x10] sm:$0xf]
        %v8059 = vld [vmem:[%s8053 + $0x14] sm:$0xf]
        %v8060 = vld [vmem:[%s8053 + $0x18] sm:$0xf]
        %v8061 = vld [vmem:[%s8053 + $0x1c] sm:$0xf]
        %v8062 = vld [vmem:[%s8053 + $0x20] sm:$0xf]
        %v8063 = vld [vmem:[%s8053 + $0x24] sm:$0xf]
        %v8064 = vld [vmem:[%s8053 + $0x28] sm:$0xf]
        %v8065 = vld [vmem:[%s8053 + $0x2c] sm:$0xf]
        %v8066 = vld [vmem:[%s8053 + $0x30] sm:$0xf]
        %v8067 = vld [vmem:[%s8053 + $0x34] sm:$0xf]
        %v8068 = vld [vmem:[%s8053 + $0x38] sm:$0xf]
        %v8069 = vld [vmem:[%s8053 + $0x3c] sm:$0xf]
        %v8070 = vld [vmem:[%s8053 + $0x40] sm:$0xf]
        %v8071 = vld [vmem:[%s8053 + $0x44] sm:$0xf]
        %v8072 = vld [vmem:[%s8053 + $0x48] sm:$0xf]
        %v8073 = vld [vmem:[%s8053 + $0x4c] sm:$0xf]
        %v8074 = vld [vmem:[%s8053 + $0x50] sm:$0xf]
        %v8075 = vld [vmem:[%s8053 + $0x54] sm:$0xf]
        %v8076 = vld [vmem:[%s8053 + $0x58] sm:$0xf]
        %v8077 = vld [vmem:[%s8053 + $0x5c] sm:$0xf]
        %v8078 = vld [vmem:[%s8053 + $0x60] sm:$0xf]
        %v8079 = vld [vmem:[%s8053 + $0x64] sm:$0xf]
        %v8080 = vld [vmem:[%s8053 + $0x68] sm:$0xf]
        %v8081 = vld [vmem:[%s8053 + $0x6c] sm:$0xf]
        %v8082 = vld [vmem:[%s8053 + $0x70] sm:$0xf]
        %v8083 = vld [vmem:[%s8053 + $0x74] sm:$0xf]
        %v8084 = vld [vmem:[%s8053 + $0x78] sm:$0xf]
        %v8085 = vld [vmem:[%s8053 + $0x7c] sm:$0xf]
        %v8086 = vld [vmem:[%s8053 + $0x80] sm:$0xf]
        %v8087 = vld [vmem:[%s8053 + $0x84] sm:$0xf]
        %v8088 = vld [vmem:[%s8053 + $0x88] sm:$0xf]
        %v8089 = vld [vmem:[%s8053 + $0x8c] sm:$0xf]
        %v8090 = vld [vmem:[%s8053 + $0x90] sm:$0xf]
        %v8091 = vld [vmem:[%s8053 + $0x94] sm:$0xf]
        %v8092 = vld [vmem:[%s8053 + $0x98] sm:$0xf]
        %v8093 = vld [vmem:[%s8053 + $0x9c] sm:$0xf]
        %v8094 = vld [vmem:[%s8053 + $0xa0] sm:$0xf]
        %v8095 = vld [vmem:[%s8053 + $0xa4] sm:$0xf]
        %v8096 = vld [vmem:[%s8053 + $0xa8] sm:$0xf]
        %v8097 = vld [vmem:[%s8053 + $0xac] sm:$0xf]
        %v8098 = vrot.slane %v6495, 3
        %v8099 = vrot.slane %v6498, 3
        %v8100 = vrot.slane %v6500, 3
        %v8147 = vunpack.c.l.b16 %v8054
        %v8148 = vunpack.c.l.b16 %v8055
        %v8149 = vunpack.c.l.b16 %v8056
        %v8150 = vunpack.c.l.b16 %v8057
        %v8151 = vunpack.c.l.b16 %v8058
        %v8152 = vunpack.c.l.b16 %v8059
        %v8153 = vunpack.c.l.b16 %v8060
        %v8154 = vunpack.c.l.b16 %v8061
        %v8155 = vunpack.c.l.b16 %v8062
        %v8156 = vunpack.c.l.b16 %v8063
        %v8157 = vunpack.c.l.b16 %v8064
        %v8158 = vunpack.c.l.b16 %v8065
        %v8159 = vunpack.c.l.b16 %v8066
        %v8160 = vunpack.c.l.b16 %v8067
        %v8161 = vunpack.c.l.b16 %v8068
        %v8162 = vunpack.c.l.b16 %v8069
        %v8163 = vunpack.c.l.b16 %v8070
        %v8164 = vunpack.c.l.b16 %v8071
        %v8165 = vunpack.c.l.b16 %v8072
        %v8166 = vunpack.c.l.b16 %v8073
        %v8167 = vunpack.c.l.b16 %v8074
        %v8168 = vunpack.c.l.b16 %v8075
        %v8169 = vunpack.c.l.b16 %v8076
        %v8170 = vunpack.c.l.b16 %v8077
        %v8171 = vunpack.c.l.b16 %v8078
        %v8172 = vunpack.c.l.b16 %v8079
        %v8173 = vunpack.c.l.b16 %v8080
        %v8174 = vunpack.c.l.b16 %v8081
        %v8175 = vunpack.c.l.b16 %v8082
        %v8176 = vunpack.c.l.b16 %v8083
        %v8177 = vunpack.c.l.b16 %v8084
        %v8178 = vunpack.c.l.b16 %v8085
        %v8179 = vunpack.c.l.b16 %v8086
        %v8180 = vunpack.c.l.b16 %v8087
        %v8181 = vunpack.c.l.b16 %v8088
        %v8182 = vunpack.c.l.b16 %v8089
        %v8183 = vunpack.c.l.b16 %v8090
        %v8184 = vunpack.c.l.b16 %v8091
        %v8185 = vunpack.c.l.b16 %v8092
        %v8186 = vunpack.c.l.b16 %v8093
        %v8187 = vunpack.c.l.b16 %v8094
        %v8188 = vunpack.c.l.b16 %v8095
        %v8189 = vunpack.c.l.b16 %v8096
        %v8190 = vunpack.c.l.b16 %v8097
        %v8191 = vpack.c.b16 %v8148, %v8147
        %v8192 = vpack.c.b16 %v8150, %v8149
        %v8193 = vpack.c.b16 %v8152, %v8151
        %v8194 = vpack.c.b16 %v8154, %v8153
        %v8195 = vpack.c.b16 %v8156, %v8155
        %v8196 = vpack.c.b16 %v8158, %v8157
        %v8197 = vpack.c.b16 %v8160, %v8159
        %v8198 = vpack.c.b16 %v8162, %v8161
        %v8199 = vpack.c.b16 %v8164, %v8163
        %v8200 = vpack.c.b16 %v8166, %v8165
        %v8201 = vpack.c.b16 %v8168, %v8167
        %v8202 = vpack.c.b16 %v8170, %v8169
        %v8203 = vpack.c.b16 %v8172, %v8171
        %v8204 = vpack.c.b16 %v8174, %v8173
        %v8205 = vpack.c.b16 %v8176, %v8175
        %v8206 = vpack.c.b16 %v8178, %v8177
        %v8207 = vpack.c.b16 %v8180, %v8179
        %v8208 = vpack.c.b16 %v8182, %v8181
        %v8209 = vpack.c.b16 %v8184, %v8183
        %v8210 = vpack.c.b16 %v8186, %v8185
        %v8211 = vpack.c.b16 %v8188, %v8187
        %v8212 = vpack.c.b16 %v8190, %v8189
        %v8236 = vsel %vm450, %v8100, 0
        %8238 = vmatprep.subr.bf16.mxu0 0
        %8239 = vmatpush1.bf16.msra.mxu0 %v8191
        %8240 = vmatprep.subr.bf16.mxu0 0
        %8241 = vmatpush1.bf16.msra.mxu0 %v8192
        %8242 = vmatprep.subr.bf16.mxu0 0
        %8243 = vmatpush1.bf16.msra.mxu0 %v8193
        %8244 = vmatprep.subr.bf16.mxu0 0
        %8245 = vmatpush1.bf16.msra.mxu0 %v8194
        %8246 = vmatprep.subr.bf16.mxu0 0
        %8247 = vmatpush1.bf16.msra.mxu0 %v8195
        %8248 = vmatprep.subr.bf16.mxu0 0
        %8249 = vmatpush1.bf16.msra.mxu0 %v8196
        %8250 = vmatprep.subr.bf16.mxu0 0
        %8251 = vmatpush1.bf16.msra.mxu0 %v8197
        %8252 = vmatprep.subr.bf16.mxu0 0
        %8253 = vmatpush1.bf16.msra.mxu0 %v8198
        %8254 = vmatprep.subr.bf16.mxu0 0
        %8255 = vmatpush1.bf16.msra.mxu0 %v8199
        %8256 = vmatprep.subr.bf16.mxu0 0
        %8257 = vmatpush1.bf16.msra.mxu0 %v8200
        %8258 = vmatprep.subr.bf16.mxu0 0
        %8259 = vmatpush1.bf16.msra.mxu0 %v8201
        %8260 = vmatprep.subr.bf16.mxu0 0
        %8261 = vmatpush1.bf16.msra.mxu0 %v8202
        %8262 = vmatprep.subr.bf16.mxu0 0
        %8263 = vmatpush1.bf16.msra.mxu0 %v8203
        %8264 = vmatprep.subr.bf16.mxu0 0
        %8265 = vmatpush1.bf16.msra.mxu0 %v8204
        %8266 = vmatprep.subr.bf16.mxu0 0
        %8267 = vmatpush1.bf16.msra.mxu0 %v8205
        %8268 = vmatprep.subr.bf16.mxu0 0
        %8269 = vmatpush1.bf16.msra.mxu0 %v8206
        %8270 = vmatprep.mubr.bf16.mxu0 %v8099
        %8271 = vmatmul.mubr.bf16.gmra.mrb[0].mxu0 %v8098
        %v8272 = vpop.f32.mrb[0].mxu0
        %v8273 = vadd.f32 0.0, %v8272
        %v8274 = vpop.f32.mrb[0].mxu0
        %v8275 = vpop.f32.mrb[0].mxu0
        %v8276 = vpop.f32.mrb[0].mxu0
        %8277 = vdwg.mxu0
        %8278 = vmatprep.subr.bf16.mxu0 0
        %8279 = vmatpush1.bf16.msra.mxu0 %v8207
        %8280 = vmatprep.subr.bf16.mxu0 0
        %8281 = vmatpush1.bf16.msra.mxu0 %v8208
        %8282 = vmatprep.subr.bf16.mxu0 0
        %8283 = vmatpush1.bf16.msra.mxu0 %v8209
        %8284 = vmatprep.subr.bf16.mxu0 0
        %8285 = vmatpush1.bf16.msra.mxu0 %v8210
        %8286 = vmatprep.subr.bf16.mxu0 0
        %8287 = vmatpush1.bf16.msra.mxu0 %v8211
        %8288 = vmatprep.subr.bf16.mxu0 0
        %8289 = vmatpush1.bf16.msra.mxu0 %v8212
        %8290 = vmatprep.subr.bf16.mxu0 0
        %8291 = vmatpush1.bf16.msra.mxu0 0
        %8292 = vmatprep.subr.bf16.mxu0 0
        %8293 = vmatpush1.bf16.msra.mxu0 0
        %8294 = vmatprep.subr.bf16.mxu0 0
        %8295 = vmatpush1.bf16.msra.mxu0 0
        %8296 = vmatprep.subr.bf16.mxu0 0
        %8297 = vmatpush1.bf16.msra.mxu0 0
        %8298 = vmatprep.subr.bf16.mxu0 0
        %8299 = vmatpush1.bf16.msra.mxu0 0
        %8300 = vmatprep.subr.bf16.mxu0 0
        %8301 = vmatpush1.bf16.msra.mxu0 0
        %8302 = vmatprep.subr.bf16.mxu0 0
        %8303 = vmatpush1.bf16.msra.mxu0 0
        %8304 = vmatprep.subr.bf16.mxu0 0
        %8305 = vmatpush1.bf16.msra.mxu0 0
        %8306 = vmatprep.subr.bf16.mxu0 0
        %8307 = vmatpush1.bf16.msra.mxu0 0
        %8308 = vmatprep.subr.bf16.mxu0 0
        %8309 = vmatpush1.bf16.msra.mxu0 0
        %8310 = vmatprep.mubr.bf16.mxu0 0
        %8311 = vmatmul.mubr.bf16.gmra.mrb[0].mxu0 %v8236
        %v8312 = vpop.f32.mrb[0].mxu0
        %v8313 = vadd.f32 %v8273, %v8312
        %v8314 = vpop.f32.mrb[0].mxu0
        %v8315 = vpop.f32.mrb[0].mxu0
        %v8316 = vpop.f32.mrb[0].mxu0
        %8317 = vdwg.mxu0
        %v8318 = vadd.f32 %v8052, %v8313
        %s8319 = scalar_lea.vmem %s7, 1408
        %v8320 = vld [vmem:[%s8319] sm:$0xf]
        %v8321 = vld [vmem:[%s8319 + $0x4] sm:$0xf]
        %v8322 = vld [vmem:[%s8319 + $0x8] sm:$0xf]
        %v8323 = vld [vmem:[%s8319 + $0xc] sm:$0xf]
        %v8324 = vld [vmem:[%s8319 + $0x10] sm:$0xf]
        %v8325 = vld [vmem:[%s8319 + $0x14] sm:$0xf]
        %v8326 = vld [vmem:[%s8319 + $0x18] sm:$0xf]
        %v8327 = vld [vmem:[%s8319 + $0x1c] sm:$0xf]
        %v8328 = vld [vmem:[%s8319 + $0x20] sm:$0xf]
        %v8329 = vld [vmem:[%s8319 + $0x24] sm:$0xf]
        %v8330 = vld [vmem:[%s8319 + $0x28] sm:$0xf]
        %v8331 = vld [vmem:[%s8319 + $0x2c] sm:$0xf]
        %v8332 = vld [vmem:[%s8319 + $0x30] sm:$0xf]
        %v8333 = vld [vmem:[%s8319 + $0x34] sm:$0xf]
        %v8334 = vld [vmem:[%s8319 + $0x38] sm:$0xf]
        %v8335 = vld [vmem:[%s8319 + $0x3c] sm:$0xf]
        %v8336 = vld [vmem:[%s8319 + $0x40] sm:$0xf]
        %v8337 = vld [vmem:[%s8319 + $0x44] sm:$0xf]
        %v8338 = vld [vmem:[%s8319 + $0x48] sm:$0xf]
        %v8339 = vld [vmem:[%s8319 + $0x4c] sm:$0xf]
        %v8340 = vld [vmem:[%s8319 + $0x50] sm:$0xf]
        %v8341 = vld [vmem:[%s8319 + $0x54] sm:$0xf]
        %v8342 = vld [vmem:[%s8319 + $0x58] sm:$0xf]
        %v8343 = vld [vmem:[%s8319 + $0x5c] sm:$0xf]
        %v8344 = vld [vmem:[%s8319 + $0x60] sm:$0xf]
        %v8345 = vld [vmem:[%s8319 + $0x64] sm:$0xf]
        %v8346 = vld [vmem:[%s8319 + $0x68] sm:$0xf]
        %v8347 = vld [vmem:[%s8319 + $0x6c] sm:$0xf]
        %v8348 = vld [vmem:[%s8319 + $0x70] sm:$0xf]
        %v8349 = vld [vmem:[%s8319 + $0x74] sm:$0xf]
        %v8350 = vld [vmem:[%s8319 + $0x78] sm:$0xf]
        %v8351 = vld [vmem:[%s8319 + $0x7c] sm:$0xf]
        %v8352 = vld [vmem:[%s8319 + $0x80] sm:$0xf]
        %v8353 = vld [vmem:[%s8319 + $0x84] sm:$0xf]
        %v8354 = vld [vmem:[%s8319 + $0x88] sm:$0xf]
        %v8355 = vld [vmem:[%s8319 + $0x8c] sm:$0xf]
        %v8356 = vld [vmem:[%s8319 + $0x90] sm:$0xf]
        %v8357 = vld [vmem:[%s8319 + $0x94] sm:$0xf]
        %v8358 = vld [vmem:[%s8319 + $0x98] sm:$0xf]
        %v8359 = vld [vmem:[%s8319 + $0x9c] sm:$0xf]
        %v8360 = vld [vmem:[%s8319 + $0xa0] sm:$0xf]
        %v8361 = vld [vmem:[%s8319 + $0xa4] sm:$0xf]
        %v8362 = vld [vmem:[%s8319 + $0xa8] sm:$0xf]
        %v8363 = vld [vmem:[%s8319 + $0xac] sm:$0xf]
        %v8364 = vrot.slane %v6185, 4
        %v8365 = vrot.slane %v6186, 4
        %v8366 = vrot.slane %v6187, 4
        %v8413 = vunpack.c.l.b16 %v8320
        %v8414 = vunpack.c.l.b16 %v8321
        %v8415 = vunpack.c.l.b16 %v8322
        %v8416 = vunpack.c.l.b16 %v8323
        %v8417 = vunpack.c.l.b16 %v8324
        %v8418 = vunpack.c.l.b16 %v8325
        %v8419 = vunpack.c.l.b16 %v8326
        %v8420 = vunpack.c.l.b16 %v8327
        %v8421 = vunpack.c.l.b16 %v8328
        %v8422 = vunpack.c.l.b16 %v8329
        %v8423 = vunpack.c.l.b16 %v8330
        %v8424 = vunpack.c.l.b16 %v8331
        %v8425 = vunpack.c.l.b16 %v8332
        %v8426 = vunpack.c.l.b16 %v8333
        %v8427 = vunpack.c.l.b16 %v8334
        %v8428 = vunpack.c.l.b16 %v8335
        %v8429 = vunpack.c.l.b16 %v8336
        %v8430 = vunpack.c.l.b16 %v8337
        %v8431 = vunpack.c.l.b16 %v8338
        %v8432 = vunpack.c.l.b16 %v8339
        %v8433 = vunpack.c.l.b16 %v8340
        %v8434 = vunpack.c.l.b16 %v8341
        %v8435 = vunpack.c.l.b16 %v8342
        %v8436 = vunpack.c.l.b16 %v8343
        %v8437 = vunpack.c.l.b16 %v8344
        %v8438 = vunpack.c.l.b16 %v8345
        %v8439 = vunpack.c.l.b16 %v8346
        %v8440 = vunpack.c.l.b16 %v8347
        %v8441 = vunpack.c.l.b16 %v8348
        %v8442 = vunpack.c.l.b16 %v8349
        %v8443 = vunpack.c.l.b16 %v8350
        %v8444 = vunpack.c.l.b16 %v8351
        %v8445 = vunpack.c.l.b16 %v8352
        %v8446 = vunpack.c.l.b16 %v8353
        %v8447 = vunpack.c.l.b16 %v8354
        %v8448 = vunpack.c.l.b16 %v8355
        %v8449 = vunpack.c.l.b16 %v8356
        %v8450 = vunpack.c.l.b16 %v8357
        %v8451 = vunpack.c.l.b16 %v8358
        %v8452 = vunpack.c.l.b16 %v8359
        %v8453 = vunpack.c.l.b16 %v8360
        %v8454 = vunpack.c.l.b16 %v8361
        %v8455 = vunpack.c.l.b16 %v8362
        %v8456 = vunpack.c.l.b16 %v8363
        %v8457 = vpack.c.b16 %v8414, %v8413
        %v8458 = vpack.c.b16 %v8416, %v8415
        %v8459 = vpack.c.b16 %v8418, %v8417
        %v8460 = vpack.c.b16 %v8420, %v8419
        %v8461 = vpack.c.b16 %v8422, %v8421
        %v8462 = vpack.c.b16 %v8424, %v8423
        %v8463 = vpack.c.b16 %v8426, %v8425
        %v8464 = vpack.c.b16 %v8428, %v8427
        %v8465 = vpack.c.b16 %v8430, %v8429
        %v8466 = vpack.c.b16 %v8432, %v8431
        %v8467 = vpack.c.b16 %v8434, %v8433
        %v8468 = vpack.c.b16 %v8436, %v8435
        %v8469 = vpack.c.b16 %v8438, %v8437
        %v8470 = vpack.c.b16 %v8440, %v8439
        %v8471 = vpack.c.b16 %v8442, %v8441
        %v8472 = vpack.c.b16 %v8444, %v8443
        %v8473 = vpack.c.b16 %v8446, %v8445
        %v8474 = vpack.c.b16 %v8448, %v8447
        %v8475 = vpack.c.b16 %v8450, %v8449
        %v8476 = vpack.c.b16 %v8452, %v8451
        %v8477 = vpack.c.b16 %v8454, %v8453
        %v8478 = vpack.c.b16 %v8456, %v8455
        %v8502 = vsel %vm450, %v8366, 0
        %8504 = vmatprep.subr.bf16.mxu0 0
        %8505 = vmatpush1.bf16.msra.mxu0 %v8457
        %8506 = vmatprep.subr.bf16.mxu0 0
        %8507 = vmatpush1.bf16.msra.mxu0 %v8458
        %8508 = vmatprep.subr.bf16.mxu0 0
        %8509 = vmatpush1.bf16.msra.mxu0 %v8459
        %8510 = vmatprep.subr.bf16.mxu0 0
        %8511 = vmatpush1.bf16.msra.mxu0 %v8460
        %8512 = vmatprep.subr.bf16.mxu0 0
        %8513 = vmatpush1.bf16.msra.mxu0 %v8461
        %8514 = vmatprep.subr.bf16.mxu0 0
        %8515 = vmatpush1.bf16.msra.mxu0 %v8462
        %8516 = vmatprep.subr.bf16.mxu0 0
        %8517 = vmatpush1.bf16.msra.mxu0 %v8463
        %8518 = vmatprep.subr.bf16.mxu0 0
        %8519 = vmatpush1.bf16.msra.mxu0 %v8464
        %8520 = vmatprep.subr.bf16.mxu0 0
        %8521 = vmatpush1.bf16.msra.mxu0 %v8465
        %8522 = vmatprep.subr.bf16.mxu0 0
        %8523 = vmatpush1.bf16.msra.mxu0 %v8466
        %8524 = vmatprep.subr.bf16.mxu0 0
        %8525 = vmatpush1.bf16.msra.mxu0 %v8467
        %8526 = vmatprep.subr.bf16.mxu0 0
        %8527 = vmatpush1.bf16.msra.mxu0 %v8468
        %8528 = vmatprep.subr.bf16.mxu0 0
        %8529 = vmatpush1.bf16.msra.mxu0 %v8469
        %8530 = vmatprep.subr.bf16.mxu0 0
        %8531 = vmatpush1.bf16.msra.mxu0 %v8470
        %8532 = vmatprep.subr.bf16.mxu0 0
        %8533 = vmatpush1.bf16.msra.mxu0 %v8471
        %8534 = vmatprep.subr.bf16.mxu0 0
        %8535 = vmatpush1.bf16.msra.mxu0 %v8472
        %8536 = vmatprep.mubr.bf16.mxu0 %v8365
        %8537 = vmatmul.mubr.bf16.gmra.mrb[0].mxu0 %v8364
        %v8538 = vpop.f32.mrb[0].mxu0
        %v8539 = vadd.f32 0.0, %v8538
        %v8540 = vpop.f32.mrb[0].mxu0
        %v8541 = vpop.f32.mrb[0].mxu0
        %v8542 = vpop.f32.mrb[0].mxu0
        %8543 = vdwg.mxu0
        %8544 = vmatprep.subr.bf16.mxu0 0
        %8545 = vmatpush1.bf16.msra.mxu0 %v8473
        %8546 = vmatprep.subr.bf16.mxu0 0
        %8547 = vmatpush1.bf16.msra.mxu0 %v8474
        %8548 = vmatprep.subr.bf16.mxu0 0
        %8549 = vmatpush1.bf16.msra.mxu0 %v8475
        %8550 = vmatprep.subr.bf16.mxu0 0
        %8551 = vmatpush1.bf16.msra.mxu0 %v8476
        %8552 = vmatprep.subr.bf16.mxu0 0
        %8553 = vmatpush1.bf16.msra.mxu0 %v8477
        %8554 = vmatprep.subr.bf16.mxu0 0
        %8555 = vmatpush1.bf16.msra.mxu0 %v8478
        %8556 = vmatprep.subr.bf16.mxu0 0
        %8557 = vmatpush1.bf16.msra.mxu0 0
        %8558 = vmatprep.subr.bf16.mxu0 0
        %8559 = vmatpush1.bf16.msra.mxu0 0
        %8560 = vmatprep.subr.bf16.mxu0 0
        %8561 = vmatpush1.bf16.msra.mxu0 0
        %8562 = vmatprep.subr.bf16.mxu0 0
        %8563 = vmatpush1.bf16.msra.mxu0 0
        %8564 = vmatprep.subr.bf16.mxu0 0
        %8565 = vmatpush1.bf16.msra.mxu0 0
        %8566 = vmatprep.subr.bf16.mxu0 0
        %8567 = vmatpush1.bf16.msra.mxu0 0
        %8568 = vmatprep.subr.bf16.mxu0 0
        %8569 = vmatpush1.bf16.msra.mxu0 0
        %8570 = vmatprep.subr.bf16.mxu0 0
        %8571 = vmatpush1.bf16.msra.mxu0 0
        %8572 = vmatprep.subr.bf16.mxu0 0
        %8573 = vmatpush1.bf16.msra.mxu0 0
        %8574 = vmatprep.subr.bf16.mxu0 0
        %8575 = vmatpush1.bf16.msra.mxu0 0
        %8576 = vmatprep.mubr.bf16.mxu0 0
        %8577 = vmatmul.mubr.bf16.gmra.mrb[0].mxu0 %v8502
        %v8578 = vpop.f32.mrb[0].mxu0
        %v8579 = vadd.f32 %v8539, %v8578
        %v8580 = vpop.f32.mrb[0].mxu0
        %v8581 = vpop.f32.mrb[0].mxu0
        %v8582 = vpop.f32.mrb[0].mxu0
        %8583 = vdwg.mxu0
        %v8584 = vadd.f32 %v8318, %v8579
        %s8585 = scalar_lea.vmem %s7, 1584
        %v8586 = vld [vmem:[%s8585] sm:$0xf]
        %v8587 = vld [vmem:[%s8585 + $0x4] sm:$0xf]
        %v8588 = vld [vmem:[%s8585 + $0x8] sm:$0xf]
        %v8589 = vld [vmem:[%s8585 + $0xc] sm:$0xf]
        %v8590 = vld [vmem:[%s8585 + $0x10] sm:$0xf]
        %v8591 = vld [vmem:[%s8585 + $0x14] sm:$0xf]
        %v8592 = vld [vmem:[%s8585 + $0x18] sm:$0xf]
        %v8593 = vld [vmem:[%s8585 + $0x1c] sm:$0xf]
        %v8594 = vld [vmem:[%s8585 + $0x20] sm:$0xf]
        %v8595 = vld [vmem:[%s8585 + $0x24] sm:$0xf]
        %v8596 = vld [vmem:[%s8585 + $0x28] sm:$0xf]
        %v8597 = vld [vmem:[%s8585 + $0x2c] sm:$0xf]
        %v8598 = vld [vmem:[%s8585 + $0x30] sm:$0xf]
        %v8599 = vld [vmem:[%s8585 + $0x34] sm:$0xf]
        %v8600 = vld [vmem:[%s8585 + $0x38] sm:$0xf]
        %v8601 = vld [vmem:[%s8585 + $0x3c] sm:$0xf]
        %v8602 = vld [vmem:[%s8585 + $0x40] sm:$0xf]
        %v8603 = vld [vmem:[%s8585 + $0x44] sm:$0xf]
        %v8604 = vld [vmem:[%s8585 + $0x48] sm:$0xf]
        %v8605 = vld [vmem:[%s8585 + $0x4c] sm:$0xf]
        %v8606 = vld [vmem:[%s8585 + $0x50] sm:$0xf]
        %v8607 = vld [vmem:[%s8585 + $0x54] sm:$0xf]
        %v8608 = vld [vmem:[%s8585 + $0x58] sm:$0xf]
        %v8609 = vld [vmem:[%s8585 + $0x5c] sm:$0xf]
        %v8610 = vld [vmem:[%s8585 + $0x60] sm:$0xf]
        %v8611 = vld [vmem:[%s8585 + $0x64] sm:$0xf]
        %v8612 = vld [vmem:[%s8585 + $0x68] sm:$0xf]
        %v8613 = vld [vmem:[%s8585 + $0x6c] sm:$0xf]
        %v8614 = vld [vmem:[%s8585 + $0x70] sm:$0xf]
        %v8615 = vld [vmem:[%s8585 + $0x74] sm:$0xf]
        %v8616 = vld [vmem:[%s8585 + $0x78] sm:$0xf]
        %v8617 = vld [vmem:[%s8585 + $0x7c] sm:$0xf]
        %v8618 = vld [vmem:[%s8585 + $0x80] sm:$0xf]
        %v8619 = vld [vmem:[%s8585 + $0x84] sm:$0xf]
        %v8620 = vld [vmem:[%s8585 + $0x88] sm:$0xf]
        %v8621 = vld [vmem:[%s8585 + $0x8c] sm:$0xf]
        %v8622 = vld [vmem:[%s8585 + $0x90] sm:$0xf]
        %v8623 = vld [vmem:[%s8585 + $0x94] sm:$0xf]
        %v8624 = vld [vmem:[%s8585 + $0x98] sm:$0xf]
        %v8625 = vld [vmem:[%s8585 + $0x9c] sm:$0xf]
        %v8626 = vld [vmem:[%s8585 + $0xa0] sm:$0xf]
        %v8627 = vld [vmem:[%s8585 + $0xa4] sm:$0xf]
        %v8628 = vld [vmem:[%s8585 + $0xa8] sm:$0xf]
        %v8629 = vld [vmem:[%s8585 + $0xac] sm:$0xf]
        %v8630 = vrot.slane %v6495, 4
        %v8631 = vrot.slane %v6498, 4
        %v8632 = vrot.slane %v6500, 4
        %v8679 = vunpack.c.l.b16 %v8586
        %v8680 = vunpack.c.l.b16 %v8587
        %v8681 = vunpack.c.l.b16 %v8588
        %v8682 = vunpack.c.l.b16 %v8589
        %v8683 = vunpack.c.l.b16 %v8590
        %v8684 = vunpack.c.l.b16 %v8591
        %v8685 = vunpack.c.l.b16 %v8592
        %v8686 = vunpack.c.l.b16 %v8593
        %v8687 = vunpack.c.l.b16 %v8594
        %v8688 = vunpack.c.l.b16 %v8595
        %v8689 = vunpack.c.l.b16 %v8596
        %v8690 = vunpack.c.l.b16 %v8597
        %v8691 = vunpack.c.l.b16 %v8598
        %v8692 = vunpack.c.l.b16 %v8599
        %v8693 = vunpack.c.l.b16 %v8600
        %v8694 = vunpack.c.l.b16 %v8601
        %v8695 = vunpack.c.l.b16 %v8602
        %v8696 = vunpack.c.l.b16 %v8603
        %v8697 = vunpack.c.l.b16 %v8604
        %v8698 = vunpack.c.l.b16 %v8605
        %v8699 = vunpack.c.l.b16 %v8606
        %v8700 = vunpack.c.l.b16 %v8607
        %v8701 = vunpack.c.l.b16 %v8608
        %v8702 = vunpack.c.l.b16 %v8609
        %v8703 = vunpack.c.l.b16 %v8610
        %v8704 = vunpack.c.l.b16 %v8611
        %v8705 = vunpack.c.l.b16 %v8612
        %v8706 = vunpack.c.l.b16 %v8613
        %v8707 = vunpack.c.l.b16 %v8614
        %v8708 = vunpack.c.l.b16 %v8615
        %v8709 = vunpack.c.l.b16 %v8616
        %v8710 = vunpack.c.l.b16 %v8617
        %v8711 = vunpack.c.l.b16 %v8618
        %v8712 = vunpack.c.l.b16 %v8619
        %v8713 = vunpack.c.l.b16 %v8620
        %v8714 = vunpack.c.l.b16 %v8621
        %v8715 = vunpack.c.l.b16 %v8622
        %v8716 = vunpack.c.l.b16 %v8623
        %v8717 = vunpack.c.l.b16 %v8624
        %v8718 = vunpack.c.l.b16 %v8625
        %v8719 = vunpack.c.l.b16 %v8626
        %v8720 = vunpack.c.l.b16 %v8627
        %v8721 = vunpack.c.l.b16 %v8628
        %v8722 = vunpack.c.l.b16 %v8629
        %v8723 = vpack.c.b16 %v8680, %v8679
        %v8724 = vpack.c.b16 %v8682, %v8681
        %v8725 = vpack.c.b16 %v8684, %v8683
        %v8726 = vpack.c.b16 %v8686, %v8685
        %v8727 = vpack.c.b16 %v8688, %v8687
        %v8728 = vpack.c.b16 %v8690, %v8689
        %v8729 = vpack.c.b16 %v8692, %v8691
        %v8730 = vpack.c.b16 %v8694, %v8693
        %v8731 = vpack.c.b16 %v8696, %v8695
        %v8732 = vpack.c.b16 %v8698, %v8697
        %v8733 = vpack.c.b16 %v8700, %v8699
        %v8734 = vpack.c.b16 %v8702, %v8701
        %v8735 = vpack.c.b16 %v8704, %v8703
        %v8736 = vpack.c.b16 %v8706, %v8705
        %v8737 = vpack.c.b16 %v8708, %v8707
        %v8738 = vpack.c.b16 %v8710, %v8709
        %v8739 = vpack.c.b16 %v8712, %v8711
        %v8740 = vpack.c.b16 %v8714, %v8713
        %v8741 = vpack.c.b16 %v8716, %v8715
        %v8742 = vpack.c.b16 %v8718, %v8717
        %v8743 = vpack.c.b16 %v8720, %v8719
        %v8744 = vpack.c.b16 %v8722, %v8721
        %v8768 = vsel %vm450, %v8632, 0
        %8770 = vmatprep.subr.bf16.mxu0 0
        %8771 = vmatpush1.bf16.msra.mxu0 %v8723
        %8772 = vmatprep.subr.bf16.mxu0 0
        %8773 = vmatpush1.bf16.msra.mxu0 %v8724
        %8774 = vmatprep.subr.bf16.mxu0 0
        %8775 = vmatpush1.bf16.msra.mxu0 %v8725
        %8776 = vmatprep.subr.bf16.mxu0 0
        %8777 = vmatpush1.bf16.msra.mxu0 %v8726
        %8778 = vmatprep.subr.bf16.mxu0 0
        %8779 = vmatpush1.bf16.msra.mxu0 %v8727
        %8780 = vmatprep.subr.bf16.mxu0 0
        %8781 = vmatpush1.bf16.msra.mxu0 %v8728
        %8782 = vmatprep.subr.bf16.mxu0 0
        %8783 = vmatpush1.bf16.msra.mxu0 %v8729
        %8784 = vmatprep.subr.bf16.mxu0 0
        %8785 = vmatpush1.bf16.msra.mxu0 %v8730
        %8786 = vmatprep.subr.bf16.mxu0 0
        %8787 = vmatpush1.bf16.msra.mxu0 %v8731
        %8788 = vmatprep.subr.bf16.mxu0 0
        %8789 = vmatpush1.bf16.msra.mxu0 %v8732
        %8790 = vmatprep.subr.bf16.mxu0 0
        %8791 = vmatpush1.bf16.msra.mxu0 %v8733
        %8792 = vmatprep.subr.bf16.mxu0 0
        %8793 = vmatpush1.bf16.msra.mxu0 %v8734
        %8794 = vmatprep.subr.bf16.mxu0 0
        %8795 = vmatpush1.bf16.msra.mxu0 %v8735
        %8796 = vmatprep.subr.bf16.mxu0 0
        %8797 = vmatpush1.bf16.msra.mxu0 %v8736
        %8798 = vmatprep.subr.bf16.mxu0 0
        %8799 = vmatpush1.bf16.msra.mxu0 %v8737
        %8800 = vmatprep.subr.bf16.mxu0 0
        %8801 = vmatpush1.bf16.msra.mxu0 %v8738
        %8802 = vmatprep.mubr.bf16.mxu0 %v8631
        %8803 = vmatmul.mubr.bf16.gmra.mrb[0].mxu0 %v8630
        %v8804 = vpop.f32.mrb[0].mxu0
        %v8805 = vadd.f32 0.0, %v8804
        %v8806 = vpop.f32.mrb[0].mxu0
        %v8807 = vpop.f32.mrb[0].mxu0
        %v8808 = vpop.f32.mrb[0].mxu0
        %8809 = vdwg.mxu0
        %8810 = vmatprep.subr.bf16.mxu0 0
        %8811 = vmatpush1.bf16.msra.mxu0 %v8739
        %8812 = vmatprep.subr.bf16.mxu0 0
        %8813 = vmatpush1.bf16.msra.mxu0 %v8740
        %8814 = vmatprep.subr.bf16.mxu0 0
        %8815 = vmatpush1.bf16.msra.mxu0 %v8741
        %8816 = vmatprep.subr.bf16.mxu0 0
        %8817 = vmatpush1.bf16.msra.mxu0 %v8742
        %8818 = vmatprep.subr.bf16.mxu0 0
        %8819 = vmatpush1.bf16.msra.mxu0 %v8743
        %8820 = vmatprep.subr.bf16.mxu0 0
        %8821 = vmatpush1.bf16.msra.mxu0 %v8744
        %8822 = vmatprep.subr.bf16.mxu0 0
        %8823 = vmatpush1.bf16.msra.mxu0 0
        %8824 = vmatprep.subr.bf16.mxu0 0
        %8825 = vmatpush1.bf16.msra.mxu0 0
        %8826 = vmatprep.subr.bf16.mxu0 0
        %8827 = vmatpush1.bf16.msra.mxu0 0
        %8828 = vmatprep.subr.bf16.mxu0 0
        %8829 = vmatpush1.bf16.msra.mxu0 0
        %8830 = vmatprep.subr.bf16.mxu0 0
        %8831 = vmatpush1.bf16.msra.mxu0 0
        %8832 = vmatprep.subr.bf16.mxu0 0
        %8833 = vmatpush1.bf16.msra.mxu0 0
        %8834 = vmatprep.subr.bf16.mxu0 0
        %8835 = vmatpush1.bf16.msra.mxu0 0
        %8836 = vmatprep.subr.bf16.mxu0 0
        %8837 = vmatpush1.bf16.msra.mxu0 0
        %8838 = vmatprep.subr.bf16.mxu0 0
        %8839 = vmatpush1.bf16.msra.mxu0 0
        %8840 = vmatprep.subr.bf16.mxu0 0
        %8841 = vmatpush1.bf16.msra.mxu0 0
        %8842 = vmatprep.mubr.bf16.mxu0 0
        %8843 = vmatmul.mubr.bf16.gmra.mrb[0].mxu0 %v8768
        %v8844 = vpop.f32.mrb[0].mxu0
        %v8845 = vadd.f32 %v8805, %v8844
        %v8846 = vpop.f32.mrb[0].mxu0
        %v8847 = vpop.f32.mrb[0].mxu0
        %v8848 = vpop.f32.mrb[0].mxu0
        %8849 = vdwg.mxu0
        %v8850 = vadd.f32 %v8584, %v8845
        %s8851 = scalar_lea.vmem %s7, 1760
        %v8852 = vld [vmem:[%s8851] sm:$0xf]
        %v8853 = vld [vmem:[%s8851 + $0x4] sm:$0xf]
        %v8854 = vld [vmem:[%s8851 + $0x8] sm:$0xf]
        %v8855 = vld [vmem:[%s8851 + $0xc] sm:$0xf]
        %v8856 = vld [vmem:[%s8851 + $0x10] sm:$0xf]
        %v8857 = vld [vmem:[%s8851 + $0x14] sm:$0xf]
        %v8858 = vld [vmem:[%s8851 + $0x18] sm:$0xf]
        %v8859 = vld [vmem:[%s8851 + $0x1c] sm:$0xf]
        %v8860 = vld [vmem:[%s8851 + $0x20] sm:$0xf]
        %v8861 = vld [vmem:[%s8851 + $0x24] sm:$0xf]
        %v8862 = vld [vmem:[%s8851 + $0x28] sm:$0xf]
        %v8863 = vld [vmem:[%s8851 + $0x2c] sm:$0xf]
        %v8864 = vld [vmem:[%s8851 + $0x30] sm:$0xf]
        %v8865 = vld [vmem:[%s8851 + $0x34] sm:$0xf]
        %v8866 = vld [vmem:[%s8851 + $0x38] sm:$0xf]
        %v8867 = vld [vmem:[%s8851 + $0x3c] sm:$0xf]
        %v8868 = vld [vmem:[%s8851 + $0x40] sm:$0xf]
        %v8869 = vld [vmem:[%s8851 + $0x44] sm:$0xf]
        %v8870 = vld [vmem:[%s8851 + $0x48] sm:$0xf]
        %v8871 = vld [vmem:[%s8851 + $0x4c] sm:$0xf]
        %v8872 = vld [vmem:[%s8851 + $0x50] sm:$0xf]
        %v8873 = vld [vmem:[%s8851 + $0x54] sm:$0xf]
        %v8874 = vld [vmem:[%s8851 + $0x58] sm:$0xf]
        %v8875 = vld [vmem:[%s8851 + $0x5c] sm:$0xf]
        %v8876 = vld [vmem:[%s8851 + $0x60] sm:$0xf]
        %v8877 = vld [vmem:[%s8851 + $0x64] sm:$0xf]
        %v8878 = vld [vmem:[%s8851 + $0x68] sm:$0xf]
        %v8879 = vld [vmem:[%s8851 + $0x6c] sm:$0xf]
        %v8880 = vld [vmem:[%s8851 + $0x70] sm:$0xf]
        %v8881 = vld [vmem:[%s8851 + $0x74] sm:$0xf]
        %v8882 = vld [vmem:[%s8851 + $0x78] sm:$0xf]
        %v8883 = vld [vmem:[%s8851 + $0x7c] sm:$0xf]
        %v8884 = vld [vmem:[%s8851 + $0x80] sm:$0xf]
        %v8885 = vld [vmem:[%s8851 + $0x84] sm:$0xf]
        %v8886 = vld [vmem:[%s8851 + $0x88] sm:$0xf]
        %v8887 = vld [vmem:[%s8851 + $0x8c] sm:$0xf]
        %v8888 = vld [vmem:[%s8851 + $0x90] sm:$0xf]
        %v8889 = vld [vmem:[%s8851 + $0x94] sm:$0xf]
        %v8890 = vld [vmem:[%s8851 + $0x98] sm:$0xf]
        %v8891 = vld [vmem:[%s8851 + $0x9c] sm:$0xf]
        %v8892 = vld [vmem:[%s8851 + $0xa0] sm:$0xf]
        %v8893 = vld [vmem:[%s8851 + $0xa4] sm:$0xf]
        %v8894 = vld [vmem:[%s8851 + $0xa8] sm:$0xf]
        %v8895 = vld [vmem:[%s8851 + $0xac] sm:$0xf]
        %v8896 = vrot.slane %v6185, 5
        %v8897 = vrot.slane %v6186, 5
        %v8898 = vrot.slane %v6187, 5
        %v8945 = vunpack.c.l.b16 %v8852
        %v8946 = vunpack.c.l.b16 %v8853
        %v8947 = vunpack.c.l.b16 %v8854
        %v8948 = vunpack.c.l.b16 %v8855
        %v8949 = vunpack.c.l.b16 %v8856
        %v8950 = vunpack.c.l.b16 %v8857
        %v8951 = vunpack.c.l.b16 %v8858
        %v8952 = vunpack.c.l.b16 %v8859
        %v8953 = vunpack.c.l.b16 %v8860
        %v8954 = vunpack.c.l.b16 %v8861
        %v8955 = vunpack.c.l.b16 %v8862
        %v8956 = vunpack.c.l.b16 %v8863
        %v8957 = vunpack.c.l.b16 %v8864
        %v8958 = vunpack.c.l.b16 %v8865
        %v8959 = vunpack.c.l.b16 %v8866
        %v8960 = vunpack.c.l.b16 %v8867
        %v8961 = vunpack.c.l.b16 %v8868
        %v8962 = vunpack.c.l.b16 %v8869
        %v8963 = vunpack.c.l.b16 %v8870
        %v8964 = vunpack.c.l.b16 %v8871
        %v8965 = vunpack.c.l.b16 %v8872
        %v8966 = vunpack.c.l.b16 %v8873
        %v8967 = vunpack.c.l.b16 %v8874
        %v8968 = vunpack.c.l.b16 %v8875
        %v8969 = vunpack.c.l.b16 %v8876
        %v8970 = vunpack.c.l.b16 %v8877
        %v8971 = vunpack.c.l.b16 %v8878
        %v8972 = vunpack.c.l.b16 %v8879
        %v8973 = vunpack.c.l.b16 %v8880
        %v8974 = vunpack.c.l.b16 %v8881
        %v8975 = vunpack.c.l.b16 %v8882
        %v8976 = vunpack.c.l.b16 %v8883
        %v8977 = vunpack.c.l.b16 %v8884
        %v8978 = vunpack.c.l.b16 %v8885
        %v8979 = vunpack.c.l.b16 %v8886
        %v8980 = vunpack.c.l.b16 %v8887
        %v8981 = vunpack.c.l.b16 %v8888
        %v8982 = vunpack.c.l.b16 %v8889
        %v8983 = vunpack.c.l.b16 %v8890
        %v8984 = vunpack.c.l.b16 %v8891
        %v8985 = vunpack.c.l.b16 %v8892
        %v8986 = vunpack.c.l.b16 %v8893
        %v8987 = vunpack.c.l.b16 %v8894
        %v8988 = vunpack.c.l.b16 %v8895
        %v8989 = vpack.c.b16 %v8946, %v8945
        %v8990 = vpack.c.b16 %v8948, %v8947
        %v8991 = vpack.c.b16 %v8950, %v8949
        %v8992 = vpack.c.b16 %v8952, %v8951
        %v8993 = vpack.c.b16 %v8954, %v8953
        %v8994 = vpack.c.b16 %v8956, %v8955
        %v8995 = vpack.c.b16 %v8958, %v8957
        %v8996 = vpack.c.b16 %v8960, %v8959
        %v8997 = vpack.c.b16 %v8962, %v8961
        %v8998 = vpack.c.b16 %v8964, %v8963
        %v8999 = vpack.c.b16 %v8966, %v8965
        %v9000 = vpack.c.b16 %v8968, %v8967
        %v9001 = vpack.c.b16 %v8970, %v8969
        %v9002 = vpack.c.b16 %v8972, %v8971
        %v9003 = vpack.c.b16 %v8974, %v8973
        %v9004 = vpack.c.b16 %v8976, %v8975
        %v9005 = vpack.c.b16 %v8978, %v8977
        %v9006 = vpack.c.b16 %v8980, %v8979
        %v9007 = vpack.c.b16 %v8982, %v8981
        %v9008 = vpack.c.b16 %v8984, %v8983
        %v9009 = vpack.c.b16 %v8986, %v8985
        %v9010 = vpack.c.b16 %v8988, %v8987
        %v9034 = vsel %vm450, %v8898, 0
        %9036 = vmatprep.subr.bf16.mxu0 0
        %9037 = vmatpush1.bf16.msra.mxu0 %v8989
        %9038 = vmatprep.subr.bf16.mxu0 0
        %9039 = vmatpush1.bf16.msra.mxu0 %v8990
        %9040 = vmatprep.subr.bf16.mxu0 0
        %9041 = vmatpush1.bf16.msra.mxu0 %v8991
        %9042 = vmatprep.subr.bf16.mxu0 0
        %9043 = vmatpush1.bf16.msra.mxu0 %v8992
        %9044 = vmatprep.subr.bf16.mxu0 0
        %9045 = vmatpush1.bf16.msra.mxu0 %v8993
        %9046 = vmatprep.subr.bf16.mxu0 0
        %9047 = vmatpush1.bf16.msra.mxu0 %v8994
        %9048 = vmatprep.subr.bf16.mxu0 0
        %9049 = vmatpush1.bf16.msra.mxu0 %v8995
        %9050 = vmatprep.subr.bf16.mxu0 0
        %9051 = vmatpush1.bf16.msra.mxu0 %v8996
        %9052 = vmatprep.subr.bf16.mxu0 0
        %9053 = vmatpush1.bf16.msra.mxu0 %v8997
        %9054 = vmatprep.subr.bf16.mxu0 0
        %9055 = vmatpush1.bf16.msra.mxu0 %v8998
        %9056 = vmatprep.subr.bf16.mxu0 0
        %9057 = vmatpush1.bf16.msra.mxu0 %v8999
        %9058 = vmatprep.subr.bf16.mxu0 0
        %9059 = vmatpush1.bf16.msra.mxu0 %v9000
        %9060 = vmatprep.subr.bf16.mxu0 0
        %9061 = vmatpush1.bf16.msra.mxu0 %v9001
        %9062 = vmatprep.subr.bf16.mxu0 0
        %9063 = vmatpush1.bf16.msra.mxu0 %v9002
        %9064 = vmatprep.subr.bf16.mxu0 0
        %9065 = vmatpush1.bf16.msra.mxu0 %v9003
        %9066 = vmatprep.subr.bf16.mxu0 0
        %9067 = vmatpush1.bf16.msra.mxu0 %v9004
        %9068 = vmatprep.mubr.bf16.mxu0 %v8897
        %9069 = vmatmul.mubr.bf16.gmra.mrb[0].mxu0 %v8896
        %v9070 = vpop.f32.mrb[0].mxu0
        %v9071 = vadd.f32 0.0, %v9070
        %v9072 = vpop.f32.mrb[0].mxu0
        %v9073 = vpop.f32.mrb[0].mxu0
        %v9074 = vpop.f32.mrb[0].mxu0
        %9075 = vdwg.mxu0
        %9076 = vmatprep.subr.bf16.mxu0 0
        %9077 = vmatpush1.bf16.msra.mxu0 %v9005
        %9078 = vmatprep.subr.bf16.mxu0 0
        %9079 = vmatpush1.bf16.msra.mxu0 %v9006
        %9080 = vmatprep.subr.bf16.mxu0 0
        %9081 = vmatpush1.bf16.msra.mxu0 %v9007
        %9082 = vmatprep.subr.bf16.mxu0 0
        %9083 = vmatpush1.bf16.msra.mxu0 %v9008
        %9084 = vmatprep.subr.bf16.mxu0 0
        %9085 = vmatpush1.bf16.msra.mxu0 %v9009
        %9086 = vmatprep.subr.bf16.mxu0 0
        %9087 = vmatpush1.bf16.msra.mxu0 %v9010
        %9088 = vmatprep.subr.bf16.mxu0 0
        %9089 = vmatpush1.bf16.msra.mxu0 0
        %9090 = vmatprep.subr.bf16.mxu0 0
        %9091 = vmatpush1.bf16.msra.mxu0 0
        %9092 = vmatprep.subr.bf16.mxu0 0
        %9093 = vmatpush1.bf16.msra.mxu0 0
        %9094 = vmatprep.subr.bf16.mxu0 0
        %9095 = vmatpush1.bf16.msra.mxu0 0
        %9096 = vmatprep.subr.bf16.mxu0 0
        %9097 = vmatpush1.bf16.msra.mxu0 0
        %9098 = vmatprep.subr.bf16.mxu0 0
        %9099 = vmatpush1.bf16.msra.mxu0 0
        %9100 = vmatprep.subr.bf16.mxu0 0
        %9101 = vmatpush1.bf16.msra.mxu0 0
        %9102 = vmatprep.subr.bf16.mxu0 0
        %9103 = vmatpush1.bf16.msra.mxu0 0
        %9104 = vmatprep.subr.bf16.mxu0 0
        %9105 = vmatpush1.bf16.msra.mxu0 0
        %9106 = vmatprep.subr.bf16.mxu0 0
        %9107 = vmatpush1.bf16.msra.mxu0 0
        %9108 = vmatprep.mubr.bf16.mxu0 0
        %9109 = vmatmul.mubr.bf16.gmra.mrb[0].mxu0 %v9034
        %v9110 = vpop.f32.mrb[0].mxu0
        %v9111 = vadd.f32 %v9071, %v9110
        %v9112 = vpop.f32.mrb[0].mxu0
        %v9113 = vpop.f32.mrb[0].mxu0
        %v9114 = vpop.f32.mrb[0].mxu0
        %9115 = vdwg.mxu0
        %v9116 = vadd.f32 %v8850, %v9111
        %v9117 = vld [vmem:[%s9] sm:$0xff]
        %v9118 = vld [vmem:[%s9 + $0x8] sm:$0xff]
        %v9119 = vld [vmem:[%s9 + $0x10] sm:$0xff]
        %v9120 = vld [vmem:[%s9 + $0x18] sm:$0xff]
        %v9121 = vld [vmem:[%s9 + $0x20] sm:$0xff]
        %v9122 = vld [vmem:[%s9 + $0x28] sm:$0xff]
        %v9123 = vld [vmem:[%s9 + $0x30] sm:$0xff]
        %v9124 = vld [vmem:[%s9 + $0x38] sm:$0xff]
        %v9125 = vld [vmem:[%s9 + $0x40] sm:$0xff]
        %v9126 = vld [vmem:[%s9 + $0x48] sm:$0xff]
        %v9127 = vld [vmem:[%s9 + $0x50] sm:$0xff]
        %v9128 = vld [vmem:[%s9 + $0x58] sm:$0xff]
        %v9129 = vld [vmem:[%s9 + $0x60] sm:$0xff]
        %v9130 = vld [vmem:[%s9 + $0x68] sm:$0xff]
        %v9131 = vld [vmem:[%s9 + $0x70] sm:$0xff]
        %v9132 = vld [vmem:[%s9 + $0x78] sm:$0xff]
        %v9133 = vld [vmem:[%s10] sm:$0x1]
        %9134 = vmatprep.subr.mxu0 0.0
        %9135 = vmatpush1.msra.mxu0 %v9117
        %9136 = vmatprep.subr.mxu0 0.0
        %9137 = vmatpush1.msra.mxu0 %v9118
        %9138 = vmatprep.subr.mxu0 0.0
        %9139 = vmatpush1.msra.mxu0 %v9119
        %9140 = vmatprep.subr.mxu0 0.0
        %9141 = vmatpush1.msra.mxu0 %v9120
        %9142 = vmatprep.subr.mxu0 0.0
        %9143 = vmatpush1.msra.mxu0 %v9121
        %9144 = vmatprep.subr.mxu0 0.0
        %9145 = vmatpush1.msra.mxu0 %v9122
        %9146 = vmatprep.subr.mxu0 0.0
        %9147 = vmatpush1.msra.mxu0 %v9123
        %9148 = vmatprep.subr.mxu0 0.0
        %9149 = vmatpush1.msra.mxu0 %v9124
        %9150 = vmatprep.subr.mxu0 0.0
        %9151 = vmatpush1.msra.mxu0 %v9125
        %9152 = vmatprep.subr.mxu0 0.0
        %9153 = vmatpush1.msra.mxu0 %v9126
        %9154 = vmatprep.subr.mxu0 0.0
        %9155 = vmatpush1.msra.mxu0 %v9127
        %9156 = vmatprep.subr.mxu0 0.0
        %9157 = vmatpush1.msra.mxu0 %v9128
        %9158 = vmatprep.subr.mxu0 0.0
        %9159 = vmatpush1.msra.mxu0 %v9129
        %9160 = vmatprep.subr.mxu0 0.0
        %9161 = vmatpush1.msra.mxu0 %v9130
        %9162 = vmatprep.subr.mxu0 0.0
        %9163 = vmatpush1.msra.mxu0 %v9131
        %9164 = vmatprep.subr.mxu0 0.0
        %9165 = vmatpush1.msra.mxu0 %v9132
        %9166 = vmatprep.subr.mxu0 0.0
        %9167 = vmatpush1.msra.mxu0 0.0
        %9168 = vmatprep.subr.mxu0 0.0
        %9169 = vmatpush1.msra.mxu0 0.0
        %9170 = vmatprep.subr.mxu0 0.0
        %9171 = vmatpush1.msra.mxu0 0.0
        %9172 = vmatprep.subr.mxu0 0.0
        %9173 = vmatpush1.msra.mxu0 0.0
        %9174 = vmatprep.subr.mxu0 0.0
        %9175 = vmatpush1.msra.mxu0 0.0
        %9176 = vmatprep.subr.mxu0 0.0
        %9177 = vmatpush1.msra.mxu0 0.0
        %9178 = vmatprep.subr.mxu0 0.0
        %9179 = vmatpush1.msra.mxu0 0.0
        %9180 = vmatprep.subr.mxu0 0.0
        %9181 = vmatpush1.msra.mxu0 0.0
        %9182 = vmatprep.subr.mxu0 0.0
        %9183 = vmatpush1.msra.mxu0 0.0
        %9184 = vmatprep.subr.mxu0 0.0
        %9185 = vmatpush1.msra.mxu0 0.0
        %9186 = vmatprep.subr.mxu0 0.0
        %9187 = vmatpush1.msra.mxu0 0.0
        %9188 = vmatprep.subr.mxu0 0.0
        %9189 = vmatpush1.msra.mxu0 0.0
        %9190 = vmatprep.subr.mxu0 0.0
        %9191 = vmatpush1.msra.mxu0 0.0
        %9192 = vmatprep.subr.mxu0 0.0
        %9193 = vmatpush1.msra.mxu0 0.0
        %9194 = vmatprep.subr.mxu0 0.0
        %9195 = vmatpush1.msra.mxu0 0.0
        %9196 = vmatprep.subr.mxu0 0.0
        %9197 = vmatpush1.msra.mxu0 0.0
        %9198 = vmatprep.mubr.f32.mxu0 0.0
        %9199 = vmatmul.mubr.f32.gmra.mrb[0].mxu0 %v9116
        %v9200 = vpop.f32.mrb[0].mxu0
        %v9201 = vadd.f32 %v9133, %v9200
        %v9202 = vpop.f32.mrb[0].mxu0
        %9203 = vdwg.mxu0
        %vm9204 = vcmask 49152
        %9205 = vst.msk [vmem:[%s378] sm:$0x1] %vm9204, %v9201
        %s9206 = sand.u32 %s269, 1
        %s9207 = scalar_lea.sflag [#allocation3], %s9206
        %s9208 = sand.u32 %s269, 1
        %s9209 = scalar_lea.vmem [#allocation2], %s9208
        // Predicated region
        $region65: #{forward.1} parent=63 // pred_check
          %p9210 = pneg %p279
        $region66: #{forward.1} parent=63 // pred_check_branch
          %9212 = sbr.rel (%p9210) target = $region68
        $region67: #{forward.1} parent=63 // pred_region
          %s9214 = ssub.s32 16, 16
          %9215 = vsyncadd %s9207, %s9214
          %s9216 = smul.addr %s25, 16
          %s9217 = scalar_lea.hbm %s11, %s9216
          %s9219 = sshll.u32 %s9209, 4
          %s9220 = int_to_ptr.vmem [resolvable:$true] %s9219
          %9222 = dma.vmem_to_hbm [thread:$0]  %s9220, 16, %s9217, %s9207
        $region68: #{forward.1} parent=63 // pred_fallthru
          _
      $region64: #{forward.1} parent=5 // pred_fallthru
        _
      %p9223 = scmp.le.s32.totalorder 2, %s20
      // Predicated region
      $region69: #{forward.1} parent=5 // pred_check
        %p9224 = pneg %p9223
      $region70: #{forward.1} parent=5 // pred_check_branch
        %9226 = sbr.rel (%p9224) target = $region72
      $region71: #{forward.1} parent=5 // pred_region
        %s9227 = ssub.s32 %s20, 2
        // Predicated region
        $region73: #{forward.1} parent=71 // pred_check
          %p9228 = pneg %p285
        $region74: #{forward.1} parent=71 // pred_check_branch
          %9230 = sbr.rel (%p9228) target = $region76
        $region75: #{forward.1} parent=71 // pred_region
          %s9231 = sand.u32 %s270, 1
          %s9232 = scalar_lea.sflag [#allocation3], %s9231
          %s9233 = sand.u32 %s270, 1
          %s9234 = scalar_lea.vmem [#allocation2], %s9233
          %9235 = dma.done %s9232, 16
        $region76: #{forward.1} parent=71 // pred_fallthru
          _
      $region72: #{forward.1} parent=5 // pred_fallthru
        _
    $region6: #{forward.1} parent=1 // loop_footer
      %s24 = sadd.s32 1, %s20
    $region7: #{forward.1} parent=1 // loop_footer_branch
      %19 = sbr.rel target = $region3
    $region8: #{forward.1} parent=1 // loop_exit
      _
    %9236 = vsyncpa [#allocation3], 1
    %s9237 = scalar_lea.sflag [#allocation3], 1
    %9238 = vsyncpa %s9237, 1

</llo_original>
